<compile_context>
chip_gen: v7x
topology: tpu7x:2x2x1
jax: 0.10.0
libtpu: 0.0.40
codegen_flags: <defaults>
</compile_context>

<pallas_src>
import functools

import jax
import jax.numpy as jnp
from jax import lax
from jax.experimental import pallas as pl
from jax.experimental.pallas import tpu as pltpu

KH = KW = 3  # conv kernel (stride 1, padding 1)


# -------------------- fused Pallas kernel --------------------

def _fused_dqn_kernel(strips_ref, toep_ref, bc_ref, w1_ref, b1_ref, w2_ref,
                      b2_ref, o_ref, acc_ref, *, n_rows):
    """Grid = (batch blocks,) ["parallel"]. Everything below is VMEM-resident.

    strips_ref : (H, BB, Kc_pad) bf16  padded-input rows h..h+2 per conv row
    toep_ref   : (Kc_pad, WC_pad) bf16 banded conv weights
    bc_ref     : (1, WC_pad) f32       conv bias tiled over w (0 in pad lanes)
    w1_ref     : (H, WC_pad, HID) bf16 fc1 rows, permuted to (h,w,c) order
    b1_ref     : (1, HID) f32
    w2_ref     : (HID, OUT_P) bf16     fc2 weights, zero-padded to 128 lanes
    b2_ref     : (1, OUT_P) f32
    o_ref      : (BB, OUT_P) f32       final fc2 output (lane-dense)
    acc_ref    : (BB, HID) f32         fc1 accumulator (VMEM scratch)
    """
    acc_ref[...] = jnp.zeros_like(acc_ref)

    # Statically-unrolled loop over conv output rows: each row is one MXU
    # matmul against the banded weights, immediately contracted into fc1.
    for h in range(n_rows):
        conv_row = jnp.dot(strips_ref[h], toep_ref[...],
                           preferred_element_type=jnp.float32)   # (BB, WC_pad)
        conv_row = jnp.maximum(conv_row + bc_ref[...], 0.0)
        acc_ref[...] += jnp.dot(conv_row.astype(jnp.bfloat16), w1_ref[h],
                                preferred_element_type=jnp.float32)  # (BB, HID)

    h1 = jnp.maximum(acc_ref[...] + b1_ref[...], 0.0).astype(jnp.bfloat16)
    o_ref[...] = jnp.dot(h1, w2_ref[...],
                         preferred_element_type=jnp.float32) + b2_ref[...]


# -------------------- one-time weight prep (outside jit) --------------------

def _round_up(x, m):
    return ((x + m - 1) // m) * m


def prep_dqn_params(params, *, height=11, width=11, wdtype=jnp.bfloat16):
    """Layout plumbing done ONCE on the weights (never per forward call)."""
    w_conv, b_conv, w1, b1, w2, b2 = params
    cout, cin, kh, kw = w_conv.shape
    feat, hid = w1.shape
    out = w2.shape[1]
    assert feat == cout * height * width

    kc = kh * (width + 2) * cin
    kc_pad = _round_up(kc, 8)
    wc = width * cout
    wc_pad = _round_up(wc, 128)
    out_pad = _round_up(out, 128)

    # (a) conv weights as a banded matrix: toep[(dy,wp,ci),(w,c)] = w_conv[c,ci,dy,wp-w]
    wt = jnp.transpose(w_conv, (2, 3, 1, 0))                     # (dy, dx, ci, c)
    bands = []
    for w in range(width):
        band = jnp.zeros((kh, width + 2, cin, cout), w_conv.dtype)
        band = band.at[:, w:w + kw].set(wt)
        bands.append(band)
    toep = jnp.stack(bands, axis=3).reshape(kc, wc)
    toep = jnp.pad(toep, ((0, kc_pad - kc), (0, wc_pad - wc))).astype(wdtype)
    bc = jnp.pad(jnp.tile(b_conv, width), (0, wc_pad - wc))
    bc = bc.reshape(1, wc_pad).astype(jnp.float32)

    # (b) fc1 rows permuted from torch (c,h,w) flatten order to (h,(w,c)) so the
    #     conv matmul output feeds fc1 with no activation transpose.
    w1p = (w1.reshape(cout, height, width, hid)
             .transpose(1, 2, 0, 3)
             .reshape(height, wc, hid))
    w1p = jnp.pad(w1p, ((0, 0), (0, wc_pad - wc), (0, 0))).astype(wdtype)
    b1r = b1.reshape(1, hid).astype(jnp.float32)

    # (c) fc2 padded to a lane-dense (128) output; b2 folded into the kernel.
    w2p = jnp.pad(w2, ((0, 0), (0, out_pad - out))).astype(wdtype)
    b2p = jnp.pad(b2, (0, out_pad - out)).reshape(1, out_pad).astype(jnp.float32)

    return (toep, bc, w1p, b1r, w2p, b2p)


# -------------------- jitted forward --------------------

@functools.partial(jax.jit, static_argnames=("out_features",))
def dqn_forward(x_nchw, prepped, *, out_features):
    """Pallas implementation of DQN.forward. x_nchw: (B, Cin, 11, 11) f32."""
    toep, bc, w1p, b1r, w2p, b2p = prepped
    B, Cin, H, W = x_nchw.shape
    Kc = KH * (W + 2) * Cin
    Kc_pad, WC_pad = toep.shape
    Hw, WC_pad2, HID = w1p.shape
    HID2, OUT_P = w2p.shape
    assert Hw == H and WC_pad2 == WC_pad and HID2 == HID

    # activation-side prep (tiny, depends on x): per-output-row strips of the
    # padded NHWC input, lane-padded to Kc_pad and cast to bf16.
    x = jnp.transpose(x_nchw, (0, 2, 3, 1))                      # (B, H, W, Cin)
    x_pad = jnp.pad(x, ((0, 0), (1, 1), (1, 1), (0, 0)))         # (B, H+2, W+2, Cin)
    strips = jnp.stack(
        [x_pad[:, h:h + KH].reshape(B, Kc) for h in range(H)], axis=0)  # (H, B, Kc)
    strips = jnp.pad(strips, ((0, 0), (0, 0), (0, Kc_pad - Kc))).astype(jnp.bfloat16)

    bb = 8 if B % 8 == 0 else B        # 2-way batch split for v7x's two TCs
    nb = B // bb

    out = pl.pallas_call(
        functools.partial(_fused_dqn_kernel, n_rows=H),
        out_shape=jax.ShapeDtypeStruct((B, OUT_P), jnp.float32),
        grid=(nb,),
        in_specs=[
            pl.BlockSpec((H, bb, Kc_pad),  lambda i: (0, i, 0)),   # strips (per batch blk)
            pl.BlockSpec((Kc_pad, WC_pad), lambda i: (0, 0)),      # toep  (constant)
            pl.BlockSpec((1, WC_pad),      lambda i: (0, 0)),      # conv bias
            pl.BlockSpec((H, WC_pad, HID), lambda i: (0, 0, 0)),   # fc1 weights
            pl.BlockSpec((1, HID),         lambda i: (0, 0)),      # fc1 bias
            pl.BlockSpec((HID, OUT_P),     lambda i: (0, 0)),      # fc2 weights
            pl.BlockSpec((1, OUT_P),       lambda i: (0, 0)),      # fc2 bias
        ],
        out_specs=pl.BlockSpec((bb, OUT_P), lambda i: (i, 0)),
        scratch_shapes=[pltpu.VMEM((bb, HID), jnp.float32)],
        compiler_params=pltpu.CompilerParams(
            dimension_semantics=("parallel",)),
    )(strips, toep, bc, w1p, b1r, w2p, b2p)

    return out[:, :out_features]


# -------------------- pure-JAX reference --------------------

def dqn_reference(x_nchw, params):
    w_conv, b_conv, w1, b1, w2, b2 = params
    conv = lax.conv_general_dilated(
        x_nchw, w_conv, window_strides=(1, 1), padding=[(1, 1), (1, 1)],
        dimension_numbers=("NCHW", "OIHW", "NCHW"))
    conv = jax.nn.relu(conv + b_conv[None, :, None, None])
    feat = conv.reshape(x_nchw.shape[0], -1)
    h = jax.nn.relu(feat @ w1 + b1)
    return h @ w2 + b2


# -------------------- main --------------------

if __name__ == "__main__":
    # fc1 expects 11*11*32 flat features; batch=16 (2 blocks of 8 sublanes).
    B, Cin, H, W = 16, 4, 11, 11
    Cout, HID, OUT = 32, 256, 8

    key = jax.random.PRNGKey(0)
    k = jax.random.split(key, 7)
    w_conv = jax.random.normal(k[0], (Cout, Cin, 3, 3), jnp.float32) * 0.1
    b_conv = jax.random.normal(k[1], (Cout,), jnp.float32) * 0.1
    w1 = jax.random.normal(k[2], (Cout * H * W, HID), jnp.float32) * 0.02
    b1 = jax.random.normal(k[3], (HID,), jnp.float32) * 0.1
    w2 = jax.random.normal(k[4], (HID, OUT), jnp.float32) * 0.05
    b2 = jax.random.normal(k[5], (OUT,), jnp.float32) * 0.1
    x = jax.random.normal(k[6], (B, Cin, H, W), jnp.float32)

    params = (w_conv, b_conv, w1, b1, w2, b2)
    prepped = jax.tree_util.tree_map(jax.block_until_ready,
                                     prep_dqn_params(params, height=H, width=W))

    out = jax.block_until_ready(dqn_forward(x, prepped, out_features=OUT))
    ref = jax.block_until_ready(dqn_reference(x, params))

    assert out.shape == (B, OUT), out.shape
    err = float(jnp.max(jnp.abs(out - ref)))
    # bf16 weights/activations with f32 accumulation -> loosened tolerance.
    assert jnp.allclose(out, ref, atol=5e-2, rtol=5e-2), ("mismatch", err)
    print("KERNEL_OK")
</pallas_src>

<mosaic_0001>
module attributes {stable_mosaic.version = 11 : i64} {
  func.func @_fused_dqn_kernel(%arg0: i32, %arg1: memref<11x8x160xbf16, #tpu.memory_space<vmem>>, %arg2: memref<160x384xbf16, #tpu.memory_space<vmem>>, %arg3: memref<1x384xf32, #tpu.memory_space<vmem>>, %arg4: memref<11x384x256xbf16, #tpu.memory_space<vmem>>, %arg5: memref<1x256xf32, #tpu.memory_space<vmem>>, %arg6: memref<256x128xbf16, #tpu.memory_space<vmem>>, %arg7: memref<1x128xf32, #tpu.memory_space<vmem>>, %arg8: memref<8x128xf32, #tpu.memory_space<vmem>>, %arg9: memref<8x256xf32, #tpu.memory_space<vmem>>) attributes {dimension_semantics = [#tpu.dimension_semantics<parallel>], iteration_bounds = array<i64: 2>, scalar_prefetch = 0 : i64, scratch_operands = 1 : i64, tpu.core_type = #tpu.core_type<tc>, window_params = [{transform_indices = @transform_0, window_bounds = array<i64: 11, 8, 160>}, {pipeline_mode = #tpu.pipeline_mode<synchronous>, transform_indices = @transform_1, window_bounds = array<i64: 160, 384>}, {pipeline_mode = #tpu.pipeline_mode<synchronous>, transform_indices = @transform_2, window_bounds = array<i64: 1, 384>}, {pipeline_mode = #tpu.pipeline_mode<synchronous>, transform_indices = @transform_3, window_bounds = array<i64: 11, 384, 256>}, {pipeline_mode = #tpu.pipeline_mode<synchronous>, transform_indices = @transform_4, window_bounds = array<i64: 1, 256>}, {pipeline_mode = #tpu.pipeline_mode<synchronous>, transform_indices = @transform_5, window_bounds = array<i64: 256, 128>}, {pipeline_mode = #tpu.pipeline_mode<synchronous>, transform_indices = @transform_6, window_bounds = array<i64: 1, 128>}, {transform_indices = @transform_7, window_bounds = array<i64: 8, 128>}]} {
    %cst = arith.constant 0.000000e+00 : f32
    %0 = vector.broadcast %cst : f32 to vector<8x256xf32>
    %c0 = arith.constant 0 : index
    %c0_0 = arith.constant 0 : index
    %1 = vector.load %arg9[%c0, %c0_0] : memref<8x256xf32, #tpu.memory_space<vmem>>, vector<8x256xf32>
    tpu.vector_store %arg9[%c0, %c0_0], %0 {strides = array<i32>} : memref<8x256xf32, #tpu.memory_space<vmem>>, vector<8x256xf32>,
    %c0_1 = arith.constant 0 : index
    %c0_2 = arith.constant 0 : index
    %c0_3 = arith.constant 0 : index
    %2 = vector.load %arg1[%c0_1, %c0_2, %c0_3] : memref<11x8x160xbf16, #tpu.memory_space<vmem>>, vector<1x8x160xbf16>
    %3 = vector.shape_cast %2 : vector<1x8x160xbf16> to vector<8x160xbf16>
    %c0_4 = arith.constant 0 : index
    %c0_5 = arith.constant 0 : index
    %4 = vector.load %arg2[%c0_4, %c0_5] : memref<160x384xbf16, #tpu.memory_space<vmem>>, vector<160x384xbf16>
    %cst_6 = arith.constant dense<0.000000e+00> : vector<8x384xf32>
    %5 = tpu.matmul %3, %4, %cst_6 {dimension_numbers = #tpu.dot_dimension_numbers<[1], [0], [0], [1], [0, 0, 1, 1], [], []>} : vector<8x160xbf16>, vector<160x384xbf16>, vector<8x384xf32> -> vector<8x384xf32>
    %c0_7 = arith.constant 0 : index
    %c0_8 = arith.constant 0 : index
    %6 = vector.load %arg3[%c0_7, %c0_8] : memref<1x384xf32, #tpu.memory_space<vmem>>, vector<1x384xf32>
    %7 = vector.broadcast %6 : vector<1x384xf32> to vector<8x384xf32>
    %8 = arith.addf %5, %7 : vector<8x384xf32>
    %cst_9 = arith.constant 0.000000e+00 : f32
    %9 = vector.broadcast %cst_9 : f32 to vector<8x384xf32>
    %10 = arith.maximumf %8, %9 : vector<8x384xf32>
    %c0_10 = arith.constant 0 : index
    %c0_11 = arith.constant 0 : index
    %11 = vector.load %arg9[%c0_10, %c0_11] : memref<8x256xf32, #tpu.memory_space<vmem>>, vector<8x256xf32>
    %12 = arith.truncf %10 : vector<8x384xf32> to vector<8x384xbf16>
    %c0_12 = arith.constant 0 : index
    %c0_13 = arith.constant 0 : index
    %c0_14 = arith.constant 0 : index
    %13 = vector.load %arg4[%c0_12, %c0_13, %c0_14] : memref<11x384x256xbf16, #tpu.memory_space<vmem>>, vector<1x384x256xbf16>
    %14 = vector.shape_cast %13 : vector<1x384x256xbf16> to vector<384x256xbf16>
    %cst_15 = arith.constant dense<0.000000e+00> : vector<8x256xf32>
    %15 = tpu.matmul %12, %14, %cst_15 {dimension_numbers = #tpu.dot_dimension_numbers<[1], [0], [0], [1], [0, 0, 1, 1], [], []>} : vector<8x384xbf16>, vector<384x256xbf16>, vector<8x256xf32> -> vector<8x256xf32>
    %16 = arith.addf %11, %15 : vector<8x256xf32>
    %c0_16 = arith.constant 0 : index
    %c0_17 = arith.constant 0 : index
    %17 = vector.load %arg9[%c0_16, %c0_17] : memref<8x256xf32, #tpu.memory_space<vmem>>, vector<8x256xf32>
    tpu.vector_store %arg9[%c0_16, %c0_17], %16 {strides = array<i32>} : memref<8x256xf32, #tpu.memory_space<vmem>>, vector<8x256xf32>,
    %c1 = arith.constant 1 : index
    %c0_18 = arith.constant 0 : index
    %c0_19 = arith.constant 0 : index
    %18 = vector.load %arg1[%c1, %c0_18, %c0_19] : memref<11x8x160xbf16, #tpu.memory_space<vmem>>, vector<1x8x160xbf16>
    %19 = vector.shape_cast %18 : vector<1x8x160xbf16> to vector<8x160xbf16>
    %c0_20 = arith.constant 0 : index
    %c0_21 = arith.constant 0 : index
    %20 = vector.load %arg2[%c0_20, %c0_21] : memref<160x384xbf16, #tpu.memory_space<vmem>>, vector<160x384xbf16>
    %cst_22 = arith.constant dense<0.000000e+00> : vector<8x384xf32>
    %21 = tpu.matmul %19, %20, %cst_22 {dimension_numbers = #tpu.dot_dimension_numbers<[1], [0], [0], [1], [0, 0, 1, 1], [], []>} : vector<8x160xbf16>, vector<160x384xbf16>, vector<8x384xf32> -> vector<8x384xf32>
    %c0_23 = arith.constant 0 : index
    %c0_24 = arith.constant 0 : index
    %22 = vector.load %arg3[%c0_23, %c0_24] : memref<1x384xf32, #tpu.memory_space<vmem>>, vector<1x384xf32>
    %23 = vector.broadcast %22 : vector<1x384xf32> to vector<8x384xf32>
    %24 = arith.addf %21, %23 : vector<8x384xf32>
    %cst_25 = arith.constant 0.000000e+00 : f32
    %25 = vector.broadcast %cst_25 : f32 to vector<8x384xf32>
    %26 = arith.maximumf %24, %25 : vector<8x384xf32>
    %c0_26 = arith.constant 0 : index
    %c0_27 = arith.constant 0 : index
    %27 = vector.load %arg9[%c0_26, %c0_27] : memref<8x256xf32, #tpu.memory_space<vmem>>, vector<8x256xf32>
    %28 = arith.truncf %26 : vector<8x384xf32> to vector<8x384xbf16>
    %c1_28 = arith.constant 1 : index
    %c0_29 = arith.constant 0 : index
    %c0_30 = arith.constant 0 : index
    %29 = vector.load %arg4[%c1_28, %c0_29, %c0_30] : memref<11x384x256xbf16, #tpu.memory_space<vmem>>, vector<1x384x256xbf16>
    %30 = vector.shape_cast %29 : vector<1x384x256xbf16> to vector<384x256xbf16>
    %cst_31 = arith.constant dense<0.000000e+00> : vector<8x256xf32>
    %31 = tpu.matmul %28, %30, %cst_31 {dimension_numbers = #tpu.dot_dimension_numbers<[1], [0], [0], [1], [0, 0, 1, 1], [], []>} : vector<8x384xbf16>, vector<384x256xbf16>, vector<8x256xf32> -> vector<8x256xf32>
    %32 = arith.addf %27, %31 : vector<8x256xf32>
    %c0_32 = arith.constant 0 : index
    %c0_33 = arith.constant 0 : index
    %33 = vector.load %arg9[%c0_32, %c0_33] : memref<8x256xf32, #tpu.memory_space<vmem>>, vector<8x256xf32>
    tpu.vector_store %arg9[%c0_32, %c0_33], %32 {strides = array<i32>} : memref<8x256xf32, #tpu.memory_space<vmem>>, vector<8x256xf32>,
    %c2 = arith.constant 2 : index
    %c0_34 = arith.constant 0 : index
    %c0_35 = arith.constant 0 : index
    %34 = vector.load %arg1[%c2, %c0_34, %c0_35] : memref<11x8x160xbf16, #tpu.memory_space<vmem>>, vector<1x8x160xbf16>
    %35 = vector.shape_cast %34 : vector<1x8x160xbf16> to vector<8x160xbf16>
    %c0_36 = arith.constant 0 : index
    %c0_37 = arith.constant 0 : index
    %36 = vector.load %arg2[%c0_36, %c0_37] : memref<160x384xbf16, #tpu.memory_space<vmem>>, vector<160x384xbf16>
    %cst_38 = arith.constant dense<0.000000e+00> : vector<8x384xf32>
    %37 = tpu.matmul %35, %36, %cst_38 {dimension_numbers = #tpu.dot_dimension_numbers<[1], [0], [0], [1], [0, 0, 1, 1], [], []>} : vector<8x160xbf16>, vector<160x384xbf16>, vector<8x384xf32> -> vector<8x384xf32>
    %c0_39 = arith.constant 0 : index
    %c0_40 = arith.constant 0 : index
    %38 = vector.load %arg3[%c0_39, %c0_40] : memref<1x384xf32, #tpu.memory_space<vmem>>, vector<1x384xf32>
    %39 = vector.broadcast %38 : vector<1x384xf32> to vector<8x384xf32>
    %40 = arith.addf %37, %39 : vector<8x384xf32>
    %cst_41 = arith.constant 0.000000e+00 : f32
    %41 = vector.broadcast %cst_41 : f32 to vector<8x384xf32>
    %42 = arith.maximumf %40, %41 : vector<8x384xf32>
    %c0_42 = arith.constant 0 : index
    %c0_43 = arith.constant 0 : index
    %43 = vector.load %arg9[%c0_42, %c0_43] : memref<8x256xf32, #tpu.memory_space<vmem>>, vector<8x256xf32>
    %44 = arith.truncf %42 : vector<8x384xf32> to vector<8x384xbf16>
    %c2_44 = arith.constant 2 : index
    %c0_45 = arith.constant 0 : index
    %c0_46 = arith.constant 0 : index
    %45 = vector.load %arg4[%c2_44, %c0_45, %c0_46] : memref<11x384x256xbf16, #tpu.memory_space<vmem>>, vector<1x384x256xbf16>
    %46 = vector.shape_cast %45 : vector<1x384x256xbf16> to vector<384x256xbf16>
    %cst_47 = arith.constant dense<0.000000e+00> : vector<8x256xf32>
    %47 = tpu.matmul %44, %46, %cst_47 {dimension_numbers = #tpu.dot_dimension_numbers<[1], [0], [0], [1], [0, 0, 1, 1], [], []>} : vector<8x384xbf16>, vector<384x256xbf16>, vector<8x256xf32> -> vector<8x256xf32>
    %48 = arith.addf %43, %47 : vector<8x256xf32>
    %c0_48 = arith.constant 0 : index
    %c0_49 = arith.constant 0 : index
    %49 = vector.load %arg9[%c0_48, %c0_49] : memref<8x256xf32, #tpu.memory_space<vmem>>, vector<8x256xf32>
    tpu.vector_store %arg9[%c0_48, %c0_49], %48 {strides = array<i32>} : memref<8x256xf32, #tpu.memory_space<vmem>>, vector<8x256xf32>,
    %c3 = arith.constant 3 : index
    %c0_50 = arith.constant 0 : index
    %c0_51 = arith.constant 0 : index
    %50 = vector.load %arg1[%c3, %c0_50, %c0_51] : memref<11x8x160xbf16, #tpu.memory_space<vmem>>, vector<1x8x160xbf16>
    %51 = vector.shape_cast %50 : vector<1x8x160xbf16> to vector<8x160xbf16>
    %c0_52 = arith.constant 0 : index
    %c0_53 = arith.constant 0 : index
    %52 = vector.load %arg2[%c0_52, %c0_53] : memref<160x384xbf16, #tpu.memory_space<vmem>>, vector<160x384xbf16>
    %cst_54 = arith.constant dense<0.000000e+00> : vector<8x384xf32>
    %53 = tpu.matmul %51, %52, %cst_54 {dimension_numbers = #tpu.dot_dimension_numbers<[1], [0], [0], [1], [0, 0, 1, 1], [], []>} : vector<8x160xbf16>, vector<160x384xbf16>, vector<8x384xf32> -> vector<8x384xf32>
    %c0_55 = arith.constant 0 : index
    %c0_56 = arith.constant 0 : index
    %54 = vector.load %arg3[%c0_55, %c0_56] : memref<1x384xf32, #tpu.memory_space<vmem>>, vector<1x384xf32>
    %55 = vector.broadcast %54 : vector<1x384xf32> to vector<8x384xf32>
    %56 = arith.addf %53, %55 : vector<8x384xf32>
    %cst_57 = arith.constant 0.000000e+00 : f32
    %57 = vector.broadcast %cst_57 : f32 to vector<8x384xf32>
    %58 = arith.maximumf %56, %57 : vector<8x384xf32>
    %c0_58 = arith.constant 0 : index
    %c0_59 = arith.constant 0 : index
    %59 = vector.load %arg9[%c0_58, %c0_59] : memref<8x256xf32, #tpu.memory_space<vmem>>, vector<8x256xf32>
    %60 = arith.truncf %58 : vector<8x384xf32> to vector<8x384xbf16>
    %c3_60 = arith.constant 3 : index
    %c0_61 = arith.constant 0 : index
    %c0_62 = arith.constant 0 : index
    %61 = vector.load %arg4[%c3_60, %c0_61, %c0_62] : memref<11x384x256xbf16, #tpu.memory_space<vmem>>, vector<1x384x256xbf16>
    %62 = vector.shape_cast %61 : vector<1x384x256xbf16> to vector<384x256xbf16>
    %cst_63 = arith.constant dense<0.000000e+00> : vector<8x256xf32>
    %63 = tpu.matmul %60, %62, %cst_63 {dimension_numbers = #tpu.dot_dimension_numbers<[1], [0], [0], [1], [0, 0, 1, 1], [], []>} : vector<8x384xbf16>, vector<384x256xbf16>, vector<8x256xf32> -> vector<8x256xf32>
    %64 = arith.addf %59, %63 : vector<8x256xf32>
    %c0_64 = arith.constant 0 : index
    %c0_65 = arith.constant 0 : index
    %65 = vector.load %arg9[%c0_64, %c0_65] : memref<8x256xf32, #tpu.memory_space<vmem>>, vector<8x256xf32>
    tpu.vector_store %arg9[%c0_64, %c0_65], %64 {strides = array<i32>} : memref<8x256xf32, #tpu.memory_space<vmem>>, vector<8x256xf32>,
    %c4 = arith.constant 4 : index
    %c0_66 = arith.constant 0 : index
    %c0_67 = arith.constant 0 : index
    %66 = vector.load %arg1[%c4, %c0_66, %c0_67] : memref<11x8x160xbf16, #tpu.memory_space<vmem>>, vector<1x8x160xbf16>
    %67 = vector.shape_cast %66 : vector<1x8x160xbf16> to vector<8x160xbf16>
    %c0_68 = arith.constant 0 : index
    %c0_69 = arith.constant 0 : index
    %68 = vector.load %arg2[%c0_68, %c0_69] : memref<160x384xbf16, #tpu.memory_space<vmem>>, vector<160x384xbf16>
    %cst_70 = arith.constant dense<0.000000e+00> : vector<8x384xf32>
    %69 = tpu.matmul %67, %68, %cst_70 {dimension_numbers = #tpu.dot_dimension_numbers<[1], [0], [0], [1], [0, 0, 1, 1], [], []>} : vector<8x160xbf16>, vector<160x384xbf16>, vector<8x384xf32> -> vector<8x384xf32>
    %c0_71 = arith.constant 0 : index
    %c0_72 = arith.constant 0 : index
    %70 = vector.load %arg3[%c0_71, %c0_72] : memref<1x384xf32, #tpu.memory_space<vmem>>, vector<1x384xf32>
    %71 = vector.broadcast %70 : vector<1x384xf32> to vector<8x384xf32>
    %72 = arith.addf %69, %71 : vector<8x384xf32>
    %cst_73 = arith.constant 0.000000e+00 : f32
    %73 = vector.broadcast %cst_73 : f32 to vector<8x384xf32>
    %74 = arith.maximumf %72, %73 : vector<8x384xf32>
    %c0_74 = arith.constant 0 : index
    %c0_75 = arith.constant 0 : index
    %75 = vector.load %arg9[%c0_74, %c0_75] : memref<8x256xf32, #tpu.memory_space<vmem>>, vector<8x256xf32>
    %76 = arith.truncf %74 : vector<8x384xf32> to vector<8x384xbf16>
    %c4_76 = arith.constant 4 : index
    %c0_77 = arith.constant 0 : index
    %c0_78 = arith.constant 0 : index
    %77 = vector.load %arg4[%c4_76, %c0_77, %c0_78] : memref<11x384x256xbf16, #tpu.memory_space<vmem>>, vector<1x384x256xbf16>
    %78 = vector.shape_cast %77 : vector<1x384x256xbf16> to vector<384x256xbf16>
    %cst_79 = arith.constant dense<0.000000e+00> : vector<8x256xf32>
    %79 = tpu.matmul %76, %78, %cst_79 {dimension_numbers = #tpu.dot_dimension_numbers<[1], [0], [0], [1], [0, 0, 1, 1], [], []>} : vector<8x384xbf16>, vector<384x256xbf16>, vector<8x256xf32> -> vector<8x256xf32>
    %80 = arith.addf %75, %79 : vector<8x256xf32>
    %c0_80 = arith.constant 0 : index
    %c0_81 = arith.constant 0 : index
    %81 = vector.load %arg9[%c0_80, %c0_81] : memref<8x256xf32, #tpu.memory_space<vmem>>, vector<8x256xf32>
    tpu.vector_store %arg9[%c0_80, %c0_81], %80 {strides = array<i32>} : memref<8x256xf32, #tpu.memory_space<vmem>>, vector<8x256xf32>,
    %c5 = arith.constant 5 : index
    %c0_82 = arith.constant 0 : index
    %c0_83 = arith.constant 0 : index
    %82 = vector.load %arg1[%c5, %c0_82, %c0_83] : memref<11x8x160xbf16, #tpu.memory_space<vmem>>, vector<1x8x160xbf16>
    %83 = vector.shape_cast %82 : vector<1x8x160xbf16> to vector<8x160xbf16>
    %c0_84 = arith.constant 0 : index
    %c0_85 = arith.constant 0 : index
    %84 = vector.load %arg2[%c0_84, %c0_85] : memref<160x384xbf16, #tpu.memory_space<vmem>>, vector<160x384xbf16>
    %cst_86 = arith.constant dense<0.000000e+00> : vector<8x384xf32>
    %85 = tpu.matmul %83, %84, %cst_86 {dimension_numbers = #tpu.dot_dimension_numbers<[1], [0], [0], [1], [0, 0, 1, 1], [], []>} : vector<8x160xbf16>, vector<160x384xbf16>, vector<8x384xf32> -> vector<8x384xf32>
    %c0_87 = arith.constant 0 : index
    %c0_88 = arith.constant 0 : index
    %86 = vector.load %arg3[%c0_87, %c0_88] : memref<1x384xf32, #tpu.memory_space<vmem>>, vector<1x384xf32>
    %87 = vector.broadcast %86 : vector<1x384xf32> to vector<8x384xf32>
    %88 = arith.addf %85, %87 : vector<8x384xf32>
    %cst_89 = arith.constant 0.000000e+00 : f32
    %89 = vector.broadcast %cst_89 : f32 to vector<8x384xf32>
    %90 = arith.maximumf %88, %89 : vector<8x384xf32>
    %c0_90 = arith.constant 0 : index
    %c0_91 = arith.constant 0 : index
    %91 = vector.load %arg9[%c0_90, %c0_91] : memref<8x256xf32, #tpu.memory_space<vmem>>, vector<8x256xf32>
    %92 = arith.truncf %90 : vector<8x384xf32> to vector<8x384xbf16>
    %c5_92 = arith.constant 5 : index
    %c0_93 = arith.constant 0 : index
    %c0_94 = arith.constant 0 : index
    %93 = vector.load %arg4[%c5_92, %c0_93, %c0_94] : memref<11x384x256xbf16, #tpu.memory_space<vmem>>, vector<1x384x256xbf16>
    %94 = vector.shape_cast %93 : vector<1x384x256xbf16> to vector<384x256xbf16>
    %cst_95 = arith.constant dense<0.000000e+00> : vector<8x256xf32>
    %95 = tpu.matmul %92, %94, %cst_95 {dimension_numbers = #tpu.dot_dimension_numbers<[1], [0], [0], [1], [0, 0, 1, 1], [], []>} : vector<8x384xbf16>, vector<384x256xbf16>, vector<8x256xf32> -> vector<8x256xf32>
    %96 = arith.addf %91, %95 : vector<8x256xf32>
    %c0_96 = arith.constant 0 : index
    %c0_97 = arith.constant 0 : index
    %97 = vector.load %arg9[%c0_96, %c0_97] : memref<8x256xf32, #tpu.memory_space<vmem>>, vector<8x256xf32>
    tpu.vector_store %arg9[%c0_96, %c0_97], %96 {strides = array<i32>} : memref<8x256xf32, #tpu.memory_space<vmem>>, vector<8x256xf32>,
    %c6 = arith.constant 6 : index
    %c0_98 = arith.constant 0 : index
    %c0_99 = arith.constant 0 : index
    %98 = vector.load %arg1[%c6, %c0_98, %c0_99] : memref<11x8x160xbf16, #tpu.memory_space<vmem>>, vector<1x8x160xbf16>
    %99 = vector.shape_cast %98 : vector<1x8x160xbf16> to vector<8x160xbf16>
    %c0_100 = arith.constant 0 : index
    %c0_101 = arith.constant 0 : index
    %100 = vector.load %arg2[%c0_100, %c0_101] : memref<160x384xbf16, #tpu.memory_space<vmem>>, vector<160x384xbf16>
    %cst_102 = arith.constant dense<0.000000e+00> : vector<8x384xf32>
    %101 = tpu.matmul %99, %100, %cst_102 {dimension_numbers = #tpu.dot_dimension_numbers<[1], [0], [0], [1], [0, 0, 1, 1], [], []>} : vector<8x160xbf16>, vector<160x384xbf16>, vector<8x384xf32> -> vector<8x384xf32>
    %c0_103 = arith.constant 0 : index
    %c0_104 = arith.constant 0 : index
    %102 = vector.load %arg3[%c0_103, %c0_104] : memref<1x384xf32, #tpu.memory_space<vmem>>, vector<1x384xf32>
    %103 = vector.broadcast %102 : vector<1x384xf32> to vector<8x384xf32>
    %104 = arith.addf %101, %103 : vector<8x384xf32>
    %cst_105 = arith.constant 0.000000e+00 : f32
    %105 = vector.broadcast %cst_105 : f32 to vector<8x384xf32>
    %106 = arith.maximumf %104, %105 : vector<8x384xf32>
    %c0_106 = arith.constant 0 : index
    %c0_107 = arith.constant 0 : index
    %107 = vector.load %arg9[%c0_106, %c0_107] : memref<8x256xf32, #tpu.memory_space<vmem>>, vector<8x256xf32>
    %108 = arith.truncf %106 : vector<8x384xf32> to vector<8x384xbf16>
    %c6_108 = arith.constant 6 : index
    %c0_109 = arith.constant 0 : index
    %c0_110 = arith.constant 0 : index
    %109 = vector.load %arg4[%c6_108, %c0_109, %c0_110] : memref<11x384x256xbf16, #tpu.memory_space<vmem>>, vector<1x384x256xbf16>
    %110 = vector.shape_cast %109 : vector<1x384x256xbf16> to vector<384x256xbf16>
    %cst_111 = arith.constant dense<0.000000e+00> : vector<8x256xf32>
    %111 = tpu.matmul %108, %110, %cst_111 {dimension_numbers = #tpu.dot_dimension_numbers<[1], [0], [0], [1], [0, 0, 1, 1], [], []>} : vector<8x384xbf16>, vector<384x256xbf16>, vector<8x256xf32> -> vector<8x256xf32>
    %112 = arith.addf %107, %111 : vector<8x256xf32>
    %c0_112 = arith.constant 0 : index
    %c0_113 = arith.constant 0 : index
    %113 = vector.load %arg9[%c0_112, %c0_113] : memref<8x256xf32, #tpu.memory_space<vmem>>, vector<8x256xf32>
    tpu.vector_store %arg9[%c0_112, %c0_113], %112 {strides = array<i32>} : memref<8x256xf32, #tpu.memory_space<vmem>>, vector<8x256xf32>,
    %c7 = arith.constant 7 : index
    %c0_114 = arith.constant 0 : index
    %c0_115 = arith.constant 0 : index
    %114 = vector.load %arg1[%c7, %c0_114, %c0_115] : memref<11x8x160xbf16, #tpu.memory_space<vmem>>, vector<1x8x160xbf16>
    %115 = vector.shape_cast %114 : vector<1x8x160xbf16> to vector<8x160xbf16>
    %c0_116 = arith.constant 0 : index
    %c0_117 = arith.constant 0 : index
    %116 = vector.load %arg2[%c0_116, %c0_117] : memref<160x384xbf16, #tpu.memory_space<vmem>>, vector<160x384xbf16>
    %cst_118 = arith.constant dense<0.000000e+00> : vector<8x384xf32>
    %117 = tpu.matmul %115, %116, %cst_118 {dimension_numbers = #tpu.dot_dimension_numbers<[1], [0], [0], [1], [0, 0, 1, 1], [], []>} : vector<8x160xbf16>, vector<160x384xbf16>, vector<8x384xf32> -> vector<8x384xf32>
    %c0_119 = arith.constant 0 : index
    %c0_120 = arith.constant 0 : index
    %118 = vector.load %arg3[%c0_119, %c0_120] : memref<1x384xf32, #tpu.memory_space<vmem>>, vector<1x384xf32>
    %119 = vector.broadcast %118 : vector<1x384xf32> to vector<8x384xf32>
    %120 = arith.addf %117, %119 : vector<8x384xf32>
    %cst_121 = arith.constant 0.000000e+00 : f32
    %121 = vector.broadcast %cst_121 : f32 to vector<8x384xf32>
    %122 = arith.maximumf %120, %121 : vector<8x384xf32>
    %c0_122 = arith.constant 0 : index
    %c0_123 = arith.constant 0 : index
    %123 = vector.load %arg9[%c0_122, %c0_123] : memref<8x256xf32, #tpu.memory_space<vmem>>, vector<8x256xf32>
    %124 = arith.truncf %122 : vector<8x384xf32> to vector<8x384xbf16>
    %c7_124 = arith.constant 7 : index
    %c0_125 = arith.constant 0 : index
    %c0_126 = arith.constant 0 : index
    %125 = vector.load %arg4[%c7_124, %c0_125, %c0_126] : memref<11x384x256xbf16, #tpu.memory_space<vmem>>, vector<1x384x256xbf16>
    %126 = vector.shape_cast %125 : vector<1x384x256xbf16> to vector<384x256xbf16>
    %cst_127 = arith.constant dense<0.000000e+00> : vector<8x256xf32>
    %127 = tpu.matmul %124, %126, %cst_127 {dimension_numbers = #tpu.dot_dimension_numbers<[1], [0], [0], [1], [0, 0, 1, 1], [], []>} : vector<8x384xbf16>, vector<384x256xbf16>, vector<8x256xf32> -> vector<8x256xf32>
    %128 = arith.addf %123, %127 : vector<8x256xf32>
    %c0_128 = arith.constant 0 : index
    %c0_129 = arith.constant 0 : index
    %129 = vector.load %arg9[%c0_128, %c0_129] : memref<8x256xf32, #tpu.memory_space<vmem>>, vector<8x256xf32>
    tpu.vector_store %arg9[%c0_128, %c0_129], %128 {strides = array<i32>} : memref<8x256xf32, #tpu.memory_space<vmem>>, vector<8x256xf32>,
    %c8 = arith.constant 8 : index
    %c0_130 = arith.constant 0 : index
    %c0_131 = arith.constant 0 : index
    %130 = vector.load %arg1[%c8, %c0_130, %c0_131] : memref<11x8x160xbf16, #tpu.memory_space<vmem>>, vector<1x8x160xbf16>
    %131 = vector.shape_cast %130 : vector<1x8x160xbf16> to vector<8x160xbf16>
    %c0_132 = arith.constant 0 : index
    %c0_133 = arith.constant 0 : index
    %132 = vector.load %arg2[%c0_132, %c0_133] : memref<160x384xbf16, #tpu.memory_space<vmem>>, vector<160x384xbf16>
    %cst_134 = arith.constant dense<0.000000e+00> : vector<8x384xf32>
    %133 = tpu.matmul %131, %132, %cst_134 {dimension_numbers = #tpu.dot_dimension_numbers<[1], [0], [0], [1], [0, 0, 1, 1], [], []>} : vector<8x160xbf16>, vector<160x384xbf16>, vector<8x384xf32> -> vector<8x384xf32>
    %c0_135 = arith.constant 0 : index
    %c0_136 = arith.constant 0 : index
    %134 = vector.load %arg3[%c0_135, %c0_136] : memref<1x384xf32, #tpu.memory_space<vmem>>, vector<1x384xf32>
    %135 = vector.broadcast %134 : vector<1x384xf32> to vector<8x384xf32>
    %136 = arith.addf %133, %135 : vector<8x384xf32>
    %cst_137 = arith.constant 0.000000e+00 : f32
    %137 = vector.broadcast %cst_137 : f32 to vector<8x384xf32>
    %138 = arith.maximumf %136, %137 : vector<8x384xf32>
    %c0_138 = arith.constant 0 : index
    %c0_139 = arith.constant 0 : index
    %139 = vector.load %arg9[%c0_138, %c0_139] : memref<8x256xf32, #tpu.memory_space<vmem>>, vector<8x256xf32>
    %140 = arith.truncf %138 : vector<8x384xf32> to vector<8x384xbf16>
    %c8_140 = arith.constant 8 : index
    %c0_141 = arith.constant 0 : index
    %c0_142 = arith.constant 0 : index
    %141 = vector.load %arg4[%c8_140, %c0_141, %c0_142] : memref<11x384x256xbf16, #tpu.memory_space<vmem>>, vector<1x384x256xbf16>
    %142 = vector.shape_cast %141 : vector<1x384x256xbf16> to vector<384x256xbf16>
    %cst_143 = arith.constant dense<0.000000e+00> : vector<8x256xf32>
    %143 = tpu.matmul %140, %142, %cst_143 {dimension_numbers = #tpu.dot_dimension_numbers<[1], [0], [0], [1], [0, 0, 1, 1], [], []>} : vector<8x384xbf16>, vector<384x256xbf16>, vector<8x256xf32> -> vector<8x256xf32>
    %144 = arith.addf %139, %143 : vector<8x256xf32>
    %c0_144 = arith.constant 0 : index
    %c0_145 = arith.constant 0 : index
    %145 = vector.load %arg9[%c0_144, %c0_145] : memref<8x256xf32, #tpu.memory_space<vmem>>, vector<8x256xf32>
    tpu.vector_store %arg9[%c0_144, %c0_145], %144 {strides = array<i32>} : memref<8x256xf32, #tpu.memory_space<vmem>>, vector<8x256xf32>,
    %c9 = arith.constant 9 : index
    %c0_146 = arith.constant 0 : index
    %c0_147 = arith.constant 0 : index
    %146 = vector.load %arg1[%c9, %c0_146, %c0_147] : memref<11x8x160xbf16, #tpu.memory_space<vmem>>, vector<1x8x160xbf16>
    %147 = vector.shape_cast %146 : vector<1x8x160xbf16> to vector<8x160xbf16>
    %c0_148 = arith.constant 0 : index
    %c0_149 = arith.constant 0 : index
    %148 = vector.load %arg2[%c0_148, %c0_149] : memref<160x384xbf16, #tpu.memory_space<vmem>>, vector<160x384xbf16>
    %cst_150 = arith.constant dense<0.000000e+00> : vector<8x384xf32>
    %149 = tpu.matmul %147, %148, %cst_150 {dimension_numbers = #tpu.dot_dimension_numbers<[1], [0], [0], [1], [0, 0, 1, 1], [], []>} : vector<8x160xbf16>, vector<160x384xbf16>, vector<8x384xf32> -> vector<8x384xf32>
    %c0_151 = arith.constant 0 : index
    %c0_152 = arith.constant 0 : index
    %150 = vector.load %arg3[%c0_151, %c0_152] : memref<1x384xf32, #tpu.memory_space<vmem>>, vector<1x384xf32>
    %151 = vector.broadcast %150 : vector<1x384xf32> to vector<8x384xf32>
    %152 = arith.addf %149, %151 : vector<8x384xf32>
    %cst_153 = arith.constant 0.000000e+00 : f32
    %153 = vector.broadcast %cst_153 : f32 to vector<8x384xf32>
    %154 = arith.maximumf %152, %153 : vector<8x384xf32>
    %c0_154 = arith.constant 0 : index
    %c0_155 = arith.constant 0 : index
    %155 = vector.load %arg9[%c0_154, %c0_155] : memref<8x256xf32, #tpu.memory_space<vmem>>, vector<8x256xf32>
    %156 = arith.truncf %154 : vector<8x384xf32> to vector<8x384xbf16>
    %c9_156 = arith.constant 9 : index
    %c0_157 = arith.constant 0 : index
    %c0_158 = arith.constant 0 : index
    %157 = vector.load %arg4[%c9_156, %c0_157, %c0_158] : memref<11x384x256xbf16, #tpu.memory_space<vmem>>, vector<1x384x256xbf16>
    %158 = vector.shape_cast %157 : vector<1x384x256xbf16> to vector<384x256xbf16>
    %cst_159 = arith.constant dense<0.000000e+00> : vector<8x256xf32>
    %159 = tpu.matmul %156, %158, %cst_159 {dimension_numbers = #tpu.dot_dimension_numbers<[1], [0], [0], [1], [0, 0, 1, 1], [], []>} : vector<8x384xbf16>, vector<384x256xbf16>, vector<8x256xf32> -> vector<8x256xf32>
    %160 = arith.addf %155, %159 : vector<8x256xf32>
    %c0_160 = arith.constant 0 : index
    %c0_161 = arith.constant 0 : index
    %161 = vector.load %arg9[%c0_160, %c0_161] : memref<8x256xf32, #tpu.memory_space<vmem>>, vector<8x256xf32>
    tpu.vector_store %arg9[%c0_160, %c0_161], %160 {strides = array<i32>} : memref<8x256xf32, #tpu.memory_space<vmem>>, vector<8x256xf32>,
    %c10 = arith.constant 10 : index
    %c0_162 = arith.constant 0 : index
    %c0_163 = arith.constant 0 : index
    %162 = vector.load %arg1[%c10, %c0_162, %c0_163] : memref<11x8x160xbf16, #tpu.memory_space<vmem>>, vector<1x8x160xbf16>
    %163 = vector.shape_cast %162 : vector<1x8x160xbf16> to vector<8x160xbf16>
    %c0_164 = arith.constant 0 : index
    %c0_165 = arith.constant 0 : index
    %164 = vector.load %arg2[%c0_164, %c0_165] : memref<160x384xbf16, #tpu.memory_space<vmem>>, vector<160x384xbf16>
    %cst_166 = arith.constant dense<0.000000e+00> : vector<8x384xf32>
    %165 = tpu.matmul %163, %164, %cst_166 {dimension_numbers = #tpu.dot_dimension_numbers<[1], [0], [0], [1], [0, 0, 1, 1], [], []>} : vector<8x160xbf16>, vector<160x384xbf16>, vector<8x384xf32> -> vector<8x384xf32>
    %c0_167 = arith.constant 0 : index
    %c0_168 = arith.constant 0 : index
    %166 = vector.load %arg3[%c0_167, %c0_168] : memref<1x384xf32, #tpu.memory_space<vmem>>, vector<1x384xf32>
    %167 = vector.broadcast %166 : vector<1x384xf32> to vector<8x384xf32>
    %168 = arith.addf %165, %167 : vector<8x384xf32>
    %cst_169 = arith.constant 0.000000e+00 : f32
    %169 = vector.broadcast %cst_169 : f32 to vector<8x384xf32>
    %170 = arith.maximumf %168, %169 : vector<8x384xf32>
    %c0_170 = arith.constant 0 : index
    %c0_171 = arith.constant 0 : index
    %171 = vector.load %arg9[%c0_170, %c0_171] : memref<8x256xf32, #tpu.memory_space<vmem>>, vector<8x256xf32>
    %172 = arith.truncf %170 : vector<8x384xf32> to vector<8x384xbf16>
    %c10_172 = arith.constant 10 : index
    %c0_173 = arith.constant 0 : index
    %c0_174 = arith.constant 0 : index
    %173 = vector.load %arg4[%c10_172, %c0_173, %c0_174] : memref<11x384x256xbf16, #tpu.memory_space<vmem>>, vector<1x384x256xbf16>
    %174 = vector.shape_cast %173 : vector<1x384x256xbf16> to vector<384x256xbf16>
    %cst_175 = arith.constant dense<0.000000e+00> : vector<8x256xf32>
    %175 = tpu.matmul %172, %174, %cst_175 {dimension_numbers = #tpu.dot_dimension_numbers<[1], [0], [0], [1], [0, 0, 1, 1], [], []>} : vector<8x384xbf16>, vector<384x256xbf16>, vector<8x256xf32> -> vector<8x256xf32>
    %176 = arith.addf %171, %175 : vector<8x256xf32>
    %c0_176 = arith.constant 0 : index
    %c0_177 = arith.constant 0 : index
    %177 = vector.load %arg9[%c0_176, %c0_177] : memref<8x256xf32, #tpu.memory_space<vmem>>, vector<8x256xf32>
    tpu.vector_store %arg9[%c0_176, %c0_177], %176 {strides = array<i32>} : memref<8x256xf32, #tpu.memory_space<vmem>>, vector<8x256xf32>,
    %c0_178 = arith.constant 0 : index
    %c0_179 = arith.constant 0 : index
    %178 = vector.load %arg9[%c0_178, %c0_179] : memref<8x256xf32, #tpu.memory_space<vmem>>, vector<8x256xf32>
    %c0_180 = arith.constant 0 : index
    %c0_181 = arith.constant 0 : index
    %179 = vector.load %arg5[%c0_180, %c0_181] : memref<1x256xf32, #tpu.memory_space<vmem>>, vector<1x256xf32>
    %180 = vector.broadcast %179 : vector<1x256xf32> to vector<8x256xf32>
    %181 = arith.addf %178, %180 : vector<8x256xf32>
    %cst_182 = arith.constant 0.000000e+00 : f32
    %182 = vector.broadcast %cst_182 : f32 to vector<8x256xf32>
    %183 = arith.maximumf %181, %182 : vector<8x256xf32>
    %184 = arith.truncf %183 : vector<8x256xf32> to vector<8x256xbf16>
    %c0_183 = arith.constant 0 : index
    %c0_184 = arith.constant 0 : index
    %185 = vector.load %arg6[%c0_183, %c0_184] : memref<256x128xbf16, #tpu.memory_space<vmem>>, vector<256x128xbf16>
    %cst_185 = arith.constant dense<0.000000e+00> : vector<8x128xf32>
    %186 = tpu.matmul %184, %185, %cst_185 {dimension_numbers = #tpu.dot_dimension_numbers<[1], [0], [0], [1], [0, 0, 1, 1], [], []>} : vector<8x256xbf16>, vector<256x128xbf16>, vector<8x128xf32> -> vector<8x128xf32>
    %c0_186 = arith.constant 0 : index
    %c0_187 = arith.constant 0 : index
    %187 = vector.load %arg7[%c0_186, %c0_187] : memref<1x128xf32, #tpu.memory_space<vmem>>, vector<1x128xf32>
    %188 = vector.broadcast %187 : vector<1x128xf32> to vector<8x128xf32>
    %189 = arith.addf %186, %188 : vector<8x128xf32>
    %c0_188 = arith.constant 0 : index
    %c0_189 = arith.constant 0 : index
    %190 = vector.load %arg8[%c0_188, %c0_189] : memref<8x128xf32, #tpu.memory_space<vmem>>, vector<8x128xf32>
    tpu.vector_store %arg8[%c0_188, %c0_189], %189 {strides = array<i32>} : memref<8x128xf32, #tpu.memory_space<vmem>>, vector<8x128xf32>,
    return
  }
  func.func @transform_0(%arg0: i32) -> (i32, i32, i32) {
    %c0_i32 = arith.constant 0 : i32
    %c0_i32_0 = arith.constant 0 : i32
    %c0_i32_1 = arith.constant 0 : i32
    return %c0_i32, %arg0, %c0_i32_0 : i32, i32, i32
  }
  func.func @transform_1(%arg0: i32) -> (i32, i32) {
    %c0_i32 = arith.constant 0 : i32
    %c0_i32_0 = arith.constant 0 : i32
    %c0_i32_1 = arith.constant 0 : i32
    return %c0_i32, %c0_i32_0 : i32, i32
  }
  func.func @transform_2(%arg0: i32) -> (i32, i32) {
    %c0_i32 = arith.constant 0 : i32
    %c0_i32_0 = arith.constant 0 : i32
    %c0_i32_1 = arith.constant 0 : i32
    return %c0_i32, %c0_i32_0 : i32, i32
  }
  func.func @transform_3(%arg0: i32) -> (i32, i32, i32) {
    %c0_i32 = arith.constant 0 : i32
    %c0_i32_0 = arith.constant 0 : i32
    %c0_i32_1 = arith.constant 0 : i32
    %c0_i32_2 = arith.constant 0 : i32
    return %c0_i32, %c0_i32_0, %c0_i32_1 : i32, i32, i32
  }
  func.func @transform_4(%arg0: i32) -> (i32, i32) {
    %c0_i32 = arith.constant 0 : i32
    %c0_i32_0 = arith.constant 0 : i32
    %c0_i32_1 = arith.constant 0 : i32
    return %c0_i32, %c0_i32_0 : i32, i32
  }
  func.func @transform_5(%arg0: i32) -> (i32, i32) {
    %c0_i32 = arith.constant 0 : i32
    %c0_i32_0 = arith.constant 0 : i32
    %c0_i32_1 = arith.constant 0 : i32
    return %c0_i32, %c0_i32_0 : i32, i32
  }
  func.func @transform_6(%arg0: i32) -> (i32, i32) {
    %c0_i32 = arith.constant 0 : i32
    %c0_i32_0 = arith.constant 0 : i32
    %c0_i32_1 = arith.constant 0 : i32
    return %c0_i32, %c0_i32_0 : i32, i32
  }
  func.func @transform_7(%arg0: i32) -> (i32, i32) {
    %c0_i32 = arith.constant 0 : i32
    %c0_i32_0 = arith.constant 0 : i32
    return %arg0, %c0_i32 : i32, i32
  }
}

</mosaic_0001>

<llo_original>
// kernel: dqn_forward.1
$region0: #{dqn_forward.1}
  #allocation0 [shape = 'u32[]', space=smem, size = 0x4, offset = 0x4, fixed_abs, tag = 'smem constant byte address 0x4 - core index']
  #allocation1 [shape = 'u32[144,128]{1,0:T(1,128)}', space=vmem, size = 0x12000, scoped, tag = 'internal scratch']
  #allocation2 [shape = 'f32[8,256]{1,0:T(8,128)}', space=vmem, size = 0x2000, scoped, tag = 'scratch operand']
  %s0 = inlined_call_operand.vmem [shape: bf16[11,16,160], index: 0, kind: input, shape index: {}]
  %s1 = inlined_call_operand.vmem [shape: bf16[160,384], index: 1, kind: input, shape index: {}]
  %s2 = inlined_call_operand.vmem [shape: f32[1,384], index: 2, kind: input, shape index: {}]
  %s3 = inlined_call_operand.vmem [shape: bf16[11,384,256], index: 3, kind: input, shape index: {}]
  %s4 = inlined_call_operand.vmem [shape: f32[1,256], index: 4, kind: input, shape index: {}]
  %s5 = inlined_call_operand.vmem [shape: bf16[256,128], index: 5, kind: input, shape index: {}]
  %s6 = inlined_call_operand.vmem [shape: f32[1,128], index: 6, kind: input, shape index: {}]
  %s7 = inlined_call_operand.vmem [shape: f32[16,128], index: 7, kind: output, shape index: {}]
  %s8 = sld [smem:[#allocation0]]
  $region99: #{dqn_forward.1} parent=0
    _
  %s10 = ssub.s32 1, %s8
  %s11 = scalar_select 0, %s10, %s8
  $region1: #{dqn_forward.1} parent=0
    #allocation3 [shape = 'u8[90112]{0}', space=vmem, size = 0x16000, scoped, tag = 'input window, operand 0']
    loop: start=0, step=1, limit=4
    $region2: #{dqn_forward.1} parent=1 // loop_pre_header
      _
    $region3: #{dqn_forward.1} parent=1 // loop_header
      %s13 = sphi 0, %s17
      %p14 = scmp.ge.s32.totalorder %s13, 4
      %s23 = sphi 0, %s25
      %s26 = sphi 0, %s23
      %s27 = sphi 0, %s26
      %s43 = sphi 0, %s27
      %s47 = sphi 0, %s47
      %s49 = sphi 0, %s47
      %s50 = sphi 0, %s49
      %s64 = sphi 0, %s50
      %s68 = sphi 0, %s68
      %s70 = sphi 0, %s68
      %s71 = sphi 0, %s70
      %s85 = sphi 0, %s71
      %s89 = sphi 0, %s89
      %s91 = sphi 0, %s89
      %s92 = sphi 0, %s91
      %s106 = sphi 0, %s92
      %s110 = sphi 0, %s110
      %s112 = sphi 0, %s110
      %s113 = sphi 0, %s112
      %s127 = sphi 0, %s113
      %s131 = sphi 0, %s131
      %s133 = sphi 0, %s131
      %s134 = sphi 0, %s133
      %s148 = sphi 0, %s134
      %s152 = sphi 0, %s152
      %s154 = sphi 0, %s152
      %s155 = sphi 0, %s154
      %s169 = sphi 0, %s155
      %s175 = sphi 0, %s177
      %s178 = sphi 0, %s175
      %s179 = sphi 0, %s178
      %s195 = sphi 0, %s179
    $region4: #{dqn_forward.1} parent=1 // loop_header_branch
      %16 = sbr.rel (%p14) target = $region8
    $region5: #{dqn_forward.1} parent=1 // loop_body
      %s18 = ssub.s32 %s13, 1
      %s19 = ssub.s32 %s13, 2
      %s20 = sadd.s32 %s13, 1
      %s21 = ssub.s32 %s13, %s20
      %p22 = scmp.eq.s32.totalorder %s21, 0
      %s24 = sadd.s32 %s23, 1
      %s25 = scalar_select %p22, %s23, %s24
      %p28 = pneg %p22
      %p29 = scmp.eq.s32.totalorder %s13, 1
      %p30 = por %p28, %p29
      %p31 = scmp.ne.s32.totalorder %s23, %s26
      %p32 = scmp.eq.s32.totalorder %s13, 0
      %p33 = por %p31, %p32
      %p34 = scmp.ne.s32.totalorder %s23, %s26
      %p35 = scmp.eq.s32.totalorder %s18, 1
      %p36 = por %p34, %p35
      %p37 = scmp.ne.s32.totalorder %s26, %s27
      %p38 = scmp.eq.s32.totalorder %s18, 0
      %p39 = por %p37, %p38
      %p40 = scmp.ne.s32.totalorder %s26, %s27
      %p41 = scmp.eq.s32.totalorder %s19, 1
      %p42 = por %p40, %p41
      %p44 = scmp.ne.s32.totalorder %s27, %s43
      %p45 = scmp.eq.s32.totalorder %s19, 0
      %p46 = por %p44, %p45
      %s48 = sadd.s32 %s47, 1
      %p51 = scmp.eq.s32.totalorder %s13, 1
      %p52 = scmp.ne.s32.totalorder %s47, %s49
      %p53 = scmp.eq.s32.totalorder %s13, 0
      %p54 = por %p52, %p53
      %p55 = scmp.ne.s32.totalorder %s47, %s49
      %p56 = scmp.eq.s32.totalorder %s18, 1
      %p57 = por %p55, %p56
      %p58 = scmp.ne.s32.totalorder %s49, %s50
      %p59 = scmp.eq.s32.totalorder %s18, 0
      %p60 = por %p58, %p59
      %p61 = scmp.ne.s32.totalorder %s49, %s50
      %p62 = scmp.eq.s32.totalorder %s19, 1
      %p63 = por %p61, %p62
      %p65 = scmp.ne.s32.totalorder %s50, %s64
      %p66 = scmp.eq.s32.totalorder %s19, 0
      %p67 = por %p65, %p66
      %s69 = sadd.s32 %s68, 1
      %p72 = scmp.eq.s32.totalorder %s13, 1
      %p73 = scmp.ne.s32.totalorder %s68, %s70
      %p74 = scmp.eq.s32.totalorder %s13, 0
      %p75 = por %p73, %p74
      %p76 = scmp.ne.s32.totalorder %s68, %s70
      %p77 = scmp.eq.s32.totalorder %s18, 1
      %p78 = por %p76, %p77
      %p79 = scmp.ne.s32.totalorder %s70, %s71
      %p80 = scmp.eq.s32.totalorder %s18, 0
      %p81 = por %p79, %p80
      %p82 = scmp.ne.s32.totalorder %s70, %s71
      %p83 = scmp.eq.s32.totalorder %s19, 1
      %p84 = por %p82, %p83
      %p86 = scmp.ne.s32.totalorder %s71, %s85
      %p87 = scmp.eq.s32.totalorder %s19, 0
      %p88 = por %p86, %p87
      %s90 = sadd.s32 %s89, 1
      %p93 = scmp.eq.s32.totalorder %s13, 1
      %p94 = scmp.ne.s32.totalorder %s89, %s91
      %p95 = scmp.eq.s32.totalorder %s13, 0
      %p96 = por %p94, %p95
      %p97 = scmp.ne.s32.totalorder %s89, %s91
      %p98 = scmp.eq.s32.totalorder %s18, 1
      %p99 = por %p97, %p98
      %p100 = scmp.ne.s32.totalorder %s91, %s92
      %p101 = scmp.eq.s32.totalorder %s18, 0
      %p102 = por %p100, %p101
      %p103 = scmp.ne.s32.totalorder %s91, %s92
      %p104 = scmp.eq.s32.totalorder %s19, 1
      %p105 = por %p103, %p104
      %p107 = scmp.ne.s32.totalorder %s92, %s106
      %p108 = scmp.eq.s32.totalorder %s19, 0
      %p109 = por %p107, %p108
      %s111 = sadd.s32 %s110, 1
      %p114 = scmp.eq.s32.totalorder %s13, 1
      %p115 = scmp.ne.s32.totalorder %s110, %s112
      %p116 = scmp.eq.s32.totalorder %s13, 0
      %p117 = por %p115, %p116
      %p118 = scmp.ne.s32.totalorder %s110, %s112
      %p119 = scmp.eq.s32.totalorder %s18, 1
      %p120 = por %p118, %p119
      %p121 = scmp.ne.s32.totalorder %s112, %s113
      %p122 = scmp.eq.s32.totalorder %s18, 0
      %p123 = por %p121, %p122
      %p124 = scmp.ne.s32.totalorder %s112, %s113
      %p125 = scmp.eq.s32.totalorder %s19, 1
      %p126 = por %p124, %p125
      %p128 = scmp.ne.s32.totalorder %s113, %s127
      %p129 = scmp.eq.s32.totalorder %s19, 0
      %p130 = por %p128, %p129
      %s132 = sadd.s32 %s131, 1
      %p135 = scmp.eq.s32.totalorder %s13, 1
      %p136 = scmp.ne.s32.totalorder %s131, %s133
      %p137 = scmp.eq.s32.totalorder %s13, 0
      %p138 = por %p136, %p137
      %p139 = scmp.ne.s32.totalorder %s131, %s133
      %p140 = scmp.eq.s32.totalorder %s18, 1
      %p141 = por %p139, %p140
      %p142 = scmp.ne.s32.totalorder %s133, %s134
      %p143 = scmp.eq.s32.totalorder %s18, 0
      %p144 = por %p142, %p143
      %p145 = scmp.ne.s32.totalorder %s133, %s134
      %p146 = scmp.eq.s32.totalorder %s19, 1
      %p147 = por %p145, %p146
      %p149 = scmp.ne.s32.totalorder %s134, %s148
      %p150 = scmp.eq.s32.totalorder %s19, 0
      %p151 = por %p149, %p150
      %s153 = sadd.s32 %s152, 1
      %p156 = scmp.eq.s32.totalorder %s13, 1
      %p157 = scmp.ne.s32.totalorder %s152, %s154
      %p158 = scmp.eq.s32.totalorder %s13, 0
      %p159 = por %p157, %p158
      %p160 = scmp.ne.s32.totalorder %s152, %s154
      %p161 = scmp.eq.s32.totalorder %s18, 1
      %p162 = por %p160, %p161
      %p163 = scmp.ne.s32.totalorder %s154, %s155
      %p164 = scmp.eq.s32.totalorder %s18, 0
      %p165 = por %p163, %p164
      %p166 = scmp.ne.s32.totalorder %s154, %s155
      %p167 = scmp.eq.s32.totalorder %s19, 1
      %p168 = por %p166, %p167
      %p170 = scmp.ne.s32.totalorder %s155, %s169
      %p171 = scmp.eq.s32.totalorder %s19, 0
      %p172 = por %p170, %p171
      %s173 = ssub.s32 %s13, %s20
      %p174 = scmp.eq.s32.totalorder %s173, 0
      %s176 = sadd.s32 %s175, 1
      %s177 = scalar_select %p174, %s175, %s176
      %p180 = pneg %p174
      %p181 = scmp.eq.s32.totalorder %s13, 1
      %p182 = por %p180, %p181
      %p183 = scmp.ne.s32.totalorder %s175, %s178
      %p184 = scmp.eq.s32.totalorder %s13, 0
      %p185 = por %p183, %p184
      %p186 = scmp.ne.s32.totalorder %s175, %s178
      %p187 = scmp.eq.s32.totalorder %s18, 1
      %p188 = por %p186, %p187
      %p189 = scmp.ne.s32.totalorder %s178, %s179
      %p190 = scmp.eq.s32.totalorder %s18, 0
      %p191 = por %p189, %p190
      %p192 = scmp.ne.s32.totalorder %s178, %s179
      %p193 = scmp.eq.s32.totalorder %s19, 1
      %p194 = por %p192, %p193
      %p196 = scmp.ne.s32.totalorder %s179, %s195
      %p197 = scmp.eq.s32.totalorder %s19, 0
      %p198 = por %p196, %p197
      %p199 = scmp.le.s32.totalorder 1, %s13
      %p200 = scmp.lt.s32.totalorder %s13, 3
      %p201 = pnand %p199, %p200
      %p202 = pneg %p201
      // Predicated region
      $region9: #{dqn_forward.1} parent=5 // pred_check
        _
      $region10: #{dqn_forward.1} parent=5 // pred_check_branch
        %204 = sbr.rel (%p201) target = $region12
      $region11: #{dqn_forward.1} parent=5 // pred_region
        %s205 = ssub.s32 %s13, 1
        // Predicated region
        $region13: #{dqn_forward.1} parent=11 // pred_check
          %p206 = pneg %p60
        $region14: #{dqn_forward.1} parent=11 // pred_check_branch
          %208 = sbr.rel (%p206) target = $region16
        $region15: #{dqn_forward.1} parent=11 // pred_region
          _
        $region16: #{dqn_forward.1} parent=11 // pred_fallthru
          _
        // Predicated region
        $region17: #{dqn_forward.1} parent=11 // pred_check
          %p209 = pneg %p81
        $region18: #{dqn_forward.1} parent=11 // pred_check_branch
          %211 = sbr.rel (%p209) target = $region20
        $region19: #{dqn_forward.1} parent=11 // pred_region
          _
        $region20: #{dqn_forward.1} parent=11 // pred_fallthru
          _
        // Predicated region
        $region21: #{dqn_forward.1} parent=11 // pred_check
          %p212 = pneg %p102
        $region22: #{dqn_forward.1} parent=11 // pred_check_branch
          %214 = sbr.rel (%p212) target = $region24
        $region23: #{dqn_forward.1} parent=11 // pred_region
          _
        $region24: #{dqn_forward.1} parent=11 // pred_fallthru
          _
        // Predicated region
        $region25: #{dqn_forward.1} parent=11 // pred_check
          %p215 = pneg %p123
        $region26: #{dqn_forward.1} parent=11 // pred_check_branch
          %217 = sbr.rel (%p215) target = $region28
        $region27: #{dqn_forward.1} parent=11 // pred_region
          _
        $region28: #{dqn_forward.1} parent=11 // pred_fallthru
          _
        // Predicated region
        $region29: #{dqn_forward.1} parent=11 // pred_check
          %p218 = pneg %p144
        $region30: #{dqn_forward.1} parent=11 // pred_check_branch
          %220 = sbr.rel (%p218) target = $region32
        $region31: #{dqn_forward.1} parent=11 // pred_region
          _
        $region32: #{dqn_forward.1} parent=11 // pred_fallthru
          _
        // Predicated region
        $region33: #{dqn_forward.1} parent=11 // pred_check
          %p221 = pneg %p165
        $region34: #{dqn_forward.1} parent=11 // pred_check_branch
          %223 = sbr.rel (%p221) target = $region36
        $region35: #{dqn_forward.1} parent=11 // pred_region
          _
        $region36: #{dqn_forward.1} parent=11 // pred_fallthru
          _
      $region12: #{dqn_forward.1} parent=5 // pred_fallthru
        _
      %p224 = scmp.lt.s32.totalorder %s13, 2
      // Predicated region
      $region37: #{dqn_forward.1} parent=5 // pred_check
        %p225 = pneg %p224
      $region38: #{dqn_forward.1} parent=5 // pred_check_branch
        %227 = sbr.rel (%p225) target = $region40
      $region39: #{dqn_forward.1} parent=5 // pred_region
        // Predicated region
        $region41: #{dqn_forward.1} parent=39 // pred_check
          %p228 = pneg %p33
        $region42: #{dqn_forward.1} parent=39 // pred_check_branch
          %230 = sbr.rel (%p228) target = $region44
        $region43: #{dqn_forward.1} parent=39 // pred_region
          %s231 = sand.u32 %s23, 1
          %s232 = sand.u32 %s23, 1
          %s233 = smul.addr %s232, 88
          %s234 = scalar_lea.vmem [#allocation3], %s233
          %s235 = smul.addr %s13, 2
          %s236 = smul.addr %s235, 4
          %s237 = scalar_lea.vmem %s0, %s236
          // Predicated region
          $region45: #{dqn_forward.1} parent=43 // pred_check
            _
          $region46: #{dqn_forward.1} parent=43 // pred_check_branch
            %239 = sbr.rel (0) target = $region48
          $region47: #{dqn_forward.1} parent=43 // pred_region
            // Predicated region
            $region49: #{dqn_forward.1} parent=47 // pred_check
              _
            $region50: #{dqn_forward.1} parent=47 // pred_check_branch
              %241 = sbr.rel (0) target = $region52
            $region51: #{dqn_forward.1} parent=47 // pred_region
              // Predicated region
              $region64: #{dqn_forward.1} parent=51 // pred_check
                _
              $region65: #{dqn_forward.1} parent=51 // pred_check_branch
                %276 = sbr.rel (0) target = $region67
              $region66: #{dqn_forward.1} parent=51 // pred_region
                loop: start=0, step=1, limit=1
                $region68: #{dqn_forward.1} parent=66 // loop_pre_header
                  _
                $region69: #{dqn_forward.1} parent=66 // loop_header
                  %s278 = sphi 0, %s282
                  %p279 = scmp.ge.s32.totalorder %s278, 1
                  %s283 = sphi %s237, %s237
                  %s284 = sphi %s234, %s234
                $region70: #{dqn_forward.1} parent=66 // loop_header_branch
                  %281 = sbr.rel (%p279) target = $region74
                $region71: #{dqn_forward.1} parent=66 // loop_body
                  %v285 = vld [vmem:[%s283] sm:$0xff]
                  %286 = vst [vmem:[%s284] sm:$0xff] %v285
                  %v287 = vld [vmem:[%s283 + $0x10] sm:$0xff]
                  %288 = vst [vmem:[%s284 + $0x8] sm:$0xff] %v287
                  %v289 = vld [vmem:[%s283 + $0x20] sm:$0xff]
                  %290 = vst [vmem:[%s284 + $0x10] sm:$0xff] %v289
                  %v291 = vld [vmem:[%s283 + $0x30] sm:$0xff]
                  %292 = vst [vmem:[%s284 + $0x18] sm:$0xff] %v291
                  %v293 = vld [vmem:[%s283 + $0x40] sm:$0xff]
                  %294 = vst [vmem:[%s284 + $0x20] sm:$0xff] %v293
                  %v295 = vld [vmem:[%s283 + $0x50] sm:$0xff]
                  %296 = vst [vmem:[%s284 + $0x28] sm:$0xff] %v295
                  %v297 = vld [vmem:[%s283 + $0x60] sm:$0xff]
                  %298 = vst [vmem:[%s284 + $0x30] sm:$0xff] %v297
                  %v299 = vld [vmem:[%s283 + $0x70] sm:$0xff]
                  %300 = vst [vmem:[%s284 + $0x38] sm:$0xff] %v299
                  %v301 = vld [vmem:[%s283 + $0x80] sm:$0xff]
                  %302 = vst [vmem:[%s284 + $0x40] sm:$0xff] %v301
                  %v303 = vld [vmem:[%s283 + $0x90] sm:$0xff]
                  %304 = vst [vmem:[%s284 + $0x48] sm:$0xff] %v303
                  %v305 = vld [vmem:[%s283 + $0xa0] sm:$0xff]
                  %306 = vst [vmem:[%s284 + $0x50] sm:$0xff] %v305
                $region72: #{dqn_forward.1} parent=66 // loop_footer
                  %s282 = sadd.s32 1, %s278
                $region73: #{dqn_forward.1} parent=66 // loop_footer_branch
                  %277 = sbr.rel target = $region69
                $region74: #{dqn_forward.1} parent=66 // loop_exit
                  _
              $region67: #{dqn_forward.1} parent=51 // pred_fallthru
                _
              // Predicated region
              $region75: #{dqn_forward.1} parent=51 // pred_check
                _
              $region76: #{dqn_forward.1} parent=51 // pred_check_branch
                %308 = sbr.rel target = $region78
              $region77: #{dqn_forward.1} parent=51 // pred_region
                _
              $region78: #{dqn_forward.1} parent=51 // pred_fallthru
                _
            $region52: #{dqn_forward.1} parent=47 // pred_fallthru
              _
            // Predicated region
            $region53: #{dqn_forward.1} parent=47 // pred_check
              _
            $region54: #{dqn_forward.1} parent=47 // pred_check_branch
              %243 = sbr.rel target = $region56
            $region55: #{dqn_forward.1} parent=47 // pred_region
              loop: start=0, step=1, limit=1
              $region57: #{dqn_forward.1} parent=55 // loop_pre_header
                _
              $region58: #{dqn_forward.1} parent=55 // loop_header
                %s246 = sphi 0, %s250
                %p247 = scmp.ge.s32.totalorder %s246, 1
                %s251 = sphi %s237, %s237
                %s252 = sphi %s234, %s234
              $region59: #{dqn_forward.1} parent=55 // loop_header_branch
                %249 = sbr.rel (%p247) target = $region63
              $region60: #{dqn_forward.1} parent=55 // loop_body
                %v253 = vld [vmem:[%s251] sm:$0xff]
                %254 = vst [vmem:[%s252] sm:$0xff] %v253
                %v255 = vld [vmem:[%s251 + $0x10] sm:$0xff]
                %256 = vst [vmem:[%s252 + $0x8] sm:$0xff] %v255
                %v257 = vld [vmem:[%s251 + $0x20] sm:$0xff]
                %258 = vst [vmem:[%s252 + $0x10] sm:$0xff] %v257
                %v259 = vld [vmem:[%s251 + $0x30] sm:$0xff]
                %260 = vst [vmem:[%s252 + $0x18] sm:$0xff] %v259
                %v261 = vld [vmem:[%s251 + $0x40] sm:$0xff]
                %262 = vst [vmem:[%s252 + $0x20] sm:$0xff] %v261
                %v263 = vld [vmem:[%s251 + $0x50] sm:$0xff]
                %264 = vst [vmem:[%s252 + $0x28] sm:$0xff] %v263
                %v265 = vld [vmem:[%s251 + $0x60] sm:$0xff]
                %266 = vst [vmem:[%s252 + $0x30] sm:$0xff] %v265
                %v267 = vld [vmem:[%s251 + $0x70] sm:$0xff]
                %268 = vst [vmem:[%s252 + $0x38] sm:$0xff] %v267
                %v269 = vld [vmem:[%s251 + $0x80] sm:$0xff]
                %270 = vst [vmem:[%s252 + $0x40] sm:$0xff] %v269
                %v271 = vld [vmem:[%s251 + $0x90] sm:$0xff]
                %272 = vst [vmem:[%s252 + $0x48] sm:$0xff] %v271
                %v273 = vld [vmem:[%s251 + $0xa0] sm:$0xff]
                %274 = vst [vmem:[%s252 + $0x50] sm:$0xff] %v273
              $region61: #{dqn_forward.1} parent=55 // loop_footer
                %s250 = sadd.s32 1, %s246
              $region62: #{dqn_forward.1} parent=55 // loop_footer_branch
                %245 = sbr.rel target = $region58
              $region63: #{dqn_forward.1} parent=55 // loop_exit
                _
            $region56: #{dqn_forward.1} parent=47 // pred_fallthru
              _
          $region48: #{dqn_forward.1} parent=43 // pred_fallthru
            _
          %309 = vnop
        $region44: #{dqn_forward.1} parent=39 // pred_fallthru
          _
      $region40: #{dqn_forward.1} parent=5 // pred_fallthru
        _
      %p310 = scmp.le.s32.totalorder 1, %s13
      %p311 = scmp.lt.s32.totalorder %s13, 3
      %p312 = pnand %p310, %p311
      %p313 = pneg %p312
      // Predicated region
      $region79: #{dqn_forward.1} parent=5 // pred_check
        _
      $region80: #{dqn_forward.1} parent=5 // pred_check_branch
        %315 = sbr.rel (%p312) target = $region82
      $region81: #{dqn_forward.1} parent=5 // pred_region
        %s316 = ssub.s32 %s13, 1
        %s317 = sand.u32 %s26, 1
        %s318 = sand.u32 %s26, 1
        %s319 = smul.addr %s318, 88
        %s320 = scalar_lea.vmem [#allocation3], %s319
        // Predicated region
        $region83: #{dqn_forward.1} parent=81 // pred_check
          %p321 = pneg %p39
        $region84: #{dqn_forward.1} parent=81 // pred_check_branch
          %323 = sbr.rel (%p321) target = $region86
        $region85: #{dqn_forward.1} parent=81 // pred_region
          _
        $region86: #{dqn_forward.1} parent=81 // pred_fallthru
          _
        %s324 = sand.u32 %s26, 1
        %s325 = sand.u32 %s26, 1
        %s326 = smul.addr %s325, 88
        %s327 = scalar_lea.vmem [#allocation3], %s326
        %p328 = pneg %p39
        %p329 = pneg %p36
        %p330 = pneg %p60
        %p331 = pneg %p57
        %p332 = pneg %p81
        %p333 = pneg %p78
        %p334 = pneg %p102
        %p335 = pneg %p99
        %p336 = pneg %p123
        %p337 = pneg %p120
        %p338 = pneg %p144
        %p339 = pneg %p141
        %p340 = pneg %p165
        %p341 = pneg %p162
        %p342 = pneg %p191
        %p343 = pneg %p188
        %p344 = scmp.lt.s32.totalorder %s18, 1
        %s345 = scalar_select %p344, %s18, 1
        %s346 = smul.addr %s345, 8
        %s347 = scalar_lea.vmem %s7, %s346
        %p348 = scmp.lt.s32.totalorder %s18, 1
        %s349 = scalar_select %p348, %s18, 1
        %s350 = smul.addr %s349, 8
        %s351 = scalar_lea.vmem %s7, %s350
        %353 = vst [vmem:[#allocation2] sm:$0xff] 0.0
        %354 = vst [vmem:[#allocation2 + $0x8] sm:$0xff] 0.0
        %v355 = vld [vmem:[%s320] sm:$0xff]
        %v356 = vld [vmem:[%s1] sm:$0xff]
        %v357 = vld [vmem:[%s1 + $0x8] sm:$0xf]
        %v358 = vld [vmem:[%s1 + $0xc] sm:$0xff]
        %v359 = vld [vmem:[%s1 + $0x14] sm:$0xf]
        %v360 = vld [vmem:[%s1 + $0x18] sm:$0xff]
        %v361 = vld [vmem:[%s1 + $0x20] sm:$0xf]
        %v362 = vld [vmem:[%s1 + $0x24] sm:$0xff]
        %v363 = vld [vmem:[%s1 + $0x2c] sm:$0xf]
        %v364 = vld [vmem:[%s1 + $0x30] sm:$0xff]
        %v365 = vld [vmem:[%s1 + $0x38] sm:$0xf]
        %v366 = vld [vmem:[%s1 + $0x3c] sm:$0xff]
        %v367 = vld [vmem:[%s1 + $0x44] sm:$0xf]
        %v368 = vld [vmem:[%s1 + $0x48] sm:$0xff]
        %v369 = vld [vmem:[%s1 + $0x50] sm:$0xf]
        %v370 = vld [vmem:[%s1 + $0x54] sm:$0xff]
        %v371 = vld [vmem:[%s1 + $0x5c] sm:$0xf]
        %v372 = vld [vmem:[%s1 + $0x60] sm:$0xff]
        %v373 = vld [vmem:[%s1 + $0x68] sm:$0xf]
        %v374 = vld [vmem:[%s1 + $0x6c] sm:$0xff]
        %v375 = vld [vmem:[%s1 + $0x74] sm:$0xf]
        %v376 = vld [vmem:[%s1 + $0x78] sm:$0xff]
        %v377 = vld [vmem:[%s1 + $0x80] sm:$0xf]
        %v378 = vld [vmem:[%s1 + $0x84] sm:$0xff]
        %v379 = vld [vmem:[%s1 + $0x8c] sm:$0xf]
        %v380 = vld [vmem:[%s1 + $0x90] sm:$0xff]
        %v381 = vld [vmem:[%s1 + $0x98] sm:$0xf]
        %v382 = vld [vmem:[%s1 + $0x9c] sm:$0xff]
        %v383 = vld [vmem:[%s1 + $0xa4] sm:$0xf]
        %v384 = vld [vmem:[%s1 + $0xa8] sm:$0xff]
        %v385 = vld [vmem:[%s1 + $0xb0] sm:$0xf]
        %v386 = vld [vmem:[%s1 + $0xb4] sm:$0xff]
        %v387 = vld [vmem:[%s1 + $0xbc] sm:$0xf]
        %v388 = vld [vmem:[%s1 + $0xc0] sm:$0xff]
        %v389 = vld [vmem:[%s1 + $0xc8] sm:$0xf]
        %v390 = vld [vmem:[%s1 + $0xcc] sm:$0xff]
        %v391 = vld [vmem:[%s1 + $0xd4] sm:$0xf]
        %v392 = vld [vmem:[%s1 + $0xd8] sm:$0xff]
        %v393 = vld [vmem:[%s1 + $0xe0] sm:$0xf]
        %v394 = vld [vmem:[%s1 + $0xe4] sm:$0xff]
        %v395 = vld [vmem:[%s1 + $0xec] sm:$0xf]
        %v396 = vld [vmem:[%s2] sm:$0x7]
        %v398 = vlaneseq
        %v399 = vshrl.u32 %v398, 7
        %v400 = vsub.s32 0, %v399
        %v401 = vrot.slane %v396, %v400
        %v402 = vlaneseq
        %v403 = vshrl.u32 %v402, 7
        %v404 = vsub.s32 1, %v403
        %v405 = vrot.slane %v396, %v404
        %v406 = vlaneseq
        %v407 = vshrl.u32 %v406, 7
        %v408 = vsub.s32 2, %v407
        %v409 = vrot.slane %v396, %v408
        %v414 = vunpack.c.l.b16 %v355
        %v415 = vunpack.c.h.b16 %v355
        %v416 = vpack.c.b16 %v414, %v414
        %v417 = vpack.c.b16 %v415, %v415
        %v459 = vunpack.c.l.b16 %v356
        %v460 = vunpack.c.h.b16 %v356
        %v461 = vunpack.c.l.b16 %v357
        %v462 = vunpack.c.l.b16 %v358
        %v463 = vunpack.c.h.b16 %v358
        %v464 = vunpack.c.l.b16 %v359
        %v465 = vunpack.c.l.b16 %v360
        %v466 = vunpack.c.h.b16 %v360
        %v467 = vunpack.c.l.b16 %v361
        %v468 = vunpack.c.l.b16 %v362
        %v469 = vunpack.c.h.b16 %v362
        %v470 = vunpack.c.l.b16 %v363
        %v471 = vunpack.c.l.b16 %v364
        %v472 = vunpack.c.h.b16 %v364
        %v473 = vunpack.c.l.b16 %v365
        %v474 = vunpack.c.l.b16 %v366
        %v475 = vunpack.c.h.b16 %v366
        %v476 = vunpack.c.l.b16 %v367
        %v477 = vunpack.c.l.b16 %v368
        %v478 = vunpack.c.h.b16 %v368
        %v479 = vunpack.c.l.b16 %v369
        %v480 = vunpack.c.l.b16 %v370
        %v481 = vunpack.c.h.b16 %v370
        %v482 = vunpack.c.l.b16 %v371
        %v483 = vunpack.c.l.b16 %v372
        %v484 = vunpack.c.h.b16 %v372
        %v485 = vunpack.c.l.b16 %v373
        %v486 = vunpack.c.l.b16 %v374
        %v487 = vunpack.c.h.b16 %v374
        %v488 = vunpack.c.l.b16 %v375
        %v489 = vunpack.c.l.b16 %v376
        %v490 = vunpack.c.h.b16 %v376
        %v491 = vunpack.c.l.b16 %v377
        %v492 = vunpack.c.l.b16 %v378
        %v493 = vunpack.c.h.b16 %v378
        %v494 = vunpack.c.l.b16 %v379
        %v495 = vunpack.c.l.b16 %v380
        %v496 = vunpack.c.h.b16 %v380
        %v497 = vunpack.c.l.b16 %v381
        %v498 = vunpack.c.l.b16 %v382
        %v499 = vunpack.c.h.b16 %v382
        %v500 = vunpack.c.l.b16 %v383
        %v501 = vunpack.c.l.b16 %v384
        %v502 = vunpack.c.h.b16 %v384
        %v503 = vunpack.c.l.b16 %v385
        %v504 = vunpack.c.l.b16 %v386
        %v505 = vunpack.c.h.b16 %v386
        %v506 = vunpack.c.l.b16 %v387
        %v507 = vunpack.c.l.b16 %v388
        %v508 = vunpack.c.h.b16 %v388
        %v509 = vunpack.c.l.b16 %v389
        %v510 = vunpack.c.l.b16 %v390
        %v511 = vunpack.c.h.b16 %v390
        %v512 = vunpack.c.l.b16 %v391
        %v513 = vunpack.c.l.b16 %v392
        %v514 = vunpack.c.h.b16 %v392
        %v515 = vunpack.c.l.b16 %v393
        %v516 = vunpack.c.l.b16 %v394
        %v517 = vunpack.c.h.b16 %v394
        %v518 = vunpack.c.l.b16 %v395
        %v519 = vpack.c.b16 %v462, %v459
        %v520 = vpack.c.b16 %v463, %v460
        %v521 = vpack.c.b16 %v464, %v461
        %v522 = vpack.c.b16 %v468, %v465
        %v523 = vpack.c.b16 %v469, %v466
        %v524 = vpack.c.b16 %v470, %v467
        %v525 = vpack.c.b16 %v474, %v471
        %v526 = vpack.c.b16 %v475, %v472
        %v527 = vpack.c.b16 %v476, %v473
        %v528 = vpack.c.b16 %v480, %v477
        %v529 = vpack.c.b16 %v481, %v478
        %v530 = vpack.c.b16 %v482, %v479
        %v531 = vpack.c.b16 %v486, %v483
        %v532 = vpack.c.b16 %v487, %v484
        %v533 = vpack.c.b16 %v488, %v485
        %v534 = vpack.c.b16 %v492, %v489
        %v535 = vpack.c.b16 %v493, %v490
        %v536 = vpack.c.b16 %v494, %v491
        %v537 = vpack.c.b16 %v498, %v495
        %v538 = vpack.c.b16 %v499, %v496
        %v539 = vpack.c.b16 %v500, %v497
        %v540 = vpack.c.b16 %v504, %v501
        %v541 = vpack.c.b16 %v505, %v502
        %v542 = vpack.c.b16 %v506, %v503
        %v543 = vpack.c.b16 %v510, %v507
        %v544 = vpack.c.b16 %v511, %v508
        %v545 = vpack.c.b16 %v512, %v509
        %v546 = vpack.c.b16 %v516, %v513
        %v547 = vpack.c.b16 %v517, %v514
        %v548 = vpack.c.b16 %v518, %v515
        %vm579 = vcmask 261120
        %v581 = vsel %vm579, %v417, 0
        %583 = vmatprep.subr.bf16.mxu0 %v520
        %584 = vmatpush1.bf16.msra.mxu0 %v519
        %585 = vmatprep.subr.bf16.mxu0 %v523
        %586 = vmatpush1.bf16.msra.mxu0 %v522
        %587 = vmatprep.subr.bf16.mxu0 %v526
        %588 = vmatpush1.bf16.msra.mxu0 %v525
        %589 = vmatprep.subr.bf16.mxu0 %v529
        %590 = vmatpush1.bf16.msra.mxu0 %v528
        %591 = vmatprep.subr.bf16.mxu0 %v532
        %592 = vmatpush1.bf16.msra.mxu0 %v531
        %593 = vmatprep.subr.bf16.mxu0 %v535
        %594 = vmatpush1.bf16.msra.mxu0 %v534
        %595 = vmatprep.subr.bf16.mxu0 %v538
        %596 = vmatpush1.bf16.msra.mxu0 %v537
        %597 = vmatprep.subr.bf16.mxu0 %v541
        %598 = vmatpush1.bf16.msra.mxu0 %v540
        %599 = vmatprep.subr.bf16.mxu0 %v544
        %600 = vmatpush1.bf16.msra.mxu0 %v543
        %601 = vmatprep.subr.bf16.mxu0 %v547
        %602 = vmatpush1.bf16.msra.mxu0 %v546
        %603 = vmatprep.subr.bf16.mxu0 0
        %604 = vmatpush1.bf16.msra.mxu0 0
        %605 = vmatprep.subr.bf16.mxu0 0
        %606 = vmatpush1.bf16.msra.mxu0 0
        %607 = vmatprep.subr.bf16.mxu0 0
        %608 = vmatpush1.bf16.msra.mxu0 0
        %609 = vmatprep.subr.bf16.mxu0 0
        %610 = vmatpush1.bf16.msra.mxu0 0
        %611 = vmatprep.subr.bf16.mxu0 0
        %612 = vmatpush1.bf16.msra.mxu0 0
        %613 = vmatprep.subr.bf16.mxu0 0
        %614 = vmatpush1.bf16.msra.mxu0 0
        %615 = vmatprep.mubr.bf16.mxu0 %v581
        %616 = vmatmul.mubr.bf16.gmra.mrb[0].mxu0 %v416
        %v617 = vpop.f32.mrb[0].mxu0
        %v618 = vadd.f32 %v401, %v617
        %v619 = vpop.f32.mrb[0].mxu0
        %v620 = vadd.f32 %v405, %v619
        %v621 = vpop.f32.mrb[0].mxu0
        %v622 = vpop.f32.mrb[0].mxu0
        %623 = vdwg.mxu0
        %624 = vmatprep.subr.bf16.mxu0 0
        %625 = vmatpush1.bf16.msra.mxu0 %v521
        %626 = vmatprep.subr.bf16.mxu0 0
        %627 = vmatpush1.bf16.msra.mxu0 %v524
        %628 = vmatprep.subr.bf16.mxu0 0
        %629 = vmatpush1.bf16.msra.mxu0 %v527
        %630 = vmatprep.subr.bf16.mxu0 0
        %631 = vmatpush1.bf16.msra.mxu0 %v530
        %632 = vmatprep.subr.bf16.mxu0 0
        %633 = vmatpush1.bf16.msra.mxu0 %v533
        %634 = vmatprep.subr.bf16.mxu0 0
        %635 = vmatpush1.bf16.msra.mxu0 %v536
        %636 = vmatprep.subr.bf16.mxu0 0
        %637 = vmatpush1.bf16.msra.mxu0 %v539
        %638 = vmatprep.subr.bf16.mxu0 0
        %639 = vmatpush1.bf16.msra.mxu0 %v542
        %640 = vmatprep.subr.bf16.mxu0 0
        %641 = vmatpush1.bf16.msra.mxu0 %v545
        %642 = vmatprep.subr.bf16.mxu0 0
        %643 = vmatpush1.bf16.msra.mxu0 %v548
        %644 = vmatprep.subr.bf16.mxu0 0
        %645 = vmatpush1.bf16.msra.mxu0 0
        %646 = vmatprep.subr.bf16.mxu0 0
        %647 = vmatpush1.bf16.msra.mxu0 0
        %648 = vmatprep.subr.bf16.mxu0 0
        %649 = vmatpush1.bf16.msra.mxu0 0
        %650 = vmatprep.subr.bf16.mxu0 0
        %651 = vmatpush1.bf16.msra.mxu0 0
        %652 = vmatprep.subr.bf16.mxu0 0
        %653 = vmatpush1.bf16.msra.mxu0 0
        %654 = vmatprep.subr.bf16.mxu0 0
        %655 = vmatpush1.bf16.msra.mxu0 0
        %656 = vmatprep.mubr.bf16.mxu0 %v581
        %657 = vmatmul.mubr.bf16.gmra.mrb[0].mxu0 %v416
        %v658 = vpop.f32.mrb[0].mxu0
        %v659 = vadd.f32 %v409, %v658
        %v660 = vpop.f32.mrb[0].mxu0
        %v661 = vpop.f32.mrb[0].mxu0
        %v662 = vpop.f32.mrb[0].mxu0
        %663 = vdwg.mxu0
        %v664 = vmax.f32 %v618, 0.0
        %v665 = vmax.f32 %v620, 0.0
        %v666 = vmax.f32 %v659, 0.0
        %v667 = vld [vmem:[#allocation2] sm:$0xff]
        %v668 = vld [vmem:[#allocation2 + $0x8] sm:$0xff]
        %v669 = vpack.c.bf16 %v664, %v664
        %v670 = vpack.c.bf16 %v665, %v665
        %v671 = vpack.c.bf16 %v666, %v666
        %v672 = vld [vmem:[%s3] sm:$0xff]
        %v673 = vld [vmem:[%s3 + $0x8] sm:$0xff]
        %v674 = vld [vmem:[%s3 + $0x10] sm:$0xff]
        %v675 = vld [vmem:[%s3 + $0x18] sm:$0xff]
        %v676 = vld [vmem:[%s3 + $0x20] sm:$0xff]
        %v677 = vld [vmem:[%s3 + $0x28] sm:$0xff]
        %v678 = vld [vmem:[%s3 + $0x30] sm:$0xff]
        %v679 = vld [vmem:[%s3 + $0x38] sm:$0xff]
        %v680 = vld [vmem:[%s3 + $0x40] sm:$0xff]
        %v681 = vld [vmem:[%s3 + $0x48] sm:$0xff]
        %v682 = vld [vmem:[%s3 + $0x50] sm:$0xff]
        %v683 = vld [vmem:[%s3 + $0x58] sm:$0xff]
        %v684 = vld [vmem:[%s3 + $0x60] sm:$0xff]
        %v685 = vld [vmem:[%s3 + $0x68] sm:$0xff]
        %v686 = vld [vmem:[%s3 + $0x70] sm:$0xff]
        %v687 = vld [vmem:[%s3 + $0x78] sm:$0xff]
        %v688 = vld [vmem:[%s3 + $0x80] sm:$0xff]
        %v689 = vld [vmem:[%s3 + $0x88] sm:$0xff]
        %v690 = vld [vmem:[%s3 + $0x90] sm:$0xff]
        %v691 = vld [vmem:[%s3 + $0x98] sm:$0xff]
        %v692 = vld [vmem:[%s3 + $0xa0] sm:$0xff]
        %v693 = vld [vmem:[%s3 + $0xa8] sm:$0xff]
        %v694 = vld [vmem:[%s3 + $0xb0] sm:$0xff]
        %v695 = vld [vmem:[%s3 + $0xb8] sm:$0xff]
        %v696 = vld [vmem:[%s3 + $0xc0] sm:$0xff]
        %v697 = vld [vmem:[%s3 + $0xc8] sm:$0xff]
        %v698 = vld [vmem:[%s3 + $0xd0] sm:$0xff]
        %v699 = vld [vmem:[%s3 + $0xd8] sm:$0xff]
        %v700 = vld [vmem:[%s3 + $0xe0] sm:$0xff]
        %v701 = vld [vmem:[%s3 + $0xe8] sm:$0xff]
        %v702 = vld [vmem:[%s3 + $0xf0] sm:$0xff]
        %v703 = vld [vmem:[%s3 + $0xf8] sm:$0xff]
        %v704 = vld [vmem:[%s3 + $0x100] sm:$0xff]
        %v705 = vld [vmem:[%s3 + $0x108] sm:$0xff]
        %v706 = vld [vmem:[%s3 + $0x110] sm:$0xff]
        %v707 = vld [vmem:[%s3 + $0x118] sm:$0xff]
        %v708 = vld [vmem:[%s3 + $0x120] sm:$0xff]
        %v709 = vld [vmem:[%s3 + $0x128] sm:$0xff]
        %v710 = vld [vmem:[%s3 + $0x130] sm:$0xff]
        %v711 = vld [vmem:[%s3 + $0x138] sm:$0xff]
        %v712 = vld [vmem:[%s3 + $0x140] sm:$0xff]
        %v713 = vld [vmem:[%s3 + $0x148] sm:$0xff]
        %v714 = vld [vmem:[%s3 + $0x150] sm:$0xff]
        %v715 = vld [vmem:[%s3 + $0x158] sm:$0xff]
        %v716 = vld [vmem:[%s3 + $0x160] sm:$0xff]
        %v717 = vld [vmem:[%s3 + $0x168] sm:$0xff]
        %v718 = vld [vmem:[%s3 + $0x170] sm:$0xff]
        %v719 = vld [vmem:[%s3 + $0x178] sm:$0xff]
        %v768 = vunpack.c.l.b16 %v672
        %v769 = vunpack.c.h.b16 %v672
        %v770 = vunpack.c.l.b16 %v673
        %v771 = vunpack.c.h.b16 %v673
        %v772 = vunpack.c.l.b16 %v674
        %v773 = vunpack.c.h.b16 %v674
        %v774 = vunpack.c.l.b16 %v675
        %v775 = vunpack.c.h.b16 %v675
        %v776 = vunpack.c.l.b16 %v676
        %v777 = vunpack.c.h.b16 %v676
        %v778 = vunpack.c.l.b16 %v677
        %v779 = vunpack.c.h.b16 %v677
        %v780 = vunpack.c.l.b16 %v678
        %v781 = vunpack.c.h.b16 %v678
        %v782 = vunpack.c.l.b16 %v679
        %v783 = vunpack.c.h.b16 %v679
        %v784 = vunpack.c.l.b16 %v680
        %v785 = vunpack.c.h.b16 %v680
        %v786 = vunpack.c.l.b16 %v681
        %v787 = vunpack.c.h.b16 %v681
        %v788 = vunpack.c.l.b16 %v682
        %v789 = vunpack.c.h.b16 %v682
        %v790 = vunpack.c.l.b16 %v683
        %v791 = vunpack.c.h.b16 %v683
        %v792 = vunpack.c.l.b16 %v684
        %v793 = vunpack.c.h.b16 %v684
        %v794 = vunpack.c.l.b16 %v685
        %v795 = vunpack.c.h.b16 %v685
        %v796 = vunpack.c.l.b16 %v686
        %v797 = vunpack.c.h.b16 %v686
        %v798 = vunpack.c.l.b16 %v687
        %v799 = vunpack.c.h.b16 %v687
        %v800 = vunpack.c.l.b16 %v688
        %v801 = vunpack.c.h.b16 %v688
        %v802 = vunpack.c.l.b16 %v689
        %v803 = vunpack.c.h.b16 %v689
        %v804 = vunpack.c.l.b16 %v690
        %v805 = vunpack.c.h.b16 %v690
        %v806 = vunpack.c.l.b16 %v691
        %v807 = vunpack.c.h.b16 %v691
        %v808 = vunpack.c.l.b16 %v692
        %v809 = vunpack.c.h.b16 %v692
        %v810 = vunpack.c.l.b16 %v693
        %v811 = vunpack.c.h.b16 %v693
        %v812 = vunpack.c.l.b16 %v694
        %v813 = vunpack.c.h.b16 %v694
        %v814 = vunpack.c.l.b16 %v695
        %v815 = vunpack.c.h.b16 %v695
        %v816 = vunpack.c.l.b16 %v696
        %v817 = vunpack.c.h.b16 %v696
        %v818 = vunpack.c.l.b16 %v697
        %v819 = vunpack.c.h.b16 %v697
        %v820 = vunpack.c.l.b16 %v698
        %v821 = vunpack.c.h.b16 %v698
        %v822 = vunpack.c.l.b16 %v699
        %v823 = vunpack.c.h.b16 %v699
        %v824 = vunpack.c.l.b16 %v700
        %v825 = vunpack.c.h.b16 %v700
        %v826 = vunpack.c.l.b16 %v701
        %v827 = vunpack.c.h.b16 %v701
        %v828 = vunpack.c.l.b16 %v702
        %v829 = vunpack.c.h.b16 %v702
        %v830 = vunpack.c.l.b16 %v703
        %v831 = vunpack.c.h.b16 %v703
        %v832 = vunpack.c.l.b16 %v704
        %v833 = vunpack.c.h.b16 %v704
        %v834 = vunpack.c.l.b16 %v705
        %v835 = vunpack.c.h.b16 %v705
        %v836 = vunpack.c.l.b16 %v706
        %v837 = vunpack.c.h.b16 %v706
        %v838 = vunpack.c.l.b16 %v707
        %v839 = vunpack.c.h.b16 %v707
        %v840 = vunpack.c.l.b16 %v708
        %v841 = vunpack.c.h.b16 %v708
        %v842 = vunpack.c.l.b16 %v709
        %v843 = vunpack.c.h.b16 %v709
        %v844 = vunpack.c.l.b16 %v710
        %v845 = vunpack.c.h.b16 %v710
        %v846 = vunpack.c.l.b16 %v711
        %v847 = vunpack.c.h.b16 %v711
        %v848 = vunpack.c.l.b16 %v712
        %v849 = vunpack.c.h.b16 %v712
        %v850 = vunpack.c.l.b16 %v713
        %v851 = vunpack.c.h.b16 %v713
        %v852 = vunpack.c.l.b16 %v714
        %v853 = vunpack.c.h.b16 %v714
        %v854 = vunpack.c.l.b16 %v715
        %v855 = vunpack.c.h.b16 %v715
        %v856 = vunpack.c.l.b16 %v716
        %v857 = vunpack.c.h.b16 %v716
        %v858 = vunpack.c.l.b16 %v717
        %v859 = vunpack.c.h.b16 %v717
        %v860 = vunpack.c.l.b16 %v718
        %v861 = vunpack.c.h.b16 %v718
        %v862 = vunpack.c.l.b16 %v719
        %v863 = vunpack.c.h.b16 %v719
        %v864 = vpack.c.b16 %v770, %v768
        %v865 = vpack.c.b16 %v771, %v769
        %v866 = vpack.c.b16 %v774, %v772
        %v867 = vpack.c.b16 %v775, %v773
        %v868 = vpack.c.b16 %v778, %v776
        %v869 = vpack.c.b16 %v779, %v777
        %v870 = vpack.c.b16 %v782, %v780
        %v871 = vpack.c.b16 %v783, %v781
        %v872 = vpack.c.b16 %v786, %v784
        %v873 = vpack.c.b16 %v787, %v785
        %v874 = vpack.c.b16 %v790, %v788
        %v875 = vpack.c.b16 %v791, %v789
        %v876 = vpack.c.b16 %v794, %v792
        %v877 = vpack.c.b16 %v795, %v793
        %v878 = vpack.c.b16 %v798, %v796
        %v879 = vpack.c.b16 %v799, %v797
        %v880 = vpack.c.b16 %v802, %v800
        %v881 = vpack.c.b16 %v803, %v801
        %v882 = vpack.c.b16 %v806, %v804
        %v883 = vpack.c.b16 %v807, %v805
        %v884 = vpack.c.b16 %v810, %v808
        %v885 = vpack.c.b16 %v811, %v809
        %v886 = vpack.c.b16 %v814, %v812
        %v887 = vpack.c.b16 %v815, %v813
        %v888 = vpack.c.b16 %v818, %v816
        %v889 = vpack.c.b16 %v819, %v817
        %v890 = vpack.c.b16 %v822, %v820
        %v891 = vpack.c.b16 %v823, %v821
        %v892 = vpack.c.b16 %v826, %v824
        %v893 = vpack.c.b16 %v827, %v825
        %v894 = vpack.c.b16 %v830, %v828
        %v895 = vpack.c.b16 %v831, %v829
        %v896 = vpack.c.b16 %v834, %v832
        %v897 = vpack.c.b16 %v835, %v833
        %v898 = vpack.c.b16 %v838, %v836
        %v899 = vpack.c.b16 %v839, %v837
        %v900 = vpack.c.b16 %v842, %v840
        %v901 = vpack.c.b16 %v843, %v841
        %v902 = vpack.c.b16 %v846, %v844
        %v903 = vpack.c.b16 %v847, %v845
        %v904 = vpack.c.b16 %v850, %v848
        %v905 = vpack.c.b16 %v851, %v849
        %v906 = vpack.c.b16 %v854, %v852
        %v907 = vpack.c.b16 %v855, %v853
        %v908 = vpack.c.b16 %v858, %v856
        %v909 = vpack.c.b16 %v859, %v857
        %v910 = vpack.c.b16 %v862, %v860
        %v911 = vpack.c.b16 %v863, %v861
        %960 = vmatprep.subr.bf16.mxu0 %v865
        %961 = vmatpush1.bf16.msra.mxu0 %v864
        %962 = vmatprep.subr.bf16.mxu0 %v867
        %963 = vmatpush1.bf16.msra.mxu0 %v866
        %964 = vmatprep.subr.bf16.mxu0 %v869
        %965 = vmatpush1.bf16.msra.mxu0 %v868
        %966 = vmatprep.subr.bf16.mxu0 %v871
        %967 = vmatpush1.bf16.msra.mxu0 %v870
        %968 = vmatprep.subr.bf16.mxu0 %v873
        %969 = vmatpush1.bf16.msra.mxu0 %v872
        %970 = vmatprep.subr.bf16.mxu0 %v875
        %971 = vmatpush1.bf16.msra.mxu0 %v874
        %972 = vmatprep.subr.bf16.mxu0 %v877
        %973 = vmatpush1.bf16.msra.mxu0 %v876
        %974 = vmatprep.subr.bf16.mxu0 %v879
        %975 = vmatpush1.bf16.msra.mxu0 %v878
        %976 = vmatprep.subr.bf16.mxu0 %v881
        %977 = vmatpush1.bf16.msra.mxu0 %v880
        %978 = vmatprep.subr.bf16.mxu0 %v883
        %979 = vmatpush1.bf16.msra.mxu0 %v882
        %980 = vmatprep.subr.bf16.mxu0 %v885
        %981 = vmatpush1.bf16.msra.mxu0 %v884
        %982 = vmatprep.subr.bf16.mxu0 %v887
        %983 = vmatpush1.bf16.msra.mxu0 %v886
        %984 = vmatprep.subr.bf16.mxu0 %v889
        %985 = vmatpush1.bf16.msra.mxu0 %v888
        %986 = vmatprep.subr.bf16.mxu0 %v891
        %987 = vmatpush1.bf16.msra.mxu0 %v890
        %988 = vmatprep.subr.bf16.mxu0 %v893
        %989 = vmatpush1.bf16.msra.mxu0 %v892
        %990 = vmatprep.subr.bf16.mxu0 %v895
        %991 = vmatpush1.bf16.msra.mxu0 %v894
        %992 = vmatprep.mubr.bf16.mxu0 %v670
        %993 = vmatmul.mubr.bf16.gmra.mrb[0].mxu0 %v669
        %v994 = vpop.f32.mrb[0].mxu0
        %v995 = vadd.f32 0.0, %v994
        %v996 = vpop.f32.mrb[0].mxu0
        %v997 = vadd.f32 0.0, %v996
        %v998 = vpop.f32.mrb[0].mxu0
        %v999 = vpop.f32.mrb[0].mxu0
        %1000 = vdwg.mxu0
        %1001 = vmatprep.subr.bf16.mxu0 %v897
        %1002 = vmatpush1.bf16.msra.mxu0 %v896
        %1003 = vmatprep.subr.bf16.mxu0 %v899
        %1004 = vmatpush1.bf16.msra.mxu0 %v898
        %1005 = vmatprep.subr.bf16.mxu0 %v901
        %1006 = vmatpush1.bf16.msra.mxu0 %v900
        %1007 = vmatprep.subr.bf16.mxu0 %v903
        %1008 = vmatpush1.bf16.msra.mxu0 %v902
        %1009 = vmatprep.subr.bf16.mxu0 %v905
        %1010 = vmatpush1.bf16.msra.mxu0 %v904
        %1011 = vmatprep.subr.bf16.mxu0 %v907
        %1012 = vmatpush1.bf16.msra.mxu0 %v906
        %1013 = vmatprep.subr.bf16.mxu0 %v909
        %1014 = vmatpush1.bf16.msra.mxu0 %v908
        %1015 = vmatprep.subr.bf16.mxu0 %v911
        %1016 = vmatpush1.bf16.msra.mxu0 %v910
        %1017 = vmatprep.subr.bf16.mxu0 0
        %1018 = vmatpush1.bf16.msra.mxu0 0
        %1019 = vmatprep.subr.bf16.mxu0 0
        %1020 = vmatpush1.bf16.msra.mxu0 0
        %1021 = vmatprep.subr.bf16.mxu0 0
        %1022 = vmatpush1.bf16.msra.mxu0 0
        %1023 = vmatprep.subr.bf16.mxu0 0
        %1024 = vmatpush1.bf16.msra.mxu0 0
        %1025 = vmatprep.subr.bf16.mxu0 0
        %1026 = vmatpush1.bf16.msra.mxu0 0
        %1027 = vmatprep.subr.bf16.mxu0 0
        %1028 = vmatpush1.bf16.msra.mxu0 0
        %1029 = vmatprep.subr.bf16.mxu0 0
        %1030 = vmatpush1.bf16.msra.mxu0 0
        %1031 = vmatprep.subr.bf16.mxu0 0
        %1032 = vmatpush1.bf16.msra.mxu0 0
        %1033 = vmatprep.mubr.bf16.mxu0 0
        %1034 = vmatmul.mubr.bf16.gmra.mrb[0].mxu0 %v671
        %v1035 = vpop.f32.mrb[0].mxu0
        %v1036 = vadd.f32 %v995, %v1035
        %v1037 = vpop.f32.mrb[0].mxu0
        %v1038 = vadd.f32 %v997, %v1037
        %v1039 = vpop.f32.mrb[0].mxu0
        %v1040 = vpop.f32.mrb[0].mxu0
        %1041 = vdwg.mxu0
        %v1042 = vadd.f32 %v667, %v1036
        %v1043 = vadd.f32 %v668, %v1038
        %1044 = vst [vmem:[#allocation2] sm:$0xff] %v1042
        %1045 = vst [vmem:[#allocation2 + $0x8] sm:$0xff] %v1043
        %s1046 = scalar_lea.vmem %s320, 8 [#allocation3]
        %v1047 = vld [vmem:[%s1046] sm:$0xff]
        %v1048 = vld [vmem:[%s1] sm:$0xff]
        %v1049 = vld [vmem:[%s1 + $0x8] sm:$0xf]
        %v1050 = vld [vmem:[%s1 + $0xc] sm:$0xff]
        %v1051 = vld [vmem:[%s1 + $0x14] sm:$0xf]
        %v1052 = vld [vmem:[%s1 + $0x18] sm:$0xff]
        %v1053 = vld [vmem:[%s1 + $0x20] sm:$0xf]
        %v1054 = vld [vmem:[%s1 + $0x24] sm:$0xff]
        %v1055 = vld [vmem:[%s1 + $0x2c] sm:$0xf]
        %v1056 = vld [vmem:[%s1 + $0x30] sm:$0xff]
        %v1057 = vld [vmem:[%s1 + $0x38] sm:$0xf]
        %v1058 = vld [vmem:[%s1 + $0x3c] sm:$0xff]
        %v1059 = vld [vmem:[%s1 + $0x44] sm:$0xf]
        %v1060 = vld [vmem:[%s1 + $0x48] sm:$0xff]
        %v1061 = vld [vmem:[%s1 + $0x50] sm:$0xf]
        %v1062 = vld [vmem:[%s1 + $0x54] sm:$0xff]
        %v1063 = vld [vmem:[%s1 + $0x5c] sm:$0xf]
        %v1064 = vld [vmem:[%s1 + $0x60] sm:$0xff]
        %v1065 = vld [vmem:[%s1 + $0x68] sm:$0xf]
        %v1066 = vld [vmem:[%s1 + $0x6c] sm:$0xff]
        %v1067 = vld [vmem:[%s1 + $0x74] sm:$0xf]
        %v1068 = vld [vmem:[%s1 + $0x78] sm:$0xff]
        %v1069 = vld [vmem:[%s1 + $0x80] sm:$0xf]
        %v1070 = vld [vmem:[%s1 + $0x84] sm:$0xff]
        %v1071 = vld [vmem:[%s1 + $0x8c] sm:$0xf]
        %v1072 = vld [vmem:[%s1 + $0x90] sm:$0xff]
        %v1073 = vld [vmem:[%s1 + $0x98] sm:$0xf]
        %v1074 = vld [vmem:[%s1 + $0x9c] sm:$0xff]
        %v1075 = vld [vmem:[%s1 + $0xa4] sm:$0xf]
        %v1076 = vld [vmem:[%s1 + $0xa8] sm:$0xff]
        %v1077 = vld [vmem:[%s1 + $0xb0] sm:$0xf]
        %v1078 = vld [vmem:[%s1 + $0xb4] sm:$0xff]
        %v1079 = vld [vmem:[%s1 + $0xbc] sm:$0xf]
        %v1080 = vld [vmem:[%s1 + $0xc0] sm:$0xff]
        %v1081 = vld [vmem:[%s1 + $0xc8] sm:$0xf]
        %v1082 = vld [vmem:[%s1 + $0xcc] sm:$0xff]
        %v1083 = vld [vmem:[%s1 + $0xd4] sm:$0xf]
        %v1084 = vld [vmem:[%s1 + $0xd8] sm:$0xff]
        %v1085 = vld [vmem:[%s1 + $0xe0] sm:$0xf]
        %v1086 = vld [vmem:[%s1 + $0xe4] sm:$0xff]
        %v1087 = vld [vmem:[%s1 + $0xec] sm:$0xf]
        %v1088 = vld [vmem:[%s2] sm:$0x7]
        %v1090 = vlaneseq
        %v1091 = vshrl.u32 %v1090, 7
        %v1092 = vsub.s32 0, %v1091
        %v1093 = vrot.slane %v1088, %v1092
        %v1094 = vlaneseq
        %v1095 = vshrl.u32 %v1094, 7
        %v1096 = vsub.s32 1, %v1095
        %v1097 = vrot.slane %v1088, %v1096
        %v1098 = vlaneseq
        %v1099 = vshrl.u32 %v1098, 7
        %v1100 = vsub.s32 2, %v1099
        %v1101 = vrot.slane %v1088, %v1100
        %v1106 = vunpack.c.l.b16 %v1047
        %v1107 = vunpack.c.h.b16 %v1047
        %v1108 = vpack.c.b16 %v1106, %v1106
        %v1109 = vpack.c.b16 %v1107, %v1107
        %v1151 = vunpack.c.l.b16 %v1048
        %v1152 = vunpack.c.h.b16 %v1048
        %v1153 = vunpack.c.l.b16 %v1049
        %v1154 = vunpack.c.l.b16 %v1050
        %v1155 = vunpack.c.h.b16 %v1050
        %v1156 = vunpack.c.l.b16 %v1051
        %v1157 = vunpack.c.l.b16 %v1052
        %v1158 = vunpack.c.h.b16 %v1052
        %v1159 = vunpack.c.l.b16 %v1053
        %v1160 = vunpack.c.l.b16 %v1054
        %v1161 = vunpack.c.h.b16 %v1054
        %v1162 = vunpack.c.l.b16 %v1055
        %v1163 = vunpack.c.l.b16 %v1056
        %v1164 = vunpack.c.h.b16 %v1056
        %v1165 = vunpack.c.l.b16 %v1057
        %v1166 = vunpack.c.l.b16 %v1058
        %v1167 = vunpack.c.h.b16 %v1058
        %v1168 = vunpack.c.l.b16 %v1059
        %v1169 = vunpack.c.l.b16 %v1060
        %v1170 = vunpack.c.h.b16 %v1060
        %v1171 = vunpack.c.l.b16 %v1061
        %v1172 = vunpack.c.l.b16 %v1062
        %v1173 = vunpack.c.h.b16 %v1062
        %v1174 = vunpack.c.l.b16 %v1063
        %v1175 = vunpack.c.l.b16 %v1064
        %v1176 = vunpack.c.h.b16 %v1064
        %v1177 = vunpack.c.l.b16 %v1065
        %v1178 = vunpack.c.l.b16 %v1066
        %v1179 = vunpack.c.h.b16 %v1066
        %v1180 = vunpack.c.l.b16 %v1067
        %v1181 = vunpack.c.l.b16 %v1068
        %v1182 = vunpack.c.h.b16 %v1068
        %v1183 = vunpack.c.l.b16 %v1069
        %v1184 = vunpack.c.l.b16 %v1070
        %v1185 = vunpack.c.h.b16 %v1070
        %v1186 = vunpack.c.l.b16 %v1071
        %v1187 = vunpack.c.l.b16 %v1072
        %v1188 = vunpack.c.h.b16 %v1072
        %v1189 = vunpack.c.l.b16 %v1073
        %v1190 = vunpack.c.l.b16 %v1074
        %v1191 = vunpack.c.h.b16 %v1074
        %v1192 = vunpack.c.l.b16 %v1075
        %v1193 = vunpack.c.l.b16 %v1076
        %v1194 = vunpack.c.h.b16 %v1076
        %v1195 = vunpack.c.l.b16 %v1077
        %v1196 = vunpack.c.l.b16 %v1078
        %v1197 = vunpack.c.h.b16 %v1078
        %v1198 = vunpack.c.l.b16 %v1079
        %v1199 = vunpack.c.l.b16 %v1080
        %v1200 = vunpack.c.h.b16 %v1080
        %v1201 = vunpack.c.l.b16 %v1081
        %v1202 = vunpack.c.l.b16 %v1082
        %v1203 = vunpack.c.h.b16 %v1082
        %v1204 = vunpack.c.l.b16 %v1083
        %v1205 = vunpack.c.l.b16 %v1084
        %v1206 = vunpack.c.h.b16 %v1084
        %v1207 = vunpack.c.l.b16 %v1085
        %v1208 = vunpack.c.l.b16 %v1086
        %v1209 = vunpack.c.h.b16 %v1086
        %v1210 = vunpack.c.l.b16 %v1087
        %v1211 = vpack.c.b16 %v1154, %v1151
        %v1212 = vpack.c.b16 %v1155, %v1152
        %v1213 = vpack.c.b16 %v1156, %v1153
        %v1214 = vpack.c.b16 %v1160, %v1157
        %v1215 = vpack.c.b16 %v1161, %v1158
        %v1216 = vpack.c.b16 %v1162, %v1159
        %v1217 = vpack.c.b16 %v1166, %v1163
        %v1218 = vpack.c.b16 %v1167, %v1164
        %v1219 = vpack.c.b16 %v1168, %v1165
        %v1220 = vpack.c.b16 %v1172, %v1169
        %v1221 = vpack.c.b16 %v1173, %v1170
        %v1222 = vpack.c.b16 %v1174, %v1171
        %v1223 = vpack.c.b16 %v1178, %v1175
        %v1224 = vpack.c.b16 %v1179, %v1176
        %v1225 = vpack.c.b16 %v1180, %v1177
        %v1226 = vpack.c.b16 %v1184, %v1181
        %v1227 = vpack.c.b16 %v1185, %v1182
        %v1228 = vpack.c.b16 %v1186, %v1183
        %v1229 = vpack.c.b16 %v1190, %v1187
        %v1230 = vpack.c.b16 %v1191, %v1188
        %v1231 = vpack.c.b16 %v1192, %v1189
        %v1232 = vpack.c.b16 %v1196, %v1193
        %v1233 = vpack.c.b16 %v1197, %v1194
        %v1234 = vpack.c.b16 %v1198, %v1195
        %v1235 = vpack.c.b16 %v1202, %v1199
        %v1236 = vpack.c.b16 %v1203, %v1200
        %v1237 = vpack.c.b16 %v1204, %v1201
        %v1238 = vpack.c.b16 %v1208, %v1205
        %v1239 = vpack.c.b16 %v1209, %v1206
        %v1240 = vpack.c.b16 %v1210, %v1207
        %v1272 = vsel %vm579, %v1109, 0
        %1274 = vmatprep.subr.bf16.mxu0 %v1212
        %1275 = vmatpush1.bf16.msra.mxu0 %v1211
        %1276 = vmatprep.subr.bf16.mxu0 %v1215
        %1277 = vmatpush1.bf16.msra.mxu0 %v1214
        %1278 = vmatprep.subr.bf16.mxu0 %v1218
        %1279 = vmatpush1.bf16.msra.mxu0 %v1217
        %1280 = vmatprep.subr.bf16.mxu0 %v1221
        %1281 = vmatpush1.bf16.msra.mxu0 %v1220
        %1282 = vmatprep.subr.bf16.mxu0 %v1224
        %1283 = vmatpush1.bf16.msra.mxu0 %v1223
        %1284 = vmatprep.subr.bf16.mxu0 %v1227
        %1285 = vmatpush1.bf16.msra.mxu0 %v1226
        %1286 = vmatprep.subr.bf16.mxu0 %v1230
        %1287 = vmatpush1.bf16.msra.mxu0 %v1229
        %1288 = vmatprep.subr.bf16.mxu0 %v1233
        %1289 = vmatpush1.bf16.msra.mxu0 %v1232
        %1290 = vmatprep.subr.bf16.mxu0 %v1236
        %1291 = vmatpush1.bf16.msra.mxu0 %v1235
        %1292 = vmatprep.subr.bf16.mxu0 %v1239
        %1293 = vmatpush1.bf16.msra.mxu0 %v1238
        %1294 = vmatprep.subr.bf16.mxu0 0
        %1295 = vmatpush1.bf16.msra.mxu0 0
        %1296 = vmatprep.subr.bf16.mxu0 0
        %1297 = vmatpush1.bf16.msra.mxu0 0
        %1298 = vmatprep.subr.bf16.mxu0 0
        %1299 = vmatpush1.bf16.msra.mxu0 0
        %1300 = vmatprep.subr.bf16.mxu0 0
        %1301 = vmatpush1.bf16.msra.mxu0 0
        %1302 = vmatprep.subr.bf16.mxu0 0
        %1303 = vmatpush1.bf16.msra.mxu0 0
        %1304 = vmatprep.subr.bf16.mxu0 0
        %1305 = vmatpush1.bf16.msra.mxu0 0
        %1306 = vmatprep.mubr.bf16.mxu0 %v1272
        %1307 = vmatmul.mubr.bf16.gmra.mrb[0].mxu0 %v1108
        %v1308 = vpop.f32.mrb[0].mxu0
        %v1309 = vadd.f32 %v1093, %v1308
        %v1310 = vpop.f32.mrb[0].mxu0
        %v1311 = vadd.f32 %v1097, %v1310
        %v1312 = vpop.f32.mrb[0].mxu0
        %v1313 = vpop.f32.mrb[0].mxu0
        %1314 = vdwg.mxu0
        %1315 = vmatprep.subr.bf16.mxu0 0
        %1316 = vmatpush1.bf16.msra.mxu0 %v1213
        %1317 = vmatprep.subr.bf16.mxu0 0
        %1318 = vmatpush1.bf16.msra.mxu0 %v1216
        %1319 = vmatprep.subr.bf16.mxu0 0
        %1320 = vmatpush1.bf16.msra.mxu0 %v1219
        %1321 = vmatprep.subr.bf16.mxu0 0
        %1322 = vmatpush1.bf16.msra.mxu0 %v1222
        %1323 = vmatprep.subr.bf16.mxu0 0
        %1324 = vmatpush1.bf16.msra.mxu0 %v1225
        %1325 = vmatprep.subr.bf16.mxu0 0
        %1326 = vmatpush1.bf16.msra.mxu0 %v1228
        %1327 = vmatprep.subr.bf16.mxu0 0
        %1328 = vmatpush1.bf16.msra.mxu0 %v1231
        %1329 = vmatprep.subr.bf16.mxu0 0
        %1330 = vmatpush1.bf16.msra.mxu0 %v1234
        %1331 = vmatprep.subr.bf16.mxu0 0
        %1332 = vmatpush1.bf16.msra.mxu0 %v1237
        %1333 = vmatprep.subr.bf16.mxu0 0
        %1334 = vmatpush1.bf16.msra.mxu0 %v1240
        %1335 = vmatprep.subr.bf16.mxu0 0
        %1336 = vmatpush1.bf16.msra.mxu0 0
        %1337 = vmatprep.subr.bf16.mxu0 0
        %1338 = vmatpush1.bf16.msra.mxu0 0
        %1339 = vmatprep.subr.bf16.mxu0 0
        %1340 = vmatpush1.bf16.msra.mxu0 0
        %1341 = vmatprep.subr.bf16.mxu0 0
        %1342 = vmatpush1.bf16.msra.mxu0 0
        %1343 = vmatprep.subr.bf16.mxu0 0
        %1344 = vmatpush1.bf16.msra.mxu0 0
        %1345 = vmatprep.subr.bf16.mxu0 0
        %1346 = vmatpush1.bf16.msra.mxu0 0
        %1347 = vmatprep.mubr.bf16.mxu0 %v1272
        %1348 = vmatmul.mubr.bf16.gmra.mrb[0].mxu0 %v1108
        %v1349 = vpop.f32.mrb[0].mxu0
        %v1350 = vadd.f32 %v1101, %v1349
        %v1351 = vpop.f32.mrb[0].mxu0
        %v1352 = vpop.f32.mrb[0].mxu0
        %v1353 = vpop.f32.mrb[0].mxu0
        %1354 = vdwg.mxu0
        %v1355 = vmax.f32 %v1309, 0.0
        %v1356 = vmax.f32 %v1311, 0.0
        %v1357 = vmax.f32 %v1350, 0.0
        %v1358 = vld [vmem:[#allocation2] sm:$0xff]
        %v1359 = vld [vmem:[#allocation2 + $0x8] sm:$0xff]
        %v1360 = vpack.c.bf16 %v1355, %v1355
        %v1361 = vpack.c.bf16 %v1356, %v1356
        %v1362 = vpack.c.bf16 %v1357, %v1357
        %s1363 = scalar_lea.vmem %s3, 384
        %v1364 = vld [vmem:[%s1363] sm:$0xff]
        %v1365 = vld [vmem:[%s1363 + $0x8] sm:$0xff]
        %v1366 = vld [vmem:[%s1363 + $0x10] sm:$0xff]
        %v1367 = vld [vmem:[%s1363 + $0x18] sm:$0xff]
        %v1368 = vld [vmem:[%s1363 + $0x20] sm:$0xff]
        %v1369 = vld [vmem:[%s1363 + $0x28] sm:$0xff]
        %v1370 = vld [vmem:[%s1363 + $0x30] sm:$0xff]
        %v1371 = vld [vmem:[%s1363 + $0x38] sm:$0xff]
        %v1372 = vld [vmem:[%s1363 + $0x40] sm:$0xff]
        %v1373 = vld [vmem:[%s1363 + $0x48] sm:$0xff]
        %v1374 = vld [vmem:[%s1363 + $0x50] sm:$0xff]
        %v1375 = vld [vmem:[%s1363 + $0x58] sm:$0xff]
        %v1376 = vld [vmem:[%s1363 + $0x60] sm:$0xff]
        %v1377 = vld [vmem:[%s1363 + $0x68] sm:$0xff]
        %v1378 = vld [vmem:[%s1363 + $0x70] sm:$0xff]
        %v1379 = vld [vmem:[%s1363 + $0x78] sm:$0xff]
        %v1380 = vld [vmem:[%s1363 + $0x80] sm:$0xff]
        %v1381 = vld [vmem:[%s1363 + $0x88] sm:$0xff]
        %v1382 = vld [vmem:[%s1363 + $0x90] sm:$0xff]
        %v1383 = vld [vmem:[%s1363 + $0x98] sm:$0xff]
        %v1384 = vld [vmem:[%s1363 + $0xa0] sm:$0xff]
        %v1385 = vld [vmem:[%s1363 + $0xa8] sm:$0xff]
        %v1386 = vld [vmem:[%s1363 + $0xb0] sm:$0xff]
        %v1387 = vld [vmem:[%s1363 + $0xb8] sm:$0xff]
        %v1388 = vld [vmem:[%s1363 + $0xc0] sm:$0xff]
        %v1389 = vld [vmem:[%s1363 + $0xc8] sm:$0xff]
        %v1390 = vld [vmem:[%s1363 + $0xd0] sm:$0xff]
        %v1391 = vld [vmem:[%s1363 + $0xd8] sm:$0xff]
        %v1392 = vld [vmem:[%s1363 + $0xe0] sm:$0xff]
        %v1393 = vld [vmem:[%s1363 + $0xe8] sm:$0xff]
        %v1394 = vld [vmem:[%s1363 + $0xf0] sm:$0xff]
        %v1395 = vld [vmem:[%s1363 + $0xf8] sm:$0xff]
        %v1396 = vld [vmem:[%s1363 + $0x100] sm:$0xff]
        %v1397 = vld [vmem:[%s1363 + $0x108] sm:$0xff]
        %v1398 = vld [vmem:[%s1363 + $0x110] sm:$0xff]
        %v1399 = vld [vmem:[%s1363 + $0x118] sm:$0xff]
        %v1400 = vld [vmem:[%s1363 + $0x120] sm:$0xff]
        %v1401 = vld [vmem:[%s1363 + $0x128] sm:$0xff]
        %v1402 = vld [vmem:[%s1363 + $0x130] sm:$0xff]
        %v1403 = vld [vmem:[%s1363 + $0x138] sm:$0xff]
        %v1404 = vld [vmem:[%s1363 + $0x140] sm:$0xff]
        %v1405 = vld [vmem:[%s1363 + $0x148] sm:$0xff]
        %v1406 = vld [vmem:[%s1363 + $0x150] sm:$0xff]
        %v1407 = vld [vmem:[%s1363 + $0x158] sm:$0xff]
        %v1408 = vld [vmem:[%s1363 + $0x160] sm:$0xff]
        %v1409 = vld [vmem:[%s1363 + $0x168] sm:$0xff]
        %v1410 = vld [vmem:[%s1363 + $0x170] sm:$0xff]
        %v1411 = vld [vmem:[%s1363 + $0x178] sm:$0xff]
        %v1460 = vunpack.c.l.b16 %v1364
        %v1461 = vunpack.c.h.b16 %v1364
        %v1462 = vunpack.c.l.b16 %v1365
        %v1463 = vunpack.c.h.b16 %v1365
        %v1464 = vunpack.c.l.b16 %v1366
        %v1465 = vunpack.c.h.b16 %v1366
        %v1466 = vunpack.c.l.b16 %v1367
        %v1467 = vunpack.c.h.b16 %v1367
        %v1468 = vunpack.c.l.b16 %v1368
        %v1469 = vunpack.c.h.b16 %v1368
        %v1470 = vunpack.c.l.b16 %v1369
        %v1471 = vunpack.c.h.b16 %v1369
        %v1472 = vunpack.c.l.b16 %v1370
        %v1473 = vunpack.c.h.b16 %v1370
        %v1474 = vunpack.c.l.b16 %v1371
        %v1475 = vunpack.c.h.b16 %v1371
        %v1476 = vunpack.c.l.b16 %v1372
        %v1477 = vunpack.c.h.b16 %v1372
        %v1478 = vunpack.c.l.b16 %v1373
        %v1479 = vunpack.c.h.b16 %v1373
        %v1480 = vunpack.c.l.b16 %v1374
        %v1481 = vunpack.c.h.b16 %v1374
        %v1482 = vunpack.c.l.b16 %v1375
        %v1483 = vunpack.c.h.b16 %v1375
        %v1484 = vunpack.c.l.b16 %v1376
        %v1485 = vunpack.c.h.b16 %v1376
        %v1486 = vunpack.c.l.b16 %v1377
        %v1487 = vunpack.c.h.b16 %v1377
        %v1488 = vunpack.c.l.b16 %v1378
        %v1489 = vunpack.c.h.b16 %v1378
        %v1490 = vunpack.c.l.b16 %v1379
        %v1491 = vunpack.c.h.b16 %v1379
        %v1492 = vunpack.c.l.b16 %v1380
        %v1493 = vunpack.c.h.b16 %v1380
        %v1494 = vunpack.c.l.b16 %v1381
        %v1495 = vunpack.c.h.b16 %v1381
        %v1496 = vunpack.c.l.b16 %v1382
        %v1497 = vunpack.c.h.b16 %v1382
        %v1498 = vunpack.c.l.b16 %v1383
        %v1499 = vunpack.c.h.b16 %v1383
        %v1500 = vunpack.c.l.b16 %v1384
        %v1501 = vunpack.c.h.b16 %v1384
        %v1502 = vunpack.c.l.b16 %v1385
        %v1503 = vunpack.c.h.b16 %v1385
        %v1504 = vunpack.c.l.b16 %v1386
        %v1505 = vunpack.c.h.b16 %v1386
        %v1506 = vunpack.c.l.b16 %v1387
        %v1507 = vunpack.c.h.b16 %v1387
        %v1508 = vunpack.c.l.b16 %v1388
        %v1509 = vunpack.c.h.b16 %v1388
        %v1510 = vunpack.c.l.b16 %v1389
        %v1511 = vunpack.c.h.b16 %v1389
        %v1512 = vunpack.c.l.b16 %v1390
        %v1513 = vunpack.c.h.b16 %v1390
        %v1514 = vunpack.c.l.b16 %v1391
        %v1515 = vunpack.c.h.b16 %v1391
        %v1516 = vunpack.c.l.b16 %v1392
        %v1517 = vunpack.c.h.b16 %v1392
        %v1518 = vunpack.c.l.b16 %v1393
        %v1519 = vunpack.c.h.b16 %v1393
        %v1520 = vunpack.c.l.b16 %v1394
        %v1521 = vunpack.c.h.b16 %v1394
        %v1522 = vunpack.c.l.b16 %v1395
        %v1523 = vunpack.c.h.b16 %v1395
        %v1524 = vunpack.c.l.b16 %v1396
        %v1525 = vunpack.c.h.b16 %v1396
        %v1526 = vunpack.c.l.b16 %v1397
        %v1527 = vunpack.c.h.b16 %v1397
        %v1528 = vunpack.c.l.b16 %v1398
        %v1529 = vunpack.c.h.b16 %v1398
        %v1530 = vunpack.c.l.b16 %v1399
        %v1531 = vunpack.c.h.b16 %v1399
        %v1532 = vunpack.c.l.b16 %v1400
        %v1533 = vunpack.c.h.b16 %v1400
        %v1534 = vunpack.c.l.b16 %v1401
        %v1535 = vunpack.c.h.b16 %v1401
        %v1536 = vunpack.c.l.b16 %v1402
        %v1537 = vunpack.c.h.b16 %v1402
        %v1538 = vunpack.c.l.b16 %v1403
        %v1539 = vunpack.c.h.b16 %v1403
        %v1540 = vunpack.c.l.b16 %v1404
        %v1541 = vunpack.c.h.b16 %v1404
        %v1542 = vunpack.c.l.b16 %v1405
        %v1543 = vunpack.c.h.b16 %v1405
        %v1544 = vunpack.c.l.b16 %v1406
        %v1545 = vunpack.c.h.b16 %v1406
        %v1546 = vunpack.c.l.b16 %v1407
        %v1547 = vunpack.c.h.b16 %v1407
        %v1548 = vunpack.c.l.b16 %v1408
        %v1549 = vunpack.c.h.b16 %v1408
        %v1550 = vunpack.c.l.b16 %v1409
        %v1551 = vunpack.c.h.b16 %v1409
        %v1552 = vunpack.c.l.b16 %v1410
        %v1553 = vunpack.c.h.b16 %v1410
        %v1554 = vunpack.c.l.b16 %v1411
        %v1555 = vunpack.c.h.b16 %v1411
        %v1556 = vpack.c.b16 %v1462, %v1460
        %v1557 = vpack.c.b16 %v1463, %v1461
        %v1558 = vpack.c.b16 %v1466, %v1464
        %v1559 = vpack.c.b16 %v1467, %v1465
        %v1560 = vpack.c.b16 %v1470, %v1468
        %v1561 = vpack.c.b16 %v1471, %v1469
        %v1562 = vpack.c.b16 %v1474, %v1472
        %v1563 = vpack.c.b16 %v1475, %v1473
        %v1564 = vpack.c.b16 %v1478, %v1476
        %v1565 = vpack.c.b16 %v1479, %v1477
        %v1566 = vpack.c.b16 %v1482, %v1480
        %v1567 = vpack.c.b16 %v1483, %v1481
        %v1568 = vpack.c.b16 %v1486, %v1484
        %v1569 = vpack.c.b16 %v1487, %v1485
        %v1570 = vpack.c.b16 %v1490, %v1488
        %v1571 = vpack.c.b16 %v1491, %v1489
        %v1572 = vpack.c.b16 %v1494, %v1492
        %v1573 = vpack.c.b16 %v1495, %v1493
        %v1574 = vpack.c.b16 %v1498, %v1496
        %v1575 = vpack.c.b16 %v1499, %v1497
        %v1576 = vpack.c.b16 %v1502, %v1500
        %v1577 = vpack.c.b16 %v1503, %v1501
        %v1578 = vpack.c.b16 %v1506, %v1504
        %v1579 = vpack.c.b16 %v1507, %v1505
        %v1580 = vpack.c.b16 %v1510, %v1508
        %v1581 = vpack.c.b16 %v1511, %v1509
        %v1582 = vpack.c.b16 %v1514, %v1512
        %v1583 = vpack.c.b16 %v1515, %v1513
        %v1584 = vpack.c.b16 %v1518, %v1516
        %v1585 = vpack.c.b16 %v1519, %v1517
        %v1586 = vpack.c.b16 %v1522, %v1520
        %v1587 = vpack.c.b16 %v1523, %v1521
        %v1588 = vpack.c.b16 %v1526, %v1524
        %v1589 = vpack.c.b16 %v1527, %v1525
        %v1590 = vpack.c.b16 %v1530, %v1528
        %v1591 = vpack.c.b16 %v1531, %v1529
        %v1592 = vpack.c.b16 %v1534, %v1532
        %v1593 = vpack.c.b16 %v1535, %v1533
        %v1594 = vpack.c.b16 %v1538, %v1536
        %v1595 = vpack.c.b16 %v1539, %v1537
        %v1596 = vpack.c.b16 %v1542, %v1540
        %v1597 = vpack.c.b16 %v1543, %v1541
        %v1598 = vpack.c.b16 %v1546, %v1544
        %v1599 = vpack.c.b16 %v1547, %v1545
        %v1600 = vpack.c.b16 %v1550, %v1548
        %v1601 = vpack.c.b16 %v1551, %v1549
        %v1602 = vpack.c.b16 %v1554, %v1552
        %v1603 = vpack.c.b16 %v1555, %v1553
        %1652 = vmatprep.subr.bf16.mxu0 %v1557
        %1653 = vmatpush1.bf16.msra.mxu0 %v1556
        %1654 = vmatprep.subr.bf16.mxu0 %v1559
        %1655 = vmatpush1.bf16.msra.mxu0 %v1558
        %1656 = vmatprep.subr.bf16.mxu0 %v1561
        %1657 = vmatpush1.bf16.msra.mxu0 %v1560
        %1658 = vmatprep.subr.bf16.mxu0 %v1563
        %1659 = vmatpush1.bf16.msra.mxu0 %v1562
        %1660 = vmatprep.subr.bf16.mxu0 %v1565
        %1661 = vmatpush1.bf16.msra.mxu0 %v1564
        %1662 = vmatprep.subr.bf16.mxu0 %v1567
        %1663 = vmatpush1.bf16.msra.mxu0 %v1566
        %1664 = vmatprep.subr.bf16.mxu0 %v1569
        %1665 = vmatpush1.bf16.msra.mxu0 %v1568
        %1666 = vmatprep.subr.bf16.mxu0 %v1571
        %1667 = vmatpush1.bf16.msra.mxu0 %v1570
        %1668 = vmatprep.subr.bf16.mxu0 %v1573
        %1669 = vmatpush1.bf16.msra.mxu0 %v1572
        %1670 = vmatprep.subr.bf16.mxu0 %v1575
        %1671 = vmatpush1.bf16.msra.mxu0 %v1574
        %1672 = vmatprep.subr.bf16.mxu0 %v1577
        %1673 = vmatpush1.bf16.msra.mxu0 %v1576
        %1674 = vmatprep.subr.bf16.mxu0 %v1579
        %1675 = vmatpush1.bf16.msra.mxu0 %v1578
        %1676 = vmatprep.subr.bf16.mxu0 %v1581
        %1677 = vmatpush1.bf16.msra.mxu0 %v1580
        %1678 = vmatprep.subr.bf16.mxu0 %v1583
        %1679 = vmatpush1.bf16.msra.mxu0 %v1582
        %1680 = vmatprep.subr.bf16.mxu0 %v1585
        %1681 = vmatpush1.bf16.msra.mxu0 %v1584
        %1682 = vmatprep.subr.bf16.mxu0 %v1587
        %1683 = vmatpush1.bf16.msra.mxu0 %v1586
        %1684 = vmatprep.mubr.bf16.mxu0 %v1361
        %1685 = vmatmul.mubr.bf16.gmra.mrb[0].mxu0 %v1360
        %v1686 = vpop.f32.mrb[0].mxu0
        %v1687 = vadd.f32 0.0, %v1686
        %v1688 = vpop.f32.mrb[0].mxu0
        %v1689 = vadd.f32 0.0, %v1688
        %v1690 = vpop.f32.mrb[0].mxu0
        %v1691 = vpop.f32.mrb[0].mxu0
        %1692 = vdwg.mxu0
        %1693 = vmatprep.subr.bf16.mxu0 %v1589
        %1694 = vmatpush1.bf16.msra.mxu0 %v1588
        %1695 = vmatprep.subr.bf16.mxu0 %v1591
        %1696 = vmatpush1.bf16.msra.mxu0 %v1590
        %1697 = vmatprep.subr.bf16.mxu0 %v1593
        %1698 = vmatpush1.bf16.msra.mxu0 %v1592
        %1699 = vmatprep.subr.bf16.mxu0 %v1595
        %1700 = vmatpush1.bf16.msra.mxu0 %v1594
        %1701 = vmatprep.subr.bf16.mxu0 %v1597
        %1702 = vmatpush1.bf16.msra.mxu0 %v1596
        %1703 = vmatprep.subr.bf16.mxu0 %v1599
        %1704 = vmatpush1.bf16.msra.mxu0 %v1598
        %1705 = vmatprep.subr.bf16.mxu0 %v1601
        %1706 = vmatpush1.bf16.msra.mxu0 %v1600
        %1707 = vmatprep.subr.bf16.mxu0 %v1603
        %1708 = vmatpush1.bf16.msra.mxu0 %v1602
        %1709 = vmatprep.subr.bf16.mxu0 0
        %1710 = vmatpush1.bf16.msra.mxu0 0
        %1711 = vmatprep.subr.bf16.mxu0 0
        %1712 = vmatpush1.bf16.msra.mxu0 0
        %1713 = vmatprep.subr.bf16.mxu0 0
        %1714 = vmatpush1.bf16.msra.mxu0 0
        %1715 = vmatprep.subr.bf16.mxu0 0
        %1716 = vmatpush1.bf16.msra.mxu0 0
        %1717 = vmatprep.subr.bf16.mxu0 0
        %1718 = vmatpush1.bf16.msra.mxu0 0
        %1719 = vmatprep.subr.bf16.mxu0 0
        %1720 = vmatpush1.bf16.msra.mxu0 0
        %1721 = vmatprep.subr.bf16.mxu0 0
        %1722 = vmatpush1.bf16.msra.mxu0 0
        %1723 = vmatprep.subr.bf16.mxu0 0
        %1724 = vmatpush1.bf16.msra.mxu0 0
        %1725 = vmatprep.mubr.bf16.mxu0 0
        %1726 = vmatmul.mubr.bf16.gmra.mrb[0].mxu0 %v1362
        %v1727 = vpop.f32.mrb[0].mxu0
        %v1728 = vadd.f32 %v1687, %v1727
        %v1729 = vpop.f32.mrb[0].mxu0
        %v1730 = vadd.f32 %v1689, %v1729
        %v1731 = vpop.f32.mrb[0].mxu0
        %v1732 = vpop.f32.mrb[0].mxu0
        %1733 = vdwg.mxu0
        %v1734 = vadd.f32 %v1358, %v1728
        %v1735 = vadd.f32 %v1359, %v1730
        %1736 = vst [vmem:[#allocation2] sm:$0xff] %v1734
        %1737 = vst [vmem:[#allocation2 + $0x8] sm:$0xff] %v1735
        %s1738 = scalar_lea.vmem %s320, 16 [#allocation3]
        %v1739 = vld [vmem:[%s1738] sm:$0xff]
        %v1740 = vld [vmem:[%s1] sm:$0xff]
        %v1741 = vld [vmem:[%s1 + $0x8] sm:$0xf]
        %v1742 = vld [vmem:[%s1 + $0xc] sm:$0xff]
        %v1743 = vld [vmem:[%s1 + $0x14] sm:$0xf]
        %v1744 = vld [vmem:[%s1 + $0x18] sm:$0xff]
        %v1745 = vld [vmem:[%s1 + $0x20] sm:$0xf]
        %v1746 = vld [vmem:[%s1 + $0x24] sm:$0xff]
        %v1747 = vld [vmem:[%s1 + $0x2c] sm:$0xf]
        %v1748 = vld [vmem:[%s1 + $0x30] sm:$0xff]
        %v1749 = vld [vmem:[%s1 + $0x38] sm:$0xf]
        %v1750 = vld [vmem:[%s1 + $0x3c] sm:$0xff]
        %v1751 = vld [vmem:[%s1 + $0x44] sm:$0xf]
        %v1752 = vld [vmem:[%s1 + $0x48] sm:$0xff]
        %v1753 = vld [vmem:[%s1 + $0x50] sm:$0xf]
        %v1754 = vld [vmem:[%s1 + $0x54] sm:$0xff]
        %v1755 = vld [vmem:[%s1 + $0x5c] sm:$0xf]
        %v1756 = vld [vmem:[%s1 + $0x60] sm:$0xff]
        %v1757 = vld [vmem:[%s1 + $0x68] sm:$0xf]
        %v1758 = vld [vmem:[%s1 + $0x6c] sm:$0xff]
        %v1759 = vld [vmem:[%s1 + $0x74] sm:$0xf]
        %v1760 = vld [vmem:[%s1 + $0x78] sm:$0xff]
        %v1761 = vld [vmem:[%s1 + $0x80] sm:$0xf]
        %v1762 = vld [vmem:[%s1 + $0x84] sm:$0xff]
        %v1763 = vld [vmem:[%s1 + $0x8c] sm:$0xf]
        %v1764 = vld [vmem:[%s1 + $0x90] sm:$0xff]
        %v1765 = vld [vmem:[%s1 + $0x98] sm:$0xf]
        %v1766 = vld [vmem:[%s1 + $0x9c] sm:$0xff]
        %v1767 = vld [vmem:[%s1 + $0xa4] sm:$0xf]
        %v1768 = vld [vmem:[%s1 + $0xa8] sm:$0xff]
        %v1769 = vld [vmem:[%s1 + $0xb0] sm:$0xf]
        %v1770 = vld [vmem:[%s1 + $0xb4] sm:$0xff]
        %v1771 = vld [vmem:[%s1 + $0xbc] sm:$0xf]
        %v1772 = vld [vmem:[%s1 + $0xc0] sm:$0xff]
        %v1773 = vld [vmem:[%s1 + $0xc8] sm:$0xf]
        %v1774 = vld [vmem:[%s1 + $0xcc] sm:$0xff]
        %v1775 = vld [vmem:[%s1 + $0xd4] sm:$0xf]
        %v1776 = vld [vmem:[%s1 + $0xd8] sm:$0xff]
        %v1777 = vld [vmem:[%s1 + $0xe0] sm:$0xf]
        %v1778 = vld [vmem:[%s1 + $0xe4] sm:$0xff]
        %v1779 = vld [vmem:[%s1 + $0xec] sm:$0xf]
        %v1780 = vld [vmem:[%s2] sm:$0x7]
        %v1782 = vlaneseq
        %v1783 = vshrl.u32 %v1782, 7
        %v1784 = vsub.s32 0, %v1783
        %v1785 = vrot.slane %v1780, %v1784
        %v1786 = vlaneseq
        %v1787 = vshrl.u32 %v1786, 7
        %v1788 = vsub.s32 1, %v1787
        %v1789 = vrot.slane %v1780, %v1788
        %v1790 = vlaneseq
        %v1791 = vshrl.u32 %v1790, 7
        %v1792 = vsub.s32 2, %v1791
        %v1793 = vrot.slane %v1780, %v1792
        %v1798 = vunpack.c.l.b16 %v1739
        %v1799 = vunpack.c.h.b16 %v1739
        %v1800 = vpack.c.b16 %v1798, %v1798
        %v1801 = vpack.c.b16 %v1799, %v1799
        %v1843 = vunpack.c.l.b16 %v1740
        %v1844 = vunpack.c.h.b16 %v1740
        %v1845 = vunpack.c.l.b16 %v1741
        %v1846 = vunpack.c.l.b16 %v1742
        %v1847 = vunpack.c.h.b16 %v1742
        %v1848 = vunpack.c.l.b16 %v1743
        %v1849 = vunpack.c.l.b16 %v1744
        %v1850 = vunpack.c.h.b16 %v1744
        %v1851 = vunpack.c.l.b16 %v1745
        %v1852 = vunpack.c.l.b16 %v1746
        %v1853 = vunpack.c.h.b16 %v1746
        %v1854 = vunpack.c.l.b16 %v1747
        %v1855 = vunpack.c.l.b16 %v1748
        %v1856 = vunpack.c.h.b16 %v1748
        %v1857 = vunpack.c.l.b16 %v1749
        %v1858 = vunpack.c.l.b16 %v1750
        %v1859 = vunpack.c.h.b16 %v1750
        %v1860 = vunpack.c.l.b16 %v1751
        %v1861 = vunpack.c.l.b16 %v1752
        %v1862 = vunpack.c.h.b16 %v1752
        %v1863 = vunpack.c.l.b16 %v1753
        %v1864 = vunpack.c.l.b16 %v1754
        %v1865 = vunpack.c.h.b16 %v1754
        %v1866 = vunpack.c.l.b16 %v1755
        %v1867 = vunpack.c.l.b16 %v1756
        %v1868 = vunpack.c.h.b16 %v1756
        %v1869 = vunpack.c.l.b16 %v1757
        %v1870 = vunpack.c.l.b16 %v1758
        %v1871 = vunpack.c.h.b16 %v1758
        %v1872 = vunpack.c.l.b16 %v1759
        %v1873 = vunpack.c.l.b16 %v1760
        %v1874 = vunpack.c.h.b16 %v1760
        %v1875 = vunpack.c.l.b16 %v1761
        %v1876 = vunpack.c.l.b16 %v1762
        %v1877 = vunpack.c.h.b16 %v1762
        %v1878 = vunpack.c.l.b16 %v1763
        %v1879 = vunpack.c.l.b16 %v1764
        %v1880 = vunpack.c.h.b16 %v1764
        %v1881 = vunpack.c.l.b16 %v1765
        %v1882 = vunpack.c.l.b16 %v1766
        %v1883 = vunpack.c.h.b16 %v1766
        %v1884 = vunpack.c.l.b16 %v1767
        %v1885 = vunpack.c.l.b16 %v1768
        %v1886 = vunpack.c.h.b16 %v1768
        %v1887 = vunpack.c.l.b16 %v1769
        %v1888 = vunpack.c.l.b16 %v1770
        %v1889 = vunpack.c.h.b16 %v1770
        %v1890 = vunpack.c.l.b16 %v1771
        %v1891 = vunpack.c.l.b16 %v1772
        %v1892 = vunpack.c.h.b16 %v1772
        %v1893 = vunpack.c.l.b16 %v1773
        %v1894 = vunpack.c.l.b16 %v1774
        %v1895 = vunpack.c.h.b16 %v1774
        %v1896 = vunpack.c.l.b16 %v1775
        %v1897 = vunpack.c.l.b16 %v1776
        %v1898 = vunpack.c.h.b16 %v1776
        %v1899 = vunpack.c.l.b16 %v1777
        %v1900 = vunpack.c.l.b16 %v1778
        %v1901 = vunpack.c.h.b16 %v1778
        %v1902 = vunpack.c.l.b16 %v1779
        %v1903 = vpack.c.b16 %v1846, %v1843
        %v1904 = vpack.c.b16 %v1847, %v1844
        %v1905 = vpack.c.b16 %v1848, %v1845
        %v1906 = vpack.c.b16 %v1852, %v1849
        %v1907 = vpack.c.b16 %v1853, %v1850
        %v1908 = vpack.c.b16 %v1854, %v1851
        %v1909 = vpack.c.b16 %v1858, %v1855
        %v1910 = vpack.c.b16 %v1859, %v1856
        %v1911 = vpack.c.b16 %v1860, %v1857
        %v1912 = vpack.c.b16 %v1864, %v1861
        %v1913 = vpack.c.b16 %v1865, %v1862
        %v1914 = vpack.c.b16 %v1866, %v1863
        %v1915 = vpack.c.b16 %v1870, %v1867
        %v1916 = vpack.c.b16 %v1871, %v1868
        %v1917 = vpack.c.b16 %v1872, %v1869
        %v1918 = vpack.c.b16 %v1876, %v1873
        %v1919 = vpack.c.b16 %v1877, %v1874
        %v1920 = vpack.c.b16 %v1878, %v1875
        %v1921 = vpack.c.b16 %v1882, %v1879
        %v1922 = vpack.c.b16 %v1883, %v1880
        %v1923 = vpack.c.b16 %v1884, %v1881
        %v1924 = vpack.c.b16 %v1888, %v1885
        %v1925 = vpack.c.b16 %v1889, %v1886
        %v1926 = vpack.c.b16 %v1890, %v1887
        %v1927 = vpack.c.b16 %v1894, %v1891
        %v1928 = vpack.c.b16 %v1895, %v1892
        %v1929 = vpack.c.b16 %v1896, %v1893
        %v1930 = vpack.c.b16 %v1900, %v1897
        %v1931 = vpack.c.b16 %v1901, %v1898
        %v1932 = vpack.c.b16 %v1902, %v1899
        %v1964 = vsel %vm579, %v1801, 0
        %1966 = vmatprep.subr.bf16.mxu0 %v1904
        %1967 = vmatpush1.bf16.msra.mxu0 %v1903
        %1968 = vmatprep.subr.bf16.mxu0 %v1907
        %1969 = vmatpush1.bf16.msra.mxu0 %v1906
        %1970 = vmatprep.subr.bf16.mxu0 %v1910
        %1971 = vmatpush1.bf16.msra.mxu0 %v1909
        %1972 = vmatprep.subr.bf16.mxu0 %v1913
        %1973 = vmatpush1.bf16.msra.mxu0 %v1912
        %1974 = vmatprep.subr.bf16.mxu0 %v1916
        %1975 = vmatpush1.bf16.msra.mxu0 %v1915
        %1976 = vmatprep.subr.bf16.mxu0 %v1919
        %1977 = vmatpush1.bf16.msra.mxu0 %v1918
        %1978 = vmatprep.subr.bf16.mxu0 %v1922
        %1979 = vmatpush1.bf16.msra.mxu0 %v1921
        %1980 = vmatprep.subr.bf16.mxu0 %v1925
        %1981 = vmatpush1.bf16.msra.mxu0 %v1924
        %1982 = vmatprep.subr.bf16.mxu0 %v1928
        %1983 = vmatpush1.bf16.msra.mxu0 %v1927
        %1984 = vmatprep.subr.bf16.mxu0 %v1931
        %1985 = vmatpush1.bf16.msra.mxu0 %v1930
        %1986 = vmatprep.subr.bf16.mxu0 0
        %1987 = vmatpush1.bf16.msra.mxu0 0
        %1988 = vmatprep.subr.bf16.mxu0 0
        %1989 = vmatpush1.bf16.msra.mxu0 0
        %1990 = vmatprep.subr.bf16.mxu0 0
        %1991 = vmatpush1.bf16.msra.mxu0 0
        %1992 = vmatprep.subr.bf16.mxu0 0
        %1993 = vmatpush1.bf16.msra.mxu0 0
        %1994 = vmatprep.subr.bf16.mxu0 0
        %1995 = vmatpush1.bf16.msra.mxu0 0
        %1996 = vmatprep.subr.bf16.mxu0 0
        %1997 = vmatpush1.bf16.msra.mxu0 0
        %1998 = vmatprep.mubr.bf16.mxu0 %v1964
        %1999 = vmatmul.mubr.bf16.gmra.mrb[0].mxu0 %v1800
        %v2000 = vpop.f32.mrb[0].mxu0
        %v2001 = vadd.f32 %v1785, %v2000
        %v2002 = vpop.f32.mrb[0].mxu0
        %v2003 = vadd.f32 %v1789, %v2002
        %v2004 = vpop.f32.mrb[0].mxu0
        %v2005 = vpop.f32.mrb[0].mxu0
        %2006 = vdwg.mxu0
        %2007 = vmatprep.subr.bf16.mxu0 0
        %2008 = vmatpush1.bf16.msra.mxu0 %v1905
        %2009 = vmatprep.subr.bf16.mxu0 0
        %2010 = vmatpush1.bf16.msra.mxu0 %v1908
        %2011 = vmatprep.subr.bf16.mxu0 0
        %2012 = vmatpush1.bf16.msra.mxu0 %v1911
        %2013 = vmatprep.subr.bf16.mxu0 0
        %2014 = vmatpush1.bf16.msra.mxu0 %v1914
        %2015 = vmatprep.subr.bf16.mxu0 0
        %2016 = vmatpush1.bf16.msra.mxu0 %v1917
        %2017 = vmatprep.subr.bf16.mxu0 0
        %2018 = vmatpush1.bf16.msra.mxu0 %v1920
        %2019 = vmatprep.subr.bf16.mxu0 0
        %2020 = vmatpush1.bf16.msra.mxu0 %v1923
        %2021 = vmatprep.subr.bf16.mxu0 0
        %2022 = vmatpush1.bf16.msra.mxu0 %v1926
        %2023 = vmatprep.subr.bf16.mxu0 0
        %2024 = vmatpush1.bf16.msra.mxu0 %v1929
        %2025 = vmatprep.subr.bf16.mxu0 0
        %2026 = vmatpush1.bf16.msra.mxu0 %v1932
        %2027 = vmatprep.subr.bf16.mxu0 0
        %2028 = vmatpush1.bf16.msra.mxu0 0
        %2029 = vmatprep.subr.bf16.mxu0 0
        %2030 = vmatpush1.bf16.msra.mxu0 0
        %2031 = vmatprep.subr.bf16.mxu0 0
        %2032 = vmatpush1.bf16.msra.mxu0 0
        %2033 = vmatprep.subr.bf16.mxu0 0
        %2034 = vmatpush1.bf16.msra.mxu0 0
        %2035 = vmatprep.subr.bf16.mxu0 0
        %2036 = vmatpush1.bf16.msra.mxu0 0
        %2037 = vmatprep.subr.bf16.mxu0 0
        %2038 = vmatpush1.bf16.msra.mxu0 0
        %2039 = vmatprep.mubr.bf16.mxu0 %v1964
        %2040 = vmatmul.mubr.bf16.gmra.mrb[0].mxu0 %v1800
        %v2041 = vpop.f32.mrb[0].mxu0
        %v2042 = vadd.f32 %v1793, %v2041
        %v2043 = vpop.f32.mrb[0].mxu0
        %v2044 = vpop.f32.mrb[0].mxu0
        %v2045 = vpop.f32.mrb[0].mxu0
        %2046 = vdwg.mxu0
        %v2047 = vmax.f32 %v2001, 0.0
        %v2048 = vmax.f32 %v2003, 0.0
        %v2049 = vmax.f32 %v2042, 0.0
        %v2050 = vld [vmem:[#allocation2] sm:$0xff]
        %v2051 = vld [vmem:[#allocation2 + $0x8] sm:$0xff]
        %v2052 = vpack.c.bf16 %v2047, %v2047
        %v2053 = vpack.c.bf16 %v2048, %v2048
        %v2054 = vpack.c.bf16 %v2049, %v2049
        %s2055 = scalar_lea.vmem %s3, 768
        %v2056 = vld [vmem:[%s2055] sm:$0xff]
        %v2057 = vld [vmem:[%s2055 + $0x8] sm:$0xff]
        %v2058 = vld [vmem:[%s2055 + $0x10] sm:$0xff]
        %v2059 = vld [vmem:[%s2055 + $0x18] sm:$0xff]
        %v2060 = vld [vmem:[%s2055 + $0x20] sm:$0xff]
        %v2061 = vld [vmem:[%s2055 + $0x28] sm:$0xff]
        %v2062 = vld [vmem:[%s2055 + $0x30] sm:$0xff]
        %v2063 = vld [vmem:[%s2055 + $0x38] sm:$0xff]
        %v2064 = vld [vmem:[%s2055 + $0x40] sm:$0xff]
        %v2065 = vld [vmem:[%s2055 + $0x48] sm:$0xff]
        %v2066 = vld [vmem:[%s2055 + $0x50] sm:$0xff]
        %v2067 = vld [vmem:[%s2055 + $0x58] sm:$0xff]
        %v2068 = vld [vmem:[%s2055 + $0x60] sm:$0xff]
        %v2069 = vld [vmem:[%s2055 + $0x68] sm:$0xff]
        %v2070 = vld [vmem:[%s2055 + $0x70] sm:$0xff]
        %v2071 = vld [vmem:[%s2055 + $0x78] sm:$0xff]
        %v2072 = vld [vmem:[%s2055 + $0x80] sm:$0xff]
        %v2073 = vld [vmem:[%s2055 + $0x88] sm:$0xff]
        %v2074 = vld [vmem:[%s2055 + $0x90] sm:$0xff]
        %v2075 = vld [vmem:[%s2055 + $0x98] sm:$0xff]
        %v2076 = vld [vmem:[%s2055 + $0xa0] sm:$0xff]
        %v2077 = vld [vmem:[%s2055 + $0xa8] sm:$0xff]
        %v2078 = vld [vmem:[%s2055 + $0xb0] sm:$0xff]
        %v2079 = vld [vmem:[%s2055 + $0xb8] sm:$0xff]
        %v2080 = vld [vmem:[%s2055 + $0xc0] sm:$0xff]
        %v2081 = vld [vmem:[%s2055 + $0xc8] sm:$0xff]
        %v2082 = vld [vmem:[%s2055 + $0xd0] sm:$0xff]
        %v2083 = vld [vmem:[%s2055 + $0xd8] sm:$0xff]
        %v2084 = vld [vmem:[%s2055 + $0xe0] sm:$0xff]
        %v2085 = vld [vmem:[%s2055 + $0xe8] sm:$0xff]
        %v2086 = vld [vmem:[%s2055 + $0xf0] sm:$0xff]
        %v2087 = vld [vmem:[%s2055 + $0xf8] sm:$0xff]
        %v2088 = vld [vmem:[%s2055 + $0x100] sm:$0xff]
        %v2089 = vld [vmem:[%s2055 + $0x108] sm:$0xff]
        %v2090 = vld [vmem:[%s2055 + $0x110] sm:$0xff]
        %v2091 = vld [vmem:[%s2055 + $0x118] sm:$0xff]
        %v2092 = vld [vmem:[%s2055 + $0x120] sm:$0xff]
        %v2093 = vld [vmem:[%s2055 + $0x128] sm:$0xff]
        %v2094 = vld [vmem:[%s2055 + $0x130] sm:$0xff]
        %v2095 = vld [vmem:[%s2055 + $0x138] sm:$0xff]
        %v2096 = vld [vmem:[%s2055 + $0x140] sm:$0xff]
        %v2097 = vld [vmem:[%s2055 + $0x148] sm:$0xff]
        %v2098 = vld [vmem:[%s2055 + $0x150] sm:$0xff]
        %v2099 = vld [vmem:[%s2055 + $0x158] sm:$0xff]
        %v2100 = vld [vmem:[%s2055 + $0x160] sm:$0xff]
        %v2101 = vld [vmem:[%s2055 + $0x168] sm:$0xff]
        %v2102 = vld [vmem:[%s2055 + $0x170] sm:$0xff]
        %v2103 = vld [vmem:[%s2055 + $0x178] sm:$0xff]
        %v2152 = vunpack.c.l.b16 %v2056
        %v2153 = vunpack.c.h.b16 %v2056
        %v2154 = vunpack.c.l.b16 %v2057
        %v2155 = vunpack.c.h.b16 %v2057
        %v2156 = vunpack.c.l.b16 %v2058
        %v2157 = vunpack.c.h.b16 %v2058
        %v2158 = vunpack.c.l.b16 %v2059
        %v2159 = vunpack.c.h.b16 %v2059
        %v2160 = vunpack.c.l.b16 %v2060
        %v2161 = vunpack.c.h.b16 %v2060
        %v2162 = vunpack.c.l.b16 %v2061
        %v2163 = vunpack.c.h.b16 %v2061
        %v2164 = vunpack.c.l.b16 %v2062
        %v2165 = vunpack.c.h.b16 %v2062
        %v2166 = vunpack.c.l.b16 %v2063
        %v2167 = vunpack.c.h.b16 %v2063
        %v2168 = vunpack.c.l.b16 %v2064
        %v2169 = vunpack.c.h.b16 %v2064
        %v2170 = vunpack.c.l.b16 %v2065
        %v2171 = vunpack.c.h.b16 %v2065
        %v2172 = vunpack.c.l.b16 %v2066
        %v2173 = vunpack.c.h.b16 %v2066
        %v2174 = vunpack.c.l.b16 %v2067
        %v2175 = vunpack.c.h.b16 %v2067
        %v2176 = vunpack.c.l.b16 %v2068
        %v2177 = vunpack.c.h.b16 %v2068
        %v2178 = vunpack.c.l.b16 %v2069
        %v2179 = vunpack.c.h.b16 %v2069
        %v2180 = vunpack.c.l.b16 %v2070
        %v2181 = vunpack.c.h.b16 %v2070
        %v2182 = vunpack.c.l.b16 %v2071
        %v2183 = vunpack.c.h.b16 %v2071
        %v2184 = vunpack.c.l.b16 %v2072
        %v2185 = vunpack.c.h.b16 %v2072
        %v2186 = vunpack.c.l.b16 %v2073
        %v2187 = vunpack.c.h.b16 %v2073
        %v2188 = vunpack.c.l.b16 %v2074
        %v2189 = vunpack.c.h.b16 %v2074
        %v2190 = vunpack.c.l.b16 %v2075
        %v2191 = vunpack.c.h.b16 %v2075
        %v2192 = vunpack.c.l.b16 %v2076
        %v2193 = vunpack.c.h.b16 %v2076
        %v2194 = vunpack.c.l.b16 %v2077
        %v2195 = vunpack.c.h.b16 %v2077
        %v2196 = vunpack.c.l.b16 %v2078
        %v2197 = vunpack.c.h.b16 %v2078
        %v2198 = vunpack.c.l.b16 %v2079
        %v2199 = vunpack.c.h.b16 %v2079
        %v2200 = vunpack.c.l.b16 %v2080
        %v2201 = vunpack.c.h.b16 %v2080
        %v2202 = vunpack.c.l.b16 %v2081
        %v2203 = vunpack.c.h.b16 %v2081
        %v2204 = vunpack.c.l.b16 %v2082
        %v2205 = vunpack.c.h.b16 %v2082
        %v2206 = vunpack.c.l.b16 %v2083
        %v2207 = vunpack.c.h.b16 %v2083
        %v2208 = vunpack.c.l.b16 %v2084
        %v2209 = vunpack.c.h.b16 %v2084
        %v2210 = vunpack.c.l.b16 %v2085
        %v2211 = vunpack.c.h.b16 %v2085
        %v2212 = vunpack.c.l.b16 %v2086
        %v2213 = vunpack.c.h.b16 %v2086
        %v2214 = vunpack.c.l.b16 %v2087
        %v2215 = vunpack.c.h.b16 %v2087
        %v2216 = vunpack.c.l.b16 %v2088
        %v2217 = vunpack.c.h.b16 %v2088
        %v2218 = vunpack.c.l.b16 %v2089
        %v2219 = vunpack.c.h.b16 %v2089
        %v2220 = vunpack.c.l.b16 %v2090
        %v2221 = vunpack.c.h.b16 %v2090
        %v2222 = vunpack.c.l.b16 %v2091
        %v2223 = vunpack.c.h.b16 %v2091
        %v2224 = vunpack.c.l.b16 %v2092
        %v2225 = vunpack.c.h.b16 %v2092
        %v2226 = vunpack.c.l.b16 %v2093
        %v2227 = vunpack.c.h.b16 %v2093
        %v2228 = vunpack.c.l.b16 %v2094
        %v2229 = vunpack.c.h.b16 %v2094
        %v2230 = vunpack.c.l.b16 %v2095
        %v2231 = vunpack.c.h.b16 %v2095
        %v2232 = vunpack.c.l.b16 %v2096
        %v2233 = vunpack.c.h.b16 %v2096
        %v2234 = vunpack.c.l.b16 %v2097
        %v2235 = vunpack.c.h.b16 %v2097
        %v2236 = vunpack.c.l.b16 %v2098
        %v2237 = vunpack.c.h.b16 %v2098
        %v2238 = vunpack.c.l.b16 %v2099
        %v2239 = vunpack.c.h.b16 %v2099
        %v2240 = vunpack.c.l.b16 %v2100
        %v2241 = vunpack.c.h.b16 %v2100
        %v2242 = vunpack.c.l.b16 %v2101
        %v2243 = vunpack.c.h.b16 %v2101
        %v2244 = vunpack.c.l.b16 %v2102
        %v2245 = vunpack.c.h.b16 %v2102
        %v2246 = vunpack.c.l.b16 %v2103
        %v2247 = vunpack.c.h.b16 %v2103
        %v2248 = vpack.c.b16 %v2154, %v2152
        %v2249 = vpack.c.b16 %v2155, %v2153
        %v2250 = vpack.c.b16 %v2158, %v2156
        %v2251 = vpack.c.b16 %v2159, %v2157
        %v2252 = vpack.c.b16 %v2162, %v2160
        %v2253 = vpack.c.b16 %v2163, %v2161
        %v2254 = vpack.c.b16 %v2166, %v2164
        %v2255 = vpack.c.b16 %v2167, %v2165
        %v2256 = vpack.c.b16 %v2170, %v2168
        %v2257 = vpack.c.b16 %v2171, %v2169
        %v2258 = vpack.c.b16 %v2174, %v2172
        %v2259 = vpack.c.b16 %v2175, %v2173
        %v2260 = vpack.c.b16 %v2178, %v2176
        %v2261 = vpack.c.b16 %v2179, %v2177
        %v2262 = vpack.c.b16 %v2182, %v2180
        %v2263 = vpack.c.b16 %v2183, %v2181
        %v2264 = vpack.c.b16 %v2186, %v2184
        %v2265 = vpack.c.b16 %v2187, %v2185
        %v2266 = vpack.c.b16 %v2190, %v2188
        %v2267 = vpack.c.b16 %v2191, %v2189
        %v2268 = vpack.c.b16 %v2194, %v2192
        %v2269 = vpack.c.b16 %v2195, %v2193
        %v2270 = vpack.c.b16 %v2198, %v2196
        %v2271 = vpack.c.b16 %v2199, %v2197
        %v2272 = vpack.c.b16 %v2202, %v2200
        %v2273 = vpack.c.b16 %v2203, %v2201
        %v2274 = vpack.c.b16 %v2206, %v2204
        %v2275 = vpack.c.b16 %v2207, %v2205
        %v2276 = vpack.c.b16 %v2210, %v2208
        %v2277 = vpack.c.b16 %v2211, %v2209
        %v2278 = vpack.c.b16 %v2214, %v2212
        %v2279 = vpack.c.b16 %v2215, %v2213
        %v2280 = vpack.c.b16 %v2218, %v2216
        %v2281 = vpack.c.b16 %v2219, %v2217
        %v2282 = vpack.c.b16 %v2222, %v2220
        %v2283 = vpack.c.b16 %v2223, %v2221
        %v2284 = vpack.c.b16 %v2226, %v2224
        %v2285 = vpack.c.b16 %v2227, %v2225
        %v2286 = vpack.c.b16 %v2230, %v2228
        %v2287 = vpack.c.b16 %v2231, %v2229
        %v2288 = vpack.c.b16 %v2234, %v2232
        %v2289 = vpack.c.b16 %v2235, %v2233
        %v2290 = vpack.c.b16 %v2238, %v2236
        %v2291 = vpack.c.b16 %v2239, %v2237
        %v2292 = vpack.c.b16 %v2242, %v2240
        %v2293 = vpack.c.b16 %v2243, %v2241
        %v2294 = vpack.c.b16 %v2246, %v2244
        %v2295 = vpack.c.b16 %v2247, %v2245
        %2344 = vmatprep.subr.bf16.mxu0 %v2249
        %2345 = vmatpush1.bf16.msra.mxu0 %v2248
        %2346 = vmatprep.subr.bf16.mxu0 %v2251
        %2347 = vmatpush1.bf16.msra.mxu0 %v2250
        %2348 = vmatprep.subr.bf16.mxu0 %v2253
        %2349 = vmatpush1.bf16.msra.mxu0 %v2252
        %2350 = vmatprep.subr.bf16.mxu0 %v2255
        %2351 = vmatpush1.bf16.msra.mxu0 %v2254
        %2352 = vmatprep.subr.bf16.mxu0 %v2257
        %2353 = vmatpush1.bf16.msra.mxu0 %v2256
        %2354 = vmatprep.subr.bf16.mxu0 %v2259
        %2355 = vmatpush1.bf16.msra.mxu0 %v2258
        %2356 = vmatprep.subr.bf16.mxu0 %v2261
        %2357 = vmatpush1.bf16.msra.mxu0 %v2260
        %2358 = vmatprep.subr.bf16.mxu0 %v2263
        %2359 = vmatpush1.bf16.msra.mxu0 %v2262
        %2360 = vmatprep.subr.bf16.mxu0 %v2265
        %2361 = vmatpush1.bf16.msra.mxu0 %v2264
        %2362 = vmatprep.subr.bf16.mxu0 %v2267
        %2363 = vmatpush1.bf16.msra.mxu0 %v2266
        %2364 = vmatprep.subr.bf16.mxu0 %v2269
        %2365 = vmatpush1.bf16.msra.mxu0 %v2268
        %2366 = vmatprep.subr.bf16.mxu0 %v2271
        %2367 = vmatpush1.bf16.msra.mxu0 %v2270
        %2368 = vmatprep.subr.bf16.mxu0 %v2273
        %2369 = vmatpush1.bf16.msra.mxu0 %v2272
        %2370 = vmatprep.subr.bf16.mxu0 %v2275
        %2371 = vmatpush1.bf16.msra.mxu0 %v2274
        %2372 = vmatprep.subr.bf16.mxu0 %v2277
        %2373 = vmatpush1.bf16.msra.mxu0 %v2276
        %2374 = vmatprep.subr.bf16.mxu0 %v2279
        %2375 = vmatpush1.bf16.msra.mxu0 %v2278
        %2376 = vmatprep.mubr.bf16.mxu0 %v2053
        %2377 = vmatmul.mubr.bf16.gmra.mrb[0].mxu0 %v2052
        %v2378 = vpop.f32.mrb[0].mxu0
        %v2379 = vadd.f32 0.0, %v2378
        %v2380 = vpop.f32.mrb[0].mxu0
        %v2381 = vadd.f32 0.0, %v2380
        %v2382 = vpop.f32.mrb[0].mxu0
        %v2383 = vpop.f32.mrb[0].mxu0
        %2384 = vdwg.mxu0
        %2385 = vmatprep.subr.bf16.mxu0 %v2281
        %2386 = vmatpush1.bf16.msra.mxu0 %v2280
        %2387 = vmatprep.subr.bf16.mxu0 %v2283
        %2388 = vmatpush1.bf16.msra.mxu0 %v2282
        %2389 = vmatprep.subr.bf16.mxu0 %v2285
        %2390 = vmatpush1.bf16.msra.mxu0 %v2284
        %2391 = vmatprep.subr.bf16.mxu0 %v2287
        %2392 = vmatpush1.bf16.msra.mxu0 %v2286
        %2393 = vmatprep.subr.bf16.mxu0 %v2289
        %2394 = vmatpush1.bf16.msra.mxu0 %v2288
        %2395 = vmatprep.subr.bf16.mxu0 %v2291
        %2396 = vmatpush1.bf16.msra.mxu0 %v2290
        %2397 = vmatprep.subr.bf16.mxu0 %v2293
        %2398 = vmatpush1.bf16.msra.mxu0 %v2292
        %2399 = vmatprep.subr.bf16.mxu0 %v2295
        %2400 = vmatpush1.bf16.msra.mxu0 %v2294
        %2401 = vmatprep.subr.bf16.mxu0 0
        %2402 = vmatpush1.bf16.msra.mxu0 0
        %2403 = vmatprep.subr.bf16.mxu0 0
        %2404 = vmatpush1.bf16.msra.mxu0 0
        %2405 = vmatprep.subr.bf16.mxu0 0
        %2406 = vmatpush1.bf16.msra.mxu0 0
        %2407 = vmatprep.subr.bf16.mxu0 0
        %2408 = vmatpush1.bf16.msra.mxu0 0
        %2409 = vmatprep.subr.bf16.mxu0 0
        %2410 = vmatpush1.bf16.msra.mxu0 0
        %2411 = vmatprep.subr.bf16.mxu0 0
        %2412 = vmatpush1.bf16.msra.mxu0 0
        %2413 = vmatprep.subr.bf16.mxu0 0
        %2414 = vmatpush1.bf16.msra.mxu0 0
        %2415 = vmatprep.subr.bf16.mxu0 0
        %2416 = vmatpush1.bf16.msra.mxu0 0
        %2417 = vmatprep.mubr.bf16.mxu0 0
        %2418 = vmatmul.mubr.bf16.gmra.mrb[0].mxu0 %v2054
        %v2419 = vpop.f32.mrb[0].mxu0
        %v2420 = vadd.f32 %v2379, %v2419
        %v2421 = vpop.f32.mrb[0].mxu0
        %v2422 = vadd.f32 %v2381, %v2421
        %v2423 = vpop.f32.mrb[0].mxu0
        %v2424 = vpop.f32.mrb[0].mxu0
        %2425 = vdwg.mxu0
        %v2426 = vadd.f32 %v2050, %v2420
        %v2427 = vadd.f32 %v2051, %v2422
        %2428 = vst [vmem:[#allocation2] sm:$0xff] %v2426
        %2429 = vst [vmem:[#allocation2 + $0x8] sm:$0xff] %v2427
        %s2430 = scalar_lea.vmem %s320, 24 [#allocation3]
        %v2431 = vld [vmem:[%s2430] sm:$0xff]
        %v2432 = vld [vmem:[%s1] sm:$0xff]
        %v2433 = vld [vmem:[%s1 + $0x8] sm:$0xf]
        %v2434 = vld [vmem:[%s1 + $0xc] sm:$0xff]
        %v2435 = vld [vmem:[%s1 + $0x14] sm:$0xf]
        %v2436 = vld [vmem:[%s1 + $0x18] sm:$0xff]
        %v2437 = vld [vmem:[%s1 + $0x20] sm:$0xf]
        %v2438 = vld [vmem:[%s1 + $0x24] sm:$0xff]
        %v2439 = vld [vmem:[%s1 + $0x2c] sm:$0xf]
        %v2440 = vld [vmem:[%s1 + $0x30] sm:$0xff]
        %v2441 = vld [vmem:[%s1 + $0x38] sm:$0xf]
        %v2442 = vld [vmem:[%s1 + $0x3c] sm:$0xff]
        %v2443 = vld [vmem:[%s1 + $0x44] sm:$0xf]
        %v2444 = vld [vmem:[%s1 + $0x48] sm:$0xff]
        %v2445 = vld [vmem:[%s1 + $0x50] sm:$0xf]
        %v2446 = vld [vmem:[%s1 + $0x54] sm:$0xff]
        %v2447 = vld [vmem:[%s1 + $0x5c] sm:$0xf]
        %v2448 = vld [vmem:[%s1 + $0x60] sm:$0xff]
        %v2449 = vld [vmem:[%s1 + $0x68] sm:$0xf]
        %v2450 = vld [vmem:[%s1 + $0x6c] sm:$0xff]
        %v2451 = vld [vmem:[%s1 + $0x74] sm:$0xf]
        %v2452 = vld [vmem:[%s1 + $0x78] sm:$0xff]
        %v2453 = vld [vmem:[%s1 + $0x80] sm:$0xf]
        %v2454 = vld [vmem:[%s1 + $0x84] sm:$0xff]
        %v2455 = vld [vmem:[%s1 + $0x8c] sm:$0xf]
        %v2456 = vld [vmem:[%s1 + $0x90] sm:$0xff]
        %v2457 = vld [vmem:[%s1 + $0x98] sm:$0xf]
        %v2458 = vld [vmem:[%s1 + $0x9c] sm:$0xff]
        %v2459 = vld [vmem:[%s1 + $0xa4] sm:$0xf]
        %v2460 = vld [vmem:[%s1 + $0xa8] sm:$0xff]
        %v2461 = vld [vmem:[%s1 + $0xb0] sm:$0xf]
        %v2462 = vld [vmem:[%s1 + $0xb4] sm:$0xff]
        %v2463 = vld [vmem:[%s1 + $0xbc] sm:$0xf]
        %v2464 = vld [vmem:[%s1 + $0xc0] sm:$0xff]
        %v2465 = vld [vmem:[%s1 + $0xc8] sm:$0xf]
        %v2466 = vld [vmem:[%s1 + $0xcc] sm:$0xff]
        %v2467 = vld [vmem:[%s1 + $0xd4] sm:$0xf]
        %v2468 = vld [vmem:[%s1 + $0xd8] sm:$0xff]
        %v2469 = vld [vmem:[%s1 + $0xe0] sm:$0xf]
        %v2470 = vld [vmem:[%s1 + $0xe4] sm:$0xff]
        %v2471 = vld [vmem:[%s1 + $0xec] sm:$0xf]
        %v2472 = vld [vmem:[%s2] sm:$0x7]
        %v2474 = vlaneseq
        %v2475 = vshrl.u32 %v2474, 7
        %v2476 = vsub.s32 0, %v2475
        %v2477 = vrot.slane %v2472, %v2476
        %v2478 = vlaneseq
        %v2479 = vshrl.u32 %v2478, 7
        %v2480 = vsub.s32 1, %v2479
        %v2481 = vrot.slane %v2472, %v2480
        %v2482 = vlaneseq
        %v2483 = vshrl.u32 %v2482, 7
        %v2484 = vsub.s32 2, %v2483
        %v2485 = vrot.slane %v2472, %v2484
        %v2490 = vunpack.c.l.b16 %v2431
        %v2491 = vunpack.c.h.b16 %v2431
        %v2492 = vpack.c.b16 %v2490, %v2490
        %v2493 = vpack.c.b16 %v2491, %v2491
        %v2535 = vunpack.c.l.b16 %v2432
        %v2536 = vunpack.c.h.b16 %v2432
        %v2537 = vunpack.c.l.b16 %v2433
        %v2538 = vunpack.c.l.b16 %v2434
        %v2539 = vunpack.c.h.b16 %v2434
        %v2540 = vunpack.c.l.b16 %v2435
        %v2541 = vunpack.c.l.b16 %v2436
        %v2542 = vunpack.c.h.b16 %v2436
        %v2543 = vunpack.c.l.b16 %v2437
        %v2544 = vunpack.c.l.b16 %v2438
        %v2545 = vunpack.c.h.b16 %v2438
        %v2546 = vunpack.c.l.b16 %v2439
        %v2547 = vunpack.c.l.b16 %v2440
        %v2548 = vunpack.c.h.b16 %v2440
        %v2549 = vunpack.c.l.b16 %v2441
        %v2550 = vunpack.c.l.b16 %v2442
        %v2551 = vunpack.c.h.b16 %v2442
        %v2552 = vunpack.c.l.b16 %v2443
        %v2553 = vunpack.c.l.b16 %v2444
        %v2554 = vunpack.c.h.b16 %v2444
        %v2555 = vunpack.c.l.b16 %v2445
        %v2556 = vunpack.c.l.b16 %v2446
        %v2557 = vunpack.c.h.b16 %v2446
        %v2558 = vunpack.c.l.b16 %v2447
        %v2559 = vunpack.c.l.b16 %v2448
        %v2560 = vunpack.c.h.b16 %v2448
        %v2561 = vunpack.c.l.b16 %v2449
        %v2562 = vunpack.c.l.b16 %v2450
        %v2563 = vunpack.c.h.b16 %v2450
        %v2564 = vunpack.c.l.b16 %v2451
        %v2565 = vunpack.c.l.b16 %v2452
        %v2566 = vunpack.c.h.b16 %v2452
        %v2567 = vunpack.c.l.b16 %v2453
        %v2568 = vunpack.c.l.b16 %v2454
        %v2569 = vunpack.c.h.b16 %v2454
        %v2570 = vunpack.c.l.b16 %v2455
        %v2571 = vunpack.c.l.b16 %v2456
        %v2572 = vunpack.c.h.b16 %v2456
        %v2573 = vunpack.c.l.b16 %v2457
        %v2574 = vunpack.c.l.b16 %v2458
        %v2575 = vunpack.c.h.b16 %v2458
        %v2576 = vunpack.c.l.b16 %v2459
        %v2577 = vunpack.c.l.b16 %v2460
        %v2578 = vunpack.c.h.b16 %v2460
        %v2579 = vunpack.c.l.b16 %v2461
        %v2580 = vunpack.c.l.b16 %v2462
        %v2581 = vunpack.c.h.b16 %v2462
        %v2582 = vunpack.c.l.b16 %v2463
        %v2583 = vunpack.c.l.b16 %v2464
        %v2584 = vunpack.c.h.b16 %v2464
        %v2585 = vunpack.c.l.b16 %v2465
        %v2586 = vunpack.c.l.b16 %v2466
        %v2587 = vunpack.c.h.b16 %v2466
        %v2588 = vunpack.c.l.b16 %v2467
        %v2589 = vunpack.c.l.b16 %v2468
        %v2590 = vunpack.c.h.b16 %v2468
        %v2591 = vunpack.c.l.b16 %v2469
        %v2592 = vunpack.c.l.b16 %v2470
        %v2593 = vunpack.c.h.b16 %v2470
        %v2594 = vunpack.c.l.b16 %v2471
        %v2595 = vpack.c.b16 %v2538, %v2535
        %v2596 = vpack.c.b16 %v2539, %v2536
        %v2597 = vpack.c.b16 %v2540, %v2537
        %v2598 = vpack.c.b16 %v2544, %v2541
        %v2599 = vpack.c.b16 %v2545, %v2542
        %v2600 = vpack.c.b16 %v2546, %v2543
        %v2601 = vpack.c.b16 %v2550, %v2547
        %v2602 = vpack.c.b16 %v2551, %v2548
        %v2603 = vpack.c.b16 %v2552, %v2549
        %v2604 = vpack.c.b16 %v2556, %v2553
        %v2605 = vpack.c.b16 %v2557, %v2554
        %v2606 = vpack.c.b16 %v2558, %v2555
        %v2607 = vpack.c.b16 %v2562, %v2559
        %v2608 = vpack.c.b16 %v2563, %v2560
        %v2609 = vpack.c.b16 %v2564, %v2561
        %v2610 = vpack.c.b16 %v2568, %v2565
        %v2611 = vpack.c.b16 %v2569, %v2566
        %v2612 = vpack.c.b16 %v2570, %v2567
        %v2613 = vpack.c.b16 %v2574, %v2571
        %v2614 = vpack.c.b16 %v2575, %v2572
        %v2615 = vpack.c.b16 %v2576, %v2573
        %v2616 = vpack.c.b16 %v2580, %v2577
        %v2617 = vpack.c.b16 %v2581, %v2578
        %v2618 = vpack.c.b16 %v2582, %v2579
        %v2619 = vpack.c.b16 %v2586, %v2583
        %v2620 = vpack.c.b16 %v2587, %v2584
        %v2621 = vpack.c.b16 %v2588, %v2585
        %v2622 = vpack.c.b16 %v2592, %v2589
        %v2623 = vpack.c.b16 %v2593, %v2590
        %v2624 = vpack.c.b16 %v2594, %v2591
        %v2656 = vsel %vm579, %v2493, 0
        %2658 = vmatprep.subr.bf16.mxu0 %v2596
        %2659 = vmatpush1.bf16.msra.mxu0 %v2595
        %2660 = vmatprep.subr.bf16.mxu0 %v2599
        %2661 = vmatpush1.bf16.msra.mxu0 %v2598
        %2662 = vmatprep.subr.bf16.mxu0 %v2602
        %2663 = vmatpush1.bf16.msra.mxu0 %v2601
        %2664 = vmatprep.subr.bf16.mxu0 %v2605
        %2665 = vmatpush1.bf16.msra.mxu0 %v2604
        %2666 = vmatprep.subr.bf16.mxu0 %v2608
        %2667 = vmatpush1.bf16.msra.mxu0 %v2607
        %2668 = vmatprep.subr.bf16.mxu0 %v2611
        %2669 = vmatpush1.bf16.msra.mxu0 %v2610
        %2670 = vmatprep.subr.bf16.mxu0 %v2614
        %2671 = vmatpush1.bf16.msra.mxu0 %v2613
        %2672 = vmatprep.subr.bf16.mxu0 %v2617
        %2673 = vmatpush1.bf16.msra.mxu0 %v2616
        %2674 = vmatprep.subr.bf16.mxu0 %v2620
        %2675 = vmatpush1.bf16.msra.mxu0 %v2619
        %2676 = vmatprep.subr.bf16.mxu0 %v2623
        %2677 = vmatpush1.bf16.msra.mxu0 %v2622
        %2678 = vmatprep.subr.bf16.mxu0 0
        %2679 = vmatpush1.bf16.msra.mxu0 0
        %2680 = vmatprep.subr.bf16.mxu0 0
        %2681 = vmatpush1.bf16.msra.mxu0 0
        %2682 = vmatprep.subr.bf16.mxu0 0
        %2683 = vmatpush1.bf16.msra.mxu0 0
        %2684 = vmatprep.subr.bf16.mxu0 0
        %2685 = vmatpush1.bf16.msra.mxu0 0
        %2686 = vmatprep.subr.bf16.mxu0 0
        %2687 = vmatpush1.bf16.msra.mxu0 0
        %2688 = vmatprep.subr.bf16.mxu0 0
        %2689 = vmatpush1.bf16.msra.mxu0 0
        %2690 = vmatprep.mubr.bf16.mxu0 %v2656
        %2691 = vmatmul.mubr.bf16.gmra.mrb[0].mxu0 %v2492
        %v2692 = vpop.f32.mrb[0].mxu0
        %v2693 = vadd.f32 %v2477, %v2692
        %v2694 = vpop.f32.mrb[0].mxu0
        %v2695 = vadd.f32 %v2481, %v2694
        %v2696 = vpop.f32.mrb[0].mxu0
        %v2697 = vpop.f32.mrb[0].mxu0
        %2698 = vdwg.mxu0
        %2699 = vmatprep.subr.bf16.mxu0 0
        %2700 = vmatpush1.bf16.msra.mxu0 %v2597
        %2701 = vmatprep.subr.bf16.mxu0 0
        %2702 = vmatpush1.bf16.msra.mxu0 %v2600
        %2703 = vmatprep.subr.bf16.mxu0 0
        %2704 = vmatpush1.bf16.msra.mxu0 %v2603
        %2705 = vmatprep.subr.bf16.mxu0 0
        %2706 = vmatpush1.bf16.msra.mxu0 %v2606
        %2707 = vmatprep.subr.bf16.mxu0 0
        %2708 = vmatpush1.bf16.msra.mxu0 %v2609
        %2709 = vmatprep.subr.bf16.mxu0 0
        %2710 = vmatpush1.bf16.msra.mxu0 %v2612
        %2711 = vmatprep.subr.bf16.mxu0 0
        %2712 = vmatpush1.bf16.msra.mxu0 %v2615
        %2713 = vmatprep.subr.bf16.mxu0 0
        %2714 = vmatpush1.bf16.msra.mxu0 %v2618
        %2715 = vmatprep.subr.bf16.mxu0 0
        %2716 = vmatpush1.bf16.msra.mxu0 %v2621
        %2717 = vmatprep.subr.bf16.mxu0 0
        %2718 = vmatpush1.bf16.msra.mxu0 %v2624
        %2719 = vmatprep.subr.bf16.mxu0 0
        %2720 = vmatpush1.bf16.msra.mxu0 0
        %2721 = vmatprep.subr.bf16.mxu0 0
        %2722 = vmatpush1.bf16.msra.mxu0 0
        %2723 = vmatprep.subr.bf16.mxu0 0
        %2724 = vmatpush1.bf16.msra.mxu0 0
        %2725 = vmatprep.subr.bf16.mxu0 0
        %2726 = vmatpush1.bf16.msra.mxu0 0
        %2727 = vmatprep.subr.bf16.mxu0 0
        %2728 = vmatpush1.bf16.msra.mxu0 0
        %2729 = vmatprep.subr.bf16.mxu0 0
        %2730 = vmatpush1.bf16.msra.mxu0 0
        %2731 = vmatprep.mubr.bf16.mxu0 %v2656
        %2732 = vmatmul.mubr.bf16.gmra.mrb[0].mxu0 %v2492
        %v2733 = vpop.f32.mrb[0].mxu0
        %v2734 = vadd.f32 %v2485, %v2733
        %v2735 = vpop.f32.mrb[0].mxu0
        %v2736 = vpop.f32.mrb[0].mxu0
        %v2737 = vpop.f32.mrb[0].mxu0
        %2738 = vdwg.mxu0
        %v2739 = vmax.f32 %v2693, 0.0
        %v2740 = vmax.f32 %v2695, 0.0
        %v2741 = vmax.f32 %v2734, 0.0
        %v2742 = vld [vmem:[#allocation2] sm:$0xff]
        %v2743 = vld [vmem:[#allocation2 + $0x8] sm:$0xff]
        %v2744 = vpack.c.bf16 %v2739, %v2739
        %v2745 = vpack.c.bf16 %v2740, %v2740
        %v2746 = vpack.c.bf16 %v2741, %v2741
        %s2747 = scalar_lea.vmem %s3, 1152
        %v2748 = vld [vmem:[%s2747] sm:$0xff]
        %v2749 = vld [vmem:[%s2747 + $0x8] sm:$0xff]
        %v2750 = vld [vmem:[%s2747 + $0x10] sm:$0xff]
        %v2751 = vld [vmem:[%s2747 + $0x18] sm:$0xff]
        %v2752 = vld [vmem:[%s2747 + $0x20] sm:$0xff]
        %v2753 = vld [vmem:[%s2747 + $0x28] sm:$0xff]
        %v2754 = vld [vmem:[%s2747 + $0x30] sm:$0xff]
        %v2755 = vld [vmem:[%s2747 + $0x38] sm:$0xff]
        %v2756 = vld [vmem:[%s2747 + $0x40] sm:$0xff]
        %v2757 = vld [vmem:[%s2747 + $0x48] sm:$0xff]
        %v2758 = vld [vmem:[%s2747 + $0x50] sm:$0xff]
        %v2759 = vld [vmem:[%s2747 + $0x58] sm:$0xff]
        %v2760 = vld [vmem:[%s2747 + $0x60] sm:$0xff]
        %v2761 = vld [vmem:[%s2747 + $0x68] sm:$0xff]
        %v2762 = vld [vmem:[%s2747 + $0x70] sm:$0xff]
        %v2763 = vld [vmem:[%s2747 + $0x78] sm:$0xff]
        %v2764 = vld [vmem:[%s2747 + $0x80] sm:$0xff]
        %v2765 = vld [vmem:[%s2747 + $0x88] sm:$0xff]
        %v2766 = vld [vmem:[%s2747 + $0x90] sm:$0xff]
        %v2767 = vld [vmem:[%s2747 + $0x98] sm:$0xff]
        %v2768 = vld [vmem:[%s2747 + $0xa0] sm:$0xff]
        %v2769 = vld [vmem:[%s2747 + $0xa8] sm:$0xff]
        %v2770 = vld [vmem:[%s2747 + $0xb0] sm:$0xff]
        %v2771 = vld [vmem:[%s2747 + $0xb8] sm:$0xff]
        %v2772 = vld [vmem:[%s2747 + $0xc0] sm:$0xff]
        %v2773 = vld [vmem:[%s2747 + $0xc8] sm:$0xff]
        %v2774 = vld [vmem:[%s2747 + $0xd0] sm:$0xff]
        %v2775 = vld [vmem:[%s2747 + $0xd8] sm:$0xff]
        %v2776 = vld [vmem:[%s2747 + $0xe0] sm:$0xff]
        %v2777 = vld [vmem:[%s2747 + $0xe8] sm:$0xff]
        %v2778 = vld [vmem:[%s2747 + $0xf0] sm:$0xff]
        %v2779 = vld [vmem:[%s2747 + $0xf8] sm:$0xff]
        %v2780 = vld [vmem:[%s2747 + $0x100] sm:$0xff]
        %v2781 = vld [vmem:[%s2747 + $0x108] sm:$0xff]
        %v2782 = vld [vmem:[%s2747 + $0x110] sm:$0xff]
        %v2783 = vld [vmem:[%s2747 + $0x118] sm:$0xff]
        %v2784 = vld [vmem:[%s2747 + $0x120] sm:$0xff]
        %v2785 = vld [vmem:[%s2747 + $0x128] sm:$0xff]
        %v2786 = vld [vmem:[%s2747 + $0x130] sm:$0xff]
        %v2787 = vld [vmem:[%s2747 + $0x138] sm:$0xff]
        %v2788 = vld [vmem:[%s2747 + $0x140] sm:$0xff]
        %v2789 = vld [vmem:[%s2747 + $0x148] sm:$0xff]
        %v2790 = vld [vmem:[%s2747 + $0x150] sm:$0xff]
        %v2791 = vld [vmem:[%s2747 + $0x158] sm:$0xff]
        %v2792 = vld [vmem:[%s2747 + $0x160] sm:$0xff]
        %v2793 = vld [vmem:[%s2747 + $0x168] sm:$0xff]
        %v2794 = vld [vmem:[%s2747 + $0x170] sm:$0xff]
        %v2795 = vld [vmem:[%s2747 + $0x178] sm:$0xff]
        %v2844 = vunpack.c.l.b16 %v2748
        %v2845 = vunpack.c.h.b16 %v2748
        %v2846 = vunpack.c.l.b16 %v2749
        %v2847 = vunpack.c.h.b16 %v2749
        %v2848 = vunpack.c.l.b16 %v2750
        %v2849 = vunpack.c.h.b16 %v2750
        %v2850 = vunpack.c.l.b16 %v2751
        %v2851 = vunpack.c.h.b16 %v2751
        %v2852 = vunpack.c.l.b16 %v2752
        %v2853 = vunpack.c.h.b16 %v2752
        %v2854 = vunpack.c.l.b16 %v2753
        %v2855 = vunpack.c.h.b16 %v2753
        %v2856 = vunpack.c.l.b16 %v2754
        %v2857 = vunpack.c.h.b16 %v2754
        %v2858 = vunpack.c.l.b16 %v2755
        %v2859 = vunpack.c.h.b16 %v2755
        %v2860 = vunpack.c.l.b16 %v2756
        %v2861 = vunpack.c.h.b16 %v2756
        %v2862 = vunpack.c.l.b16 %v2757
        %v2863 = vunpack.c.h.b16 %v2757
        %v2864 = vunpack.c.l.b16 %v2758
        %v2865 = vunpack.c.h.b16 %v2758
        %v2866 = vunpack.c.l.b16 %v2759
        %v2867 = vunpack.c.h.b16 %v2759
        %v2868 = vunpack.c.l.b16 %v2760
        %v2869 = vunpack.c.h.b16 %v2760
        %v2870 = vunpack.c.l.b16 %v2761
        %v2871 = vunpack.c.h.b16 %v2761
        %v2872 = vunpack.c.l.b16 %v2762
        %v2873 = vunpack.c.h.b16 %v2762
        %v2874 = vunpack.c.l.b16 %v2763
        %v2875 = vunpack.c.h.b16 %v2763
        %v2876 = vunpack.c.l.b16 %v2764
        %v2877 = vunpack.c.h.b16 %v2764
        %v2878 = vunpack.c.l.b16 %v2765
        %v2879 = vunpack.c.h.b16 %v2765
        %v2880 = vunpack.c.l.b16 %v2766
        %v2881 = vunpack.c.h.b16 %v2766
        %v2882 = vunpack.c.l.b16 %v2767
        %v2883 = vunpack.c.h.b16 %v2767
        %v2884 = vunpack.c.l.b16 %v2768
        %v2885 = vunpack.c.h.b16 %v2768
        %v2886 = vunpack.c.l.b16 %v2769
        %v2887 = vunpack.c.h.b16 %v2769
        %v2888 = vunpack.c.l.b16 %v2770
        %v2889 = vunpack.c.h.b16 %v2770
        %v2890 = vunpack.c.l.b16 %v2771
        %v2891 = vunpack.c.h.b16 %v2771
        %v2892 = vunpack.c.l.b16 %v2772
        %v2893 = vunpack.c.h.b16 %v2772
        %v2894 = vunpack.c.l.b16 %v2773
        %v2895 = vunpack.c.h.b16 %v2773
        %v2896 = vunpack.c.l.b16 %v2774
        %v2897 = vunpack.c.h.b16 %v2774
        %v2898 = vunpack.c.l.b16 %v2775
        %v2899 = vunpack.c.h.b16 %v2775
        %v2900 = vunpack.c.l.b16 %v2776
        %v2901 = vunpack.c.h.b16 %v2776
        %v2902 = vunpack.c.l.b16 %v2777
        %v2903 = vunpack.c.h.b16 %v2777
        %v2904 = vunpack.c.l.b16 %v2778
        %v2905 = vunpack.c.h.b16 %v2778
        %v2906 = vunpack.c.l.b16 %v2779
        %v2907 = vunpack.c.h.b16 %v2779
        %v2908 = vunpack.c.l.b16 %v2780
        %v2909 = vunpack.c.h.b16 %v2780
        %v2910 = vunpack.c.l.b16 %v2781
        %v2911 = vunpack.c.h.b16 %v2781
        %v2912 = vunpack.c.l.b16 %v2782
        %v2913 = vunpack.c.h.b16 %v2782
        %v2914 = vunpack.c.l.b16 %v2783
        %v2915 = vunpack.c.h.b16 %v2783
        %v2916 = vunpack.c.l.b16 %v2784
        %v2917 = vunpack.c.h.b16 %v2784
        %v2918 = vunpack.c.l.b16 %v2785
        %v2919 = vunpack.c.h.b16 %v2785
        %v2920 = vunpack.c.l.b16 %v2786
        %v2921 = vunpack.c.h.b16 %v2786
        %v2922 = vunpack.c.l.b16 %v2787
        %v2923 = vunpack.c.h.b16 %v2787
        %v2924 = vunpack.c.l.b16 %v2788
        %v2925 = vunpack.c.h.b16 %v2788
        %v2926 = vunpack.c.l.b16 %v2789
        %v2927 = vunpack.c.h.b16 %v2789
        %v2928 = vunpack.c.l.b16 %v2790
        %v2929 = vunpack.c.h.b16 %v2790
        %v2930 = vunpack.c.l.b16 %v2791
        %v2931 = vunpack.c.h.b16 %v2791
        %v2932 = vunpack.c.l.b16 %v2792
        %v2933 = vunpack.c.h.b16 %v2792
        %v2934 = vunpack.c.l.b16 %v2793
        %v2935 = vunpack.c.h.b16 %v2793
        %v2936 = vunpack.c.l.b16 %v2794
        %v2937 = vunpack.c.h.b16 %v2794
        %v2938 = vunpack.c.l.b16 %v2795
        %v2939 = vunpack.c.h.b16 %v2795
        %v2940 = vpack.c.b16 %v2846, %v2844
        %v2941 = vpack.c.b16 %v2847, %v2845
        %v2942 = vpack.c.b16 %v2850, %v2848
        %v2943 = vpack.c.b16 %v2851, %v2849
        %v2944 = vpack.c.b16 %v2854, %v2852
        %v2945 = vpack.c.b16 %v2855, %v2853
        %v2946 = vpack.c.b16 %v2858, %v2856
        %v2947 = vpack.c.b16 %v2859, %v2857
        %v2948 = vpack.c.b16 %v2862, %v2860
        %v2949 = vpack.c.b16 %v2863, %v2861
        %v2950 = vpack.c.b16 %v2866, %v2864
        %v2951 = vpack.c.b16 %v2867, %v2865
        %v2952 = vpack.c.b16 %v2870, %v2868
        %v2953 = vpack.c.b16 %v2871, %v2869
        %v2954 = vpack.c.b16 %v2874, %v2872
        %v2955 = vpack.c.b16 %v2875, %v2873
        %v2956 = vpack.c.b16 %v2878, %v2876
        %v2957 = vpack.c.b16 %v2879, %v2877
        %v2958 = vpack.c.b16 %v2882, %v2880
        %v2959 = vpack.c.b16 %v2883, %v2881
        %v2960 = vpack.c.b16 %v2886, %v2884
        %v2961 = vpack.c.b16 %v2887, %v2885
        %v2962 = vpack.c.b16 %v2890, %v2888
        %v2963 = vpack.c.b16 %v2891, %v2889
        %v2964 = vpack.c.b16 %v2894, %v2892
        %v2965 = vpack.c.b16 %v2895, %v2893
        %v2966 = vpack.c.b16 %v2898, %v2896
        %v2967 = vpack.c.b16 %v2899, %v2897
        %v2968 = vpack.c.b16 %v2902, %v2900
        %v2969 = vpack.c.b16 %v2903, %v2901
        %v2970 = vpack.c.b16 %v2906, %v2904
        %v2971 = vpack.c.b16 %v2907, %v2905
        %v2972 = vpack.c.b16 %v2910, %v2908
        %v2973 = vpack.c.b16 %v2911, %v2909
        %v2974 = vpack.c.b16 %v2914, %v2912
        %v2975 = vpack.c.b16 %v2915, %v2913
        %v2976 = vpack.c.b16 %v2918, %v2916
        %v2977 = vpack.c.b16 %v2919, %v2917
        %v2978 = vpack.c.b16 %v2922, %v2920
        %v2979 = vpack.c.b16 %v2923, %v2921
        %v2980 = vpack.c.b16 %v2926, %v2924
        %v2981 = vpack.c.b16 %v2927, %v2925
        %v2982 = vpack.c.b16 %v2930, %v2928
        %v2983 = vpack.c.b16 %v2931, %v2929
        %v2984 = vpack.c.b16 %v2934, %v2932
        %v2985 = vpack.c.b16 %v2935, %v2933
        %v2986 = vpack.c.b16 %v2938, %v2936
        %v2987 = vpack.c.b16 %v2939, %v2937
        %3036 = vmatprep.subr.bf16.mxu0 %v2941
        %3037 = vmatpush1.bf16.msra.mxu0 %v2940
        %3038 = vmatprep.subr.bf16.mxu0 %v2943
        %3039 = vmatpush1.bf16.msra.mxu0 %v2942
        %3040 = vmatprep.subr.bf16.mxu0 %v2945
        %3041 = vmatpush1.bf16.msra.mxu0 %v2944
        %3042 = vmatprep.subr.bf16.mxu0 %v2947
        %3043 = vmatpush1.bf16.msra.mxu0 %v2946
        %3044 = vmatprep.subr.bf16.mxu0 %v2949
        %3045 = vmatpush1.bf16.msra.mxu0 %v2948
        %3046 = vmatprep.subr.bf16.mxu0 %v2951
        %3047 = vmatpush1.bf16.msra.mxu0 %v2950
        %3048 = vmatprep.subr.bf16.mxu0 %v2953
        %3049 = vmatpush1.bf16.msra.mxu0 %v2952
        %3050 = vmatprep.subr.bf16.mxu0 %v2955
        %3051 = vmatpush1.bf16.msra.mxu0 %v2954
        %3052 = vmatprep.subr.bf16.mxu0 %v2957
        %3053 = vmatpush1.bf16.msra.mxu0 %v2956
        %3054 = vmatprep.subr.bf16.mxu0 %v2959
        %3055 = vmatpush1.bf16.msra.mxu0 %v2958
        %3056 = vmatprep.subr.bf16.mxu0 %v2961
        %3057 = vmatpush1.bf16.msra.mxu0 %v2960
        %3058 = vmatprep.subr.bf16.mxu0 %v2963
        %3059 = vmatpush1.bf16.msra.mxu0 %v2962
        %3060 = vmatprep.subr.bf16.mxu0 %v2965
        %3061 = vmatpush1.bf16.msra.mxu0 %v2964
        %3062 = vmatprep.subr.bf16.mxu0 %v2967
        %3063 = vmatpush1.bf16.msra.mxu0 %v2966
        %3064 = vmatprep.subr.bf16.mxu0 %v2969
        %3065 = vmatpush1.bf16.msra.mxu0 %v2968
        %3066 = vmatprep.subr.bf16.mxu0 %v2971
        %3067 = vmatpush1.bf16.msra.mxu0 %v2970
        %3068 = vmatprep.mubr.bf16.mxu0 %v2745
        %3069 = vmatmul.mubr.bf16.gmra.mrb[0].mxu0 %v2744
        %v3070 = vpop.f32.mrb[0].mxu0
        %v3071 = vadd.f32 0.0, %v3070
        %v3072 = vpop.f32.mrb[0].mxu0
        %v3073 = vadd.f32 0.0, %v3072
        %v3074 = vpop.f32.mrb[0].mxu0
        %v3075 = vpop.f32.mrb[0].mxu0
        %3076 = vdwg.mxu0
        %3077 = vmatprep.subr.bf16.mxu0 %v2973
        %3078 = vmatpush1.bf16.msra.mxu0 %v2972
        %3079 = vmatprep.subr.bf16.mxu0 %v2975
        %3080 = vmatpush1.bf16.msra.mxu0 %v2974
        %3081 = vmatprep.subr.bf16.mxu0 %v2977
        %3082 = vmatpush1.bf16.msra.mxu0 %v2976
        %3083 = vmatprep.subr.bf16.mxu0 %v2979
        %3084 = vmatpush1.bf16.msra.mxu0 %v2978
        %3085 = vmatprep.subr.bf16.mxu0 %v2981
        %3086 = vmatpush1.bf16.msra.mxu0 %v2980
        %3087 = vmatprep.subr.bf16.mxu0 %v2983
        %3088 = vmatpush1.bf16.msra.mxu0 %v2982
        %3089 = vmatprep.subr.bf16.mxu0 %v2985
        %3090 = vmatpush1.bf16.msra.mxu0 %v2984
        %3091 = vmatprep.subr.bf16.mxu0 %v2987
        %3092 = vmatpush1.bf16.msra.mxu0 %v2986
        %3093 = vmatprep.subr.bf16.mxu0 0
        %3094 = vmatpush1.bf16.msra.mxu0 0
        %3095 = vmatprep.subr.bf16.mxu0 0
        %3096 = vmatpush1.bf16.msra.mxu0 0
        %3097 = vmatprep.subr.bf16.mxu0 0
        %3098 = vmatpush1.bf16.msra.mxu0 0
        %3099 = vmatprep.subr.bf16.mxu0 0
        %3100 = vmatpush1.bf16.msra.mxu0 0
        %3101 = vmatprep.subr.bf16.mxu0 0
        %3102 = vmatpush1.bf16.msra.mxu0 0
        %3103 = vmatprep.subr.bf16.mxu0 0
        %3104 = vmatpush1.bf16.msra.mxu0 0
        %3105 = vmatprep.subr.bf16.mxu0 0
        %3106 = vmatpush1.bf16.msra.mxu0 0
        %3107 = vmatprep.subr.bf16.mxu0 0
        %3108 = vmatpush1.bf16.msra.mxu0 0
        %3109 = vmatprep.mubr.bf16.mxu0 0
        %3110 = vmatmul.mubr.bf16.gmra.mrb[0].mxu0 %v2746
        %v3111 = vpop.f32.mrb[0].mxu0
        %v3112 = vadd.f32 %v3071, %v3111
        %v3113 = vpop.f32.mrb[0].mxu0
        %v3114 = vadd.f32 %v3073, %v3113
        %v3115 = vpop.f32.mrb[0].mxu0
        %v3116 = vpop.f32.mrb[0].mxu0
        %3117 = vdwg.mxu0
        %v3118 = vadd.f32 %v2742, %v3112
        %v3119 = vadd.f32 %v2743, %v3114
        %3120 = vst [vmem:[#allocation2] sm:$0xff] %v3118
        %3121 = vst [vmem:[#allocation2 + $0x8] sm:$0xff] %v3119
        %s3122 = scalar_lea.vmem %s320, 32 [#allocation3]
        %v3123 = vld [vmem:[%s3122] sm:$0xff]
        %v3124 = vld [vmem:[%s1] sm:$0xff]
        %v3125 = vld [vmem:[%s1 + $0x8] sm:$0xf]
        %v3126 = vld [vmem:[%s1 + $0xc] sm:$0xff]
        %v3127 = vld [vmem:[%s1 + $0x14] sm:$0xf]
        %v3128 = vld [vmem:[%s1 + $0x18] sm:$0xff]
        %v3129 = vld [vmem:[%s1 + $0x20] sm:$0xf]
        %v3130 = vld [vmem:[%s1 + $0x24] sm:$0xff]
        %v3131 = vld [vmem:[%s1 + $0x2c] sm:$0xf]
        %v3132 = vld [vmem:[%s1 + $0x30] sm:$0xff]
        %v3133 = vld [vmem:[%s1 + $0x38] sm:$0xf]
        %v3134 = vld [vmem:[%s1 + $0x3c] sm:$0xff]
        %v3135 = vld [vmem:[%s1 + $0x44] sm:$0xf]
        %v3136 = vld [vmem:[%s1 + $0x48] sm:$0xff]
        %v3137 = vld [vmem:[%s1 + $0x50] sm:$0xf]
        %v3138 = vld [vmem:[%s1 + $0x54] sm:$0xff]
        %v3139 = vld [vmem:[%s1 + $0x5c] sm:$0xf]
        %v3140 = vld [vmem:[%s1 + $0x60] sm:$0xff]
        %v3141 = vld [vmem:[%s1 + $0x68] sm:$0xf]
        %v3142 = vld [vmem:[%s1 + $0x6c] sm:$0xff]
        %v3143 = vld [vmem:[%s1 + $0x74] sm:$0xf]
        %v3144 = vld [vmem:[%s1 + $0x78] sm:$0xff]
        %v3145 = vld [vmem:[%s1 + $0x80] sm:$0xf]
        %v3146 = vld [vmem:[%s1 + $0x84] sm:$0xff]
        %v3147 = vld [vmem:[%s1 + $0x8c] sm:$0xf]
        %v3148 = vld [vmem:[%s1 + $0x90] sm:$0xff]
        %v3149 = vld [vmem:[%s1 + $0x98] sm:$0xf]
        %v3150 = vld [vmem:[%s1 + $0x9c] sm:$0xff]
        %v3151 = vld [vmem:[%s1 + $0xa4] sm:$0xf]
        %v3152 = vld [vmem:[%s1 + $0xa8] sm:$0xff]
        %v3153 = vld [vmem:[%s1 + $0xb0] sm:$0xf]
        %v3154 = vld [vmem:[%s1 + $0xb4] sm:$0xff]
        %v3155 = vld [vmem:[%s1 + $0xbc] sm:$0xf]
        %v3156 = vld [vmem:[%s1 + $0xc0] sm:$0xff]
        %v3157 = vld [vmem:[%s1 + $0xc8] sm:$0xf]
        %v3158 = vld [vmem:[%s1 + $0xcc] sm:$0xff]
        %v3159 = vld [vmem:[%s1 + $0xd4] sm:$0xf]
        %v3160 = vld [vmem:[%s1 + $0xd8] sm:$0xff]
        %v3161 = vld [vmem:[%s1 + $0xe0] sm:$0xf]
        %v3162 = vld [vmem:[%s1 + $0xe4] sm:$0xff]
        %v3163 = vld [vmem:[%s1 + $0xec] sm:$0xf]
        %v3164 = vld [vmem:[%s2] sm:$0x7]
        %v3166 = vlaneseq
        %v3167 = vshrl.u32 %v3166, 7
        %v3168 = vsub.s32 0, %v3167
        %v3169 = vrot.slane %v3164, %v3168
        %v3170 = vlaneseq
        %v3171 = vshrl.u32 %v3170, 7
        %v3172 = vsub.s32 1, %v3171
        %v3173 = vrot.slane %v3164, %v3172
        %v3174 = vlaneseq
        %v3175 = vshrl.u32 %v3174, 7
        %v3176 = vsub.s32 2, %v3175
        %v3177 = vrot.slane %v3164, %v3176
        %v3182 = vunpack.c.l.b16 %v3123
        %v3183 = vunpack.c.h.b16 %v3123
        %v3184 = vpack.c.b16 %v3182, %v3182
        %v3185 = vpack.c.b16 %v3183, %v3183
        %v3227 = vunpack.c.l.b16 %v3124
        %v3228 = vunpack.c.h.b16 %v3124
        %v3229 = vunpack.c.l.b16 %v3125
        %v3230 = vunpack.c.l.b16 %v3126
        %v3231 = vunpack.c.h.b16 %v3126
        %v3232 = vunpack.c.l.b16 %v3127
        %v3233 = vunpack.c.l.b16 %v3128
        %v3234 = vunpack.c.h.b16 %v3128
        %v3235 = vunpack.c.l.b16 %v3129
        %v3236 = vunpack.c.l.b16 %v3130
        %v3237 = vunpack.c.h.b16 %v3130
        %v3238 = vunpack.c.l.b16 %v3131
        %v3239 = vunpack.c.l.b16 %v3132
        %v3240 = vunpack.c.h.b16 %v3132
        %v3241 = vunpack.c.l.b16 %v3133
        %v3242 = vunpack.c.l.b16 %v3134
        %v3243 = vunpack.c.h.b16 %v3134
        %v3244 = vunpack.c.l.b16 %v3135
        %v3245 = vunpack.c.l.b16 %v3136
        %v3246 = vunpack.c.h.b16 %v3136
        %v3247 = vunpack.c.l.b16 %v3137
        %v3248 = vunpack.c.l.b16 %v3138
        %v3249 = vunpack.c.h.b16 %v3138
        %v3250 = vunpack.c.l.b16 %v3139
        %v3251 = vunpack.c.l.b16 %v3140
        %v3252 = vunpack.c.h.b16 %v3140
        %v3253 = vunpack.c.l.b16 %v3141
        %v3254 = vunpack.c.l.b16 %v3142
        %v3255 = vunpack.c.h.b16 %v3142
        %v3256 = vunpack.c.l.b16 %v3143
        %v3257 = vunpack.c.l.b16 %v3144
        %v3258 = vunpack.c.h.b16 %v3144
        %v3259 = vunpack.c.l.b16 %v3145
        %v3260 = vunpack.c.l.b16 %v3146
        %v3261 = vunpack.c.h.b16 %v3146
        %v3262 = vunpack.c.l.b16 %v3147
        %v3263 = vunpack.c.l.b16 %v3148
        %v3264 = vunpack.c.h.b16 %v3148
        %v3265 = vunpack.c.l.b16 %v3149
        %v3266 = vunpack.c.l.b16 %v3150
        %v3267 = vunpack.c.h.b16 %v3150
        %v3268 = vunpack.c.l.b16 %v3151
        %v3269 = vunpack.c.l.b16 %v3152
        %v3270 = vunpack.c.h.b16 %v3152
        %v3271 = vunpack.c.l.b16 %v3153
        %v3272 = vunpack.c.l.b16 %v3154
        %v3273 = vunpack.c.h.b16 %v3154
        %v3274 = vunpack.c.l.b16 %v3155
        %v3275 = vunpack.c.l.b16 %v3156
        %v3276 = vunpack.c.h.b16 %v3156
        %v3277 = vunpack.c.l.b16 %v3157
        %v3278 = vunpack.c.l.b16 %v3158
        %v3279 = vunpack.c.h.b16 %v3158
        %v3280 = vunpack.c.l.b16 %v3159
        %v3281 = vunpack.c.l.b16 %v3160
        %v3282 = vunpack.c.h.b16 %v3160
        %v3283 = vunpack.c.l.b16 %v3161
        %v3284 = vunpack.c.l.b16 %v3162
        %v3285 = vunpack.c.h.b16 %v3162
        %v3286 = vunpack.c.l.b16 %v3163
        %v3287 = vpack.c.b16 %v3230, %v3227
        %v3288 = vpack.c.b16 %v3231, %v3228
        %v3289 = vpack.c.b16 %v3232, %v3229
        %v3290 = vpack.c.b16 %v3236, %v3233
        %v3291 = vpack.c.b16 %v3237, %v3234
        %v3292 = vpack.c.b16 %v3238, %v3235
        %v3293 = vpack.c.b16 %v3242, %v3239
        %v3294 = vpack.c.b16 %v3243, %v3240
        %v3295 = vpack.c.b16 %v3244, %v3241
        %v3296 = vpack.c.b16 %v3248, %v3245
        %v3297 = vpack.c.b16 %v3249, %v3246
        %v3298 = vpack.c.b16 %v3250, %v3247
        %v3299 = vpack.c.b16 %v3254, %v3251
        %v3300 = vpack.c.b16 %v3255, %v3252
        %v3301 = vpack.c.b16 %v3256, %v3253
        %v3302 = vpack.c.b16 %v3260, %v3257
        %v3303 = vpack.c.b16 %v3261, %v3258
        %v3304 = vpack.c.b16 %v3262, %v3259
        %v3305 = vpack.c.b16 %v3266, %v3263
        %v3306 = vpack.c.b16 %v3267, %v3264
        %v3307 = vpack.c.b16 %v3268, %v3265
        %v3308 = vpack.c.b16 %v3272, %v3269
        %v3309 = vpack.c.b16 %v3273, %v3270
        %v3310 = vpack.c.b16 %v3274, %v3271
        %v3311 = vpack.c.b16 %v3278, %v3275
        %v3312 = vpack.c.b16 %v3279, %v3276
        %v3313 = vpack.c.b16 %v3280, %v3277
        %v3314 = vpack.c.b16 %v3284, %v3281
        %v3315 = vpack.c.b16 %v3285, %v3282
        %v3316 = vpack.c.b16 %v3286, %v3283
        %v3348 = vsel %vm579, %v3185, 0
        %3350 = vmatprep.subr.bf16.mxu0 %v3288
        %3351 = vmatpush1.bf16.msra.mxu0 %v3287
        %3352 = vmatprep.subr.bf16.mxu0 %v3291
        %3353 = vmatpush1.bf16.msra.mxu0 %v3290
        %3354 = vmatprep.subr.bf16.mxu0 %v3294
        %3355 = vmatpush1.bf16.msra.mxu0 %v3293
        %3356 = vmatprep.subr.bf16.mxu0 %v3297
        %3357 = vmatpush1.bf16.msra.mxu0 %v3296
        %3358 = vmatprep.subr.bf16.mxu0 %v3300
        %3359 = vmatpush1.bf16.msra.mxu0 %v3299
        %3360 = vmatprep.subr.bf16.mxu0 %v3303
        %3361 = vmatpush1.bf16.msra.mxu0 %v3302
        %3362 = vmatprep.subr.bf16.mxu0 %v3306
        %3363 = vmatpush1.bf16.msra.mxu0 %v3305
        %3364 = vmatprep.subr.bf16.mxu0 %v3309
        %3365 = vmatpush1.bf16.msra.mxu0 %v3308
        %3366 = vmatprep.subr.bf16.mxu0 %v3312
        %3367 = vmatpush1.bf16.msra.mxu0 %v3311
        %3368 = vmatprep.subr.bf16.mxu0 %v3315
        %3369 = vmatpush1.bf16.msra.mxu0 %v3314
        %3370 = vmatprep.subr.bf16.mxu0 0
        %3371 = vmatpush1.bf16.msra.mxu0 0
        %3372 = vmatprep.subr.bf16.mxu0 0
        %3373 = vmatpush1.bf16.msra.mxu0 0
        %3374 = vmatprep.subr.bf16.mxu0 0
        %3375 = vmatpush1.bf16.msra.mxu0 0
        %3376 = vmatprep.subr.bf16.mxu0 0
        %3377 = vmatpush1.bf16.msra.mxu0 0
        %3378 = vmatprep.subr.bf16.mxu0 0
        %3379 = vmatpush1.bf16.msra.mxu0 0
        %3380 = vmatprep.subr.bf16.mxu0 0
        %3381 = vmatpush1.bf16.msra.mxu0 0
        %3382 = vmatprep.mubr.bf16.mxu0 %v3348
        %3383 = vmatmul.mubr.bf16.gmra.mrb[0].mxu0 %v3184
        %v3384 = vpop.f32.mrb[0].mxu0
        %v3385 = vadd.f32 %v3169, %v3384
        %v3386 = vpop.f32.mrb[0].mxu0
        %v3387 = vadd.f32 %v3173, %v3386
        %v3388 = vpop.f32.mrb[0].mxu0
        %v3389 = vpop.f32.mrb[0].mxu0
        %3390 = vdwg.mxu0
        %3391 = vmatprep.subr.bf16.mxu0 0
        %3392 = vmatpush1.bf16.msra.mxu0 %v3289
        %3393 = vmatprep.subr.bf16.mxu0 0
        %3394 = vmatpush1.bf16.msra.mxu0 %v3292
        %3395 = vmatprep.subr.bf16.mxu0 0
        %3396 = vmatpush1.bf16.msra.mxu0 %v3295
        %3397 = vmatprep.subr.bf16.mxu0 0
        %3398 = vmatpush1.bf16.msra.mxu0 %v3298
        %3399 = vmatprep.subr.bf16.mxu0 0
        %3400 = vmatpush1.bf16.msra.mxu0 %v3301
        %3401 = vmatprep.subr.bf16.mxu0 0
        %3402 = vmatpush1.bf16.msra.mxu0 %v3304
        %3403 = vmatprep.subr.bf16.mxu0 0
        %3404 = vmatpush1.bf16.msra.mxu0 %v3307
        %3405 = vmatprep.subr.bf16.mxu0 0
        %3406 = vmatpush1.bf16.msra.mxu0 %v3310
        %3407 = vmatprep.subr.bf16.mxu0 0
        %3408 = vmatpush1.bf16.msra.mxu0 %v3313
        %3409 = vmatprep.subr.bf16.mxu0 0
        %3410 = vmatpush1.bf16.msra.mxu0 %v3316
        %3411 = vmatprep.subr.bf16.mxu0 0
        %3412 = vmatpush1.bf16.msra.mxu0 0
        %3413 = vmatprep.subr.bf16.mxu0 0
        %3414 = vmatpush1.bf16.msra.mxu0 0
        %3415 = vmatprep.subr.bf16.mxu0 0
        %3416 = vmatpush1.bf16.msra.mxu0 0
        %3417 = vmatprep.subr.bf16.mxu0 0
        %3418 = vmatpush1.bf16.msra.mxu0 0
        %3419 = vmatprep.subr.bf16.mxu0 0
        %3420 = vmatpush1.bf16.msra.mxu0 0
        %3421 = vmatprep.subr.bf16.mxu0 0
        %3422 = vmatpush1.bf16.msra.mxu0 0
        %3423 = vmatprep.mubr.bf16.mxu0 %v3348
        %3424 = vmatmul.mubr.bf16.gmra.mrb[0].mxu0 %v3184
        %v3425 = vpop.f32.mrb[0].mxu0
        %v3426 = vadd.f32 %v3177, %v3425
        %v3427 = vpop.f32.mrb[0].mxu0
        %v3428 = vpop.f32.mrb[0].mxu0
        %v3429 = vpop.f32.mrb[0].mxu0
        %3430 = vdwg.mxu0
        %v3431 = vmax.f32 %v3385, 0.0
        %v3432 = vmax.f32 %v3387, 0.0
        %v3433 = vmax.f32 %v3426, 0.0
        %v3434 = vld [vmem:[#allocation2] sm:$0xff]
        %v3435 = vld [vmem:[#allocation2 + $0x8] sm:$0xff]
        %v3436 = vpack.c.bf16 %v3431, %v3431
        %v3437 = vpack.c.bf16 %v3432, %v3432
        %v3438 = vpack.c.bf16 %v3433, %v3433
        %s3439 = scalar_lea.vmem %s3, 1536
        %v3440 = vld [vmem:[%s3439] sm:$0xff]
        %v3441 = vld [vmem:[%s3439 + $0x8] sm:$0xff]
        %v3442 = vld [vmem:[%s3439 + $0x10] sm:$0xff]
        %v3443 = vld [vmem:[%s3439 + $0x18] sm:$0xff]
        %v3444 = vld [vmem:[%s3439 + $0x20] sm:$0xff]
        %v3445 = vld [vmem:[%s3439 + $0x28] sm:$0xff]
        %v3446 = vld [vmem:[%s3439 + $0x30] sm:$0xff]
        %v3447 = vld [vmem:[%s3439 + $0x38] sm:$0xff]
        %v3448 = vld [vmem:[%s3439 + $0x40] sm:$0xff]
        %v3449 = vld [vmem:[%s3439 + $0x48] sm:$0xff]
        %v3450 = vld [vmem:[%s3439 + $0x50] sm:$0xff]
        %v3451 = vld [vmem:[%s3439 + $0x58] sm:$0xff]
        %v3452 = vld [vmem:[%s3439 + $0x60] sm:$0xff]
        %v3453 = vld [vmem:[%s3439 + $0x68] sm:$0xff]
        %v3454 = vld [vmem:[%s3439 + $0x70] sm:$0xff]
        %v3455 = vld [vmem:[%s3439 + $0x78] sm:$0xff]
        %v3456 = vld [vmem:[%s3439 + $0x80] sm:$0xff]
        %v3457 = vld [vmem:[%s3439 + $0x88] sm:$0xff]
        %v3458 = vld [vmem:[%s3439 + $0x90] sm:$0xff]
        %v3459 = vld [vmem:[%s3439 + $0x98] sm:$0xff]
        %v3460 = vld [vmem:[%s3439 + $0xa0] sm:$0xff]
        %v3461 = vld [vmem:[%s3439 + $0xa8] sm:$0xff]
        %v3462 = vld [vmem:[%s3439 + $0xb0] sm:$0xff]
        %v3463 = vld [vmem:[%s3439 + $0xb8] sm:$0xff]
        %v3464 = vld [vmem:[%s3439 + $0xc0] sm:$0xff]
        %v3465 = vld [vmem:[%s3439 + $0xc8] sm:$0xff]
        %v3466 = vld [vmem:[%s3439 + $0xd0] sm:$0xff]
        %v3467 = vld [vmem:[%s3439 + $0xd8] sm:$0xff]
        %v3468 = vld [vmem:[%s3439 + $0xe0] sm:$0xff]
        %v3469 = vld [vmem:[%s3439 + $0xe8] sm:$0xff]
        %v3470 = vld [vmem:[%s3439 + $0xf0] sm:$0xff]
        %v3471 = vld [vmem:[%s3439 + $0xf8] sm:$0xff]
        %v3472 = vld [vmem:[%s3439 + $0x100] sm:$0xff]
        %v3473 = vld [vmem:[%s3439 + $0x108] sm:$0xff]
        %v3474 = vld [vmem:[%s3439 + $0x110] sm:$0xff]
        %v3475 = vld [vmem:[%s3439 + $0x118] sm:$0xff]
        %v3476 = vld [vmem:[%s3439 + $0x120] sm:$0xff]
        %v3477 = vld [vmem:[%s3439 + $0x128] sm:$0xff]
        %v3478 = vld [vmem:[%s3439 + $0x130] sm:$0xff]
        %v3479 = vld [vmem:[%s3439 + $0x138] sm:$0xff]
        %v3480 = vld [vmem:[%s3439 + $0x140] sm:$0xff]
        %v3481 = vld [vmem:[%s3439 + $0x148] sm:$0xff]
        %v3482 = vld [vmem:[%s3439 + $0x150] sm:$0xff]
        %v3483 = vld [vmem:[%s3439 + $0x158] sm:$0xff]
        %v3484 = vld [vmem:[%s3439 + $0x160] sm:$0xff]
        %v3485 = vld [vmem:[%s3439 + $0x168] sm:$0xff]
        %v3486 = vld [vmem:[%s3439 + $0x170] sm:$0xff]
        %v3487 = vld [vmem:[%s3439 + $0x178] sm:$0xff]
        %v3536 = vunpack.c.l.b16 %v3440
        %v3537 = vunpack.c.h.b16 %v3440
        %v3538 = vunpack.c.l.b16 %v3441
        %v3539 = vunpack.c.h.b16 %v3441
        %v3540 = vunpack.c.l.b16 %v3442
        %v3541 = vunpack.c.h.b16 %v3442
        %v3542 = vunpack.c.l.b16 %v3443
        %v3543 = vunpack.c.h.b16 %v3443
        %v3544 = vunpack.c.l.b16 %v3444
        %v3545 = vunpack.c.h.b16 %v3444
        %v3546 = vunpack.c.l.b16 %v3445
        %v3547 = vunpack.c.h.b16 %v3445
        %v3548 = vunpack.c.l.b16 %v3446
        %v3549 = vunpack.c.h.b16 %v3446
        %v3550 = vunpack.c.l.b16 %v3447
        %v3551 = vunpack.c.h.b16 %v3447
        %v3552 = vunpack.c.l.b16 %v3448
        %v3553 = vunpack.c.h.b16 %v3448
        %v3554 = vunpack.c.l.b16 %v3449
        %v3555 = vunpack.c.h.b16 %v3449
        %v3556 = vunpack.c.l.b16 %v3450
        %v3557 = vunpack.c.h.b16 %v3450
        %v3558 = vunpack.c.l.b16 %v3451
        %v3559 = vunpack.c.h.b16 %v3451
        %v3560 = vunpack.c.l.b16 %v3452
        %v3561 = vunpack.c.h.b16 %v3452
        %v3562 = vunpack.c.l.b16 %v3453
        %v3563 = vunpack.c.h.b16 %v3453
        %v3564 = vunpack.c.l.b16 %v3454
        %v3565 = vunpack.c.h.b16 %v3454
        %v3566 = vunpack.c.l.b16 %v3455
        %v3567 = vunpack.c.h.b16 %v3455
        %v3568 = vunpack.c.l.b16 %v3456
        %v3569 = vunpack.c.h.b16 %v3456
        %v3570 = vunpack.c.l.b16 %v3457
        %v3571 = vunpack.c.h.b16 %v3457
        %v3572 = vunpack.c.l.b16 %v3458
        %v3573 = vunpack.c.h.b16 %v3458
        %v3574 = vunpack.c.l.b16 %v3459
        %v3575 = vunpack.c.h.b16 %v3459
        %v3576 = vunpack.c.l.b16 %v3460
        %v3577 = vunpack.c.h.b16 %v3460
        %v3578 = vunpack.c.l.b16 %v3461
        %v3579 = vunpack.c.h.b16 %v3461
        %v3580 = vunpack.c.l.b16 %v3462
        %v3581 = vunpack.c.h.b16 %v3462
        %v3582 = vunpack.c.l.b16 %v3463
        %v3583 = vunpack.c.h.b16 %v3463
        %v3584 = vunpack.c.l.b16 %v3464
        %v3585 = vunpack.c.h.b16 %v3464
        %v3586 = vunpack.c.l.b16 %v3465
        %v3587 = vunpack.c.h.b16 %v3465
        %v3588 = vunpack.c.l.b16 %v3466
        %v3589 = vunpack.c.h.b16 %v3466
        %v3590 = vunpack.c.l.b16 %v3467
        %v3591 = vunpack.c.h.b16 %v3467
        %v3592 = vunpack.c.l.b16 %v3468
        %v3593 = vunpack.c.h.b16 %v3468
        %v3594 = vunpack.c.l.b16 %v3469
        %v3595 = vunpack.c.h.b16 %v3469
        %v3596 = vunpack.c.l.b16 %v3470
        %v3597 = vunpack.c.h.b16 %v3470
        %v3598 = vunpack.c.l.b16 %v3471
        %v3599 = vunpack.c.h.b16 %v3471
        %v3600 = vunpack.c.l.b16 %v3472
        %v3601 = vunpack.c.h.b16 %v3472
        %v3602 = vunpack.c.l.b16 %v3473
        %v3603 = vunpack.c.h.b16 %v3473
        %v3604 = vunpack.c.l.b16 %v3474
        %v3605 = vunpack.c.h.b16 %v3474
        %v3606 = vunpack.c.l.b16 %v3475
        %v3607 = vunpack.c.h.b16 %v3475
        %v3608 = vunpack.c.l.b16 %v3476
        %v3609 = vunpack.c.h.b16 %v3476
        %v3610 = vunpack.c.l.b16 %v3477
        %v3611 = vunpack.c.h.b16 %v3477
        %v3612 = vunpack.c.l.b16 %v3478
        %v3613 = vunpack.c.h.b16 %v3478
        %v3614 = vunpack.c.l.b16 %v3479
        %v3615 = vunpack.c.h.b16 %v3479
        %v3616 = vunpack.c.l.b16 %v3480
        %v3617 = vunpack.c.h.b16 %v3480
        %v3618 = vunpack.c.l.b16 %v3481
        %v3619 = vunpack.c.h.b16 %v3481
        %v3620 = vunpack.c.l.b16 %v3482
        %v3621 = vunpack.c.h.b16 %v3482
        %v3622 = vunpack.c.l.b16 %v3483
        %v3623 = vunpack.c.h.b16 %v3483
        %v3624 = vunpack.c.l.b16 %v3484
        %v3625 = vunpack.c.h.b16 %v3484
        %v3626 = vunpack.c.l.b16 %v3485
        %v3627 = vunpack.c.h.b16 %v3485
        %v3628 = vunpack.c.l.b16 %v3486
        %v3629 = vunpack.c.h.b16 %v3486
        %v3630 = vunpack.c.l.b16 %v3487
        %v3631 = vunpack.c.h.b16 %v3487
        %v3632 = vpack.c.b16 %v3538, %v3536
        %v3633 = vpack.c.b16 %v3539, %v3537
        %v3634 = vpack.c.b16 %v3542, %v3540
        %v3635 = vpack.c.b16 %v3543, %v3541
        %v3636 = vpack.c.b16 %v3546, %v3544
        %v3637 = vpack.c.b16 %v3547, %v3545
        %v3638 = vpack.c.b16 %v3550, %v3548
        %v3639 = vpack.c.b16 %v3551, %v3549
        %v3640 = vpack.c.b16 %v3554, %v3552
        %v3641 = vpack.c.b16 %v3555, %v3553
        %v3642 = vpack.c.b16 %v3558, %v3556
        %v3643 = vpack.c.b16 %v3559, %v3557
        %v3644 = vpack.c.b16 %v3562, %v3560
        %v3645 = vpack.c.b16 %v3563, %v3561
        %v3646 = vpack.c.b16 %v3566, %v3564
        %v3647 = vpack.c.b16 %v3567, %v3565
        %v3648 = vpack.c.b16 %v3570, %v3568
        %v3649 = vpack.c.b16 %v3571, %v3569
        %v3650 = vpack.c.b16 %v3574, %v3572
        %v3651 = vpack.c.b16 %v3575, %v3573
        %v3652 = vpack.c.b16 %v3578, %v3576
        %v3653 = vpack.c.b16 %v3579, %v3577
        %v3654 = vpack.c.b16 %v3582, %v3580
        %v3655 = vpack.c.b16 %v3583, %v3581
        %v3656 = vpack.c.b16 %v3586, %v3584
        %v3657 = vpack.c.b16 %v3587, %v3585
        %v3658 = vpack.c.b16 %v3590, %v3588
        %v3659 = vpack.c.b16 %v3591, %v3589
        %v3660 = vpack.c.b16 %v3594, %v3592
        %v3661 = vpack.c.b16 %v3595, %v3593
        %v3662 = vpack.c.b16 %v3598, %v3596
        %v3663 = vpack.c.b16 %v3599, %v3597
        %v3664 = vpack.c.b16 %v3602, %v3600
        %v3665 = vpack.c.b16 %v3603, %v3601
        %v3666 = vpack.c.b16 %v3606, %v3604
        %v3667 = vpack.c.b16 %v3607, %v3605
        %v3668 = vpack.c.b16 %v3610, %v3608
        %v3669 = vpack.c.b16 %v3611, %v3609
        %v3670 = vpack.c.b16 %v3614, %v3612
        %v3671 = vpack.c.b16 %v3615, %v3613
        %v3672 = vpack.c.b16 %v3618, %v3616
        %v3673 = vpack.c.b16 %v3619, %v3617
        %v3674 = vpack.c.b16 %v3622, %v3620
        %v3675 = vpack.c.b16 %v3623, %v3621
        %v3676 = vpack.c.b16 %v3626, %v3624
        %v3677 = vpack.c.b16 %v3627, %v3625
        %v3678 = vpack.c.b16 %v3630, %v3628
        %v3679 = vpack.c.b16 %v3631, %v3629
        %3728 = vmatprep.subr.bf16.mxu0 %v3633
        %3729 = vmatpush1.bf16.msra.mxu0 %v3632
        %3730 = vmatprep.subr.bf16.mxu0 %v3635
        %3731 = vmatpush1.bf16.msra.mxu0 %v3634
        %3732 = vmatprep.subr.bf16.mxu0 %v3637
        %3733 = vmatpush1.bf16.msra.mxu0 %v3636
        %3734 = vmatprep.subr.bf16.mxu0 %v3639
        %3735 = vmatpush1.bf16.msra.mxu0 %v3638
        %3736 = vmatprep.subr.bf16.mxu0 %v3641
        %3737 = vmatpush1.bf16.msra.mxu0 %v3640
        %3738 = vmatprep.subr.bf16.mxu0 %v3643
        %3739 = vmatpush1.bf16.msra.mxu0 %v3642
        %3740 = vmatprep.subr.bf16.mxu0 %v3645
        %3741 = vmatpush1.bf16.msra.mxu0 %v3644
        %3742 = vmatprep.subr.bf16.mxu0 %v3647
        %3743 = vmatpush1.bf16.msra.mxu0 %v3646
        %3744 = vmatprep.subr.bf16.mxu0 %v3649
        %3745 = vmatpush1.bf16.msra.mxu0 %v3648
        %3746 = vmatprep.subr.bf16.mxu0 %v3651
        %3747 = vmatpush1.bf16.msra.mxu0 %v3650
        %3748 = vmatprep.subr.bf16.mxu0 %v3653
        %3749 = vmatpush1.bf16.msra.mxu0 %v3652
        %3750 = vmatprep.subr.bf16.mxu0 %v3655
        %3751 = vmatpush1.bf16.msra.mxu0 %v3654
        %3752 = vmatprep.subr.bf16.mxu0 %v3657
        %3753 = vmatpush1.bf16.msra.mxu0 %v3656
        %3754 = vmatprep.subr.bf16.mxu0 %v3659
        %3755 = vmatpush1.bf16.msra.mxu0 %v3658
        %3756 = vmatprep.subr.bf16.mxu0 %v3661
        %3757 = vmatpush1.bf16.msra.mxu0 %v3660
        %3758 = vmatprep.subr.bf16.mxu0 %v3663
        %3759 = vmatpush1.bf16.msra.mxu0 %v3662
        %3760 = vmatprep.mubr.bf16.mxu0 %v3437
        %3761 = vmatmul.mubr.bf16.gmra.mrb[0].mxu0 %v3436
        %v3762 = vpop.f32.mrb[0].mxu0
        %v3763 = vadd.f32 0.0, %v3762
        %v3764 = vpop.f32.mrb[0].mxu0
        %v3765 = vadd.f32 0.0, %v3764
        %v3766 = vpop.f32.mrb[0].mxu0
        %v3767 = vpop.f32.mrb[0].mxu0
        %3768 = vdwg.mxu0
        %3769 = vmatprep.subr.bf16.mxu0 %v3665
        %3770 = vmatpush1.bf16.msra.mxu0 %v3664
        %3771 = vmatprep.subr.bf16.mxu0 %v3667
        %3772 = vmatpush1.bf16.msra.mxu0 %v3666
        %3773 = vmatprep.subr.bf16.mxu0 %v3669
        %3774 = vmatpush1.bf16.msra.mxu0 %v3668
        %3775 = vmatprep.subr.bf16.mxu0 %v3671
        %3776 = vmatpush1.bf16.msra.mxu0 %v3670
        %3777 = vmatprep.subr.bf16.mxu0 %v3673
        %3778 = vmatpush1.bf16.msra.mxu0 %v3672
        %3779 = vmatprep.subr.bf16.mxu0 %v3675
        %3780 = vmatpush1.bf16.msra.mxu0 %v3674
        %3781 = vmatprep.subr.bf16.mxu0 %v3677
        %3782 = vmatpush1.bf16.msra.mxu0 %v3676
        %3783 = vmatprep.subr.bf16.mxu0 %v3679
        %3784 = vmatpush1.bf16.msra.mxu0 %v3678
        %3785 = vmatprep.subr.bf16.mxu0 0
        %3786 = vmatpush1.bf16.msra.mxu0 0
        %3787 = vmatprep.subr.bf16.mxu0 0
        %3788 = vmatpush1.bf16.msra.mxu0 0
        %3789 = vmatprep.subr.bf16.mxu0 0
        %3790 = vmatpush1.bf16.msra.mxu0 0
        %3791 = vmatprep.subr.bf16.mxu0 0
        %3792 = vmatpush1.bf16.msra.mxu0 0
        %3793 = vmatprep.subr.bf16.mxu0 0
        %3794 = vmatpush1.bf16.msra.mxu0 0
        %3795 = vmatprep.subr.bf16.mxu0 0
        %3796 = vmatpush1.bf16.msra.mxu0 0
        %3797 = vmatprep.subr.bf16.mxu0 0
        %3798 = vmatpush1.bf16.msra.mxu0 0
        %3799 = vmatprep.subr.bf16.mxu0 0
        %3800 = vmatpush1.bf16.msra.mxu0 0
        %3801 = vmatprep.mubr.bf16.mxu0 0
        %3802 = vmatmul.mubr.bf16.gmra.mrb[0].mxu0 %v3438
        %v3803 = vpop.f32.mrb[0].mxu0
        %v3804 = vadd.f32 %v3763, %v3803
        %v3805 = vpop.f32.mrb[0].mxu0
        %v3806 = vadd.f32 %v3765, %v3805
        %v3807 = vpop.f32.mrb[0].mxu0
        %v3808 = vpop.f32.mrb[0].mxu0
        %3809 = vdwg.mxu0
        %v3810 = vadd.f32 %v3434, %v3804
        %v3811 = vadd.f32 %v3435, %v3806
        %3812 = vst [vmem:[#allocation2] sm:$0xff] %v3810
        %3813 = vst [vmem:[#allocation2 + $0x8] sm:$0xff] %v3811
        %s3814 = scalar_lea.vmem %s320, 40 [#allocation3]
        %v3815 = vld [vmem:[%s3814] sm:$0xff]
        %v3816 = vld [vmem:[%s1] sm:$0xff]
        %v3817 = vld [vmem:[%s1 + $0x8] sm:$0xf]
        %v3818 = vld [vmem:[%s1 + $0xc] sm:$0xff]
        %v3819 = vld [vmem:[%s1 + $0x14] sm:$0xf]
        %v3820 = vld [vmem:[%s1 + $0x18] sm:$0xff]
        %v3821 = vld [vmem:[%s1 + $0x20] sm:$0xf]
        %v3822 = vld [vmem:[%s1 + $0x24] sm:$0xff]
        %v3823 = vld [vmem:[%s1 + $0x2c] sm:$0xf]
        %v3824 = vld [vmem:[%s1 + $0x30] sm:$0xff]
        %v3825 = vld [vmem:[%s1 + $0x38] sm:$0xf]
        %v3826 = vld [vmem:[%s1 + $0x3c] sm:$0xff]
        %v3827 = vld [vmem:[%s1 + $0x44] sm:$0xf]
        %v3828 = vld [vmem:[%s1 + $0x48] sm:$0xff]
        %v3829 = vld [vmem:[%s1 + $0x50] sm:$0xf]
        %v3830 = vld [vmem:[%s1 + $0x54] sm:$0xff]
        %v3831 = vld [vmem:[%s1 + $0x5c] sm:$0xf]
        %v3832 = vld [vmem:[%s1 + $0x60] sm:$0xff]
        %v3833 = vld [vmem:[%s1 + $0x68] sm:$0xf]
        %v3834 = vld [vmem:[%s1 + $0x6c] sm:$0xff]
        %v3835 = vld [vmem:[%s1 + $0x74] sm:$0xf]
        %v3836 = vld [vmem:[%s1 + $0x78] sm:$0xff]
        %v3837 = vld [vmem:[%s1 + $0x80] sm:$0xf]
        %v3838 = vld [vmem:[%s1 + $0x84] sm:$0xff]
        %v3839 = vld [vmem:[%s1 + $0x8c] sm:$0xf]
        %v3840 = vld [vmem:[%s1 + $0x90] sm:$0xff]
        %v3841 = vld [vmem:[%s1 + $0x98] sm:$0xf]
        %v3842 = vld [vmem:[%s1 + $0x9c] sm:$0xff]
        %v3843 = vld [vmem:[%s1 + $0xa4] sm:$0xf]
        %v3844 = vld [vmem:[%s1 + $0xa8] sm:$0xff]
        %v3845 = vld [vmem:[%s1 + $0xb0] sm:$0xf]
        %v3846 = vld [vmem:[%s1 + $0xb4] sm:$0xff]
        %v3847 = vld [vmem:[%s1 + $0xbc] sm:$0xf]
        %v3848 = vld [vmem:[%s1 + $0xc0] sm:$0xff]
        %v3849 = vld [vmem:[%s1 + $0xc8] sm:$0xf]
        %v3850 = vld [vmem:[%s1 + $0xcc] sm:$0xff]
        %v3851 = vld [vmem:[%s1 + $0xd4] sm:$0xf]
        %v3852 = vld [vmem:[%s1 + $0xd8] sm:$0xff]
        %v3853 = vld [vmem:[%s1 + $0xe0] sm:$0xf]
        %v3854 = vld [vmem:[%s1 + $0xe4] sm:$0xff]
        %v3855 = vld [vmem:[%s1 + $0xec] sm:$0xf]
        %v3856 = vld [vmem:[%s2] sm:$0x7]
        %v3858 = vlaneseq
        %v3859 = vshrl.u32 %v3858, 7
        %v3860 = vsub.s32 0, %v3859
        %v3861 = vrot.slane %v3856, %v3860
        %v3862 = vlaneseq
        %v3863 = vshrl.u32 %v3862, 7
        %v3864 = vsub.s32 1, %v3863
        %v3865 = vrot.slane %v3856, %v3864
        %v3866 = vlaneseq
        %v3867 = vshrl.u32 %v3866, 7
        %v3868 = vsub.s32 2, %v3867
        %v3869 = vrot.slane %v3856, %v3868
        %v3874 = vunpack.c.l.b16 %v3815
        %v3875 = vunpack.c.h.b16 %v3815
        %v3876 = vpack.c.b16 %v3874, %v3874
        %v3877 = vpack.c.b16 %v3875, %v3875
        %v3919 = vunpack.c.l.b16 %v3816
        %v3920 = vunpack.c.h.b16 %v3816
        %v3921 = vunpack.c.l.b16 %v3817
        %v3922 = vunpack.c.l.b16 %v3818
        %v3923 = vunpack.c.h.b16 %v3818
        %v3924 = vunpack.c.l.b16 %v3819
        %v3925 = vunpack.c.l.b16 %v3820
        %v3926 = vunpack.c.h.b16 %v3820
        %v3927 = vunpack.c.l.b16 %v3821
        %v3928 = vunpack.c.l.b16 %v3822
        %v3929 = vunpack.c.h.b16 %v3822
        %v3930 = vunpack.c.l.b16 %v3823
        %v3931 = vunpack.c.l.b16 %v3824
        %v3932 = vunpack.c.h.b16 %v3824
        %v3933 = vunpack.c.l.b16 %v3825
        %v3934 = vunpack.c.l.b16 %v3826
        %v3935 = vunpack.c.h.b16 %v3826
        %v3936 = vunpack.c.l.b16 %v3827
        %v3937 = vunpack.c.l.b16 %v3828
        %v3938 = vunpack.c.h.b16 %v3828
        %v3939 = vunpack.c.l.b16 %v3829
        %v3940 = vunpack.c.l.b16 %v3830
        %v3941 = vunpack.c.h.b16 %v3830
        %v3942 = vunpack.c.l.b16 %v3831
        %v3943 = vunpack.c.l.b16 %v3832
        %v3944 = vunpack.c.h.b16 %v3832
        %v3945 = vunpack.c.l.b16 %v3833
        %v3946 = vunpack.c.l.b16 %v3834
        %v3947 = vunpack.c.h.b16 %v3834
        %v3948 = vunpack.c.l.b16 %v3835
        %v3949 = vunpack.c.l.b16 %v3836
        %v3950 = vunpack.c.h.b16 %v3836
        %v3951 = vunpack.c.l.b16 %v3837
        %v3952 = vunpack.c.l.b16 %v3838
        %v3953 = vunpack.c.h.b16 %v3838
        %v3954 = vunpack.c.l.b16 %v3839
        %v3955 = vunpack.c.l.b16 %v3840
        %v3956 = vunpack.c.h.b16 %v3840
        %v3957 = vunpack.c.l.b16 %v3841
        %v3958 = vunpack.c.l.b16 %v3842
        %v3959 = vunpack.c.h.b16 %v3842
        %v3960 = vunpack.c.l.b16 %v3843
        %v3961 = vunpack.c.l.b16 %v3844
        %v3962 = vunpack.c.h.b16 %v3844
        %v3963 = vunpack.c.l.b16 %v3845
        %v3964 = vunpack.c.l.b16 %v3846
        %v3965 = vunpack.c.h.b16 %v3846
        %v3966 = vunpack.c.l.b16 %v3847
        %v3967 = vunpack.c.l.b16 %v3848
        %v3968 = vunpack.c.h.b16 %v3848
        %v3969 = vunpack.c.l.b16 %v3849
        %v3970 = vunpack.c.l.b16 %v3850
        %v3971 = vunpack.c.h.b16 %v3850
        %v3972 = vunpack.c.l.b16 %v3851
        %v3973 = vunpack.c.l.b16 %v3852
        %v3974 = vunpack.c.h.b16 %v3852
        %v3975 = vunpack.c.l.b16 %v3853
        %v3976 = vunpack.c.l.b16 %v3854
        %v3977 = vunpack.c.h.b16 %v3854
        %v3978 = vunpack.c.l.b16 %v3855
        %v3979 = vpack.c.b16 %v3922, %v3919
        %v3980 = vpack.c.b16 %v3923, %v3920
        %v3981 = vpack.c.b16 %v3924, %v3921
        %v3982 = vpack.c.b16 %v3928, %v3925
        %v3983 = vpack.c.b16 %v3929, %v3926
        %v3984 = vpack.c.b16 %v3930, %v3927
        %v3985 = vpack.c.b16 %v3934, %v3931
        %v3986 = vpack.c.b16 %v3935, %v3932
        %v3987 = vpack.c.b16 %v3936, %v3933
        %v3988 = vpack.c.b16 %v3940, %v3937
        %v3989 = vpack.c.b16 %v3941, %v3938
        %v3990 = vpack.c.b16 %v3942, %v3939
        %v3991 = vpack.c.b16 %v3946, %v3943
        %v3992 = vpack.c.b16 %v3947, %v3944
        %v3993 = vpack.c.b16 %v3948, %v3945
        %v3994 = vpack.c.b16 %v3952, %v3949
        %v3995 = vpack.c.b16 %v3953, %v3950
        %v3996 = vpack.c.b16 %v3954, %v3951
        %v3997 = vpack.c.b16 %v3958, %v3955
        %v3998 = vpack.c.b16 %v3959, %v3956
        %v3999 = vpack.c.b16 %v3960, %v3957
        %v4000 = vpack.c.b16 %v3964, %v3961
        %v4001 = vpack.c.b16 %v3965, %v3962
        %v4002 = vpack.c.b16 %v3966, %v3963
        %v4003 = vpack.c.b16 %v3970, %v3967
        %v4004 = vpack.c.b16 %v3971, %v3968
        %v4005 = vpack.c.b16 %v3972, %v3969
        %v4006 = vpack.c.b16 %v3976, %v3973
        %v4007 = vpack.c.b16 %v3977, %v3974
        %v4008 = vpack.c.b16 %v3978, %v3975
        %v4040 = vsel %vm579, %v3877, 0
        %4042 = vmatprep.subr.bf16.mxu0 %v3980
        %4043 = vmatpush1.bf16.msra.mxu0 %v3979
        %4044 = vmatprep.subr.bf16.mxu0 %v3983
        %4045 = vmatpush1.bf16.msra.mxu0 %v3982
        %4046 = vmatprep.subr.bf16.mxu0 %v3986
        %4047 = vmatpush1.bf16.msra.mxu0 %v3985
        %4048 = vmatprep.subr.bf16.mxu0 %v3989
        %4049 = vmatpush1.bf16.msra.mxu0 %v3988
        %4050 = vmatprep.subr.bf16.mxu0 %v3992
        %4051 = vmatpush1.bf16.msra.mxu0 %v3991
        %4052 = vmatprep.subr.bf16.mxu0 %v3995
        %4053 = vmatpush1.bf16.msra.mxu0 %v3994
        %4054 = vmatprep.subr.bf16.mxu0 %v3998
        %4055 = vmatpush1.bf16.msra.mxu0 %v3997
        %4056 = vmatprep.subr.bf16.mxu0 %v4001
        %4057 = vmatpush1.bf16.msra.mxu0 %v4000
        %4058 = vmatprep.subr.bf16.mxu0 %v4004
        %4059 = vmatpush1.bf16.msra.mxu0 %v4003
        %4060 = vmatprep.subr.bf16.mxu0 %v4007
        %4061 = vmatpush1.bf16.msra.mxu0 %v4006
        %4062 = vmatprep.subr.bf16.mxu0 0
        %4063 = vmatpush1.bf16.msra.mxu0 0
        %4064 = vmatprep.subr.bf16.mxu0 0
        %4065 = vmatpush1.bf16.msra.mxu0 0
        %4066 = vmatprep.subr.bf16.mxu0 0
        %4067 = vmatpush1.bf16.msra.mxu0 0
        %4068 = vmatprep.subr.bf16.mxu0 0
        %4069 = vmatpush1.bf16.msra.mxu0 0
        %4070 = vmatprep.subr.bf16.mxu0 0
        %4071 = vmatpush1.bf16.msra.mxu0 0
        %4072 = vmatprep.subr.bf16.mxu0 0
        %4073 = vmatpush1.bf16.msra.mxu0 0
        %4074 = vmatprep.mubr.bf16.mxu0 %v4040
        %4075 = vmatmul.mubr.bf16.gmra.mrb[0].mxu0 %v3876
        %v4076 = vpop.f32.mrb[0].mxu0
        %v4077 = vadd.f32 %v3861, %v4076
        %v4078 = vpop.f32.mrb[0].mxu0
        %v4079 = vadd.f32 %v3865, %v4078
        %v4080 = vpop.f32.mrb[0].mxu0
        %v4081 = vpop.f32.mrb[0].mxu0
        %4082 = vdwg.mxu0
        %4083 = vmatprep.subr.bf16.mxu0 0
        %4084 = vmatpush1.bf16.msra.mxu0 %v3981
        %4085 = vmatprep.subr.bf16.mxu0 0
        %4086 = vmatpush1.bf16.msra.mxu0 %v3984
        %4087 = vmatprep.subr.bf16.mxu0 0
        %4088 = vmatpush1.bf16.msra.mxu0 %v3987
        %4089 = vmatprep.subr.bf16.mxu0 0
        %4090 = vmatpush1.bf16.msra.mxu0 %v3990
        %4091 = vmatprep.subr.bf16.mxu0 0
        %4092 = vmatpush1.bf16.msra.mxu0 %v3993
        %4093 = vmatprep.subr.bf16.mxu0 0
        %4094 = vmatpush1.bf16.msra.mxu0 %v3996
        %4095 = vmatprep.subr.bf16.mxu0 0
        %4096 = vmatpush1.bf16.msra.mxu0 %v3999
        %4097 = vmatprep.subr.bf16.mxu0 0
        %4098 = vmatpush1.bf16.msra.mxu0 %v4002
        %4099 = vmatprep.subr.bf16.mxu0 0
        %4100 = vmatpush1.bf16.msra.mxu0 %v4005
        %4101 = vmatprep.subr.bf16.mxu0 0
        %4102 = vmatpush1.bf16.msra.mxu0 %v4008
        %4103 = vmatprep.subr.bf16.mxu0 0
        %4104 = vmatpush1.bf16.msra.mxu0 0
        %4105 = vmatprep.subr.bf16.mxu0 0
        %4106 = vmatpush1.bf16.msra.mxu0 0
        %4107 = vmatprep.subr.bf16.mxu0 0
        %4108 = vmatpush1.bf16.msra.mxu0 0
        %4109 = vmatprep.subr.bf16.mxu0 0
        %4110 = vmatpush1.bf16.msra.mxu0 0
        %4111 = vmatprep.subr.bf16.mxu0 0
        %4112 = vmatpush1.bf16.msra.mxu0 0
        %4113 = vmatprep.subr.bf16.mxu0 0
        %4114 = vmatpush1.bf16.msra.mxu0 0
        %4115 = vmatprep.mubr.bf16.mxu0 %v4040
        %4116 = vmatmul.mubr.bf16.gmra.mrb[0].mxu0 %v3876
        %v4117 = vpop.f32.mrb[0].mxu0
        %v4118 = vadd.f32 %v3869, %v4117
        %v4119 = vpop.f32.mrb[0].mxu0
        %v4120 = vpop.f32.mrb[0].mxu0
        %v4121 = vpop.f32.mrb[0].mxu0
        %4122 = vdwg.mxu0
        %v4123 = vmax.f32 %v4077, 0.0
        %v4124 = vmax.f32 %v4079, 0.0
        %v4125 = vmax.f32 %v4118, 0.0
        %v4126 = vld [vmem:[#allocation2] sm:$0xff]
        %v4127 = vld [vmem:[#allocation2 + $0x8] sm:$0xff]
        %v4128 = vpack.c.bf16 %v4123, %v4123
        %v4129 = vpack.c.bf16 %v4124, %v4124
        %v4130 = vpack.c.bf16 %v4125, %v4125
        %s4131 = scalar_lea.vmem %s3, 1920
        %v4132 = vld [vmem:[%s4131] sm:$0xff]
        %v4133 = vld [vmem:[%s4131 + $0x8] sm:$0xff]
        %v4134 = vld [vmem:[%s4131 + $0x10] sm:$0xff]
        %v4135 = vld [vmem:[%s4131 + $0x18] sm:$0xff]
        %v4136 = vld [vmem:[%s4131 + $0x20] sm:$0xff]
        %v4137 = vld [vmem:[%s4131 + $0x28] sm:$0xff]
        %v4138 = vld [vmem:[%s4131 + $0x30] sm:$0xff]
        %v4139 = vld [vmem:[%s4131 + $0x38] sm:$0xff]
        %v4140 = vld [vmem:[%s4131 + $0x40] sm:$0xff]
        %v4141 = vld [vmem:[%s4131 + $0x48] sm:$0xff]
        %v4142 = vld [vmem:[%s4131 + $0x50] sm:$0xff]
        %v4143 = vld [vmem:[%s4131 + $0x58] sm:$0xff]
        %v4144 = vld [vmem:[%s4131 + $0x60] sm:$0xff]
        %v4145 = vld [vmem:[%s4131 + $0x68] sm:$0xff]
        %v4146 = vld [vmem:[%s4131 + $0x70] sm:$0xff]
        %v4147 = vld [vmem:[%s4131 + $0x78] sm:$0xff]
        %v4148 = vld [vmem:[%s4131 + $0x80] sm:$0xff]
        %v4149 = vld [vmem:[%s4131 + $0x88] sm:$0xff]
        %v4150 = vld [vmem:[%s4131 + $0x90] sm:$0xff]
        %v4151 = vld [vmem:[%s4131 + $0x98] sm:$0xff]
        %v4152 = vld [vmem:[%s4131 + $0xa0] sm:$0xff]
        %v4153 = vld [vmem:[%s4131 + $0xa8] sm:$0xff]
        %v4154 = vld [vmem:[%s4131 + $0xb0] sm:$0xff]
        %v4155 = vld [vmem:[%s4131 + $0xb8] sm:$0xff]
        %v4156 = vld [vmem:[%s4131 + $0xc0] sm:$0xff]
        %v4157 = vld [vmem:[%s4131 + $0xc8] sm:$0xff]
        %v4158 = vld [vmem:[%s4131 + $0xd0] sm:$0xff]
        %v4159 = vld [vmem:[%s4131 + $0xd8] sm:$0xff]
        %v4160 = vld [vmem:[%s4131 + $0xe0] sm:$0xff]
        %v4161 = vld [vmem:[%s4131 + $0xe8] sm:$0xff]
        %v4162 = vld [vmem:[%s4131 + $0xf0] sm:$0xff]
        %v4163 = vld [vmem:[%s4131 + $0xf8] sm:$0xff]
        %v4164 = vld [vmem:[%s4131 + $0x100] sm:$0xff]
        %v4165 = vld [vmem:[%s4131 + $0x108] sm:$0xff]
        %v4166 = vld [vmem:[%s4131 + $0x110] sm:$0xff]
        %v4167 = vld [vmem:[%s4131 + $0x118] sm:$0xff]
        %v4168 = vld [vmem:[%s4131 + $0x120] sm:$0xff]
        %v4169 = vld [vmem:[%s4131 + $0x128] sm:$0xff]
        %v4170 = vld [vmem:[%s4131 + $0x130] sm:$0xff]
        %v4171 = vld [vmem:[%s4131 + $0x138] sm:$0xff]
        %v4172 = vld [vmem:[%s4131 + $0x140] sm:$0xff]
        %v4173 = vld [vmem:[%s4131 + $0x148] sm:$0xff]
        %v4174 = vld [vmem:[%s4131 + $0x150] sm:$0xff]
        %v4175 = vld [vmem:[%s4131 + $0x158] sm:$0xff]
        %v4176 = vld [vmem:[%s4131 + $0x160] sm:$0xff]
        %v4177 = vld [vmem:[%s4131 + $0x168] sm:$0xff]
        %v4178 = vld [vmem:[%s4131 + $0x170] sm:$0xff]
        %v4179 = vld [vmem:[%s4131 + $0x178] sm:$0xff]
        %v4228 = vunpack.c.l.b16 %v4132
        %v4229 = vunpack.c.h.b16 %v4132
        %v4230 = vunpack.c.l.b16 %v4133
        %v4231 = vunpack.c.h.b16 %v4133
        %v4232 = vunpack.c.l.b16 %v4134
        %v4233 = vunpack.c.h.b16 %v4134
        %v4234 = vunpack.c.l.b16 %v4135
        %v4235 = vunpack.c.h.b16 %v4135
        %v4236 = vunpack.c.l.b16 %v4136
        %v4237 = vunpack.c.h.b16 %v4136
        %v4238 = vunpack.c.l.b16 %v4137
        %v4239 = vunpack.c.h.b16 %v4137
        %v4240 = vunpack.c.l.b16 %v4138
        %v4241 = vunpack.c.h.b16 %v4138
        %v4242 = vunpack.c.l.b16 %v4139
        %v4243 = vunpack.c.h.b16 %v4139
        %v4244 = vunpack.c.l.b16 %v4140
        %v4245 = vunpack.c.h.b16 %v4140
        %v4246 = vunpack.c.l.b16 %v4141
        %v4247 = vunpack.c.h.b16 %v4141
        %v4248 = vunpack.c.l.b16 %v4142
        %v4249 = vunpack.c.h.b16 %v4142
        %v4250 = vunpack.c.l.b16 %v4143
        %v4251 = vunpack.c.h.b16 %v4143
        %v4252 = vunpack.c.l.b16 %v4144
        %v4253 = vunpack.c.h.b16 %v4144
        %v4254 = vunpack.c.l.b16 %v4145
        %v4255 = vunpack.c.h.b16 %v4145
        %v4256 = vunpack.c.l.b16 %v4146
        %v4257 = vunpack.c.h.b16 %v4146
        %v4258 = vunpack.c.l.b16 %v4147
        %v4259 = vunpack.c.h.b16 %v4147
        %v4260 = vunpack.c.l.b16 %v4148
        %v4261 = vunpack.c.h.b16 %v4148
        %v4262 = vunpack.c.l.b16 %v4149
        %v4263 = vunpack.c.h.b16 %v4149
        %v4264 = vunpack.c.l.b16 %v4150
        %v4265 = vunpack.c.h.b16 %v4150
        %v4266 = vunpack.c.l.b16 %v4151
        %v4267 = vunpack.c.h.b16 %v4151
        %v4268 = vunpack.c.l.b16 %v4152
        %v4269 = vunpack.c.h.b16 %v4152
        %v4270 = vunpack.c.l.b16 %v4153
        %v4271 = vunpack.c.h.b16 %v4153
        %v4272 = vunpack.c.l.b16 %v4154
        %v4273 = vunpack.c.h.b16 %v4154
        %v4274 = vunpack.c.l.b16 %v4155
        %v4275 = vunpack.c.h.b16 %v4155
        %v4276 = vunpack.c.l.b16 %v4156
        %v4277 = vunpack.c.h.b16 %v4156
        %v4278 = vunpack.c.l.b16 %v4157
        %v4279 = vunpack.c.h.b16 %v4157
        %v4280 = vunpack.c.l.b16 %v4158
        %v4281 = vunpack.c.h.b16 %v4158
        %v4282 = vunpack.c.l.b16 %v4159
        %v4283 = vunpack.c.h.b16 %v4159
        %v4284 = vunpack.c.l.b16 %v4160
        %v4285 = vunpack.c.h.b16 %v4160
        %v4286 = vunpack.c.l.b16 %v4161
        %v4287 = vunpack.c.h.b16 %v4161
        %v4288 = vunpack.c.l.b16 %v4162
        %v4289 = vunpack.c.h.b16 %v4162
        %v4290 = vunpack.c.l.b16 %v4163
        %v4291 = vunpack.c.h.b16 %v4163
        %v4292 = vunpack.c.l.b16 %v4164
        %v4293 = vunpack.c.h.b16 %v4164
        %v4294 = vunpack.c.l.b16 %v4165
        %v4295 = vunpack.c.h.b16 %v4165
        %v4296 = vunpack.c.l.b16 %v4166
        %v4297 = vunpack.c.h.b16 %v4166
        %v4298 = vunpack.c.l.b16 %v4167
        %v4299 = vunpack.c.h.b16 %v4167
        %v4300 = vunpack.c.l.b16 %v4168
        %v4301 = vunpack.c.h.b16 %v4168
        %v4302 = vunpack.c.l.b16 %v4169
        %v4303 = vunpack.c.h.b16 %v4169
        %v4304 = vunpack.c.l.b16 %v4170
        %v4305 = vunpack.c.h.b16 %v4170
        %v4306 = vunpack.c.l.b16 %v4171
        %v4307 = vunpack.c.h.b16 %v4171
        %v4308 = vunpack.c.l.b16 %v4172
        %v4309 = vunpack.c.h.b16 %v4172
        %v4310 = vunpack.c.l.b16 %v4173
        %v4311 = vunpack.c.h.b16 %v4173
        %v4312 = vunpack.c.l.b16 %v4174
        %v4313 = vunpack.c.h.b16 %v4174
        %v4314 = vunpack.c.l.b16 %v4175
        %v4315 = vunpack.c.h.b16 %v4175
        %v4316 = vunpack.c.l.b16 %v4176
        %v4317 = vunpack.c.h.b16 %v4176
        %v4318 = vunpack.c.l.b16 %v4177
        %v4319 = vunpack.c.h.b16 %v4177
        %v4320 = vunpack.c.l.b16 %v4178
        %v4321 = vunpack.c.h.b16 %v4178
        %v4322 = vunpack.c.l.b16 %v4179
        %v4323 = vunpack.c.h.b16 %v4179
        %v4324 = vpack.c.b16 %v4230, %v4228
        %v4325 = vpack.c.b16 %v4231, %v4229
        %v4326 = vpack.c.b16 %v4234, %v4232
        %v4327 = vpack.c.b16 %v4235, %v4233
        %v4328 = vpack.c.b16 %v4238, %v4236
        %v4329 = vpack.c.b16 %v4239, %v4237
        %v4330 = vpack.c.b16 %v4242, %v4240
        %v4331 = vpack.c.b16 %v4243, %v4241
        %v4332 = vpack.c.b16 %v4246, %v4244
        %v4333 = vpack.c.b16 %v4247, %v4245
        %v4334 = vpack.c.b16 %v4250, %v4248
        %v4335 = vpack.c.b16 %v4251, %v4249
        %v4336 = vpack.c.b16 %v4254, %v4252
        %v4337 = vpack.c.b16 %v4255, %v4253
        %v4338 = vpack.c.b16 %v4258, %v4256
        %v4339 = vpack.c.b16 %v4259, %v4257
        %v4340 = vpack.c.b16 %v4262, %v4260
        %v4341 = vpack.c.b16 %v4263, %v4261
        %v4342 = vpack.c.b16 %v4266, %v4264
        %v4343 = vpack.c.b16 %v4267, %v4265
        %v4344 = vpack.c.b16 %v4270, %v4268
        %v4345 = vpack.c.b16 %v4271, %v4269
        %v4346 = vpack.c.b16 %v4274, %v4272
        %v4347 = vpack.c.b16 %v4275, %v4273
        %v4348 = vpack.c.b16 %v4278, %v4276
        %v4349 = vpack.c.b16 %v4279, %v4277
        %v4350 = vpack.c.b16 %v4282, %v4280
        %v4351 = vpack.c.b16 %v4283, %v4281
        %v4352 = vpack.c.b16 %v4286, %v4284
        %v4353 = vpack.c.b16 %v4287, %v4285
        %v4354 = vpack.c.b16 %v4290, %v4288
        %v4355 = vpack.c.b16 %v4291, %v4289
        %v4356 = vpack.c.b16 %v4294, %v4292
        %v4357 = vpack.c.b16 %v4295, %v4293
        %v4358 = vpack.c.b16 %v4298, %v4296
        %v4359 = vpack.c.b16 %v4299, %v4297
        %v4360 = vpack.c.b16 %v4302, %v4300
        %v4361 = vpack.c.b16 %v4303, %v4301
        %v4362 = vpack.c.b16 %v4306, %v4304
        %v4363 = vpack.c.b16 %v4307, %v4305
        %v4364 = vpack.c.b16 %v4310, %v4308
        %v4365 = vpack.c.b16 %v4311, %v4309
        %v4366 = vpack.c.b16 %v4314, %v4312
        %v4367 = vpack.c.b16 %v4315, %v4313
        %v4368 = vpack.c.b16 %v4318, %v4316
        %v4369 = vpack.c.b16 %v4319, %v4317
        %v4370 = vpack.c.b16 %v4322, %v4320
        %v4371 = vpack.c.b16 %v4323, %v4321
        %4420 = vmatprep.subr.bf16.mxu0 %v4325
        %4421 = vmatpush1.bf16.msra.mxu0 %v4324
        %4422 = vmatprep.subr.bf16.mxu0 %v4327
        %4423 = vmatpush1.bf16.msra.mxu0 %v4326
        %4424 = vmatprep.subr.bf16.mxu0 %v4329
        %4425 = vmatpush1.bf16.msra.mxu0 %v4328
        %4426 = vmatprep.subr.bf16.mxu0 %v4331
        %4427 = vmatpush1.bf16.msra.mxu0 %v4330
        %4428 = vmatprep.subr.bf16.mxu0 %v4333
        %4429 = vmatpush1.bf16.msra.mxu0 %v4332
        %4430 = vmatprep.subr.bf16.mxu0 %v4335
        %4431 = vmatpush1.bf16.msra.mxu0 %v4334
        %4432 = vmatprep.subr.bf16.mxu0 %v4337
        %4433 = vmatpush1.bf16.msra.mxu0 %v4336
        %4434 = vmatprep.subr.bf16.mxu0 %v4339
        %4435 = vmatpush1.bf16.msra.mxu0 %v4338
        %4436 = vmatprep.subr.bf16.mxu0 %v4341
        %4437 = vmatpush1.bf16.msra.mxu0 %v4340
        %4438 = vmatprep.subr.bf16.mxu0 %v4343
        %4439 = vmatpush1.bf16.msra.mxu0 %v4342
        %4440 = vmatprep.subr.bf16.mxu0 %v4345
        %4441 = vmatpush1.bf16.msra.mxu0 %v4344
        %4442 = vmatprep.subr.bf16.mxu0 %v4347
        %4443 = vmatpush1.bf16.msra.mxu0 %v4346
        %4444 = vmatprep.subr.bf16.mxu0 %v4349
        %4445 = vmatpush1.bf16.msra.mxu0 %v4348
        %4446 = vmatprep.subr.bf16.mxu0 %v4351
        %4447 = vmatpush1.bf16.msra.mxu0 %v4350
        %4448 = vmatprep.subr.bf16.mxu0 %v4353
        %4449 = vmatpush1.bf16.msra.mxu0 %v4352
        %4450 = vmatprep.subr.bf16.mxu0 %v4355
        %4451 = vmatpush1.bf16.msra.mxu0 %v4354
        %4452 = vmatprep.mubr.bf16.mxu0 %v4129
        %4453 = vmatmul.mubr.bf16.gmra.mrb[0].mxu0 %v4128
        %v4454 = vpop.f32.mrb[0].mxu0
        %v4455 = vadd.f32 0.0, %v4454
        %v4456 = vpop.f32.mrb[0].mxu0
        %v4457 = vadd.f32 0.0, %v4456
        %v4458 = vpop.f32.mrb[0].mxu0
        %v4459 = vpop.f32.mrb[0].mxu0
        %4460 = vdwg.mxu0
        %4461 = vmatprep.subr.bf16.mxu0 %v4357
        %4462 = vmatpush1.bf16.msra.mxu0 %v4356
        %4463 = vmatprep.subr.bf16.mxu0 %v4359
        %4464 = vmatpush1.bf16.msra.mxu0 %v4358
        %4465 = vmatprep.subr.bf16.mxu0 %v4361
        %4466 = vmatpush1.bf16.msra.mxu0 %v4360
        %4467 = vmatprep.subr.bf16.mxu0 %v4363
        %4468 = vmatpush1.bf16.msra.mxu0 %v4362
        %4469 = vmatprep.subr.bf16.mxu0 %v4365
        %4470 = vmatpush1.bf16.msra.mxu0 %v4364
        %4471 = vmatprep.subr.bf16.mxu0 %v4367
        %4472 = vmatpush1.bf16.msra.mxu0 %v4366
        %4473 = vmatprep.subr.bf16.mxu0 %v4369
        %4474 = vmatpush1.bf16.msra.mxu0 %v4368
        %4475 = vmatprep.subr.bf16.mxu0 %v4371
        %4476 = vmatpush1.bf16.msra.mxu0 %v4370
        %4477 = vmatprep.subr.bf16.mxu0 0
        %4478 = vmatpush1.bf16.msra.mxu0 0
        %4479 = vmatprep.subr.bf16.mxu0 0
        %4480 = vmatpush1.bf16.msra.mxu0 0
        %4481 = vmatprep.subr.bf16.mxu0 0
        %4482 = vmatpush1.bf16.msra.mxu0 0
        %4483 = vmatprep.subr.bf16.mxu0 0
        %4484 = vmatpush1.bf16.msra.mxu0 0
        %4485 = vmatprep.subr.bf16.mxu0 0
        %4486 = vmatpush1.bf16.msra.mxu0 0
        %4487 = vmatprep.subr.bf16.mxu0 0
        %4488 = vmatpush1.bf16.msra.mxu0 0
        %4489 = vmatprep.subr.bf16.mxu0 0
        %4490 = vmatpush1.bf16.msra.mxu0 0
        %4491 = vmatprep.subr.bf16.mxu0 0
        %4492 = vmatpush1.bf16.msra.mxu0 0
        %4493 = vmatprep.mubr.bf16.mxu0 0
        %4494 = vmatmul.mubr.bf16.gmra.mrb[0].mxu0 %v4130
        %v4495 = vpop.f32.mrb[0].mxu0
        %v4496 = vadd.f32 %v4455, %v4495
        %v4497 = vpop.f32.mrb[0].mxu0
        %v4498 = vadd.f32 %v4457, %v4497
        %v4499 = vpop.f32.mrb[0].mxu0
        %v4500 = vpop.f32.mrb[0].mxu0
        %4501 = vdwg.mxu0
        %v4502 = vadd.f32 %v4126, %v4496
        %v4503 = vadd.f32 %v4127, %v4498
        %4504 = vst [vmem:[#allocation2] sm:$0xff] %v4502
        %4505 = vst [vmem:[#allocation2 + $0x8] sm:$0xff] %v4503
        %s4506 = scalar_lea.vmem %s320, 48 [#allocation3]
        %v4507 = vld [vmem:[%s4506] sm:$0xff]
        %v4508 = vld [vmem:[%s1] sm:$0xff]
        %v4509 = vld [vmem:[%s1 + $0x8] sm:$0xf]
        %v4510 = vld [vmem:[%s1 + $0xc] sm:$0xff]
        %v4511 = vld [vmem:[%s1 + $0x14] sm:$0xf]
        %v4512 = vld [vmem:[%s1 + $0x18] sm:$0xff]
        %v4513 = vld [vmem:[%s1 + $0x20] sm:$0xf]
        %v4514 = vld [vmem:[%s1 + $0x24] sm:$0xff]
        %v4515 = vld [vmem:[%s1 + $0x2c] sm:$0xf]
        %v4516 = vld [vmem:[%s1 + $0x30] sm:$0xff]
        %v4517 = vld [vmem:[%s1 + $0x38] sm:$0xf]
        %v4518 = vld [vmem:[%s1 + $0x3c] sm:$0xff]
        %v4519 = vld [vmem:[%s1 + $0x44] sm:$0xf]
        %v4520 = vld [vmem:[%s1 + $0x48] sm:$0xff]
        %v4521 = vld [vmem:[%s1 + $0x50] sm:$0xf]
        %v4522 = vld [vmem:[%s1 + $0x54] sm:$0xff]
        %v4523 = vld [vmem:[%s1 + $0x5c] sm:$0xf]
        %v4524 = vld [vmem:[%s1 + $0x60] sm:$0xff]
        %v4525 = vld [vmem:[%s1 + $0x68] sm:$0xf]
        %v4526 = vld [vmem:[%s1 + $0x6c] sm:$0xff]
        %v4527 = vld [vmem:[%s1 + $0x74] sm:$0xf]
        %v4528 = vld [vmem:[%s1 + $0x78] sm:$0xff]
        %v4529 = vld [vmem:[%s1 + $0x80] sm:$0xf]
        %v4530 = vld [vmem:[%s1 + $0x84] sm:$0xff]
        %v4531 = vld [vmem:[%s1 + $0x8c] sm:$0xf]
        %v4532 = vld [vmem:[%s1 + $0x90] sm:$0xff]
        %v4533 = vld [vmem:[%s1 + $0x98] sm:$0xf]
        %v4534 = vld [vmem:[%s1 + $0x9c] sm:$0xff]
        %v4535 = vld [vmem:[%s1 + $0xa4] sm:$0xf]
        %v4536 = vld [vmem:[%s1 + $0xa8] sm:$0xff]
        %v4537 = vld [vmem:[%s1 + $0xb0] sm:$0xf]
        %v4538 = vld [vmem:[%s1 + $0xb4] sm:$0xff]
        %v4539 = vld [vmem:[%s1 + $0xbc] sm:$0xf]
        %v4540 = vld [vmem:[%s1 + $0xc0] sm:$0xff]
        %v4541 = vld [vmem:[%s1 + $0xc8] sm:$0xf]
        %v4542 = vld [vmem:[%s1 + $0xcc] sm:$0xff]
        %v4543 = vld [vmem:[%s1 + $0xd4] sm:$0xf]
        %v4544 = vld [vmem:[%s1 + $0xd8] sm:$0xff]
        %v4545 = vld [vmem:[%s1 + $0xe0] sm:$0xf]
        %v4546 = vld [vmem:[%s1 + $0xe4] sm:$0xff]
        %v4547 = vld [vmem:[%s1 + $0xec] sm:$0xf]
        %v4548 = vld [vmem:[%s2] sm:$0x7]
        %v4550 = vlaneseq
        %v4551 = vshrl.u32 %v4550, 7
        %v4552 = vsub.s32 0, %v4551
        %v4553 = vrot.slane %v4548, %v4552
        %v4554 = vlaneseq
        %v4555 = vshrl.u32 %v4554, 7
        %v4556 = vsub.s32 1, %v4555
        %v4557 = vrot.slane %v4548, %v4556
        %v4558 = vlaneseq
        %v4559 = vshrl.u32 %v4558, 7
        %v4560 = vsub.s32 2, %v4559
        %v4561 = vrot.slane %v4548, %v4560
        %v4566 = vunpack.c.l.b16 %v4507
        %v4567 = vunpack.c.h.b16 %v4507
        %v4568 = vpack.c.b16 %v4566, %v4566
        %v4569 = vpack.c.b16 %v4567, %v4567
        %v4611 = vunpack.c.l.b16 %v4508
        %v4612 = vunpack.c.h.b16 %v4508
        %v4613 = vunpack.c.l.b16 %v4509
        %v4614 = vunpack.c.l.b16 %v4510
        %v4615 = vunpack.c.h.b16 %v4510
        %v4616 = vunpack.c.l.b16 %v4511
        %v4617 = vunpack.c.l.b16 %v4512
        %v4618 = vunpack.c.h.b16 %v4512
        %v4619 = vunpack.c.l.b16 %v4513
        %v4620 = vunpack.c.l.b16 %v4514
        %v4621 = vunpack.c.h.b16 %v4514
        %v4622 = vunpack.c.l.b16 %v4515
        %v4623 = vunpack.c.l.b16 %v4516
        %v4624 = vunpack.c.h.b16 %v4516
        %v4625 = vunpack.c.l.b16 %v4517
        %v4626 = vunpack.c.l.b16 %v4518
        %v4627 = vunpack.c.h.b16 %v4518
        %v4628 = vunpack.c.l.b16 %v4519
        %v4629 = vunpack.c.l.b16 %v4520
        %v4630 = vunpack.c.h.b16 %v4520
        %v4631 = vunpack.c.l.b16 %v4521
        %v4632 = vunpack.c.l.b16 %v4522
        %v4633 = vunpack.c.h.b16 %v4522
        %v4634 = vunpack.c.l.b16 %v4523
        %v4635 = vunpack.c.l.b16 %v4524
        %v4636 = vunpack.c.h.b16 %v4524
        %v4637 = vunpack.c.l.b16 %v4525
        %v4638 = vunpack.c.l.b16 %v4526
        %v4639 = vunpack.c.h.b16 %v4526
        %v4640 = vunpack.c.l.b16 %v4527
        %v4641 = vunpack.c.l.b16 %v4528
        %v4642 = vunpack.c.h.b16 %v4528
        %v4643 = vunpack.c.l.b16 %v4529
        %v4644 = vunpack.c.l.b16 %v4530
        %v4645 = vunpack.c.h.b16 %v4530
        %v4646 = vunpack.c.l.b16 %v4531
        %v4647 = vunpack.c.l.b16 %v4532
        %v4648 = vunpack.c.h.b16 %v4532
        %v4649 = vunpack.c.l.b16 %v4533
        %v4650 = vunpack.c.l.b16 %v4534
        %v4651 = vunpack.c.h.b16 %v4534
        %v4652 = vunpack.c.l.b16 %v4535
        %v4653 = vunpack.c.l.b16 %v4536
        %v4654 = vunpack.c.h.b16 %v4536
        %v4655 = vunpack.c.l.b16 %v4537
        %v4656 = vunpack.c.l.b16 %v4538
        %v4657 = vunpack.c.h.b16 %v4538
        %v4658 = vunpack.c.l.b16 %v4539
        %v4659 = vunpack.c.l.b16 %v4540
        %v4660 = vunpack.c.h.b16 %v4540
        %v4661 = vunpack.c.l.b16 %v4541
        %v4662 = vunpack.c.l.b16 %v4542
        %v4663 = vunpack.c.h.b16 %v4542
        %v4664 = vunpack.c.l.b16 %v4543
        %v4665 = vunpack.c.l.b16 %v4544
        %v4666 = vunpack.c.h.b16 %v4544
        %v4667 = vunpack.c.l.b16 %v4545
        %v4668 = vunpack.c.l.b16 %v4546
        %v4669 = vunpack.c.h.b16 %v4546
        %v4670 = vunpack.c.l.b16 %v4547
        %v4671 = vpack.c.b16 %v4614, %v4611
        %v4672 = vpack.c.b16 %v4615, %v4612
        %v4673 = vpack.c.b16 %v4616, %v4613
        %v4674 = vpack.c.b16 %v4620, %v4617
        %v4675 = vpack.c.b16 %v4621, %v4618
        %v4676 = vpack.c.b16 %v4622, %v4619
        %v4677 = vpack.c.b16 %v4626, %v4623
        %v4678 = vpack.c.b16 %v4627, %v4624
        %v4679 = vpack.c.b16 %v4628, %v4625
        %v4680 = vpack.c.b16 %v4632, %v4629
        %v4681 = vpack.c.b16 %v4633, %v4630
        %v4682 = vpack.c.b16 %v4634, %v4631
        %v4683 = vpack.c.b16 %v4638, %v4635
        %v4684 = vpack.c.b16 %v4639, %v4636
        %v4685 = vpack.c.b16 %v4640, %v4637
        %v4686 = vpack.c.b16 %v4644, %v4641
        %v4687 = vpack.c.b16 %v4645, %v4642
        %v4688 = vpack.c.b16 %v4646, %v4643
        %v4689 = vpack.c.b16 %v4650, %v4647
        %v4690 = vpack.c.b16 %v4651, %v4648
        %v4691 = vpack.c.b16 %v4652, %v4649
        %v4692 = vpack.c.b16 %v4656, %v4653
        %v4693 = vpack.c.b16 %v4657, %v4654
        %v4694 = vpack.c.b16 %v4658, %v4655
        %v4695 = vpack.c.b16 %v4662, %v4659
        %v4696 = vpack.c.b16 %v4663, %v4660
        %v4697 = vpack.c.b16 %v4664, %v4661
        %v4698 = vpack.c.b16 %v4668, %v4665
        %v4699 = vpack.c.b16 %v4669, %v4666
        %v4700 = vpack.c.b16 %v4670, %v4667
        %v4732 = vsel %vm579, %v4569, 0
        %4734 = vmatprep.subr.bf16.mxu0 %v4672
        %4735 = vmatpush1.bf16.msra.mxu0 %v4671
        %4736 = vmatprep.subr.bf16.mxu0 %v4675
        %4737 = vmatpush1.bf16.msra.mxu0 %v4674
        %4738 = vmatprep.subr.bf16.mxu0 %v4678
        %4739 = vmatpush1.bf16.msra.mxu0 %v4677
        %4740 = vmatprep.subr.bf16.mxu0 %v4681
        %4741 = vmatpush1.bf16.msra.mxu0 %v4680
        %4742 = vmatprep.subr.bf16.mxu0 %v4684
        %4743 = vmatpush1.bf16.msra.mxu0 %v4683
        %4744 = vmatprep.subr.bf16.mxu0 %v4687
        %4745 = vmatpush1.bf16.msra.mxu0 %v4686
        %4746 = vmatprep.subr.bf16.mxu0 %v4690
        %4747 = vmatpush1.bf16.msra.mxu0 %v4689
        %4748 = vmatprep.subr.bf16.mxu0 %v4693
        %4749 = vmatpush1.bf16.msra.mxu0 %v4692
        %4750 = vmatprep.subr.bf16.mxu0 %v4696
        %4751 = vmatpush1.bf16.msra.mxu0 %v4695
        %4752 = vmatprep.subr.bf16.mxu0 %v4699
        %4753 = vmatpush1.bf16.msra.mxu0 %v4698
        %4754 = vmatprep.subr.bf16.mxu0 0
        %4755 = vmatpush1.bf16.msra.mxu0 0
        %4756 = vmatprep.subr.bf16.mxu0 0
        %4757 = vmatpush1.bf16.msra.mxu0 0
        %4758 = vmatprep.subr.bf16.mxu0 0
        %4759 = vmatpush1.bf16.msra.mxu0 0
        %4760 = vmatprep.subr.bf16.mxu0 0
        %4761 = vmatpush1.bf16.msra.mxu0 0
        %4762 = vmatprep.subr.bf16.mxu0 0
        %4763 = vmatpush1.bf16.msra.mxu0 0
        %4764 = vmatprep.subr.bf16.mxu0 0
        %4765 = vmatpush1.bf16.msra.mxu0 0
        %4766 = vmatprep.mubr.bf16.mxu0 %v4732
        %4767 = vmatmul.mubr.bf16.gmra.mrb[0].mxu0 %v4568
        %v4768 = vpop.f32.mrb[0].mxu0
        %v4769 = vadd.f32 %v4553, %v4768
        %v4770 = vpop.f32.mrb[0].mxu0
        %v4771 = vadd.f32 %v4557, %v4770
        %v4772 = vpop.f32.mrb[0].mxu0
        %v4773 = vpop.f32.mrb[0].mxu0
        %4774 = vdwg.mxu0
        %4775 = vmatprep.subr.bf16.mxu0 0
        %4776 = vmatpush1.bf16.msra.mxu0 %v4673
        %4777 = vmatprep.subr.bf16.mxu0 0
        %4778 = vmatpush1.bf16.msra.mxu0 %v4676
        %4779 = vmatprep.subr.bf16.mxu0 0
        %4780 = vmatpush1.bf16.msra.mxu0 %v4679
        %4781 = vmatprep.subr.bf16.mxu0 0
        %4782 = vmatpush1.bf16.msra.mxu0 %v4682
        %4783 = vmatprep.subr.bf16.mxu0 0
        %4784 = vmatpush1.bf16.msra.mxu0 %v4685
        %4785 = vmatprep.subr.bf16.mxu0 0
        %4786 = vmatpush1.bf16.msra.mxu0 %v4688
        %4787 = vmatprep.subr.bf16.mxu0 0
        %4788 = vmatpush1.bf16.msra.mxu0 %v4691
        %4789 = vmatprep.subr.bf16.mxu0 0
        %4790 = vmatpush1.bf16.msra.mxu0 %v4694
        %4791 = vmatprep.subr.bf16.mxu0 0
        %4792 = vmatpush1.bf16.msra.mxu0 %v4697
        %4793 = vmatprep.subr.bf16.mxu0 0
        %4794 = vmatpush1.bf16.msra.mxu0 %v4700
        %4795 = vmatprep.subr.bf16.mxu0 0
        %4796 = vmatpush1.bf16.msra.mxu0 0
        %4797 = vmatprep.subr.bf16.mxu0 0
        %4798 = vmatpush1.bf16.msra.mxu0 0
        %4799 = vmatprep.subr.bf16.mxu0 0
        %4800 = vmatpush1.bf16.msra.mxu0 0
        %4801 = vmatprep.subr.bf16.mxu0 0
        %4802 = vmatpush1.bf16.msra.mxu0 0
        %4803 = vmatprep.subr.bf16.mxu0 0
        %4804 = vmatpush1.bf16.msra.mxu0 0
        %4805 = vmatprep.subr.bf16.mxu0 0
        %4806 = vmatpush1.bf16.msra.mxu0 0
        %4807 = vmatprep.mubr.bf16.mxu0 %v4732
        %4808 = vmatmul.mubr.bf16.gmra.mrb[0].mxu0 %v4568
        %v4809 = vpop.f32.mrb[0].mxu0
        %v4810 = vadd.f32 %v4561, %v4809
        %v4811 = vpop.f32.mrb[0].mxu0
        %v4812 = vpop.f32.mrb[0].mxu0
        %v4813 = vpop.f32.mrb[0].mxu0
        %4814 = vdwg.mxu0
        %v4815 = vmax.f32 %v4769, 0.0
        %v4816 = vmax.f32 %v4771, 0.0
        %v4817 = vmax.f32 %v4810, 0.0
        %v4818 = vld [vmem:[#allocation2] sm:$0xff]
        %v4819 = vld [vmem:[#allocation2 + $0x8] sm:$0xff]
        %v4820 = vpack.c.bf16 %v4815, %v4815
        %v4821 = vpack.c.bf16 %v4816, %v4816
        %v4822 = vpack.c.bf16 %v4817, %v4817
        %s4823 = scalar_lea.vmem %s3, 2304
        %v4824 = vld [vmem:[%s4823] sm:$0xff]
        %v4825 = vld [vmem:[%s4823 + $0x8] sm:$0xff]
        %v4826 = vld [vmem:[%s4823 + $0x10] sm:$0xff]
        %v4827 = vld [vmem:[%s4823 + $0x18] sm:$0xff]
        %v4828 = vld [vmem:[%s4823 + $0x20] sm:$0xff]
        %v4829 = vld [vmem:[%s4823 + $0x28] sm:$0xff]
        %v4830 = vld [vmem:[%s4823 + $0x30] sm:$0xff]
        %v4831 = vld [vmem:[%s4823 + $0x38] sm:$0xff]
        %v4832 = vld [vmem:[%s4823 + $0x40] sm:$0xff]
        %v4833 = vld [vmem:[%s4823 + $0x48] sm:$0xff]
        %v4834 = vld [vmem:[%s4823 + $0x50] sm:$0xff]
        %v4835 = vld [vmem:[%s4823 + $0x58] sm:$0xff]
        %v4836 = vld [vmem:[%s4823 + $0x60] sm:$0xff]
        %v4837 = vld [vmem:[%s4823 + $0x68] sm:$0xff]
        %v4838 = vld [vmem:[%s4823 + $0x70] sm:$0xff]
        %v4839 = vld [vmem:[%s4823 + $0x78] sm:$0xff]
        %v4840 = vld [vmem:[%s4823 + $0x80] sm:$0xff]
        %v4841 = vld [vmem:[%s4823 + $0x88] sm:$0xff]
        %v4842 = vld [vmem:[%s4823 + $0x90] sm:$0xff]
        %v4843 = vld [vmem:[%s4823 + $0x98] sm:$0xff]
        %v4844 = vld [vmem:[%s4823 + $0xa0] sm:$0xff]
        %v4845 = vld [vmem:[%s4823 + $0xa8] sm:$0xff]
        %v4846 = vld [vmem:[%s4823 + $0xb0] sm:$0xff]
        %v4847 = vld [vmem:[%s4823 + $0xb8] sm:$0xff]
        %v4848 = vld [vmem:[%s4823 + $0xc0] sm:$0xff]
        %v4849 = vld [vmem:[%s4823 + $0xc8] sm:$0xff]
        %v4850 = vld [vmem:[%s4823 + $0xd0] sm:$0xff]
        %v4851 = vld [vmem:[%s4823 + $0xd8] sm:$0xff]
        %v4852 = vld [vmem:[%s4823 + $0xe0] sm:$0xff]
        %v4853 = vld [vmem:[%s4823 + $0xe8] sm:$0xff]
        %v4854 = vld [vmem:[%s4823 + $0xf0] sm:$0xff]
        %v4855 = vld [vmem:[%s4823 + $0xf8] sm:$0xff]
        %v4856 = vld [vmem:[%s4823 + $0x100] sm:$0xff]
        %v4857 = vld [vmem:[%s4823 + $0x108] sm:$0xff]
        %v4858 = vld [vmem:[%s4823 + $0x110] sm:$0xff]
        %v4859 = vld [vmem:[%s4823 + $0x118] sm:$0xff]
        %v4860 = vld [vmem:[%s4823 + $0x120] sm:$0xff]
        %v4861 = vld [vmem:[%s4823 + $0x128] sm:$0xff]
        %v4862 = vld [vmem:[%s4823 + $0x130] sm:$0xff]
        %v4863 = vld [vmem:[%s4823 + $0x138] sm:$0xff]
        %v4864 = vld [vmem:[%s4823 + $0x140] sm:$0xff]
        %v4865 = vld [vmem:[%s4823 + $0x148] sm:$0xff]
        %v4866 = vld [vmem:[%s4823 + $0x150] sm:$0xff]
        %v4867 = vld [vmem:[%s4823 + $0x158] sm:$0xff]
        %v4868 = vld [vmem:[%s4823 + $0x160] sm:$0xff]
        %v4869 = vld [vmem:[%s4823 + $0x168] sm:$0xff]
        %v4870 = vld [vmem:[%s4823 + $0x170] sm:$0xff]
        %v4871 = vld [vmem:[%s4823 + $0x178] sm:$0xff]
        %v4920 = vunpack.c.l.b16 %v4824
        %v4921 = vunpack.c.h.b16 %v4824
        %v4922 = vunpack.c.l.b16 %v4825
        %v4923 = vunpack.c.h.b16 %v4825
        %v4924 = vunpack.c.l.b16 %v4826
        %v4925 = vunpack.c.h.b16 %v4826
        %v4926 = vunpack.c.l.b16 %v4827
        %v4927 = vunpack.c.h.b16 %v4827
        %v4928 = vunpack.c.l.b16 %v4828
        %v4929 = vunpack.c.h.b16 %v4828
        %v4930 = vunpack.c.l.b16 %v4829
        %v4931 = vunpack.c.h.b16 %v4829
        %v4932 = vunpack.c.l.b16 %v4830
        %v4933 = vunpack.c.h.b16 %v4830
        %v4934 = vunpack.c.l.b16 %v4831
        %v4935 = vunpack.c.h.b16 %v4831
        %v4936 = vunpack.c.l.b16 %v4832
        %v4937 = vunpack.c.h.b16 %v4832
        %v4938 = vunpack.c.l.b16 %v4833
        %v4939 = vunpack.c.h.b16 %v4833
        %v4940 = vunpack.c.l.b16 %v4834
        %v4941 = vunpack.c.h.b16 %v4834
        %v4942 = vunpack.c.l.b16 %v4835
        %v4943 = vunpack.c.h.b16 %v4835
        %v4944 = vunpack.c.l.b16 %v4836
        %v4945 = vunpack.c.h.b16 %v4836
        %v4946 = vunpack.c.l.b16 %v4837
        %v4947 = vunpack.c.h.b16 %v4837
        %v4948 = vunpack.c.l.b16 %v4838
        %v4949 = vunpack.c.h.b16 %v4838
        %v4950 = vunpack.c.l.b16 %v4839
        %v4951 = vunpack.c.h.b16 %v4839
        %v4952 = vunpack.c.l.b16 %v4840
        %v4953 = vunpack.c.h.b16 %v4840
        %v4954 = vunpack.c.l.b16 %v4841
        %v4955 = vunpack.c.h.b16 %v4841
        %v4956 = vunpack.c.l.b16 %v4842
        %v4957 = vunpack.c.h.b16 %v4842
        %v4958 = vunpack.c.l.b16 %v4843
        %v4959 = vunpack.c.h.b16 %v4843
        %v4960 = vunpack.c.l.b16 %v4844
        %v4961 = vunpack.c.h.b16 %v4844
        %v4962 = vunpack.c.l.b16 %v4845
        %v4963 = vunpack.c.h.b16 %v4845
        %v4964 = vunpack.c.l.b16 %v4846
        %v4965 = vunpack.c.h.b16 %v4846
        %v4966 = vunpack.c.l.b16 %v4847
        %v4967 = vunpack.c.h.b16 %v4847
        %v4968 = vunpack.c.l.b16 %v4848
        %v4969 = vunpack.c.h.b16 %v4848
        %v4970 = vunpack.c.l.b16 %v4849
        %v4971 = vunpack.c.h.b16 %v4849
        %v4972 = vunpack.c.l.b16 %v4850
        %v4973 = vunpack.c.h.b16 %v4850
        %v4974 = vunpack.c.l.b16 %v4851
        %v4975 = vunpack.c.h.b16 %v4851
        %v4976 = vunpack.c.l.b16 %v4852
        %v4977 = vunpack.c.h.b16 %v4852
        %v4978 = vunpack.c.l.b16 %v4853
        %v4979 = vunpack.c.h.b16 %v4853
        %v4980 = vunpack.c.l.b16 %v4854
        %v4981 = vunpack.c.h.b16 %v4854
        %v4982 = vunpack.c.l.b16 %v4855
        %v4983 = vunpack.c.h.b16 %v4855
        %v4984 = vunpack.c.l.b16 %v4856
        %v4985 = vunpack.c.h.b16 %v4856
        %v4986 = vunpack.c.l.b16 %v4857
        %v4987 = vunpack.c.h.b16 %v4857
        %v4988 = vunpack.c.l.b16 %v4858
        %v4989 = vunpack.c.h.b16 %v4858
        %v4990 = vunpack.c.l.b16 %v4859
        %v4991 = vunpack.c.h.b16 %v4859
        %v4992 = vunpack.c.l.b16 %v4860
        %v4993 = vunpack.c.h.b16 %v4860
        %v4994 = vunpack.c.l.b16 %v4861
        %v4995 = vunpack.c.h.b16 %v4861
        %v4996 = vunpack.c.l.b16 %v4862
        %v4997 = vunpack.c.h.b16 %v4862
        %v4998 = vunpack.c.l.b16 %v4863
        %v4999 = vunpack.c.h.b16 %v4863
        %v5000 = vunpack.c.l.b16 %v4864
        %v5001 = vunpack.c.h.b16 %v4864
        %v5002 = vunpack.c.l.b16 %v4865
        %v5003 = vunpack.c.h.b16 %v4865
        %v5004 = vunpack.c.l.b16 %v4866
        %v5005 = vunpack.c.h.b16 %v4866
        %v5006 = vunpack.c.l.b16 %v4867
        %v5007 = vunpack.c.h.b16 %v4867
        %v5008 = vunpack.c.l.b16 %v4868
        %v5009 = vunpack.c.h.b16 %v4868
        %v5010 = vunpack.c.l.b16 %v4869
        %v5011 = vunpack.c.h.b16 %v4869
        %v5012 = vunpack.c.l.b16 %v4870
        %v5013 = vunpack.c.h.b16 %v4870
        %v5014 = vunpack.c.l.b16 %v4871
        %v5015 = vunpack.c.h.b16 %v4871
        %v5016 = vpack.c.b16 %v4922, %v4920
        %v5017 = vpack.c.b16 %v4923, %v4921
        %v5018 = vpack.c.b16 %v4926, %v4924
        %v5019 = vpack.c.b16 %v4927, %v4925
        %v5020 = vpack.c.b16 %v4930, %v4928
        %v5021 = vpack.c.b16 %v4931, %v4929
        %v5022 = vpack.c.b16 %v4934, %v4932
        %v5023 = vpack.c.b16 %v4935, %v4933
        %v5024 = vpack.c.b16 %v4938, %v4936
        %v5025 = vpack.c.b16 %v4939, %v4937
        %v5026 = vpack.c.b16 %v4942, %v4940
        %v5027 = vpack.c.b16 %v4943, %v4941
        %v5028 = vpack.c.b16 %v4946, %v4944
        %v5029 = vpack.c.b16 %v4947, %v4945
        %v5030 = vpack.c.b16 %v4950, %v4948
        %v5031 = vpack.c.b16 %v4951, %v4949
        %v5032 = vpack.c.b16 %v4954, %v4952
        %v5033 = vpack.c.b16 %v4955, %v4953
        %v5034 = vpack.c.b16 %v4958, %v4956
        %v5035 = vpack.c.b16 %v4959, %v4957
        %v5036 = vpack.c.b16 %v4962, %v4960
        %v5037 = vpack.c.b16 %v4963, %v4961
        %v5038 = vpack.c.b16 %v4966, %v4964
        %v5039 = vpack.c.b16 %v4967, %v4965
        %v5040 = vpack.c.b16 %v4970, %v4968
        %v5041 = vpack.c.b16 %v4971, %v4969
        %v5042 = vpack.c.b16 %v4974, %v4972
        %v5043 = vpack.c.b16 %v4975, %v4973
        %v5044 = vpack.c.b16 %v4978, %v4976
        %v5045 = vpack.c.b16 %v4979, %v4977
        %v5046 = vpack.c.b16 %v4982, %v4980
        %v5047 = vpack.c.b16 %v4983, %v4981
        %v5048 = vpack.c.b16 %v4986, %v4984
        %v5049 = vpack.c.b16 %v4987, %v4985
        %v5050 = vpack.c.b16 %v4990, %v4988
        %v5051 = vpack.c.b16 %v4991, %v4989
        %v5052 = vpack.c.b16 %v4994, %v4992
        %v5053 = vpack.c.b16 %v4995, %v4993
        %v5054 = vpack.c.b16 %v4998, %v4996
        %v5055 = vpack.c.b16 %v4999, %v4997
        %v5056 = vpack.c.b16 %v5002, %v5000
        %v5057 = vpack.c.b16 %v5003, %v5001
        %v5058 = vpack.c.b16 %v5006, %v5004
        %v5059 = vpack.c.b16 %v5007, %v5005
        %v5060 = vpack.c.b16 %v5010, %v5008
        %v5061 = vpack.c.b16 %v5011, %v5009
        %v5062 = vpack.c.b16 %v5014, %v5012
        %v5063 = vpack.c.b16 %v5015, %v5013
        %5112 = vmatprep.subr.bf16.mxu0 %v5017
        %5113 = vmatpush1.bf16.msra.mxu0 %v5016
        %5114 = vmatprep.subr.bf16.mxu0 %v5019
        %5115 = vmatpush1.bf16.msra.mxu0 %v5018
        %5116 = vmatprep.subr.bf16.mxu0 %v5021
        %5117 = vmatpush1.bf16.msra.mxu0 %v5020
        %5118 = vmatprep.subr.bf16.mxu0 %v5023
        %5119 = vmatpush1.bf16.msra.mxu0 %v5022
        %5120 = vmatprep.subr.bf16.mxu0 %v5025
        %5121 = vmatpush1.bf16.msra.mxu0 %v5024
        %5122 = vmatprep.subr.bf16.mxu0 %v5027
        %5123 = vmatpush1.bf16.msra.mxu0 %v5026
        %5124 = vmatprep.subr.bf16.mxu0 %v5029
        %5125 = vmatpush1.bf16.msra.mxu0 %v5028
        %5126 = vmatprep.subr.bf16.mxu0 %v5031
        %5127 = vmatpush1.bf16.msra.mxu0 %v5030
        %5128 = vmatprep.subr.bf16.mxu0 %v5033
        %5129 = vmatpush1.bf16.msra.mxu0 %v5032
        %5130 = vmatprep.subr.bf16.mxu0 %v5035
        %5131 = vmatpush1.bf16.msra.mxu0 %v5034
        %5132 = vmatprep.subr.bf16.mxu0 %v5037
        %5133 = vmatpush1.bf16.msra.mxu0 %v5036
        %5134 = vmatprep.subr.bf16.mxu0 %v5039
        %5135 = vmatpush1.bf16.msra.mxu0 %v5038
        %5136 = vmatprep.subr.bf16.mxu0 %v5041
        %5137 = vmatpush1.bf16.msra.mxu0 %v5040
        %5138 = vmatprep.subr.bf16.mxu0 %v5043
        %5139 = vmatpush1.bf16.msra.mxu0 %v5042
        %5140 = vmatprep.subr.bf16.mxu0 %v5045
        %5141 = vmatpush1.bf16.msra.mxu0 %v5044
        %5142 = vmatprep.subr.bf16.mxu0 %v5047
        %5143 = vmatpush1.bf16.msra.mxu0 %v5046
        %5144 = vmatprep.mubr.bf16.mxu0 %v4821
        %5145 = vmatmul.mubr.bf16.gmra.mrb[0].mxu0 %v4820
        %v5146 = vpop.f32.mrb[0].mxu0
        %v5147 = vadd.f32 0.0, %v5146
        %v5148 = vpop.f32.mrb[0].mxu0
        %v5149 = vadd.f32 0.0, %v5148
        %v5150 = vpop.f32.mrb[0].mxu0
        %v5151 = vpop.f32.mrb[0].mxu0
        %5152 = vdwg.mxu0
        %5153 = vmatprep.subr.bf16.mxu0 %v5049
        %5154 = vmatpush1.bf16.msra.mxu0 %v5048
        %5155 = vmatprep.subr.bf16.mxu0 %v5051
        %5156 = vmatpush1.bf16.msra.mxu0 %v5050
        %5157 = vmatprep.subr.bf16.mxu0 %v5053
        %5158 = vmatpush1.bf16.msra.mxu0 %v5052
        %5159 = vmatprep.subr.bf16.mxu0 %v5055
        %5160 = vmatpush1.bf16.msra.mxu0 %v5054
        %5161 = vmatprep.subr.bf16.mxu0 %v5057
        %5162 = vmatpush1.bf16.msra.mxu0 %v5056
        %5163 = vmatprep.subr.bf16.mxu0 %v5059
        %5164 = vmatpush1.bf16.msra.mxu0 %v5058
        %5165 = vmatprep.subr.bf16.mxu0 %v5061
        %5166 = vmatpush1.bf16.msra.mxu0 %v5060
        %5167 = vmatprep.subr.bf16.mxu0 %v5063
        %5168 = vmatpush1.bf16.msra.mxu0 %v5062
        %5169 = vmatprep.subr.bf16.mxu0 0
        %5170 = vmatpush1.bf16.msra.mxu0 0
        %5171 = vmatprep.subr.bf16.mxu0 0
        %5172 = vmatpush1.bf16.msra.mxu0 0
        %5173 = vmatprep.subr.bf16.mxu0 0
        %5174 = vmatpush1.bf16.msra.mxu0 0
        %5175 = vmatprep.subr.bf16.mxu0 0
        %5176 = vmatpush1.bf16.msra.mxu0 0
        %5177 = vmatprep.subr.bf16.mxu0 0
        %5178 = vmatpush1.bf16.msra.mxu0 0
        %5179 = vmatprep.subr.bf16.mxu0 0
        %5180 = vmatpush1.bf16.msra.mxu0 0
        %5181 = vmatprep.subr.bf16.mxu0 0
        %5182 = vmatpush1.bf16.msra.mxu0 0
        %5183 = vmatprep.subr.bf16.mxu0 0
        %5184 = vmatpush1.bf16.msra.mxu0 0
        %5185 = vmatprep.mubr.bf16.mxu0 0
        %5186 = vmatmul.mubr.bf16.gmra.mrb[0].mxu0 %v4822
        %v5187 = vpop.f32.mrb[0].mxu0
        %v5188 = vadd.f32 %v5147, %v5187
        %v5189 = vpop.f32.mrb[0].mxu0
        %v5190 = vadd.f32 %v5149, %v5189
        %v5191 = vpop.f32.mrb[0].mxu0
        %v5192 = vpop.f32.mrb[0].mxu0
        %5193 = vdwg.mxu0
        %v5194 = vadd.f32 %v4818, %v5188
        %v5195 = vadd.f32 %v4819, %v5190
        %5196 = vst [vmem:[#allocation2] sm:$0xff] %v5194
        %5197 = vst [vmem:[#allocation2 + $0x8] sm:$0xff] %v5195
        %s5198 = scalar_lea.vmem %s320, 56 [#allocation3]
        %v5199 = vld [vmem:[%s5198] sm:$0xff]
        %v5200 = vld [vmem:[%s1] sm:$0xff]
        %v5201 = vld [vmem:[%s1 + $0x8] sm:$0xf]
        %v5202 = vld [vmem:[%s1 + $0xc] sm:$0xff]
        %v5203 = vld [vmem:[%s1 + $0x14] sm:$0xf]
        %v5204 = vld [vmem:[%s1 + $0x18] sm:$0xff]
        %v5205 = vld [vmem:[%s1 + $0x20] sm:$0xf]
        %v5206 = vld [vmem:[%s1 + $0x24] sm:$0xff]
        %v5207 = vld [vmem:[%s1 + $0x2c] sm:$0xf]
        %v5208 = vld [vmem:[%s1 + $0x30] sm:$0xff]
        %v5209 = vld [vmem:[%s1 + $0x38] sm:$0xf]
        %v5210 = vld [vmem:[%s1 + $0x3c] sm:$0xff]
        %v5211 = vld [vmem:[%s1 + $0x44] sm:$0xf]
        %v5212 = vld [vmem:[%s1 + $0x48] sm:$0xff]
        %v5213 = vld [vmem:[%s1 + $0x50] sm:$0xf]
        %v5214 = vld [vmem:[%s1 + $0x54] sm:$0xff]
        %v5215 = vld [vmem:[%s1 + $0x5c] sm:$0xf]
        %v5216 = vld [vmem:[%s1 + $0x60] sm:$0xff]
        %v5217 = vld [vmem:[%s1 + $0x68] sm:$0xf]
        %v5218 = vld [vmem:[%s1 + $0x6c] sm:$0xff]
        %v5219 = vld [vmem:[%s1 + $0x74] sm:$0xf]
        %v5220 = vld [vmem:[%s1 + $0x78] sm:$0xff]
        %v5221 = vld [vmem:[%s1 + $0x80] sm:$0xf]
        %v5222 = vld [vmem:[%s1 + $0x84] sm:$0xff]
        %v5223 = vld [vmem:[%s1 + $0x8c] sm:$0xf]
        %v5224 = vld [vmem:[%s1 + $0x90] sm:$0xff]
        %v5225 = vld [vmem:[%s1 + $0x98] sm:$0xf]
        %v5226 = vld [vmem:[%s1 + $0x9c] sm:$0xff]
        %v5227 = vld [vmem:[%s1 + $0xa4] sm:$0xf]
        %v5228 = vld [vmem:[%s1 + $0xa8] sm:$0xff]
        %v5229 = vld [vmem:[%s1 + $0xb0] sm:$0xf]
        %v5230 = vld [vmem:[%s1 + $0xb4] sm:$0xff]
        %v5231 = vld [vmem:[%s1 + $0xbc] sm:$0xf]
        %v5232 = vld [vmem:[%s1 + $0xc0] sm:$0xff]
        %v5233 = vld [vmem:[%s1 + $0xc8] sm:$0xf]
        %v5234 = vld [vmem:[%s1 + $0xcc] sm:$0xff]
        %v5235 = vld [vmem:[%s1 + $0xd4] sm:$0xf]
        %v5236 = vld [vmem:[%s1 + $0xd8] sm:$0xff]
        %v5237 = vld [vmem:[%s1 + $0xe0] sm:$0xf]
        %v5238 = vld [vmem:[%s1 + $0xe4] sm:$0xff]
        %v5239 = vld [vmem:[%s1 + $0xec] sm:$0xf]
        %v5240 = vld [vmem:[%s2] sm:$0x7]
        %v5242 = vlaneseq
        %v5243 = vshrl.u32 %v5242, 7
        %v5244 = vsub.s32 0, %v5243
        %v5245 = vrot.slane %v5240, %v5244
        %v5246 = vlaneseq
        %v5247 = vshrl.u32 %v5246, 7
        %v5248 = vsub.s32 1, %v5247
        %v5249 = vrot.slane %v5240, %v5248
        %v5250 = vlaneseq
        %v5251 = vshrl.u32 %v5250, 7
        %v5252 = vsub.s32 2, %v5251
        %v5253 = vrot.slane %v5240, %v5252
        %v5258 = vunpack.c.l.b16 %v5199
        %v5259 = vunpack.c.h.b16 %v5199
        %v5260 = vpack.c.b16 %v5258, %v5258
        %v5261 = vpack.c.b16 %v5259, %v5259
        %v5303 = vunpack.c.l.b16 %v5200
        %v5304 = vunpack.c.h.b16 %v5200
        %v5305 = vunpack.c.l.b16 %v5201
        %v5306 = vunpack.c.l.b16 %v5202
        %v5307 = vunpack.c.h.b16 %v5202
        %v5308 = vunpack.c.l.b16 %v5203
        %v5309 = vunpack.c.l.b16 %v5204
        %v5310 = vunpack.c.h.b16 %v5204
        %v5311 = vunpack.c.l.b16 %v5205
        %v5312 = vunpack.c.l.b16 %v5206
        %v5313 = vunpack.c.h.b16 %v5206
        %v5314 = vunpack.c.l.b16 %v5207
        %v5315 = vunpack.c.l.b16 %v5208
        %v5316 = vunpack.c.h.b16 %v5208
        %v5317 = vunpack.c.l.b16 %v5209
        %v5318 = vunpack.c.l.b16 %v5210
        %v5319 = vunpack.c.h.b16 %v5210
        %v5320 = vunpack.c.l.b16 %v5211
        %v5321 = vunpack.c.l.b16 %v5212
        %v5322 = vunpack.c.h.b16 %v5212
        %v5323 = vunpack.c.l.b16 %v5213
        %v5324 = vunpack.c.l.b16 %v5214
        %v5325 = vunpack.c.h.b16 %v5214
        %v5326 = vunpack.c.l.b16 %v5215
        %v5327 = vunpack.c.l.b16 %v5216
        %v5328 = vunpack.c.h.b16 %v5216
        %v5329 = vunpack.c.l.b16 %v5217
        %v5330 = vunpack.c.l.b16 %v5218
        %v5331 = vunpack.c.h.b16 %v5218
        %v5332 = vunpack.c.l.b16 %v5219
        %v5333 = vunpack.c.l.b16 %v5220
        %v5334 = vunpack.c.h.b16 %v5220
        %v5335 = vunpack.c.l.b16 %v5221
        %v5336 = vunpack.c.l.b16 %v5222
        %v5337 = vunpack.c.h.b16 %v5222
        %v5338 = vunpack.c.l.b16 %v5223
        %v5339 = vunpack.c.l.b16 %v5224
        %v5340 = vunpack.c.h.b16 %v5224
        %v5341 = vunpack.c.l.b16 %v5225
        %v5342 = vunpack.c.l.b16 %v5226
        %v5343 = vunpack.c.h.b16 %v5226
        %v5344 = vunpack.c.l.b16 %v5227
        %v5345 = vunpack.c.l.b16 %v5228
        %v5346 = vunpack.c.h.b16 %v5228
        %v5347 = vunpack.c.l.b16 %v5229
        %v5348 = vunpack.c.l.b16 %v5230
        %v5349 = vunpack.c.h.b16 %v5230
        %v5350 = vunpack.c.l.b16 %v5231
        %v5351 = vunpack.c.l.b16 %v5232
        %v5352 = vunpack.c.h.b16 %v5232
        %v5353 = vunpack.c.l.b16 %v5233
        %v5354 = vunpack.c.l.b16 %v5234
        %v5355 = vunpack.c.h.b16 %v5234
        %v5356 = vunpack.c.l.b16 %v5235
        %v5357 = vunpack.c.l.b16 %v5236
        %v5358 = vunpack.c.h.b16 %v5236
        %v5359 = vunpack.c.l.b16 %v5237
        %v5360 = vunpack.c.l.b16 %v5238
        %v5361 = vunpack.c.h.b16 %v5238
        %v5362 = vunpack.c.l.b16 %v5239
        %v5363 = vpack.c.b16 %v5306, %v5303
        %v5364 = vpack.c.b16 %v5307, %v5304
        %v5365 = vpack.c.b16 %v5308, %v5305
        %v5366 = vpack.c.b16 %v5312, %v5309
        %v5367 = vpack.c.b16 %v5313, %v5310
        %v5368 = vpack.c.b16 %v5314, %v5311
        %v5369 = vpack.c.b16 %v5318, %v5315
        %v5370 = vpack.c.b16 %v5319, %v5316
        %v5371 = vpack.c.b16 %v5320, %v5317
        %v5372 = vpack.c.b16 %v5324, %v5321
        %v5373 = vpack.c.b16 %v5325, %v5322
        %v5374 = vpack.c.b16 %v5326, %v5323
        %v5375 = vpack.c.b16 %v5330, %v5327
        %v5376 = vpack.c.b16 %v5331, %v5328
        %v5377 = vpack.c.b16 %v5332, %v5329
        %v5378 = vpack.c.b16 %v5336, %v5333
        %v5379 = vpack.c.b16 %v5337, %v5334
        %v5380 = vpack.c.b16 %v5338, %v5335
        %v5381 = vpack.c.b16 %v5342, %v5339
        %v5382 = vpack.c.b16 %v5343, %v5340
        %v5383 = vpack.c.b16 %v5344, %v5341
        %v5384 = vpack.c.b16 %v5348, %v5345
        %v5385 = vpack.c.b16 %v5349, %v5346
        %v5386 = vpack.c.b16 %v5350, %v5347
        %v5387 = vpack.c.b16 %v5354, %v5351
        %v5388 = vpack.c.b16 %v5355, %v5352
        %v5389 = vpack.c.b16 %v5356, %v5353
        %v5390 = vpack.c.b16 %v5360, %v5357
        %v5391 = vpack.c.b16 %v5361, %v5358
        %v5392 = vpack.c.b16 %v5362, %v5359
        %v5424 = vsel %vm579, %v5261, 0
        %5426 = vmatprep.subr.bf16.mxu0 %v5364
        %5427 = vmatpush1.bf16.msra.mxu0 %v5363
        %5428 = vmatprep.subr.bf16.mxu0 %v5367
        %5429 = vmatpush1.bf16.msra.mxu0 %v5366
        %5430 = vmatprep.subr.bf16.mxu0 %v5370
        %5431 = vmatpush1.bf16.msra.mxu0 %v5369
        %5432 = vmatprep.subr.bf16.mxu0 %v5373
        %5433 = vmatpush1.bf16.msra.mxu0 %v5372
        %5434 = vmatprep.subr.bf16.mxu0 %v5376
        %5435 = vmatpush1.bf16.msra.mxu0 %v5375
        %5436 = vmatprep.subr.bf16.mxu0 %v5379
        %5437 = vmatpush1.bf16.msra.mxu0 %v5378
        %5438 = vmatprep.subr.bf16.mxu0 %v5382
        %5439 = vmatpush1.bf16.msra.mxu0 %v5381
        %5440 = vmatprep.subr.bf16.mxu0 %v5385
        %5441 = vmatpush1.bf16.msra.mxu0 %v5384
        %5442 = vmatprep.subr.bf16.mxu0 %v5388
        %5443 = vmatpush1.bf16.msra.mxu0 %v5387
        %5444 = vmatprep.subr.bf16.mxu0 %v5391
        %5445 = vmatpush1.bf16.msra.mxu0 %v5390
        %5446 = vmatprep.subr.bf16.mxu0 0
        %5447 = vmatpush1.bf16.msra.mxu0 0
        %5448 = vmatprep.subr.bf16.mxu0 0
        %5449 = vmatpush1.bf16.msra.mxu0 0
        %5450 = vmatprep.subr.bf16.mxu0 0
        %5451 = vmatpush1.bf16.msra.mxu0 0
        %5452 = vmatprep.subr.bf16.mxu0 0
        %5453 = vmatpush1.bf16.msra.mxu0 0
        %5454 = vmatprep.subr.bf16.mxu0 0
        %5455 = vmatpush1.bf16.msra.mxu0 0
        %5456 = vmatprep.subr.bf16.mxu0 0
        %5457 = vmatpush1.bf16.msra.mxu0 0
        %5458 = vmatprep.mubr.bf16.mxu0 %v5424
        %5459 = vmatmul.mubr.bf16.gmra.mrb[0].mxu0 %v5260
        %v5460 = vpop.f32.mrb[0].mxu0
        %v5461 = vadd.f32 %v5245, %v5460
        %v5462 = vpop.f32.mrb[0].mxu0
        %v5463 = vadd.f32 %v5249, %v5462
        %v5464 = vpop.f32.mrb[0].mxu0
        %v5465 = vpop.f32.mrb[0].mxu0
        %5466 = vdwg.mxu0
        %5467 = vmatprep.subr.bf16.mxu0 0
        %5468 = vmatpush1.bf16.msra.mxu0 %v5365
        %5469 = vmatprep.subr.bf16.mxu0 0
        %5470 = vmatpush1.bf16.msra.mxu0 %v5368
        %5471 = vmatprep.subr.bf16.mxu0 0
        %5472 = vmatpush1.bf16.msra.mxu0 %v5371
        %5473 = vmatprep.subr.bf16.mxu0 0
        %5474 = vmatpush1.bf16.msra.mxu0 %v5374
        %5475 = vmatprep.subr.bf16.mxu0 0
        %5476 = vmatpush1.bf16.msra.mxu0 %v5377
        %5477 = vmatprep.subr.bf16.mxu0 0
        %5478 = vmatpush1.bf16.msra.mxu0 %v5380
        %5479 = vmatprep.subr.bf16.mxu0 0
        %5480 = vmatpush1.bf16.msra.mxu0 %v5383
        %5481 = vmatprep.subr.bf16.mxu0 0
        %5482 = vmatpush1.bf16.msra.mxu0 %v5386
        %5483 = vmatprep.subr.bf16.mxu0 0
        %5484 = vmatpush1.bf16.msra.mxu0 %v5389
        %5485 = vmatprep.subr.bf16.mxu0 0
        %5486 = vmatpush1.bf16.msra.mxu0 %v5392
        %5487 = vmatprep.subr.bf16.mxu0 0
        %5488 = vmatpush1.bf16.msra.mxu0 0
        %5489 = vmatprep.subr.bf16.mxu0 0
        %5490 = vmatpush1.bf16.msra.mxu0 0
        %5491 = vmatprep.subr.bf16.mxu0 0
        %5492 = vmatpush1.bf16.msra.mxu0 0
        %5493 = vmatprep.subr.bf16.mxu0 0
        %5494 = vmatpush1.bf16.msra.mxu0 0
        %5495 = vmatprep.subr.bf16.mxu0 0
        %5496 = vmatpush1.bf16.msra.mxu0 0
        %5497 = vmatprep.subr.bf16.mxu0 0
        %5498 = vmatpush1.bf16.msra.mxu0 0
        %5499 = vmatprep.mubr.bf16.mxu0 %v5424
        %5500 = vmatmul.mubr.bf16.gmra.mrb[0].mxu0 %v5260
        %v5501 = vpop.f32.mrb[0].mxu0
        %v5502 = vadd.f32 %v5253, %v5501
        %v5503 = vpop.f32.mrb[0].mxu0
        %v5504 = vpop.f32.mrb[0].mxu0
        %v5505 = vpop.f32.mrb[0].mxu0
        %5506 = vdwg.mxu0
        %v5507 = vmax.f32 %v5461, 0.0
        %v5508 = vmax.f32 %v5463, 0.0
        %v5509 = vmax.f32 %v5502, 0.0
        %v5510 = vld [vmem:[#allocation2] sm:$0xff]
        %v5511 = vld [vmem:[#allocation2 + $0x8] sm:$0xff]
        %v5512 = vpack.c.bf16 %v5507, %v5507
        %v5513 = vpack.c.bf16 %v5508, %v5508
        %v5514 = vpack.c.bf16 %v5509, %v5509
        %s5515 = scalar_lea.vmem %s3, 2688
        %v5516 = vld [vmem:[%s5515] sm:$0xff]
        %v5517 = vld [vmem:[%s5515 + $0x8] sm:$0xff]
        %v5518 = vld [vmem:[%s5515 + $0x10] sm:$0xff]
        %v5519 = vld [vmem:[%s5515 + $0x18] sm:$0xff]
        %v5520 = vld [vmem:[%s5515 + $0x20] sm:$0xff]
        %v5521 = vld [vmem:[%s5515 + $0x28] sm:$0xff]
        %v5522 = vld [vmem:[%s5515 + $0x30] sm:$0xff]
        %v5523 = vld [vmem:[%s5515 + $0x38] sm:$0xff]
        %v5524 = vld [vmem:[%s5515 + $0x40] sm:$0xff]
        %v5525 = vld [vmem:[%s5515 + $0x48] sm:$0xff]
        %v5526 = vld [vmem:[%s5515 + $0x50] sm:$0xff]
        %v5527 = vld [vmem:[%s5515 + $0x58] sm:$0xff]
        %v5528 = vld [vmem:[%s5515 + $0x60] sm:$0xff]
        %v5529 = vld [vmem:[%s5515 + $0x68] sm:$0xff]
        %v5530 = vld [vmem:[%s5515 + $0x70] sm:$0xff]
        %v5531 = vld [vmem:[%s5515 + $0x78] sm:$0xff]
        %v5532 = vld [vmem:[%s5515 + $0x80] sm:$0xff]
        %v5533 = vld [vmem:[%s5515 + $0x88] sm:$0xff]
        %v5534 = vld [vmem:[%s5515 + $0x90] sm:$0xff]
        %v5535 = vld [vmem:[%s5515 + $0x98] sm:$0xff]
        %v5536 = vld [vmem:[%s5515 + $0xa0] sm:$0xff]
        %v5537 = vld [vmem:[%s5515 + $0xa8] sm:$0xff]
        %v5538 = vld [vmem:[%s5515 + $0xb0] sm:$0xff]
        %v5539 = vld [vmem:[%s5515 + $0xb8] sm:$0xff]
        %v5540 = vld [vmem:[%s5515 + $0xc0] sm:$0xff]
        %v5541 = vld [vmem:[%s5515 + $0xc8] sm:$0xff]
        %v5542 = vld [vmem:[%s5515 + $0xd0] sm:$0xff]
        %v5543 = vld [vmem:[%s5515 + $0xd8] sm:$0xff]
        %v5544 = vld [vmem:[%s5515 + $0xe0] sm:$0xff]
        %v5545 = vld [vmem:[%s5515 + $0xe8] sm:$0xff]
        %v5546 = vld [vmem:[%s5515 + $0xf0] sm:$0xff]
        %v5547 = vld [vmem:[%s5515 + $0xf8] sm:$0xff]
        %v5548 = vld [vmem:[%s5515 + $0x100] sm:$0xff]
        %v5549 = vld [vmem:[%s5515 + $0x108] sm:$0xff]
        %v5550 = vld [vmem:[%s5515 + $0x110] sm:$0xff]
        %v5551 = vld [vmem:[%s5515 + $0x118] sm:$0xff]
        %v5552 = vld [vmem:[%s5515 + $0x120] sm:$0xff]
        %v5553 = vld [vmem:[%s5515 + $0x128] sm:$0xff]
        %v5554 = vld [vmem:[%s5515 + $0x130] sm:$0xff]
        %v5555 = vld [vmem:[%s5515 + $0x138] sm:$0xff]
        %v5556 = vld [vmem:[%s5515 + $0x140] sm:$0xff]
        %v5557 = vld [vmem:[%s5515 + $0x148] sm:$0xff]
        %v5558 = vld [vmem:[%s5515 + $0x150] sm:$0xff]
        %v5559 = vld [vmem:[%s5515 + $0x158] sm:$0xff]
        %v5560 = vld [vmem:[%s5515 + $0x160] sm:$0xff]
        %v5561 = vld [vmem:[%s5515 + $0x168] sm:$0xff]
        %v5562 = vld [vmem:[%s5515 + $0x170] sm:$0xff]
        %v5563 = vld [vmem:[%s5515 + $0x178] sm:$0xff]
        %v5612 = vunpack.c.l.b16 %v5516
        %v5613 = vunpack.c.h.b16 %v5516
        %v5614 = vunpack.c.l.b16 %v5517
        %v5615 = vunpack.c.h.b16 %v5517
        %v5616 = vunpack.c.l.b16 %v5518
        %v5617 = vunpack.c.h.b16 %v5518
        %v5618 = vunpack.c.l.b16 %v5519
        %v5619 = vunpack.c.h.b16 %v5519
        %v5620 = vunpack.c.l.b16 %v5520
        %v5621 = vunpack.c.h.b16 %v5520
        %v5622 = vunpack.c.l.b16 %v5521
        %v5623 = vunpack.c.h.b16 %v5521
        %v5624 = vunpack.c.l.b16 %v5522
        %v5625 = vunpack.c.h.b16 %v5522
        %v5626 = vunpack.c.l.b16 %v5523
        %v5627 = vunpack.c.h.b16 %v5523
        %v5628 = vunpack.c.l.b16 %v5524
        %v5629 = vunpack.c.h.b16 %v5524
        %v5630 = vunpack.c.l.b16 %v5525
        %v5631 = vunpack.c.h.b16 %v5525
        %v5632 = vunpack.c.l.b16 %v5526
        %v5633 = vunpack.c.h.b16 %v5526
        %v5634 = vunpack.c.l.b16 %v5527
        %v5635 = vunpack.c.h.b16 %v5527
        %v5636 = vunpack.c.l.b16 %v5528
        %v5637 = vunpack.c.h.b16 %v5528
        %v5638 = vunpack.c.l.b16 %v5529
        %v5639 = vunpack.c.h.b16 %v5529
        %v5640 = vunpack.c.l.b16 %v5530
        %v5641 = vunpack.c.h.b16 %v5530
        %v5642 = vunpack.c.l.b16 %v5531
        %v5643 = vunpack.c.h.b16 %v5531
        %v5644 = vunpack.c.l.b16 %v5532
        %v5645 = vunpack.c.h.b16 %v5532
        %v5646 = vunpack.c.l.b16 %v5533
        %v5647 = vunpack.c.h.b16 %v5533
        %v5648 = vunpack.c.l.b16 %v5534
        %v5649 = vunpack.c.h.b16 %v5534
        %v5650 = vunpack.c.l.b16 %v5535
        %v5651 = vunpack.c.h.b16 %v5535
        %v5652 = vunpack.c.l.b16 %v5536
        %v5653 = vunpack.c.h.b16 %v5536
        %v5654 = vunpack.c.l.b16 %v5537
        %v5655 = vunpack.c.h.b16 %v5537
        %v5656 = vunpack.c.l.b16 %v5538
        %v5657 = vunpack.c.h.b16 %v5538
        %v5658 = vunpack.c.l.b16 %v5539
        %v5659 = vunpack.c.h.b16 %v5539
        %v5660 = vunpack.c.l.b16 %v5540
        %v5661 = vunpack.c.h.b16 %v5540
        %v5662 = vunpack.c.l.b16 %v5541
        %v5663 = vunpack.c.h.b16 %v5541
        %v5664 = vunpack.c.l.b16 %v5542
        %v5665 = vunpack.c.h.b16 %v5542
        %v5666 = vunpack.c.l.b16 %v5543
        %v5667 = vunpack.c.h.b16 %v5543
        %v5668 = vunpack.c.l.b16 %v5544
        %v5669 = vunpack.c.h.b16 %v5544
        %v5670 = vunpack.c.l.b16 %v5545
        %v5671 = vunpack.c.h.b16 %v5545
        %v5672 = vunpack.c.l.b16 %v5546
        %v5673 = vunpack.c.h.b16 %v5546
        %v5674 = vunpack.c.l.b16 %v5547
        %v5675 = vunpack.c.h.b16 %v5547
        %v5676 = vunpack.c.l.b16 %v5548
        %v5677 = vunpack.c.h.b16 %v5548
        %v5678 = vunpack.c.l.b16 %v5549
        %v5679 = vunpack.c.h.b16 %v5549
        %v5680 = vunpack.c.l.b16 %v5550
        %v5681 = vunpack.c.h.b16 %v5550
        %v5682 = vunpack.c.l.b16 %v5551
        %v5683 = vunpack.c.h.b16 %v5551
        %v5684 = vunpack.c.l.b16 %v5552
        %v5685 = vunpack.c.h.b16 %v5552
        %v5686 = vunpack.c.l.b16 %v5553
        %v5687 = vunpack.c.h.b16 %v5553
        %v5688 = vunpack.c.l.b16 %v5554
        %v5689 = vunpack.c.h.b16 %v5554
        %v5690 = vunpack.c.l.b16 %v5555
        %v5691 = vunpack.c.h.b16 %v5555
        %v5692 = vunpack.c.l.b16 %v5556
        %v5693 = vunpack.c.h.b16 %v5556
        %v5694 = vunpack.c.l.b16 %v5557
        %v5695 = vunpack.c.h.b16 %v5557
        %v5696 = vunpack.c.l.b16 %v5558
        %v5697 = vunpack.c.h.b16 %v5558
        %v5698 = vunpack.c.l.b16 %v5559
        %v5699 = vunpack.c.h.b16 %v5559
        %v5700 = vunpack.c.l.b16 %v5560
        %v5701 = vunpack.c.h.b16 %v5560
        %v5702 = vunpack.c.l.b16 %v5561
        %v5703 = vunpack.c.h.b16 %v5561
        %v5704 = vunpack.c.l.b16 %v5562
        %v5705 = vunpack.c.h.b16 %v5562
        %v5706 = vunpack.c.l.b16 %v5563
        %v5707 = vunpack.c.h.b16 %v5563
        %v5708 = vpack.c.b16 %v5614, %v5612
        %v5709 = vpack.c.b16 %v5615, %v5613
        %v5710 = vpack.c.b16 %v5618, %v5616
        %v5711 = vpack.c.b16 %v5619, %v5617
        %v5712 = vpack.c.b16 %v5622, %v5620
        %v5713 = vpack.c.b16 %v5623, %v5621
        %v5714 = vpack.c.b16 %v5626, %v5624
        %v5715 = vpack.c.b16 %v5627, %v5625
        %v5716 = vpack.c.b16 %v5630, %v5628
        %v5717 = vpack.c.b16 %v5631, %v5629
        %v5718 = vpack.c.b16 %v5634, %v5632
        %v5719 = vpack.c.b16 %v5635, %v5633
        %v5720 = vpack.c.b16 %v5638, %v5636
        %v5721 = vpack.c.b16 %v5639, %v5637
        %v5722 = vpack.c.b16 %v5642, %v5640
        %v5723 = vpack.c.b16 %v5643, %v5641
        %v5724 = vpack.c.b16 %v5646, %v5644
        %v5725 = vpack.c.b16 %v5647, %v5645
        %v5726 = vpack.c.b16 %v5650, %v5648
        %v5727 = vpack.c.b16 %v5651, %v5649
        %v5728 = vpack.c.b16 %v5654, %v5652
        %v5729 = vpack.c.b16 %v5655, %v5653
        %v5730 = vpack.c.b16 %v5658, %v5656
        %v5731 = vpack.c.b16 %v5659, %v5657
        %v5732 = vpack.c.b16 %v5662, %v5660
        %v5733 = vpack.c.b16 %v5663, %v5661
        %v5734 = vpack.c.b16 %v5666, %v5664
        %v5735 = vpack.c.b16 %v5667, %v5665
        %v5736 = vpack.c.b16 %v5670, %v5668
        %v5737 = vpack.c.b16 %v5671, %v5669
        %v5738 = vpack.c.b16 %v5674, %v5672
        %v5739 = vpack.c.b16 %v5675, %v5673
        %v5740 = vpack.c.b16 %v5678, %v5676
        %v5741 = vpack.c.b16 %v5679, %v5677
        %v5742 = vpack.c.b16 %v5682, %v5680
        %v5743 = vpack.c.b16 %v5683, %v5681
        %v5744 = vpack.c.b16 %v5686, %v5684
        %v5745 = vpack.c.b16 %v5687, %v5685
        %v5746 = vpack.c.b16 %v5690, %v5688
        %v5747 = vpack.c.b16 %v5691, %v5689
        %v5748 = vpack.c.b16 %v5694, %v5692
        %v5749 = vpack.c.b16 %v5695, %v5693
        %v5750 = vpack.c.b16 %v5698, %v5696
        %v5751 = vpack.c.b16 %v5699, %v5697
        %v5752 = vpack.c.b16 %v5702, %v5700
        %v5753 = vpack.c.b16 %v5703, %v5701
        %v5754 = vpack.c.b16 %v5706, %v5704
        %v5755 = vpack.c.b16 %v5707, %v5705
        %5804 = vmatprep.subr.bf16.mxu0 %v5709
        %5805 = vmatpush1.bf16.msra.mxu0 %v5708
        %5806 = vmatprep.subr.bf16.mxu0 %v5711
        %5807 = vmatpush1.bf16.msra.mxu0 %v5710
        %5808 = vmatprep.subr.bf16.mxu0 %v5713
        %5809 = vmatpush1.bf16.msra.mxu0 %v5712
        %5810 = vmatprep.subr.bf16.mxu0 %v5715
        %5811 = vmatpush1.bf16.msra.mxu0 %v5714
        %5812 = vmatprep.subr.bf16.mxu0 %v5717
        %5813 = vmatpush1.bf16.msra.mxu0 %v5716
        %5814 = vmatprep.subr.bf16.mxu0 %v5719
        %5815 = vmatpush1.bf16.msra.mxu0 %v5718
        %5816 = vmatprep.subr.bf16.mxu0 %v5721
        %5817 = vmatpush1.bf16.msra.mxu0 %v5720
        %5818 = vmatprep.subr.bf16.mxu0 %v5723
        %5819 = vmatpush1.bf16.msra.mxu0 %v5722
        %5820 = vmatprep.subr.bf16.mxu0 %v5725
        %5821 = vmatpush1.bf16.msra.mxu0 %v5724
        %5822 = vmatprep.subr.bf16.mxu0 %v5727
        %5823 = vmatpush1.bf16.msra.mxu0 %v5726
        %5824 = vmatprep.subr.bf16.mxu0 %v5729
        %5825 = vmatpush1.bf16.msra.mxu0 %v5728
        %5826 = vmatprep.subr.bf16.mxu0 %v5731
        %5827 = vmatpush1.bf16.msra.mxu0 %v5730
        %5828 = vmatprep.subr.bf16.mxu0 %v5733
        %5829 = vmatpush1.bf16.msra.mxu0 %v5732
        %5830 = vmatprep.subr.bf16.mxu0 %v5735
        %5831 = vmatpush1.bf16.msra.mxu0 %v5734
        %5832 = vmatprep.subr.bf16.mxu0 %v5737
        %5833 = vmatpush1.bf16.msra.mxu0 %v5736
        %5834 = vmatprep.subr.bf16.mxu0 %v5739
        %5835 = vmatpush1.bf16.msra.mxu0 %v5738
        %5836 = vmatprep.mubr.bf16.mxu0 %v5513
        %5837 = vmatmul.mubr.bf16.gmra.mrb[0].mxu0 %v5512
        %v5838 = vpop.f32.mrb[0].mxu0
        %v5839 = vadd.f32 0.0, %v5838
        %v5840 = vpop.f32.mrb[0].mxu0
        %v5841 = vadd.f32 0.0, %v5840
        %v5842 = vpop.f32.mrb[0].mxu0
        %v5843 = vpop.f32.mrb[0].mxu0
        %5844 = vdwg.mxu0
        %5845 = vmatprep.subr.bf16.mxu0 %v5741
        %5846 = vmatpush1.bf16.msra.mxu0 %v5740
        %5847 = vmatprep.subr.bf16.mxu0 %v5743
        %5848 = vmatpush1.bf16.msra.mxu0 %v5742
        %5849 = vmatprep.subr.bf16.mxu0 %v5745
        %5850 = vmatpush1.bf16.msra.mxu0 %v5744
        %5851 = vmatprep.subr.bf16.mxu0 %v5747
        %5852 = vmatpush1.bf16.msra.mxu0 %v5746
        %5853 = vmatprep.subr.bf16.mxu0 %v5749
        %5854 = vmatpush1.bf16.msra.mxu0 %v5748
        %5855 = vmatprep.subr.bf16.mxu0 %v5751
        %5856 = vmatpush1.bf16.msra.mxu0 %v5750
        %5857 = vmatprep.subr.bf16.mxu0 %v5753
        %5858 = vmatpush1.bf16.msra.mxu0 %v5752
        %5859 = vmatprep.subr.bf16.mxu0 %v5755
        %5860 = vmatpush1.bf16.msra.mxu0 %v5754
        %5861 = vmatprep.subr.bf16.mxu0 0
        %5862 = vmatpush1.bf16.msra.mxu0 0
        %5863 = vmatprep.subr.bf16.mxu0 0
        %5864 = vmatpush1.bf16.msra.mxu0 0
        %5865 = vmatprep.subr.bf16.mxu0 0
        %5866 = vmatpush1.bf16.msra.mxu0 0
        %5867 = vmatprep.subr.bf16.mxu0 0
        %5868 = vmatpush1.bf16.msra.mxu0 0
        %5869 = vmatprep.subr.bf16.mxu0 0
        %5870 = vmatpush1.bf16.msra.mxu0 0
        %5871 = vmatprep.subr.bf16.mxu0 0
        %5872 = vmatpush1.bf16.msra.mxu0 0
        %5873 = vmatprep.subr.bf16.mxu0 0
        %5874 = vmatpush1.bf16.msra.mxu0 0
        %5875 = vmatprep.subr.bf16.mxu0 0
        %5876 = vmatpush1.bf16.msra.mxu0 0
        %5877 = vmatprep.mubr.bf16.mxu0 0
        %5878 = vmatmul.mubr.bf16.gmra.mrb[0].mxu0 %v5514
        %v5879 = vpop.f32.mrb[0].mxu0
        %v5880 = vadd.f32 %v5839, %v5879
        %v5881 = vpop.f32.mrb[0].mxu0
        %v5882 = vadd.f32 %v5841, %v5881
        %v5883 = vpop.f32.mrb[0].mxu0
        %v5884 = vpop.f32.mrb[0].mxu0
        %5885 = vdwg.mxu0
        %v5886 = vadd.f32 %v5510, %v5880
        %v5887 = vadd.f32 %v5511, %v5882
        %5888 = vst [vmem:[#allocation2] sm:$0xff] %v5886
        %5889 = vst [vmem:[#allocation2 + $0x8] sm:$0xff] %v5887
        %s5890 = scalar_lea.vmem %s320, 64 [#allocation3]
        %v5891 = vld [vmem:[%s5890] sm:$0xff]
        %v5892 = vld [vmem:[%s1] sm:$0xff]
        %v5893 = vld [vmem:[%s1 + $0x8] sm:$0xf]
        %v5894 = vld [vmem:[%s1 + $0xc] sm:$0xff]
        %v5895 = vld [vmem:[%s1 + $0x14] sm:$0xf]
        %v5896 = vld [vmem:[%s1 + $0x18] sm:$0xff]
        %v5897 = vld [vmem:[%s1 + $0x20] sm:$0xf]
        %v5898 = vld [vmem:[%s1 + $0x24] sm:$0xff]
        %v5899 = vld [vmem:[%s1 + $0x2c] sm:$0xf]
        %v5900 = vld [vmem:[%s1 + $0x30] sm:$0xff]
        %v5901 = vld [vmem:[%s1 + $0x38] sm:$0xf]
        %v5902 = vld [vmem:[%s1 + $0x3c] sm:$0xff]
        %v5903 = vld [vmem:[%s1 + $0x44] sm:$0xf]
        %v5904 = vld [vmem:[%s1 + $0x48] sm:$0xff]
        %v5905 = vld [vmem:[%s1 + $0x50] sm:$0xf]
        %v5906 = vld [vmem:[%s1 + $0x54] sm:$0xff]
        %v5907 = vld [vmem:[%s1 + $0x5c] sm:$0xf]
        %v5908 = vld [vmem:[%s1 + $0x60] sm:$0xff]
        %v5909 = vld [vmem:[%s1 + $0x68] sm:$0xf]
        %v5910 = vld [vmem:[%s1 + $0x6c] sm:$0xff]
        %v5911 = vld [vmem:[%s1 + $0x74] sm:$0xf]
        %v5912 = vld [vmem:[%s1 + $0x78] sm:$0xff]
        %v5913 = vld [vmem:[%s1 + $0x80] sm:$0xf]
        %v5914 = vld [vmem:[%s1 + $0x84] sm:$0xff]
        %v5915 = vld [vmem:[%s1 + $0x8c] sm:$0xf]
        %v5916 = vld [vmem:[%s1 + $0x90] sm:$0xff]
        %v5917 = vld [vmem:[%s1 + $0x98] sm:$0xf]
        %v5918 = vld [vmem:[%s1 + $0x9c] sm:$0xff]
        %v5919 = vld [vmem:[%s1 + $0xa4] sm:$0xf]
        %v5920 = vld [vmem:[%s1 + $0xa8] sm:$0xff]
        %v5921 = vld [vmem:[%s1 + $0xb0] sm:$0xf]
        %v5922 = vld [vmem:[%s1 + $0xb4] sm:$0xff]
        %v5923 = vld [vmem:[%s1 + $0xbc] sm:$0xf]
        %v5924 = vld [vmem:[%s1 + $0xc0] sm:$0xff]
        %v5925 = vld [vmem:[%s1 + $0xc8] sm:$0xf]
        %v5926 = vld [vmem:[%s1 + $0xcc] sm:$0xff]
        %v5927 = vld [vmem:[%s1 + $0xd4] sm:$0xf]
        %v5928 = vld [vmem:[%s1 + $0xd8] sm:$0xff]
        %v5929 = vld [vmem:[%s1 + $0xe0] sm:$0xf]
        %v5930 = vld [vmem:[%s1 + $0xe4] sm:$0xff]
        %v5931 = vld [vmem:[%s1 + $0xec] sm:$0xf]
        %v5932 = vld [vmem:[%s2] sm:$0x7]
        %v5934 = vlaneseq
        %v5935 = vshrl.u32 %v5934, 7
        %v5936 = vsub.s32 0, %v5935
        %v5937 = vrot.slane %v5932, %v5936
        %v5938 = vlaneseq
        %v5939 = vshrl.u32 %v5938, 7
        %v5940 = vsub.s32 1, %v5939
        %v5941 = vrot.slane %v5932, %v5940
        %v5942 = vlaneseq
        %v5943 = vshrl.u32 %v5942, 7
        %v5944 = vsub.s32 2, %v5943
        %v5945 = vrot.slane %v5932, %v5944
        %v5950 = vunpack.c.l.b16 %v5891
        %v5951 = vunpack.c.h.b16 %v5891
        %v5952 = vpack.c.b16 %v5950, %v5950
        %v5953 = vpack.c.b16 %v5951, %v5951
        %v5995 = vunpack.c.l.b16 %v5892
        %v5996 = vunpack.c.h.b16 %v5892
        %v5997 = vunpack.c.l.b16 %v5893
        %v5998 = vunpack.c.l.b16 %v5894
        %v5999 = vunpack.c.h.b16 %v5894
        %v6000 = vunpack.c.l.b16 %v5895
        %v6001 = vunpack.c.l.b16 %v5896
        %v6002 = vunpack.c.h.b16 %v5896
        %v6003 = vunpack.c.l.b16 %v5897
        %v6004 = vunpack.c.l.b16 %v5898
        %v6005 = vunpack.c.h.b16 %v5898
        %v6006 = vunpack.c.l.b16 %v5899
        %v6007 = vunpack.c.l.b16 %v5900
        %v6008 = vunpack.c.h.b16 %v5900
        %v6009 = vunpack.c.l.b16 %v5901
        %v6010 = vunpack.c.l.b16 %v5902
        %v6011 = vunpack.c.h.b16 %v5902
        %v6012 = vunpack.c.l.b16 %v5903
        %v6013 = vunpack.c.l.b16 %v5904
        %v6014 = vunpack.c.h.b16 %v5904
        %v6015 = vunpack.c.l.b16 %v5905
        %v6016 = vunpack.c.l.b16 %v5906
        %v6017 = vunpack.c.h.b16 %v5906
        %v6018 = vunpack.c.l.b16 %v5907
        %v6019 = vunpack.c.l.b16 %v5908
        %v6020 = vunpack.c.h.b16 %v5908
        %v6021 = vunpack.c.l.b16 %v5909
        %v6022 = vunpack.c.l.b16 %v5910
        %v6023 = vunpack.c.h.b16 %v5910
        %v6024 = vunpack.c.l.b16 %v5911
        %v6025 = vunpack.c.l.b16 %v5912
        %v6026 = vunpack.c.h.b16 %v5912
        %v6027 = vunpack.c.l.b16 %v5913
        %v6028 = vunpack.c.l.b16 %v5914
        %v6029 = vunpack.c.h.b16 %v5914
        %v6030 = vunpack.c.l.b16 %v5915
        %v6031 = vunpack.c.l.b16 %v5916
        %v6032 = vunpack.c.h.b16 %v5916
        %v6033 = vunpack.c.l.b16 %v5917
        %v6034 = vunpack.c.l.b16 %v5918
        %v6035 = vunpack.c.h.b16 %v5918
        %v6036 = vunpack.c.l.b16 %v5919
        %v6037 = vunpack.c.l.b16 %v5920
        %v6038 = vunpack.c.h.b16 %v5920
        %v6039 = vunpack.c.l.b16 %v5921
        %v6040 = vunpack.c.l.b16 %v5922
        %v6041 = vunpack.c.h.b16 %v5922
        %v6042 = vunpack.c.l.b16 %v5923
        %v6043 = vunpack.c.l.b16 %v5924
        %v6044 = vunpack.c.h.b16 %v5924
        %v6045 = vunpack.c.l.b16 %v5925
        %v6046 = vunpack.c.l.b16 %v5926
        %v6047 = vunpack.c.h.b16 %v5926
        %v6048 = vunpack.c.l.b16 %v5927
        %v6049 = vunpack.c.l.b16 %v5928
        %v6050 = vunpack.c.h.b16 %v5928
        %v6051 = vunpack.c.l.b16 %v5929
        %v6052 = vunpack.c.l.b16 %v5930
        %v6053 = vunpack.c.h.b16 %v5930
        %v6054 = vunpack.c.l.b16 %v5931
        %v6055 = vpack.c.b16 %v5998, %v5995
        %v6056 = vpack.c.b16 %v5999, %v5996
        %v6057 = vpack.c.b16 %v6000, %v5997
        %v6058 = vpack.c.b16 %v6004, %v6001
        %v6059 = vpack.c.b16 %v6005, %v6002
        %v6060 = vpack.c.b16 %v6006, %v6003
        %v6061 = vpack.c.b16 %v6010, %v6007
        %v6062 = vpack.c.b16 %v6011, %v6008
        %v6063 = vpack.c.b16 %v6012, %v6009
        %v6064 = vpack.c.b16 %v6016, %v6013
        %v6065 = vpack.c.b16 %v6017, %v6014
        %v6066 = vpack.c.b16 %v6018, %v6015
        %v6067 = vpack.c.b16 %v6022, %v6019
        %v6068 = vpack.c.b16 %v6023, %v6020
        %v6069 = vpack.c.b16 %v6024, %v6021
        %v6070 = vpack.c.b16 %v6028, %v6025
        %v6071 = vpack.c.b16 %v6029, %v6026
        %v6072 = vpack.c.b16 %v6030, %v6027
        %v6073 = vpack.c.b16 %v6034, %v6031
        %v6074 = vpack.c.b16 %v6035, %v6032
        %v6075 = vpack.c.b16 %v6036, %v6033
        %v6076 = vpack.c.b16 %v6040, %v6037
        %v6077 = vpack.c.b16 %v6041, %v6038
        %v6078 = vpack.c.b16 %v6042, %v6039
        %v6079 = vpack.c.b16 %v6046, %v6043
        %v6080 = vpack.c.b16 %v6047, %v6044
        %v6081 = vpack.c.b16 %v6048, %v6045
        %v6082 = vpack.c.b16 %v6052, %v6049
        %v6083 = vpack.c.b16 %v6053, %v6050
        %v6084 = vpack.c.b16 %v6054, %v6051
        %v6116 = vsel %vm579, %v5953, 0
        %6118 = vmatprep.subr.bf16.mxu0 %v6056
        %6119 = vmatpush1.bf16.msra.mxu0 %v6055
        %6120 = vmatprep.subr.bf16.mxu0 %v6059
        %6121 = vmatpush1.bf16.msra.mxu0 %v6058
        %6122 = vmatprep.subr.bf16.mxu0 %v6062
        %6123 = vmatpush1.bf16.msra.mxu0 %v6061
        %6124 = vmatprep.subr.bf16.mxu0 %v6065
        %6125 = vmatpush1.bf16.msra.mxu0 %v6064
        %6126 = vmatprep.subr.bf16.mxu0 %v6068
        %6127 = vmatpush1.bf16.msra.mxu0 %v6067
        %6128 = vmatprep.subr.bf16.mxu0 %v6071
        %6129 = vmatpush1.bf16.msra.mxu0 %v6070
        %6130 = vmatprep.subr.bf16.mxu0 %v6074
        %6131 = vmatpush1.bf16.msra.mxu0 %v6073
        %6132 = vmatprep.subr.bf16.mxu0 %v6077
        %6133 = vmatpush1.bf16.msra.mxu0 %v6076
        %6134 = vmatprep.subr.bf16.mxu0 %v6080
        %6135 = vmatpush1.bf16.msra.mxu0 %v6079
        %6136 = vmatprep.subr.bf16.mxu0 %v6083
        %6137 = vmatpush1.bf16.msra.mxu0 %v6082
        %6138 = vmatprep.subr.bf16.mxu0 0
        %6139 = vmatpush1.bf16.msra.mxu0 0
        %6140 = vmatprep.subr.bf16.mxu0 0
        %6141 = vmatpush1.bf16.msra.mxu0 0
        %6142 = vmatprep.subr.bf16.mxu0 0
        %6143 = vmatpush1.bf16.msra.mxu0 0
        %6144 = vmatprep.subr.bf16.mxu0 0
        %6145 = vmatpush1.bf16.msra.mxu0 0
        %6146 = vmatprep.subr.bf16.mxu0 0
        %6147 = vmatpush1.bf16.msra.mxu0 0
        %6148 = vmatprep.subr.bf16.mxu0 0
        %6149 = vmatpush1.bf16.msra.mxu0 0
        %6150 = vmatprep.mubr.bf16.mxu0 %v6116
        %6151 = vmatmul.mubr.bf16.gmra.mrb[0].mxu0 %v5952
        %v6152 = vpop.f32.mrb[0].mxu0
        %v6153 = vadd.f32 %v5937, %v6152
        %v6154 = vpop.f32.mrb[0].mxu0
        %v6155 = vadd.f32 %v5941, %v6154
        %v6156 = vpop.f32.mrb[0].mxu0
        %v6157 = vpop.f32.mrb[0].mxu0
        %6158 = vdwg.mxu0
        %6159 = vmatprep.subr.bf16.mxu0 0
        %6160 = vmatpush1.bf16.msra.mxu0 %v6057
        %6161 = vmatprep.subr.bf16.mxu0 0
        %6162 = vmatpush1.bf16.msra.mxu0 %v6060
        %6163 = vmatprep.subr.bf16.mxu0 0
        %6164 = vmatpush1.bf16.msra.mxu0 %v6063
        %6165 = vmatprep.subr.bf16.mxu0 0
        %6166 = vmatpush1.bf16.msra.mxu0 %v6066
        %6167 = vmatprep.subr.bf16.mxu0 0
        %6168 = vmatpush1.bf16.msra.mxu0 %v6069
        %6169 = vmatprep.subr.bf16.mxu0 0
        %6170 = vmatpush1.bf16.msra.mxu0 %v6072
        %6171 = vmatprep.subr.bf16.mxu0 0
        %6172 = vmatpush1.bf16.msra.mxu0 %v6075
        %6173 = vmatprep.subr.bf16.mxu0 0
        %6174 = vmatpush1.bf16.msra.mxu0 %v6078
        %6175 = vmatprep.subr.bf16.mxu0 0
        %6176 = vmatpush1.bf16.msra.mxu0 %v6081
        %6177 = vmatprep.subr.bf16.mxu0 0
        %6178 = vmatpush1.bf16.msra.mxu0 %v6084
        %6179 = vmatprep.subr.bf16.mxu0 0
        %6180 = vmatpush1.bf16.msra.mxu0 0
        %6181 = vmatprep.subr.bf16.mxu0 0
        %6182 = vmatpush1.bf16.msra.mxu0 0
        %6183 = vmatprep.subr.bf16.mxu0 0
        %6184 = vmatpush1.bf16.msra.mxu0 0
        %6185 = vmatprep.subr.bf16.mxu0 0
        %6186 = vmatpush1.bf16.msra.mxu0 0
        %6187 = vmatprep.subr.bf16.mxu0 0
        %6188 = vmatpush1.bf16.msra.mxu0 0
        %6189 = vmatprep.subr.bf16.mxu0 0
        %6190 = vmatpush1.bf16.msra.mxu0 0
        %6191 = vmatprep.mubr.bf16.mxu0 %v6116
        %6192 = vmatmul.mubr.bf16.gmra.mrb[0].mxu0 %v5952
        %v6193 = vpop.f32.mrb[0].mxu0
        %v6194 = vadd.f32 %v5945, %v6193
        %v6195 = vpop.f32.mrb[0].mxu0
        %v6196 = vpop.f32.mrb[0].mxu0
        %v6197 = vpop.f32.mrb[0].mxu0
        %6198 = vdwg.mxu0
        %v6199 = vmax.f32 %v6153, 0.0
        %v6200 = vmax.f32 %v6155, 0.0
        %v6201 = vmax.f32 %v6194, 0.0
        %v6202 = vld [vmem:[#allocation2] sm:$0xff]
        %v6203 = vld [vmem:[#allocation2 + $0x8] sm:$0xff]
        %v6204 = vpack.c.bf16 %v6199, %v6199
        %v6205 = vpack.c.bf16 %v6200, %v6200
        %v6206 = vpack.c.bf16 %v6201, %v6201
        %s6207 = scalar_lea.vmem %s3, 3072
        %v6208 = vld [vmem:[%s6207] sm:$0xff]
        %v6209 = vld [vmem:[%s6207 + $0x8] sm:$0xff]
        %v6210 = vld [vmem:[%s6207 + $0x10] sm:$0xff]
        %v6211 = vld [vmem:[%s6207 + $0x18] sm:$0xff]
        %v6212 = vld [vmem:[%s6207 + $0x20] sm:$0xff]
        %v6213 = vld [vmem:[%s6207 + $0x28] sm:$0xff]
        %v6214 = vld [vmem:[%s6207 + $0x30] sm:$0xff]
        %v6215 = vld [vmem:[%s6207 + $0x38] sm:$0xff]
        %v6216 = vld [vmem:[%s6207 + $0x40] sm:$0xff]
        %v6217 = vld [vmem:[%s6207 + $0x48] sm:$0xff]
        %v6218 = vld [vmem:[%s6207 + $0x50] sm:$0xff]
        %v6219 = vld [vmem:[%s6207 + $0x58] sm:$0xff]
        %v6220 = vld [vmem:[%s6207 + $0x60] sm:$0xff]
        %v6221 = vld [vmem:[%s6207 + $0x68] sm:$0xff]
        %v6222 = vld [vmem:[%s6207 + $0x70] sm:$0xff]
        %v6223 = vld [vmem:[%s6207 + $0x78] sm:$0xff]
        %v6224 = vld [vmem:[%s6207 + $0x80] sm:$0xff]
        %v6225 = vld [vmem:[%s6207 + $0x88] sm:$0xff]
        %v6226 = vld [vmem:[%s6207 + $0x90] sm:$0xff]
        %v6227 = vld [vmem:[%s6207 + $0x98] sm:$0xff]
        %v6228 = vld [vmem:[%s6207 + $0xa0] sm:$0xff]
        %v6229 = vld [vmem:[%s6207 + $0xa8] sm:$0xff]
        %v6230 = vld [vmem:[%s6207 + $0xb0] sm:$0xff]
        %v6231 = vld [vmem:[%s6207 + $0xb8] sm:$0xff]
        %v6232 = vld [vmem:[%s6207 + $0xc0] sm:$0xff]
        %v6233 = vld [vmem:[%s6207 + $0xc8] sm:$0xff]
        %v6234 = vld [vmem:[%s6207 + $0xd0] sm:$0xff]
        %v6235 = vld [vmem:[%s6207 + $0xd8] sm:$0xff]
        %v6236 = vld [vmem:[%s6207 + $0xe0] sm:$0xff]
        %v6237 = vld [vmem:[%s6207 + $0xe8] sm:$0xff]
        %v6238 = vld [vmem:[%s6207 + $0xf0] sm:$0xff]
        %v6239 = vld [vmem:[%s6207 + $0xf8] sm:$0xff]
        %v6240 = vld [vmem:[%s6207 + $0x100] sm:$0xff]
        %v6241 = vld [vmem:[%s6207 + $0x108] sm:$0xff]
        %v6242 = vld [vmem:[%s6207 + $0x110] sm:$0xff]
        %v6243 = vld [vmem:[%s6207 + $0x118] sm:$0xff]
        %v6244 = vld [vmem:[%s6207 + $0x120] sm:$0xff]
        %v6245 = vld [vmem:[%s6207 + $0x128] sm:$0xff]
        %v6246 = vld [vmem:[%s6207 + $0x130] sm:$0xff]
        %v6247 = vld [vmem:[%s6207 + $0x138] sm:$0xff]
        %v6248 = vld [vmem:[%s6207 + $0x140] sm:$0xff]
        %v6249 = vld [vmem:[%s6207 + $0x148] sm:$0xff]
        %v6250 = vld [vmem:[%s6207 + $0x150] sm:$0xff]
        %v6251 = vld [vmem:[%s6207 + $0x158] sm:$0xff]
        %v6252 = vld [vmem:[%s6207 + $0x160] sm:$0xff]
        %v6253 = vld [vmem:[%s6207 + $0x168] sm:$0xff]
        %v6254 = vld [vmem:[%s6207 + $0x170] sm:$0xff]
        %v6255 = vld [vmem:[%s6207 + $0x178] sm:$0xff]
        %v6304 = vunpack.c.l.b16 %v6208
        %v6305 = vunpack.c.h.b16 %v6208
        %v6306 = vunpack.c.l.b16 %v6209
        %v6307 = vunpack.c.h.b16 %v6209
        %v6308 = vunpack.c.l.b16 %v6210
        %v6309 = vunpack.c.h.b16 %v6210
        %v6310 = vunpack.c.l.b16 %v6211
        %v6311 = vunpack.c.h.b16 %v6211
        %v6312 = vunpack.c.l.b16 %v6212
        %v6313 = vunpack.c.h.b16 %v6212
        %v6314 = vunpack.c.l.b16 %v6213
        %v6315 = vunpack.c.h.b16 %v6213
        %v6316 = vunpack.c.l.b16 %v6214
        %v6317 = vunpack.c.h.b16 %v6214
        %v6318 = vunpack.c.l.b16 %v6215
        %v6319 = vunpack.c.h.b16 %v6215
        %v6320 = vunpack.c.l.b16 %v6216
        %v6321 = vunpack.c.h.b16 %v6216
        %v6322 = vunpack.c.l.b16 %v6217
        %v6323 = vunpack.c.h.b16 %v6217
        %v6324 = vunpack.c.l.b16 %v6218
        %v6325 = vunpack.c.h.b16 %v6218
        %v6326 = vunpack.c.l.b16 %v6219
        %v6327 = vunpack.c.h.b16 %v6219
        %v6328 = vunpack.c.l.b16 %v6220
        %v6329 = vunpack.c.h.b16 %v6220
        %v6330 = vunpack.c.l.b16 %v6221
        %v6331 = vunpack.c.h.b16 %v6221
        %v6332 = vunpack.c.l.b16 %v6222
        %v6333 = vunpack.c.h.b16 %v6222
        %v6334 = vunpack.c.l.b16 %v6223
        %v6335 = vunpack.c.h.b16 %v6223
        %v6336 = vunpack.c.l.b16 %v6224
        %v6337 = vunpack.c.h.b16 %v6224
        %v6338 = vunpack.c.l.b16 %v6225
        %v6339 = vunpack.c.h.b16 %v6225
        %v6340 = vunpack.c.l.b16 %v6226
        %v6341 = vunpack.c.h.b16 %v6226
        %v6342 = vunpack.c.l.b16 %v6227
        %v6343 = vunpack.c.h.b16 %v6227
        %v6344 = vunpack.c.l.b16 %v6228
        %v6345 = vunpack.c.h.b16 %v6228
        %v6346 = vunpack.c.l.b16 %v6229
        %v6347 = vunpack.c.h.b16 %v6229
        %v6348 = vunpack.c.l.b16 %v6230
        %v6349 = vunpack.c.h.b16 %v6230
        %v6350 = vunpack.c.l.b16 %v6231
        %v6351 = vunpack.c.h.b16 %v6231
        %v6352 = vunpack.c.l.b16 %v6232
        %v6353 = vunpack.c.h.b16 %v6232
        %v6354 = vunpack.c.l.b16 %v6233
        %v6355 = vunpack.c.h.b16 %v6233
        %v6356 = vunpack.c.l.b16 %v6234
        %v6357 = vunpack.c.h.b16 %v6234
        %v6358 = vunpack.c.l.b16 %v6235
        %v6359 = vunpack.c.h.b16 %v6235
        %v6360 = vunpack.c.l.b16 %v6236
        %v6361 = vunpack.c.h.b16 %v6236
        %v6362 = vunpack.c.l.b16 %v6237
        %v6363 = vunpack.c.h.b16 %v6237
        %v6364 = vunpack.c.l.b16 %v6238
        %v6365 = vunpack.c.h.b16 %v6238
        %v6366 = vunpack.c.l.b16 %v6239
        %v6367 = vunpack.c.h.b16 %v6239
        %v6368 = vunpack.c.l.b16 %v6240
        %v6369 = vunpack.c.h.b16 %v6240
        %v6370 = vunpack.c.l.b16 %v6241
        %v6371 = vunpack.c.h.b16 %v6241
        %v6372 = vunpack.c.l.b16 %v6242
        %v6373 = vunpack.c.h.b16 %v6242
        %v6374 = vunpack.c.l.b16 %v6243
        %v6375 = vunpack.c.h.b16 %v6243
        %v6376 = vunpack.c.l.b16 %v6244
        %v6377 = vunpack.c.h.b16 %v6244
        %v6378 = vunpack.c.l.b16 %v6245
        %v6379 = vunpack.c.h.b16 %v6245
        %v6380 = vunpack.c.l.b16 %v6246
        %v6381 = vunpack.c.h.b16 %v6246
        %v6382 = vunpack.c.l.b16 %v6247
        %v6383 = vunpack.c.h.b16 %v6247
        %v6384 = vunpack.c.l.b16 %v6248
        %v6385 = vunpack.c.h.b16 %v6248
        %v6386 = vunpack.c.l.b16 %v6249
        %v6387 = vunpack.c.h.b16 %v6249
        %v6388 = vunpack.c.l.b16 %v6250
        %v6389 = vunpack.c.h.b16 %v6250
        %v6390 = vunpack.c.l.b16 %v6251
        %v6391 = vunpack.c.h.b16 %v6251
        %v6392 = vunpack.c.l.b16 %v6252
        %v6393 = vunpack.c.h.b16 %v6252
        %v6394 = vunpack.c.l.b16 %v6253
        %v6395 = vunpack.c.h.b16 %v6253
        %v6396 = vunpack.c.l.b16 %v6254
        %v6397 = vunpack.c.h.b16 %v6254
        %v6398 = vunpack.c.l.b16 %v6255
        %v6399 = vunpack.c.h.b16 %v6255
        %v6400 = vpack.c.b16 %v6306, %v6304
        %v6401 = vpack.c.b16 %v6307, %v6305
        %v6402 = vpack.c.b16 %v6310, %v6308
        %v6403 = vpack.c.b16 %v6311, %v6309
        %v6404 = vpack.c.b16 %v6314, %v6312
        %v6405 = vpack.c.b16 %v6315, %v6313
        %v6406 = vpack.c.b16 %v6318, %v6316
        %v6407 = vpack.c.b16 %v6319, %v6317
        %v6408 = vpack.c.b16 %v6322, %v6320
        %v6409 = vpack.c.b16 %v6323, %v6321
        %v6410 = vpack.c.b16 %v6326, %v6324
        %v6411 = vpack.c.b16 %v6327, %v6325
        %v6412 = vpack.c.b16 %v6330, %v6328
        %v6413 = vpack.c.b16 %v6331, %v6329
        %v6414 = vpack.c.b16 %v6334, %v6332
        %v6415 = vpack.c.b16 %v6335, %v6333
        %v6416 = vpack.c.b16 %v6338, %v6336
        %v6417 = vpack.c.b16 %v6339, %v6337
        %v6418 = vpack.c.b16 %v6342, %v6340
        %v6419 = vpack.c.b16 %v6343, %v6341
        %v6420 = vpack.c.b16 %v6346, %v6344
        %v6421 = vpack.c.b16 %v6347, %v6345
        %v6422 = vpack.c.b16 %v6350, %v6348
        %v6423 = vpack.c.b16 %v6351, %v6349
        %v6424 = vpack.c.b16 %v6354, %v6352
        %v6425 = vpack.c.b16 %v6355, %v6353
        %v6426 = vpack.c.b16 %v6358, %v6356
        %v6427 = vpack.c.b16 %v6359, %v6357
        %v6428 = vpack.c.b16 %v6362, %v6360
        %v6429 = vpack.c.b16 %v6363, %v6361
        %v6430 = vpack.c.b16 %v6366, %v6364
        %v6431 = vpack.c.b16 %v6367, %v6365
        %v6432 = vpack.c.b16 %v6370, %v6368
        %v6433 = vpack.c.b16 %v6371, %v6369
        %v6434 = vpack.c.b16 %v6374, %v6372
        %v6435 = vpack.c.b16 %v6375, %v6373
        %v6436 = vpack.c.b16 %v6378, %v6376
        %v6437 = vpack.c.b16 %v6379, %v6377
        %v6438 = vpack.c.b16 %v6382, %v6380
        %v6439 = vpack.c.b16 %v6383, %v6381
        %v6440 = vpack.c.b16 %v6386, %v6384
        %v6441 = vpack.c.b16 %v6387, %v6385
        %v6442 = vpack.c.b16 %v6390, %v6388
        %v6443 = vpack.c.b16 %v6391, %v6389
        %v6444 = vpack.c.b16 %v6394, %v6392
        %v6445 = vpack.c.b16 %v6395, %v6393
        %v6446 = vpack.c.b16 %v6398, %v6396
        %v6447 = vpack.c.b16 %v6399, %v6397
        %6496 = vmatprep.subr.bf16.mxu0 %v6401
        %6497 = vmatpush1.bf16.msra.mxu0 %v6400
        %6498 = vmatprep.subr.bf16.mxu0 %v6403
        %6499 = vmatpush1.bf16.msra.mxu0 %v6402
        %6500 = vmatprep.subr.bf16.mxu0 %v6405
        %6501 = vmatpush1.bf16.msra.mxu0 %v6404
        %6502 = vmatprep.subr.bf16.mxu0 %v6407
        %6503 = vmatpush1.bf16.msra.mxu0 %v6406
        %6504 = vmatprep.subr.bf16.mxu0 %v6409
        %6505 = vmatpush1.bf16.msra.mxu0 %v6408
        %6506 = vmatprep.subr.bf16.mxu0 %v6411
        %6507 = vmatpush1.bf16.msra.mxu0 %v6410
        %6508 = vmatprep.subr.bf16.mxu0 %v6413
        %6509 = vmatpush1.bf16.msra.mxu0 %v6412
        %6510 = vmatprep.subr.bf16.mxu0 %v6415
        %6511 = vmatpush1.bf16.msra.mxu0 %v6414
        %6512 = vmatprep.subr.bf16.mxu0 %v6417
        %6513 = vmatpush1.bf16.msra.mxu0 %v6416
        %6514 = vmatprep.subr.bf16.mxu0 %v6419
        %6515 = vmatpush1.bf16.msra.mxu0 %v6418
        %6516 = vmatprep.subr.bf16.mxu0 %v6421
        %6517 = vmatpush1.bf16.msra.mxu0 %v6420
        %6518 = vmatprep.subr.bf16.mxu0 %v6423
        %6519 = vmatpush1.bf16.msra.mxu0 %v6422
        %6520 = vmatprep.subr.bf16.mxu0 %v6425
        %6521 = vmatpush1.bf16.msra.mxu0 %v6424
        %6522 = vmatprep.subr.bf16.mxu0 %v6427
        %6523 = vmatpush1.bf16.msra.mxu0 %v6426
        %6524 = vmatprep.subr.bf16.mxu0 %v6429
        %6525 = vmatpush1.bf16.msra.mxu0 %v6428
        %6526 = vmatprep.subr.bf16.mxu0 %v6431
        %6527 = vmatpush1.bf16.msra.mxu0 %v6430
        %6528 = vmatprep.mubr.bf16.mxu0 %v6205
        %6529 = vmatmul.mubr.bf16.gmra.mrb[0].mxu0 %v6204
        %v6530 = vpop.f32.mrb[0].mxu0
        %v6531 = vadd.f32 0.0, %v6530
        %v6532 = vpop.f32.mrb[0].mxu0
        %v6533 = vadd.f32 0.0, %v6532
        %v6534 = vpop.f32.mrb[0].mxu0
        %v6535 = vpop.f32.mrb[0].mxu0
        %6536 = vdwg.mxu0
        %6537 = vmatprep.subr.bf16.mxu0 %v6433
        %6538 = vmatpush1.bf16.msra.mxu0 %v6432
        %6539 = vmatprep.subr.bf16.mxu0 %v6435
        %6540 = vmatpush1.bf16.msra.mxu0 %v6434
        %6541 = vmatprep.subr.bf16.mxu0 %v6437
        %6542 = vmatpush1.bf16.msra.mxu0 %v6436
        %6543 = vmatprep.subr.bf16.mxu0 %v6439
        %6544 = vmatpush1.bf16.msra.mxu0 %v6438
        %6545 = vmatprep.subr.bf16.mxu0 %v6441
        %6546 = vmatpush1.bf16.msra.mxu0 %v6440
        %6547 = vmatprep.subr.bf16.mxu0 %v6443
        %6548 = vmatpush1.bf16.msra.mxu0 %v6442
        %6549 = vmatprep.subr.bf16.mxu0 %v6445
        %6550 = vmatpush1.bf16.msra.mxu0 %v6444
        %6551 = vmatprep.subr.bf16.mxu0 %v6447
        %6552 = vmatpush1.bf16.msra.mxu0 %v6446
        %6553 = vmatprep.subr.bf16.mxu0 0
        %6554 = vmatpush1.bf16.msra.mxu0 0
        %6555 = vmatprep.subr.bf16.mxu0 0
        %6556 = vmatpush1.bf16.msra.mxu0 0
        %6557 = vmatprep.subr.bf16.mxu0 0
        %6558 = vmatpush1.bf16.msra.mxu0 0
        %6559 = vmatprep.subr.bf16.mxu0 0
        %6560 = vmatpush1.bf16.msra.mxu0 0
        %6561 = vmatprep.subr.bf16.mxu0 0
        %6562 = vmatpush1.bf16.msra.mxu0 0
        %6563 = vmatprep.subr.bf16.mxu0 0
        %6564 = vmatpush1.bf16.msra.mxu0 0
        %6565 = vmatprep.subr.bf16.mxu0 0
        %6566 = vmatpush1.bf16.msra.mxu0 0
        %6567 = vmatprep.subr.bf16.mxu0 0
        %6568 = vmatpush1.bf16.msra.mxu0 0
        %6569 = vmatprep.mubr.bf16.mxu0 0
        %6570 = vmatmul.mubr.bf16.gmra.mrb[0].mxu0 %v6206
        %v6571 = vpop.f32.mrb[0].mxu0
        %v6572 = vadd.f32 %v6531, %v6571
        %v6573 = vpop.f32.mrb[0].mxu0
        %v6574 = vadd.f32 %v6533, %v6573
        %v6575 = vpop.f32.mrb[0].mxu0
        %v6576 = vpop.f32.mrb[0].mxu0
        %6577 = vdwg.mxu0
        %v6578 = vadd.f32 %v6202, %v6572
        %v6579 = vadd.f32 %v6203, %v6574
        %6580 = vst [vmem:[#allocation2] sm:$0xff] %v6578
        %6581 = vst [vmem:[#allocation2 + $0x8] sm:$0xff] %v6579
        %s6582 = scalar_lea.vmem %s320, 72 [#allocation3]
        %v6583 = vld [vmem:[%s6582] sm:$0xff]
        %v6584 = vld [vmem:[%s1] sm:$0xff]
        %v6585 = vld [vmem:[%s1 + $0x8] sm:$0xf]
        %v6586 = vld [vmem:[%s1 + $0xc] sm:$0xff]
        %v6587 = vld [vmem:[%s1 + $0x14] sm:$0xf]
        %v6588 = vld [vmem:[%s1 + $0x18] sm:$0xff]
        %v6589 = vld [vmem:[%s1 + $0x20] sm:$0xf]
        %v6590 = vld [vmem:[%s1 + $0x24] sm:$0xff]
        %v6591 = vld [vmem:[%s1 + $0x2c] sm:$0xf]
        %v6592 = vld [vmem:[%s1 + $0x30] sm:$0xff]
        %v6593 = vld [vmem:[%s1 + $0x38] sm:$0xf]
        %v6594 = vld [vmem:[%s1 + $0x3c] sm:$0xff]
        %v6595 = vld [vmem:[%s1 + $0x44] sm:$0xf]
        %v6596 = vld [vmem:[%s1 + $0x48] sm:$0xff]
        %v6597 = vld [vmem:[%s1 + $0x50] sm:$0xf]
        %v6598 = vld [vmem:[%s1 + $0x54] sm:$0xff]
        %v6599 = vld [vmem:[%s1 + $0x5c] sm:$0xf]
        %v6600 = vld [vmem:[%s1 + $0x60] sm:$0xff]
        %v6601 = vld [vmem:[%s1 + $0x68] sm:$0xf]
        %v6602 = vld [vmem:[%s1 + $0x6c] sm:$0xff]
        %v6603 = vld [vmem:[%s1 + $0x74] sm:$0xf]
        %v6604 = vld [vmem:[%s1 + $0x78] sm:$0xff]
        %v6605 = vld [vmem:[%s1 + $0x80] sm:$0xf]
        %v6606 = vld [vmem:[%s1 + $0x84] sm:$0xff]
        %v6607 = vld [vmem:[%s1 + $0x8c] sm:$0xf]
        %v6608 = vld [vmem:[%s1 + $0x90] sm:$0xff]
        %v6609 = vld [vmem:[%s1 + $0x98] sm:$0xf]
        %v6610 = vld [vmem:[%s1 + $0x9c] sm:$0xff]
        %v6611 = vld [vmem:[%s1 + $0xa4] sm:$0xf]
        %v6612 = vld [vmem:[%s1 + $0xa8] sm:$0xff]
        %v6613 = vld [vmem:[%s1 + $0xb0] sm:$0xf]
        %v6614 = vld [vmem:[%s1 + $0xb4] sm:$0xff]
        %v6615 = vld [vmem:[%s1 + $0xbc] sm:$0xf]
        %v6616 = vld [vmem:[%s1 + $0xc0] sm:$0xff]
        %v6617 = vld [vmem:[%s1 + $0xc8] sm:$0xf]
        %v6618 = vld [vmem:[%s1 + $0xcc] sm:$0xff]
        %v6619 = vld [vmem:[%s1 + $0xd4] sm:$0xf]
        %v6620 = vld [vmem:[%s1 + $0xd8] sm:$0xff]
        %v6621 = vld [vmem:[%s1 + $0xe0] sm:$0xf]
        %v6622 = vld [vmem:[%s1 + $0xe4] sm:$0xff]
        %v6623 = vld [vmem:[%s1 + $0xec] sm:$0xf]
        %v6624 = vld [vmem:[%s2] sm:$0x7]
        %v6626 = vlaneseq
        %v6627 = vshrl.u32 %v6626, 7
        %v6628 = vsub.s32 0, %v6627
        %v6629 = vrot.slane %v6624, %v6628
        %v6630 = vlaneseq
        %v6631 = vshrl.u32 %v6630, 7
        %v6632 = vsub.s32 1, %v6631
        %v6633 = vrot.slane %v6624, %v6632
        %v6634 = vlaneseq
        %v6635 = vshrl.u32 %v6634, 7
        %v6636 = vsub.s32 2, %v6635
        %v6637 = vrot.slane %v6624, %v6636
        %v6642 = vunpack.c.l.b16 %v6583
        %v6643 = vunpack.c.h.b16 %v6583
        %v6644 = vpack.c.b16 %v6642, %v6642
        %v6645 = vpack.c.b16 %v6643, %v6643
        %v6687 = vunpack.c.l.b16 %v6584
        %v6688 = vunpack.c.h.b16 %v6584
        %v6689 = vunpack.c.l.b16 %v6585
        %v6690 = vunpack.c.l.b16 %v6586
        %v6691 = vunpack.c.h.b16 %v6586
        %v6692 = vunpack.c.l.b16 %v6587
        %v6693 = vunpack.c.l.b16 %v6588
        %v6694 = vunpack.c.h.b16 %v6588
        %v6695 = vunpack.c.l.b16 %v6589
        %v6696 = vunpack.c.l.b16 %v6590
        %v6697 = vunpack.c.h.b16 %v6590
        %v6698 = vunpack.c.l.b16 %v6591
        %v6699 = vunpack.c.l.b16 %v6592
        %v6700 = vunpack.c.h.b16 %v6592
        %v6701 = vunpack.c.l.b16 %v6593
        %v6702 = vunpack.c.l.b16 %v6594
        %v6703 = vunpack.c.h.b16 %v6594
        %v6704 = vunpack.c.l.b16 %v6595
        %v6705 = vunpack.c.l.b16 %v6596
        %v6706 = vunpack.c.h.b16 %v6596
        %v6707 = vunpack.c.l.b16 %v6597
        %v6708 = vunpack.c.l.b16 %v6598
        %v6709 = vunpack.c.h.b16 %v6598
        %v6710 = vunpack.c.l.b16 %v6599
        %v6711 = vunpack.c.l.b16 %v6600
        %v6712 = vunpack.c.h.b16 %v6600
        %v6713 = vunpack.c.l.b16 %v6601
        %v6714 = vunpack.c.l.b16 %v6602
        %v6715 = vunpack.c.h.b16 %v6602
        %v6716 = vunpack.c.l.b16 %v6603
        %v6717 = vunpack.c.l.b16 %v6604
        %v6718 = vunpack.c.h.b16 %v6604
        %v6719 = vunpack.c.l.b16 %v6605
        %v6720 = vunpack.c.l.b16 %v6606
        %v6721 = vunpack.c.h.b16 %v6606
        %v6722 = vunpack.c.l.b16 %v6607
        %v6723 = vunpack.c.l.b16 %v6608
        %v6724 = vunpack.c.h.b16 %v6608
        %v6725 = vunpack.c.l.b16 %v6609
        %v6726 = vunpack.c.l.b16 %v6610
        %v6727 = vunpack.c.h.b16 %v6610
        %v6728 = vunpack.c.l.b16 %v6611
        %v6729 = vunpack.c.l.b16 %v6612
        %v6730 = vunpack.c.h.b16 %v6612
        %v6731 = vunpack.c.l.b16 %v6613
        %v6732 = vunpack.c.l.b16 %v6614
        %v6733 = vunpack.c.h.b16 %v6614
        %v6734 = vunpack.c.l.b16 %v6615
        %v6735 = vunpack.c.l.b16 %v6616
        %v6736 = vunpack.c.h.b16 %v6616
        %v6737 = vunpack.c.l.b16 %v6617
        %v6738 = vunpack.c.l.b16 %v6618
        %v6739 = vunpack.c.h.b16 %v6618
        %v6740 = vunpack.c.l.b16 %v6619
        %v6741 = vunpack.c.l.b16 %v6620
        %v6742 = vunpack.c.h.b16 %v6620
        %v6743 = vunpack.c.l.b16 %v6621
        %v6744 = vunpack.c.l.b16 %v6622
        %v6745 = vunpack.c.h.b16 %v6622
        %v6746 = vunpack.c.l.b16 %v6623
        %v6747 = vpack.c.b16 %v6690, %v6687
        %v6748 = vpack.c.b16 %v6691, %v6688
        %v6749 = vpack.c.b16 %v6692, %v6689
        %v6750 = vpack.c.b16 %v6696, %v6693
        %v6751 = vpack.c.b16 %v6697, %v6694
        %v6752 = vpack.c.b16 %v6698, %v6695
        %v6753 = vpack.c.b16 %v6702, %v6699
        %v6754 = vpack.c.b16 %v6703, %v6700
        %v6755 = vpack.c.b16 %v6704, %v6701
        %v6756 = vpack.c.b16 %v6708, %v6705
        %v6757 = vpack.c.b16 %v6709, %v6706
        %v6758 = vpack.c.b16 %v6710, %v6707
        %v6759 = vpack.c.b16 %v6714, %v6711
        %v6760 = vpack.c.b16 %v6715, %v6712
        %v6761 = vpack.c.b16 %v6716, %v6713
        %v6762 = vpack.c.b16 %v6720, %v6717
        %v6763 = vpack.c.b16 %v6721, %v6718
        %v6764 = vpack.c.b16 %v6722, %v6719
        %v6765 = vpack.c.b16 %v6726, %v6723
        %v6766 = vpack.c.b16 %v6727, %v6724
        %v6767 = vpack.c.b16 %v6728, %v6725
        %v6768 = vpack.c.b16 %v6732, %v6729
        %v6769 = vpack.c.b16 %v6733, %v6730
        %v6770 = vpack.c.b16 %v6734, %v6731
        %v6771 = vpack.c.b16 %v6738, %v6735
        %v6772 = vpack.c.b16 %v6739, %v6736
        %v6773 = vpack.c.b16 %v6740, %v6737
        %v6774 = vpack.c.b16 %v6744, %v6741
        %v6775 = vpack.c.b16 %v6745, %v6742
        %v6776 = vpack.c.b16 %v6746, %v6743
        %v6808 = vsel %vm579, %v6645, 0
        %6810 = vmatprep.subr.bf16.mxu0 %v6748
        %6811 = vmatpush1.bf16.msra.mxu0 %v6747
        %6812 = vmatprep.subr.bf16.mxu0 %v6751
        %6813 = vmatpush1.bf16.msra.mxu0 %v6750
        %6814 = vmatprep.subr.bf16.mxu0 %v6754
        %6815 = vmatpush1.bf16.msra.mxu0 %v6753
        %6816 = vmatprep.subr.bf16.mxu0 %v6757
        %6817 = vmatpush1.bf16.msra.mxu0 %v6756
        %6818 = vmatprep.subr.bf16.mxu0 %v6760
        %6819 = vmatpush1.bf16.msra.mxu0 %v6759
        %6820 = vmatprep.subr.bf16.mxu0 %v6763
        %6821 = vmatpush1.bf16.msra.mxu0 %v6762
        %6822 = vmatprep.subr.bf16.mxu0 %v6766
        %6823 = vmatpush1.bf16.msra.mxu0 %v6765
        %6824 = vmatprep.subr.bf16.mxu0 %v6769
        %6825 = vmatpush1.bf16.msra.mxu0 %v6768
        %6826 = vmatprep.subr.bf16.mxu0 %v6772
        %6827 = vmatpush1.bf16.msra.mxu0 %v6771
        %6828 = vmatprep.subr.bf16.mxu0 %v6775
        %6829 = vmatpush1.bf16.msra.mxu0 %v6774
        %6830 = vmatprep.subr.bf16.mxu0 0
        %6831 = vmatpush1.bf16.msra.mxu0 0
        %6832 = vmatprep.subr.bf16.mxu0 0
        %6833 = vmatpush1.bf16.msra.mxu0 0
        %6834 = vmatprep.subr.bf16.mxu0 0
        %6835 = vmatpush1.bf16.msra.mxu0 0
        %6836 = vmatprep.subr.bf16.mxu0 0
        %6837 = vmatpush1.bf16.msra.mxu0 0
        %6838 = vmatprep.subr.bf16.mxu0 0
        %6839 = vmatpush1.bf16.msra.mxu0 0
        %6840 = vmatprep.subr.bf16.mxu0 0
        %6841 = vmatpush1.bf16.msra.mxu0 0
        %6842 = vmatprep.mubr.bf16.mxu0 %v6808
        %6843 = vmatmul.mubr.bf16.gmra.mrb[0].mxu0 %v6644
        %v6844 = vpop.f32.mrb[0].mxu0
        %v6845 = vadd.f32 %v6629, %v6844
        %v6846 = vpop.f32.mrb[0].mxu0
        %v6847 = vadd.f32 %v6633, %v6846
        %v6848 = vpop.f32.mrb[0].mxu0
        %v6849 = vpop.f32.mrb[0].mxu0
        %6850 = vdwg.mxu0
        %6851 = vmatprep.subr.bf16.mxu0 0
        %6852 = vmatpush1.bf16.msra.mxu0 %v6749
        %6853 = vmatprep.subr.bf16.mxu0 0
        %6854 = vmatpush1.bf16.msra.mxu0 %v6752
        %6855 = vmatprep.subr.bf16.mxu0 0
        %6856 = vmatpush1.bf16.msra.mxu0 %v6755
        %6857 = vmatprep.subr.bf16.mxu0 0
        %6858 = vmatpush1.bf16.msra.mxu0 %v6758
        %6859 = vmatprep.subr.bf16.mxu0 0
        %6860 = vmatpush1.bf16.msra.mxu0 %v6761
        %6861 = vmatprep.subr.bf16.mxu0 0
        %6862 = vmatpush1.bf16.msra.mxu0 %v6764
        %6863 = vmatprep.subr.bf16.mxu0 0
        %6864 = vmatpush1.bf16.msra.mxu0 %v6767
        %6865 = vmatprep.subr.bf16.mxu0 0
        %6866 = vmatpush1.bf16.msra.mxu0 %v6770
        %6867 = vmatprep.subr.bf16.mxu0 0
        %6868 = vmatpush1.bf16.msra.mxu0 %v6773
        %6869 = vmatprep.subr.bf16.mxu0 0
        %6870 = vmatpush1.bf16.msra.mxu0 %v6776
        %6871 = vmatprep.subr.bf16.mxu0 0
        %6872 = vmatpush1.bf16.msra.mxu0 0
        %6873 = vmatprep.subr.bf16.mxu0 0
        %6874 = vmatpush1.bf16.msra.mxu0 0
        %6875 = vmatprep.subr.bf16.mxu0 0
        %6876 = vmatpush1.bf16.msra.mxu0 0
        %6877 = vmatprep.subr.bf16.mxu0 0
        %6878 = vmatpush1.bf16.msra.mxu0 0
        %6879 = vmatprep.subr.bf16.mxu0 0
        %6880 = vmatpush1.bf16.msra.mxu0 0
        %6881 = vmatprep.subr.bf16.mxu0 0
        %6882 = vmatpush1.bf16.msra.mxu0 0
        %6883 = vmatprep.mubr.bf16.mxu0 %v6808
        %6884 = vmatmul.mubr.bf16.gmra.mrb[0].mxu0 %v6644
        %v6885 = vpop.f32.mrb[0].mxu0
        %v6886 = vadd.f32 %v6637, %v6885
        %v6887 = vpop.f32.mrb[0].mxu0
        %v6888 = vpop.f32.mrb[0].mxu0
        %v6889 = vpop.f32.mrb[0].mxu0
        %6890 = vdwg.mxu0
        %v6891 = vmax.f32 %v6845, 0.0
        %v6892 = vmax.f32 %v6847, 0.0
        %v6893 = vmax.f32 %v6886, 0.0
        %v6894 = vld [vmem:[#allocation2] sm:$0xff]
        %v6895 = vld [vmem:[#allocation2 + $0x8] sm:$0xff]
        %v6896 = vpack.c.bf16 %v6891, %v6891
        %v6897 = vpack.c.bf16 %v6892, %v6892
        %v6898 = vpack.c.bf16 %v6893, %v6893
        %s6899 = scalar_lea.vmem %s3, 3456
        %v6900 = vld [vmem:[%s6899] sm:$0xff]
        %v6901 = vld [vmem:[%s6899 + $0x8] sm:$0xff]
        %v6902 = vld [vmem:[%s6899 + $0x10] sm:$0xff]
        %v6903 = vld [vmem:[%s6899 + $0x18] sm:$0xff]
        %v6904 = vld [vmem:[%s6899 + $0x20] sm:$0xff]
        %v6905 = vld [vmem:[%s6899 + $0x28] sm:$0xff]
        %v6906 = vld [vmem:[%s6899 + $0x30] sm:$0xff]
        %v6907 = vld [vmem:[%s6899 + $0x38] sm:$0xff]
        %v6908 = vld [vmem:[%s6899 + $0x40] sm:$0xff]
        %v6909 = vld [vmem:[%s6899 + $0x48] sm:$0xff]
        %v6910 = vld [vmem:[%s6899 + $0x50] sm:$0xff]
        %v6911 = vld [vmem:[%s6899 + $0x58] sm:$0xff]
        %v6912 = vld [vmem:[%s6899 + $0x60] sm:$0xff]
        %v6913 = vld [vmem:[%s6899 + $0x68] sm:$0xff]
        %v6914 = vld [vmem:[%s6899 + $0x70] sm:$0xff]
        %v6915 = vld [vmem:[%s6899 + $0x78] sm:$0xff]
        %v6916 = vld [vmem:[%s6899 + $0x80] sm:$0xff]
        %v6917 = vld [vmem:[%s6899 + $0x88] sm:$0xff]
        %v6918 = vld [vmem:[%s6899 + $0x90] sm:$0xff]
        %v6919 = vld [vmem:[%s6899 + $0x98] sm:$0xff]
        %v6920 = vld [vmem:[%s6899 + $0xa0] sm:$0xff]
        %v6921 = vld [vmem:[%s6899 + $0xa8] sm:$0xff]
        %v6922 = vld [vmem:[%s6899 + $0xb0] sm:$0xff]
        %v6923 = vld [vmem:[%s6899 + $0xb8] sm:$0xff]
        %v6924 = vld [vmem:[%s6899 + $0xc0] sm:$0xff]
        %v6925 = vld [vmem:[%s6899 + $0xc8] sm:$0xff]
        %v6926 = vld [vmem:[%s6899 + $0xd0] sm:$0xff]
        %v6927 = vld [vmem:[%s6899 + $0xd8] sm:$0xff]
        %v6928 = vld [vmem:[%s6899 + $0xe0] sm:$0xff]
        %v6929 = vld [vmem:[%s6899 + $0xe8] sm:$0xff]
        %v6930 = vld [vmem:[%s6899 + $0xf0] sm:$0xff]
        %v6931 = vld [vmem:[%s6899 + $0xf8] sm:$0xff]
        %v6932 = vld [vmem:[%s6899 + $0x100] sm:$0xff]
        %v6933 = vld [vmem:[%s6899 + $0x108] sm:$0xff]
        %v6934 = vld [vmem:[%s6899 + $0x110] sm:$0xff]
        %v6935 = vld [vmem:[%s6899 + $0x118] sm:$0xff]
        %v6936 = vld [vmem:[%s6899 + $0x120] sm:$0xff]
        %v6937 = vld [vmem:[%s6899 + $0x128] sm:$0xff]
        %v6938 = vld [vmem:[%s6899 + $0x130] sm:$0xff]
        %v6939 = vld [vmem:[%s6899 + $0x138] sm:$0xff]
        %v6940 = vld [vmem:[%s6899 + $0x140] sm:$0xff]
        %v6941 = vld [vmem:[%s6899 + $0x148] sm:$0xff]
        %v6942 = vld [vmem:[%s6899 + $0x150] sm:$0xff]
        %v6943 = vld [vmem:[%s6899 + $0x158] sm:$0xff]
        %v6944 = vld [vmem:[%s6899 + $0x160] sm:$0xff]
        %v6945 = vld [vmem:[%s6899 + $0x168] sm:$0xff]
        %v6946 = vld [vmem:[%s6899 + $0x170] sm:$0xff]
        %v6947 = vld [vmem:[%s6899 + $0x178] sm:$0xff]
        %v6996 = vunpack.c.l.b16 %v6900
        %v6997 = vunpack.c.h.b16 %v6900
        %v6998 = vunpack.c.l.b16 %v6901
        %v6999 = vunpack.c.h.b16 %v6901
        %v7000 = vunpack.c.l.b16 %v6902
        %v7001 = vunpack.c.h.b16 %v6902
        %v7002 = vunpack.c.l.b16 %v6903
        %v7003 = vunpack.c.h.b16 %v6903
        %v7004 = vunpack.c.l.b16 %v6904
        %v7005 = vunpack.c.h.b16 %v6904
        %v7006 = vunpack.c.l.b16 %v6905
        %v7007 = vunpack.c.h.b16 %v6905
        %v7008 = vunpack.c.l.b16 %v6906
        %v7009 = vunpack.c.h.b16 %v6906
        %v7010 = vunpack.c.l.b16 %v6907
        %v7011 = vunpack.c.h.b16 %v6907
        %v7012 = vunpack.c.l.b16 %v6908
        %v7013 = vunpack.c.h.b16 %v6908
        %v7014 = vunpack.c.l.b16 %v6909
        %v7015 = vunpack.c.h.b16 %v6909
        %v7016 = vunpack.c.l.b16 %v6910
        %v7017 = vunpack.c.h.b16 %v6910
        %v7018 = vunpack.c.l.b16 %v6911
        %v7019 = vunpack.c.h.b16 %v6911
        %v7020 = vunpack.c.l.b16 %v6912
        %v7021 = vunpack.c.h.b16 %v6912
        %v7022 = vunpack.c.l.b16 %v6913
        %v7023 = vunpack.c.h.b16 %v6913
        %v7024 = vunpack.c.l.b16 %v6914
        %v7025 = vunpack.c.h.b16 %v6914
        %v7026 = vunpack.c.l.b16 %v6915
        %v7027 = vunpack.c.h.b16 %v6915
        %v7028 = vunpack.c.l.b16 %v6916
        %v7029 = vunpack.c.h.b16 %v6916
        %v7030 = vunpack.c.l.b16 %v6917
        %v7031 = vunpack.c.h.b16 %v6917
        %v7032 = vunpack.c.l.b16 %v6918
        %v7033 = vunpack.c.h.b16 %v6918
        %v7034 = vunpack.c.l.b16 %v6919
        %v7035 = vunpack.c.h.b16 %v6919
        %v7036 = vunpack.c.l.b16 %v6920
        %v7037 = vunpack.c.h.b16 %v6920
        %v7038 = vunpack.c.l.b16 %v6921
        %v7039 = vunpack.c.h.b16 %v6921
        %v7040 = vunpack.c.l.b16 %v6922
        %v7041 = vunpack.c.h.b16 %v6922
        %v7042 = vunpack.c.l.b16 %v6923
        %v7043 = vunpack.c.h.b16 %v6923
        %v7044 = vunpack.c.l.b16 %v6924
        %v7045 = vunpack.c.h.b16 %v6924
        %v7046 = vunpack.c.l.b16 %v6925
        %v7047 = vunpack.c.h.b16 %v6925
        %v7048 = vunpack.c.l.b16 %v6926
        %v7049 = vunpack.c.h.b16 %v6926
        %v7050 = vunpack.c.l.b16 %v6927
        %v7051 = vunpack.c.h.b16 %v6927
        %v7052 = vunpack.c.l.b16 %v6928
        %v7053 = vunpack.c.h.b16 %v6928
        %v7054 = vunpack.c.l.b16 %v6929
        %v7055 = vunpack.c.h.b16 %v6929
        %v7056 = vunpack.c.l.b16 %v6930
        %v7057 = vunpack.c.h.b16 %v6930
        %v7058 = vunpack.c.l.b16 %v6931
        %v7059 = vunpack.c.h.b16 %v6931
        %v7060 = vunpack.c.l.b16 %v6932
        %v7061 = vunpack.c.h.b16 %v6932
        %v7062 = vunpack.c.l.b16 %v6933
        %v7063 = vunpack.c.h.b16 %v6933
        %v7064 = vunpack.c.l.b16 %v6934
        %v7065 = vunpack.c.h.b16 %v6934
        %v7066 = vunpack.c.l.b16 %v6935
        %v7067 = vunpack.c.h.b16 %v6935
        %v7068 = vunpack.c.l.b16 %v6936
        %v7069 = vunpack.c.h.b16 %v6936
        %v7070 = vunpack.c.l.b16 %v6937
        %v7071 = vunpack.c.h.b16 %v6937
        %v7072 = vunpack.c.l.b16 %v6938
        %v7073 = vunpack.c.h.b16 %v6938
        %v7074 = vunpack.c.l.b16 %v6939
        %v7075 = vunpack.c.h.b16 %v6939
        %v7076 = vunpack.c.l.b16 %v6940
        %v7077 = vunpack.c.h.b16 %v6940
        %v7078 = vunpack.c.l.b16 %v6941
        %v7079 = vunpack.c.h.b16 %v6941
        %v7080 = vunpack.c.l.b16 %v6942
        %v7081 = vunpack.c.h.b16 %v6942
        %v7082 = vunpack.c.l.b16 %v6943
        %v7083 = vunpack.c.h.b16 %v6943
        %v7084 = vunpack.c.l.b16 %v6944
        %v7085 = vunpack.c.h.b16 %v6944
        %v7086 = vunpack.c.l.b16 %v6945
        %v7087 = vunpack.c.h.b16 %v6945
        %v7088 = vunpack.c.l.b16 %v6946
        %v7089 = vunpack.c.h.b16 %v6946
        %v7090 = vunpack.c.l.b16 %v6947
        %v7091 = vunpack.c.h.b16 %v6947
        %v7092 = vpack.c.b16 %v6998, %v6996
        %v7093 = vpack.c.b16 %v6999, %v6997
        %v7094 = vpack.c.b16 %v7002, %v7000
        %v7095 = vpack.c.b16 %v7003, %v7001
        %v7096 = vpack.c.b16 %v7006, %v7004
        %v7097 = vpack.c.b16 %v7007, %v7005
        %v7098 = vpack.c.b16 %v7010, %v7008
        %v7099 = vpack.c.b16 %v7011, %v7009
        %v7100 = vpack.c.b16 %v7014, %v7012
        %v7101 = vpack.c.b16 %v7015, %v7013
        %v7102 = vpack.c.b16 %v7018, %v7016
        %v7103 = vpack.c.b16 %v7019, %v7017
        %v7104 = vpack.c.b16 %v7022, %v7020
        %v7105 = vpack.c.b16 %v7023, %v7021
        %v7106 = vpack.c.b16 %v7026, %v7024
        %v7107 = vpack.c.b16 %v7027, %v7025
        %v7108 = vpack.c.b16 %v7030, %v7028
        %v7109 = vpack.c.b16 %v7031, %v7029
        %v7110 = vpack.c.b16 %v7034, %v7032
        %v7111 = vpack.c.b16 %v7035, %v7033
        %v7112 = vpack.c.b16 %v7038, %v7036
        %v7113 = vpack.c.b16 %v7039, %v7037
        %v7114 = vpack.c.b16 %v7042, %v7040
        %v7115 = vpack.c.b16 %v7043, %v7041
        %v7116 = vpack.c.b16 %v7046, %v7044
        %v7117 = vpack.c.b16 %v7047, %v7045
        %v7118 = vpack.c.b16 %v7050, %v7048
        %v7119 = vpack.c.b16 %v7051, %v7049
        %v7120 = vpack.c.b16 %v7054, %v7052
        %v7121 = vpack.c.b16 %v7055, %v7053
        %v7122 = vpack.c.b16 %v7058, %v7056
        %v7123 = vpack.c.b16 %v7059, %v7057
        %v7124 = vpack.c.b16 %v7062, %v7060
        %v7125 = vpack.c.b16 %v7063, %v7061
        %v7126 = vpack.c.b16 %v7066, %v7064
        %v7127 = vpack.c.b16 %v7067, %v7065
        %v7128 = vpack.c.b16 %v7070, %v7068
        %v7129 = vpack.c.b16 %v7071, %v7069
        %v7130 = vpack.c.b16 %v7074, %v7072
        %v7131 = vpack.c.b16 %v7075, %v7073
        %v7132 = vpack.c.b16 %v7078, %v7076
        %v7133 = vpack.c.b16 %v7079, %v7077
        %v7134 = vpack.c.b16 %v7082, %v7080
        %v7135 = vpack.c.b16 %v7083, %v7081
        %v7136 = vpack.c.b16 %v7086, %v7084
        %v7137 = vpack.c.b16 %v7087, %v7085
        %v7138 = vpack.c.b16 %v7090, %v7088
        %v7139 = vpack.c.b16 %v7091, %v7089
        %7188 = vmatprep.subr.bf16.mxu0 %v7093
        %7189 = vmatpush1.bf16.msra.mxu0 %v7092
        %7190 = vmatprep.subr.bf16.mxu0 %v7095
        %7191 = vmatpush1.bf16.msra.mxu0 %v7094
        %7192 = vmatprep.subr.bf16.mxu0 %v7097
        %7193 = vmatpush1.bf16.msra.mxu0 %v7096
        %7194 = vmatprep.subr.bf16.mxu0 %v7099
        %7195 = vmatpush1.bf16.msra.mxu0 %v7098
        %7196 = vmatprep.subr.bf16.mxu0 %v7101
        %7197 = vmatpush1.bf16.msra.mxu0 %v7100
        %7198 = vmatprep.subr.bf16.mxu0 %v7103
        %7199 = vmatpush1.bf16.msra.mxu0 %v7102
        %7200 = vmatprep.subr.bf16.mxu0 %v7105
        %7201 = vmatpush1.bf16.msra.mxu0 %v7104
        %7202 = vmatprep.subr.bf16.mxu0 %v7107
        %7203 = vmatpush1.bf16.msra.mxu0 %v7106
        %7204 = vmatprep.subr.bf16.mxu0 %v7109
        %7205 = vmatpush1.bf16.msra.mxu0 %v7108
        %7206 = vmatprep.subr.bf16.mxu0 %v7111
        %7207 = vmatpush1.bf16.msra.mxu0 %v7110
        %7208 = vmatprep.subr.bf16.mxu0 %v7113
        %7209 = vmatpush1.bf16.msra.mxu0 %v7112
        %7210 = vmatprep.subr.bf16.mxu0 %v7115
        %7211 = vmatpush1.bf16.msra.mxu0 %v7114
        %7212 = vmatprep.subr.bf16.mxu0 %v7117
        %7213 = vmatpush1.bf16.msra.mxu0 %v7116
        %7214 = vmatprep.subr.bf16.mxu0 %v7119
        %7215 = vmatpush1.bf16.msra.mxu0 %v7118
        %7216 = vmatprep.subr.bf16.mxu0 %v7121
        %7217 = vmatpush1.bf16.msra.mxu0 %v7120
        %7218 = vmatprep.subr.bf16.mxu0 %v7123
        %7219 = vmatpush1.bf16.msra.mxu0 %v7122
        %7220 = vmatprep.mubr.bf16.mxu0 %v6897
        %7221 = vmatmul.mubr.bf16.gmra.mrb[0].mxu0 %v6896
        %v7222 = vpop.f32.mrb[0].mxu0
        %v7223 = vadd.f32 0.0, %v7222
        %v7224 = vpop.f32.mrb[0].mxu0
        %v7225 = vadd.f32 0.0, %v7224
        %v7226 = vpop.f32.mrb[0].mxu0
        %v7227 = vpop.f32.mrb[0].mxu0
        %7228 = vdwg.mxu0
        %7229 = vmatprep.subr.bf16.mxu0 %v7125
        %7230 = vmatpush1.bf16.msra.mxu0 %v7124
        %7231 = vmatprep.subr.bf16.mxu0 %v7127
        %7232 = vmatpush1.bf16.msra.mxu0 %v7126
        %7233 = vmatprep.subr.bf16.mxu0 %v7129
        %7234 = vmatpush1.bf16.msra.mxu0 %v7128
        %7235 = vmatprep.subr.bf16.mxu0 %v7131
        %7236 = vmatpush1.bf16.msra.mxu0 %v7130
        %7237 = vmatprep.subr.bf16.mxu0 %v7133
        %7238 = vmatpush1.bf16.msra.mxu0 %v7132
        %7239 = vmatprep.subr.bf16.mxu0 %v7135
        %7240 = vmatpush1.bf16.msra.mxu0 %v7134
        %7241 = vmatprep.subr.bf16.mxu0 %v7137
        %7242 = vmatpush1.bf16.msra.mxu0 %v7136
        %7243 = vmatprep.subr.bf16.mxu0 %v7139
        %7244 = vmatpush1.bf16.msra.mxu0 %v7138
        %7245 = vmatprep.subr.bf16.mxu0 0
        %7246 = vmatpush1.bf16.msra.mxu0 0
        %7247 = vmatprep.subr.bf16.mxu0 0
        %7248 = vmatpush1.bf16.msra.mxu0 0
        %7249 = vmatprep.subr.bf16.mxu0 0
        %7250 = vmatpush1.bf16.msra.mxu0 0
        %7251 = vmatprep.subr.bf16.mxu0 0
        %7252 = vmatpush1.bf16.msra.mxu0 0
        %7253 = vmatprep.subr.bf16.mxu0 0
        %7254 = vmatpush1.bf16.msra.mxu0 0
        %7255 = vmatprep.subr.bf16.mxu0 0
        %7256 = vmatpush1.bf16.msra.mxu0 0
        %7257 = vmatprep.subr.bf16.mxu0 0
        %7258 = vmatpush1.bf16.msra.mxu0 0
        %7259 = vmatprep.subr.bf16.mxu0 0
        %7260 = vmatpush1.bf16.msra.mxu0 0
        %7261 = vmatprep.mubr.bf16.mxu0 0
        %7262 = vmatmul.mubr.bf16.gmra.mrb[0].mxu0 %v6898
        %v7263 = vpop.f32.mrb[0].mxu0
        %v7264 = vadd.f32 %v7223, %v7263
        %v7265 = vpop.f32.mrb[0].mxu0
        %v7266 = vadd.f32 %v7225, %v7265
        %v7267 = vpop.f32.mrb[0].mxu0
        %v7268 = vpop.f32.mrb[0].mxu0
        %7269 = vdwg.mxu0
        %v7270 = vadd.f32 %v6894, %v7264
        %v7271 = vadd.f32 %v6895, %v7266
        %7272 = vst [vmem:[#allocation2] sm:$0xff] %v7270
        %7273 = vst [vmem:[#allocation2 + $0x8] sm:$0xff] %v7271
        %s7274 = scalar_lea.vmem %s320, 80 [#allocation3]
        %v7275 = vld [vmem:[%s7274] sm:$0xff]
        %v7276 = vld [vmem:[%s1] sm:$0xff]
        %v7277 = vld [vmem:[%s1 + $0x8] sm:$0xf]
        %v7278 = vld [vmem:[%s1 + $0xc] sm:$0xff]
        %v7279 = vld [vmem:[%s1 + $0x14] sm:$0xf]
        %v7280 = vld [vmem:[%s1 + $0x18] sm:$0xff]
        %v7281 = vld [vmem:[%s1 + $0x20] sm:$0xf]
        %v7282 = vld [vmem:[%s1 + $0x24] sm:$0xff]
        %v7283 = vld [vmem:[%s1 + $0x2c] sm:$0xf]
        %v7284 = vld [vmem:[%s1 + $0x30] sm:$0xff]
        %v7285 = vld [vmem:[%s1 + $0x38] sm:$0xf]
        %v7286 = vld [vmem:[%s1 + $0x3c] sm:$0xff]
        %v7287 = vld [vmem:[%s1 + $0x44] sm:$0xf]
        %v7288 = vld [vmem:[%s1 + $0x48] sm:$0xff]
        %v7289 = vld [vmem:[%s1 + $0x50] sm:$0xf]
        %v7290 = vld [vmem:[%s1 + $0x54] sm:$0xff]
        %v7291 = vld [vmem:[%s1 + $0x5c] sm:$0xf]
        %v7292 = vld [vmem:[%s1 + $0x60] sm:$0xff]
        %v7293 = vld [vmem:[%s1 + $0x68] sm:$0xf]
        %v7294 = vld [vmem:[%s1 + $0x6c] sm:$0xff]
        %v7295 = vld [vmem:[%s1 + $0x74] sm:$0xf]
        %v7296 = vld [vmem:[%s1 + $0x78] sm:$0xff]
        %v7297 = vld [vmem:[%s1 + $0x80] sm:$0xf]
        %v7298 = vld [vmem:[%s1 + $0x84] sm:$0xff]
        %v7299 = vld [vmem:[%s1 + $0x8c] sm:$0xf]
        %v7300 = vld [vmem:[%s1 + $0x90] sm:$0xff]
        %v7301 = vld [vmem:[%s1 + $0x98] sm:$0xf]
        %v7302 = vld [vmem:[%s1 + $0x9c] sm:$0xff]
        %v7303 = vld [vmem:[%s1 + $0xa4] sm:$0xf]
        %v7304 = vld [vmem:[%s1 + $0xa8] sm:$0xff]
        %v7305 = vld [vmem:[%s1 + $0xb0] sm:$0xf]
        %v7306 = vld [vmem:[%s1 + $0xb4] sm:$0xff]
        %v7307 = vld [vmem:[%s1 + $0xbc] sm:$0xf]
        %v7308 = vld [vmem:[%s1 + $0xc0] sm:$0xff]
        %v7309 = vld [vmem:[%s1 + $0xc8] sm:$0xf]
        %v7310 = vld [vmem:[%s1 + $0xcc] sm:$0xff]
        %v7311 = vld [vmem:[%s1 + $0xd4] sm:$0xf]
        %v7312 = vld [vmem:[%s1 + $0xd8] sm:$0xff]
        %v7313 = vld [vmem:[%s1 + $0xe0] sm:$0xf]
        %v7314 = vld [vmem:[%s1 + $0xe4] sm:$0xff]
        %v7315 = vld [vmem:[%s1 + $0xec] sm:$0xf]
        %v7316 = vld [vmem:[%s2] sm:$0x7]
        %v7318 = vlaneseq
        %v7319 = vshrl.u32 %v7318, 7
        %v7320 = vsub.s32 0, %v7319
        %v7321 = vrot.slane %v7316, %v7320
        %v7322 = vlaneseq
        %v7323 = vshrl.u32 %v7322, 7
        %v7324 = vsub.s32 1, %v7323
        %v7325 = vrot.slane %v7316, %v7324
        %v7326 = vlaneseq
        %v7327 = vshrl.u32 %v7326, 7
        %v7328 = vsub.s32 2, %v7327
        %v7329 = vrot.slane %v7316, %v7328
        %v7334 = vunpack.c.l.b16 %v7275
        %v7335 = vunpack.c.h.b16 %v7275
        %v7336 = vpack.c.b16 %v7334, %v7334
        %v7337 = vpack.c.b16 %v7335, %v7335
        %v7379 = vunpack.c.l.b16 %v7276
        %v7380 = vunpack.c.h.b16 %v7276
        %v7381 = vunpack.c.l.b16 %v7277
        %v7382 = vunpack.c.l.b16 %v7278
        %v7383 = vunpack.c.h.b16 %v7278
        %v7384 = vunpack.c.l.b16 %v7279
        %v7385 = vunpack.c.l.b16 %v7280
        %v7386 = vunpack.c.h.b16 %v7280
        %v7387 = vunpack.c.l.b16 %v7281
        %v7388 = vunpack.c.l.b16 %v7282
        %v7389 = vunpack.c.h.b16 %v7282
        %v7390 = vunpack.c.l.b16 %v7283
        %v7391 = vunpack.c.l.b16 %v7284
        %v7392 = vunpack.c.h.b16 %v7284
        %v7393 = vunpack.c.l.b16 %v7285
        %v7394 = vunpack.c.l.b16 %v7286
        %v7395 = vunpack.c.h.b16 %v7286
        %v7396 = vunpack.c.l.b16 %v7287
        %v7397 = vunpack.c.l.b16 %v7288
        %v7398 = vunpack.c.h.b16 %v7288
        %v7399 = vunpack.c.l.b16 %v7289
        %v7400 = vunpack.c.l.b16 %v7290
        %v7401 = vunpack.c.h.b16 %v7290
        %v7402 = vunpack.c.l.b16 %v7291
        %v7403 = vunpack.c.l.b16 %v7292
        %v7404 = vunpack.c.h.b16 %v7292
        %v7405 = vunpack.c.l.b16 %v7293
        %v7406 = vunpack.c.l.b16 %v7294
        %v7407 = vunpack.c.h.b16 %v7294
        %v7408 = vunpack.c.l.b16 %v7295
        %v7409 = vunpack.c.l.b16 %v7296
        %v7410 = vunpack.c.h.b16 %v7296
        %v7411 = vunpack.c.l.b16 %v7297
        %v7412 = vunpack.c.l.b16 %v7298
        %v7413 = vunpack.c.h.b16 %v7298
        %v7414 = vunpack.c.l.b16 %v7299
        %v7415 = vunpack.c.l.b16 %v7300
        %v7416 = vunpack.c.h.b16 %v7300
        %v7417 = vunpack.c.l.b16 %v7301
        %v7418 = vunpack.c.l.b16 %v7302
        %v7419 = vunpack.c.h.b16 %v7302
        %v7420 = vunpack.c.l.b16 %v7303
        %v7421 = vunpack.c.l.b16 %v7304
        %v7422 = vunpack.c.h.b16 %v7304
        %v7423 = vunpack.c.l.b16 %v7305
        %v7424 = vunpack.c.l.b16 %v7306
        %v7425 = vunpack.c.h.b16 %v7306
        %v7426 = vunpack.c.l.b16 %v7307
        %v7427 = vunpack.c.l.b16 %v7308
        %v7428 = vunpack.c.h.b16 %v7308
        %v7429 = vunpack.c.l.b16 %v7309
        %v7430 = vunpack.c.l.b16 %v7310
        %v7431 = vunpack.c.h.b16 %v7310
        %v7432 = vunpack.c.l.b16 %v7311
        %v7433 = vunpack.c.l.b16 %v7312
        %v7434 = vunpack.c.h.b16 %v7312
        %v7435 = vunpack.c.l.b16 %v7313
        %v7436 = vunpack.c.l.b16 %v7314
        %v7437 = vunpack.c.h.b16 %v7314
        %v7438 = vunpack.c.l.b16 %v7315
        %v7439 = vpack.c.b16 %v7382, %v7379
        %v7440 = vpack.c.b16 %v7383, %v7380
        %v7441 = vpack.c.b16 %v7384, %v7381
        %v7442 = vpack.c.b16 %v7388, %v7385
        %v7443 = vpack.c.b16 %v7389, %v7386
        %v7444 = vpack.c.b16 %v7390, %v7387
        %v7445 = vpack.c.b16 %v7394, %v7391
        %v7446 = vpack.c.b16 %v7395, %v7392
        %v7447 = vpack.c.b16 %v7396, %v7393
        %v7448 = vpack.c.b16 %v7400, %v7397
        %v7449 = vpack.c.b16 %v7401, %v7398
        %v7450 = vpack.c.b16 %v7402, %v7399
        %v7451 = vpack.c.b16 %v7406, %v7403
        %v7452 = vpack.c.b16 %v7407, %v7404
        %v7453 = vpack.c.b16 %v7408, %v7405
        %v7454 = vpack.c.b16 %v7412, %v7409
        %v7455 = vpack.c.b16 %v7413, %v7410
        %v7456 = vpack.c.b16 %v7414, %v7411
        %v7457 = vpack.c.b16 %v7418, %v7415
        %v7458 = vpack.c.b16 %v7419, %v7416
        %v7459 = vpack.c.b16 %v7420, %v7417
        %v7460 = vpack.c.b16 %v7424, %v7421
        %v7461 = vpack.c.b16 %v7425, %v7422
        %v7462 = vpack.c.b16 %v7426, %v7423
        %v7463 = vpack.c.b16 %v7430, %v7427
        %v7464 = vpack.c.b16 %v7431, %v7428
        %v7465 = vpack.c.b16 %v7432, %v7429
        %v7466 = vpack.c.b16 %v7436, %v7433
        %v7467 = vpack.c.b16 %v7437, %v7434
        %v7468 = vpack.c.b16 %v7438, %v7435
        %v7500 = vsel %vm579, %v7337, 0
        %7502 = vmatprep.subr.bf16.mxu0 %v7440
        %7503 = vmatpush1.bf16.msra.mxu0 %v7439
        %7504 = vmatprep.subr.bf16.mxu0 %v7443
        %7505 = vmatpush1.bf16.msra.mxu0 %v7442
        %7506 = vmatprep.subr.bf16.mxu0 %v7446
        %7507 = vmatpush1.bf16.msra.mxu0 %v7445
        %7508 = vmatprep.subr.bf16.mxu0 %v7449
        %7509 = vmatpush1.bf16.msra.mxu0 %v7448
        %7510 = vmatprep.subr.bf16.mxu0 %v7452
        %7511 = vmatpush1.bf16.msra.mxu0 %v7451
        %7512 = vmatprep.subr.bf16.mxu0 %v7455
        %7513 = vmatpush1.bf16.msra.mxu0 %v7454
        %7514 = vmatprep.subr.bf16.mxu0 %v7458
        %7515 = vmatpush1.bf16.msra.mxu0 %v7457
        %7516 = vmatprep.subr.bf16.mxu0 %v7461
        %7517 = vmatpush1.bf16.msra.mxu0 %v7460
        %7518 = vmatprep.subr.bf16.mxu0 %v7464
        %7519 = vmatpush1.bf16.msra.mxu0 %v7463
        %7520 = vmatprep.subr.bf16.mxu0 %v7467
        %7521 = vmatpush1.bf16.msra.mxu0 %v7466
        %7522 = vmatprep.subr.bf16.mxu0 0
        %7523 = vmatpush1.bf16.msra.mxu0 0
        %7524 = vmatprep.subr.bf16.mxu0 0
        %7525 = vmatpush1.bf16.msra.mxu0 0
        %7526 = vmatprep.subr.bf16.mxu0 0
        %7527 = vmatpush1.bf16.msra.mxu0 0
        %7528 = vmatprep.subr.bf16.mxu0 0
        %7529 = vmatpush1.bf16.msra.mxu0 0
        %7530 = vmatprep.subr.bf16.mxu0 0
        %7531 = vmatpush1.bf16.msra.mxu0 0
        %7532 = vmatprep.subr.bf16.mxu0 0
        %7533 = vmatpush1.bf16.msra.mxu0 0
        %7534 = vmatprep.mubr.bf16.mxu0 %v7500
        %7535 = vmatmul.mubr.bf16.gmra.mrb[0].mxu0 %v7336
        %v7536 = vpop.f32.mrb[0].mxu0
        %v7537 = vadd.f32 %v7321, %v7536
        %v7538 = vpop.f32.mrb[0].mxu0
        %v7539 = vadd.f32 %v7325, %v7538
        %v7540 = vpop.f32.mrb[0].mxu0
        %v7541 = vpop.f32.mrb[0].mxu0
        %7542 = vdwg.mxu0
        %7543 = vmatprep.subr.bf16.mxu0 0
        %7544 = vmatpush1.bf16.msra.mxu0 %v7441
        %7545 = vmatprep.subr.bf16.mxu0 0
        %7546 = vmatpush1.bf16.msra.mxu0 %v7444
        %7547 = vmatprep.subr.bf16.mxu0 0
        %7548 = vmatpush1.bf16.msra.mxu0 %v7447
        %7549 = vmatprep.subr.bf16.mxu0 0
        %7550 = vmatpush1.bf16.msra.mxu0 %v7450
        %7551 = vmatprep.subr.bf16.mxu0 0
        %7552 = vmatpush1.bf16.msra.mxu0 %v7453
        %7553 = vmatprep.subr.bf16.mxu0 0
        %7554 = vmatpush1.bf16.msra.mxu0 %v7456
        %7555 = vmatprep.subr.bf16.mxu0 0
        %7556 = vmatpush1.bf16.msra.mxu0 %v7459
        %7557 = vmatprep.subr.bf16.mxu0 0
        %7558 = vmatpush1.bf16.msra.mxu0 %v7462
        %7559 = vmatprep.subr.bf16.mxu0 0
        %7560 = vmatpush1.bf16.msra.mxu0 %v7465
        %7561 = vmatprep.subr.bf16.mxu0 0
        %7562 = vmatpush1.bf16.msra.mxu0 %v7468
        %7563 = vmatprep.subr.bf16.mxu0 0
        %7564 = vmatpush1.bf16.msra.mxu0 0
        %7565 = vmatprep.subr.bf16.mxu0 0
        %7566 = vmatpush1.bf16.msra.mxu0 0
        %7567 = vmatprep.subr.bf16.mxu0 0
        %7568 = vmatpush1.bf16.msra.mxu0 0
        %7569 = vmatprep.subr.bf16.mxu0 0
        %7570 = vmatpush1.bf16.msra.mxu0 0
        %7571 = vmatprep.subr.bf16.mxu0 0
        %7572 = vmatpush1.bf16.msra.mxu0 0
        %7573 = vmatprep.subr.bf16.mxu0 0
        %7574 = vmatpush1.bf16.msra.mxu0 0
        %7575 = vmatprep.mubr.bf16.mxu0 %v7500
        %7576 = vmatmul.mubr.bf16.gmra.mrb[0].mxu0 %v7336
        %v7577 = vpop.f32.mrb[0].mxu0
        %v7578 = vadd.f32 %v7329, %v7577
        %v7579 = vpop.f32.mrb[0].mxu0
        %v7580 = vpop.f32.mrb[0].mxu0
        %v7581 = vpop.f32.mrb[0].mxu0
        %7582 = vdwg.mxu0
        %v7583 = vmax.f32 %v7537, 0.0
        %v7584 = vmax.f32 %v7539, 0.0
        %v7585 = vmax.f32 %v7578, 0.0
        %v7586 = vld [vmem:[#allocation2] sm:$0xff]
        %v7587 = vld [vmem:[#allocation2 + $0x8] sm:$0xff]
        %v7588 = vpack.c.bf16 %v7583, %v7583
        %v7589 = vpack.c.bf16 %v7584, %v7584
        %v7590 = vpack.c.bf16 %v7585, %v7585
        %s7591 = scalar_lea.vmem %s3, 3840
        %v7592 = vld [vmem:[%s7591] sm:$0xff]
        %v7593 = vld [vmem:[%s7591 + $0x8] sm:$0xff]
        %v7594 = vld [vmem:[%s7591 + $0x10] sm:$0xff]
        %v7595 = vld [vmem:[%s7591 + $0x18] sm:$0xff]
        %v7596 = vld [vmem:[%s7591 + $0x20] sm:$0xff]
        %v7597 = vld [vmem:[%s7591 + $0x28] sm:$0xff]
        %v7598 = vld [vmem:[%s7591 + $0x30] sm:$0xff]
        %v7599 = vld [vmem:[%s7591 + $0x38] sm:$0xff]
        %v7600 = vld [vmem:[%s7591 + $0x40] sm:$0xff]
        %v7601 = vld [vmem:[%s7591 + $0x48] sm:$0xff]
        %v7602 = vld [vmem:[%s7591 + $0x50] sm:$0xff]
        %v7603 = vld [vmem:[%s7591 + $0x58] sm:$0xff]
        %v7604 = vld [vmem:[%s7591 + $0x60] sm:$0xff]
        %v7605 = vld [vmem:[%s7591 + $0x68] sm:$0xff]
        %v7606 = vld [vmem:[%s7591 + $0x70] sm:$0xff]
        %v7607 = vld [vmem:[%s7591 + $0x78] sm:$0xff]
        %v7608 = vld [vmem:[%s7591 + $0x80] sm:$0xff]
        %v7609 = vld [vmem:[%s7591 + $0x88] sm:$0xff]
        %v7610 = vld [vmem:[%s7591 + $0x90] sm:$0xff]
        %v7611 = vld [vmem:[%s7591 + $0x98] sm:$0xff]
        %v7612 = vld [vmem:[%s7591 + $0xa0] sm:$0xff]
        %v7613 = vld [vmem:[%s7591 + $0xa8] sm:$0xff]
        %v7614 = vld [vmem:[%s7591 + $0xb0] sm:$0xff]
        %v7615 = vld [vmem:[%s7591 + $0xb8] sm:$0xff]
        %v7616 = vld [vmem:[%s7591 + $0xc0] sm:$0xff]
        %v7617 = vld [vmem:[%s7591 + $0xc8] sm:$0xff]
        %v7618 = vld [vmem:[%s7591 + $0xd0] sm:$0xff]
        %v7619 = vld [vmem:[%s7591 + $0xd8] sm:$0xff]
        %v7620 = vld [vmem:[%s7591 + $0xe0] sm:$0xff]
        %v7621 = vld [vmem:[%s7591 + $0xe8] sm:$0xff]
        %v7622 = vld [vmem:[%s7591 + $0xf0] sm:$0xff]
        %v7623 = vld [vmem:[%s7591 + $0xf8] sm:$0xff]
        %v7624 = vld [vmem:[%s7591 + $0x100] sm:$0xff]
        %v7625 = vld [vmem:[%s7591 + $0x108] sm:$0xff]
        %v7626 = vld [vmem:[%s7591 + $0x110] sm:$0xff]
        %v7627 = vld [vmem:[%s7591 + $0x118] sm:$0xff]
        %v7628 = vld [vmem:[%s7591 + $0x120] sm:$0xff]
        %v7629 = vld [vmem:[%s7591 + $0x128] sm:$0xff]
        %v7630 = vld [vmem:[%s7591 + $0x130] sm:$0xff]
        %v7631 = vld [vmem:[%s7591 + $0x138] sm:$0xff]
        %v7632 = vld [vmem:[%s7591 + $0x140] sm:$0xff]
        %v7633 = vld [vmem:[%s7591 + $0x148] sm:$0xff]
        %v7634 = vld [vmem:[%s7591 + $0x150] sm:$0xff]
        %v7635 = vld [vmem:[%s7591 + $0x158] sm:$0xff]
        %v7636 = vld [vmem:[%s7591 + $0x160] sm:$0xff]
        %v7637 = vld [vmem:[%s7591 + $0x168] sm:$0xff]
        %v7638 = vld [vmem:[%s7591 + $0x170] sm:$0xff]
        %v7639 = vld [vmem:[%s7591 + $0x178] sm:$0xff]
        %v7688 = vunpack.c.l.b16 %v7592
        %v7689 = vunpack.c.h.b16 %v7592
        %v7690 = vunpack.c.l.b16 %v7593
        %v7691 = vunpack.c.h.b16 %v7593
        %v7692 = vunpack.c.l.b16 %v7594
        %v7693 = vunpack.c.h.b16 %v7594
        %v7694 = vunpack.c.l.b16 %v7595
        %v7695 = vunpack.c.h.b16 %v7595
        %v7696 = vunpack.c.l.b16 %v7596
        %v7697 = vunpack.c.h.b16 %v7596
        %v7698 = vunpack.c.l.b16 %v7597
        %v7699 = vunpack.c.h.b16 %v7597
        %v7700 = vunpack.c.l.b16 %v7598
        %v7701 = vunpack.c.h.b16 %v7598
        %v7702 = vunpack.c.l.b16 %v7599
        %v7703 = vunpack.c.h.b16 %v7599
        %v7704 = vunpack.c.l.b16 %v7600
        %v7705 = vunpack.c.h.b16 %v7600
        %v7706 = vunpack.c.l.b16 %v7601
        %v7707 = vunpack.c.h.b16 %v7601
        %v7708 = vunpack.c.l.b16 %v7602
        %v7709 = vunpack.c.h.b16 %v7602
        %v7710 = vunpack.c.l.b16 %v7603
        %v7711 = vunpack.c.h.b16 %v7603
        %v7712 = vunpack.c.l.b16 %v7604
        %v7713 = vunpack.c.h.b16 %v7604
        %v7714 = vunpack.c.l.b16 %v7605
        %v7715 = vunpack.c.h.b16 %v7605
        %v7716 = vunpack.c.l.b16 %v7606
        %v7717 = vunpack.c.h.b16 %v7606
        %v7718 = vunpack.c.l.b16 %v7607
        %v7719 = vunpack.c.h.b16 %v7607
        %v7720 = vunpack.c.l.b16 %v7608
        %v7721 = vunpack.c.h.b16 %v7608
        %v7722 = vunpack.c.l.b16 %v7609
        %v7723 = vunpack.c.h.b16 %v7609
        %v7724 = vunpack.c.l.b16 %v7610
        %v7725 = vunpack.c.h.b16 %v7610
        %v7726 = vunpack.c.l.b16 %v7611
        %v7727 = vunpack.c.h.b16 %v7611
        %v7728 = vunpack.c.l.b16 %v7612
        %v7729 = vunpack.c.h.b16 %v7612
        %v7730 = vunpack.c.l.b16 %v7613
        %v7731 = vunpack.c.h.b16 %v7613
        %v7732 = vunpack.c.l.b16 %v7614
        %v7733 = vunpack.c.h.b16 %v7614
        %v7734 = vunpack.c.l.b16 %v7615
        %v7735 = vunpack.c.h.b16 %v7615
        %v7736 = vunpack.c.l.b16 %v7616
        %v7737 = vunpack.c.h.b16 %v7616
        %v7738 = vunpack.c.l.b16 %v7617
        %v7739 = vunpack.c.h.b16 %v7617
        %v7740 = vunpack.c.l.b16 %v7618
        %v7741 = vunpack.c.h.b16 %v7618
        %v7742 = vunpack.c.l.b16 %v7619
        %v7743 = vunpack.c.h.b16 %v7619
        %v7744 = vunpack.c.l.b16 %v7620
        %v7745 = vunpack.c.h.b16 %v7620
        %v7746 = vunpack.c.l.b16 %v7621
        %v7747 = vunpack.c.h.b16 %v7621
        %v7748 = vunpack.c.l.b16 %v7622
        %v7749 = vunpack.c.h.b16 %v7622
        %v7750 = vunpack.c.l.b16 %v7623
        %v7751 = vunpack.c.h.b16 %v7623
        %v7752 = vunpack.c.l.b16 %v7624
        %v7753 = vunpack.c.h.b16 %v7624
        %v7754 = vunpack.c.l.b16 %v7625
        %v7755 = vunpack.c.h.b16 %v7625
        %v7756 = vunpack.c.l.b16 %v7626
        %v7757 = vunpack.c.h.b16 %v7626
        %v7758 = vunpack.c.l.b16 %v7627
        %v7759 = vunpack.c.h.b16 %v7627
        %v7760 = vunpack.c.l.b16 %v7628
        %v7761 = vunpack.c.h.b16 %v7628
        %v7762 = vunpack.c.l.b16 %v7629
        %v7763 = vunpack.c.h.b16 %v7629
        %v7764 = vunpack.c.l.b16 %v7630
        %v7765 = vunpack.c.h.b16 %v7630
        %v7766 = vunpack.c.l.b16 %v7631
        %v7767 = vunpack.c.h.b16 %v7631
        %v7768 = vunpack.c.l.b16 %v7632
        %v7769 = vunpack.c.h.b16 %v7632
        %v7770 = vunpack.c.l.b16 %v7633
        %v7771 = vunpack.c.h.b16 %v7633
        %v7772 = vunpack.c.l.b16 %v7634
        %v7773 = vunpack.c.h.b16 %v7634
        %v7774 = vunpack.c.l.b16 %v7635
        %v7775 = vunpack.c.h.b16 %v7635
        %v7776 = vunpack.c.l.b16 %v7636
        %v7777 = vunpack.c.h.b16 %v7636
        %v7778 = vunpack.c.l.b16 %v7637
        %v7779 = vunpack.c.h.b16 %v7637
        %v7780 = vunpack.c.l.b16 %v7638
        %v7781 = vunpack.c.h.b16 %v7638
        %v7782 = vunpack.c.l.b16 %v7639
        %v7783 = vunpack.c.h.b16 %v7639
        %v7784 = vpack.c.b16 %v7690, %v7688
        %v7785 = vpack.c.b16 %v7691, %v7689
        %v7786 = vpack.c.b16 %v7694, %v7692
        %v7787 = vpack.c.b16 %v7695, %v7693
        %v7788 = vpack.c.b16 %v7698, %v7696
        %v7789 = vpack.c.b16 %v7699, %v7697
        %v7790 = vpack.c.b16 %v7702, %v7700
        %v7791 = vpack.c.b16 %v7703, %v7701
        %v7792 = vpack.c.b16 %v7706, %v7704
        %v7793 = vpack.c.b16 %v7707, %v7705
        %v7794 = vpack.c.b16 %v7710, %v7708
        %v7795 = vpack.c.b16 %v7711, %v7709
        %v7796 = vpack.c.b16 %v7714, %v7712
        %v7797 = vpack.c.b16 %v7715, %v7713
        %v7798 = vpack.c.b16 %v7718, %v7716
        %v7799 = vpack.c.b16 %v7719, %v7717
        %v7800 = vpack.c.b16 %v7722, %v7720
        %v7801 = vpack.c.b16 %v7723, %v7721
        %v7802 = vpack.c.b16 %v7726, %v7724
        %v7803 = vpack.c.b16 %v7727, %v7725
        %v7804 = vpack.c.b16 %v7730, %v7728
        %v7805 = vpack.c.b16 %v7731, %v7729
        %v7806 = vpack.c.b16 %v7734, %v7732
        %v7807 = vpack.c.b16 %v7735, %v7733
        %v7808 = vpack.c.b16 %v7738, %v7736
        %v7809 = vpack.c.b16 %v7739, %v7737
        %v7810 = vpack.c.b16 %v7742, %v7740
        %v7811 = vpack.c.b16 %v7743, %v7741
        %v7812 = vpack.c.b16 %v7746, %v7744
        %v7813 = vpack.c.b16 %v7747, %v7745
        %v7814 = vpack.c.b16 %v7750, %v7748
        %v7815 = vpack.c.b16 %v7751, %v7749
        %v7816 = vpack.c.b16 %v7754, %v7752
        %v7817 = vpack.c.b16 %v7755, %v7753
        %v7818 = vpack.c.b16 %v7758, %v7756
        %v7819 = vpack.c.b16 %v7759, %v7757
        %v7820 = vpack.c.b16 %v7762, %v7760
        %v7821 = vpack.c.b16 %v7763, %v7761
        %v7822 = vpack.c.b16 %v7766, %v7764
        %v7823 = vpack.c.b16 %v7767, %v7765
        %v7824 = vpack.c.b16 %v7770, %v7768
        %v7825 = vpack.c.b16 %v7771, %v7769
        %v7826 = vpack.c.b16 %v7774, %v7772
        %v7827 = vpack.c.b16 %v7775, %v7773
        %v7828 = vpack.c.b16 %v7778, %v7776
        %v7829 = vpack.c.b16 %v7779, %v7777
        %v7830 = vpack.c.b16 %v7782, %v7780
        %v7831 = vpack.c.b16 %v7783, %v7781
        %7880 = vmatprep.subr.bf16.mxu0 %v7785
        %7881 = vmatpush1.bf16.msra.mxu0 %v7784
        %7882 = vmatprep.subr.bf16.mxu0 %v7787
        %7883 = vmatpush1.bf16.msra.mxu0 %v7786
        %7884 = vmatprep.subr.bf16.mxu0 %v7789
        %7885 = vmatpush1.bf16.msra.mxu0 %v7788
        %7886 = vmatprep.subr.bf16.mxu0 %v7791
        %7887 = vmatpush1.bf16.msra.mxu0 %v7790
        %7888 = vmatprep.subr.bf16.mxu0 %v7793
        %7889 = vmatpush1.bf16.msra.mxu0 %v7792
        %7890 = vmatprep.subr.bf16.mxu0 %v7795
        %7891 = vmatpush1.bf16.msra.mxu0 %v7794
        %7892 = vmatprep.subr.bf16.mxu0 %v7797
        %7893 = vmatpush1.bf16.msra.mxu0 %v7796
        %7894 = vmatprep.subr.bf16.mxu0 %v7799
        %7895 = vmatpush1.bf16.msra.mxu0 %v7798
        %7896 = vmatprep.subr.bf16.mxu0 %v7801
        %7897 = vmatpush1.bf16.msra.mxu0 %v7800
        %7898 = vmatprep.subr.bf16.mxu0 %v7803
        %7899 = vmatpush1.bf16.msra.mxu0 %v7802
        %7900 = vmatprep.subr.bf16.mxu0 %v7805
        %7901 = vmatpush1.bf16.msra.mxu0 %v7804
        %7902 = vmatprep.subr.bf16.mxu0 %v7807
        %7903 = vmatpush1.bf16.msra.mxu0 %v7806
        %7904 = vmatprep.subr.bf16.mxu0 %v7809
        %7905 = vmatpush1.bf16.msra.mxu0 %v7808
        %7906 = vmatprep.subr.bf16.mxu0 %v7811
        %7907 = vmatpush1.bf16.msra.mxu0 %v7810
        %7908 = vmatprep.subr.bf16.mxu0 %v7813
        %7909 = vmatpush1.bf16.msra.mxu0 %v7812
        %7910 = vmatprep.subr.bf16.mxu0 %v7815
        %7911 = vmatpush1.bf16.msra.mxu0 %v7814
        %7912 = vmatprep.mubr.bf16.mxu0 %v7589
        %7913 = vmatmul.mubr.bf16.gmra.mrb[0].mxu0 %v7588
        %v7914 = vpop.f32.mrb[0].mxu0
        %v7915 = vadd.f32 0.0, %v7914
        %v7916 = vpop.f32.mrb[0].mxu0
        %v7917 = vadd.f32 0.0, %v7916
        %v7918 = vpop.f32.mrb[0].mxu0
        %v7919 = vpop.f32.mrb[0].mxu0
        %7920 = vdwg.mxu0
        %7921 = vmatprep.subr.bf16.mxu0 %v7817
        %7922 = vmatpush1.bf16.msra.mxu0 %v7816
        %7923 = vmatprep.subr.bf16.mxu0 %v7819
        %7924 = vmatpush1.bf16.msra.mxu0 %v7818
        %7925 = vmatprep.subr.bf16.mxu0 %v7821
        %7926 = vmatpush1.bf16.msra.mxu0 %v7820
        %7927 = vmatprep.subr.bf16.mxu0 %v7823
        %7928 = vmatpush1.bf16.msra.mxu0 %v7822
        %7929 = vmatprep.subr.bf16.mxu0 %v7825
        %7930 = vmatpush1.bf16.msra.mxu0 %v7824
        %7931 = vmatprep.subr.bf16.mxu0 %v7827
        %7932 = vmatpush1.bf16.msra.mxu0 %v7826
        %7933 = vmatprep.subr.bf16.mxu0 %v7829
        %7934 = vmatpush1.bf16.msra.mxu0 %v7828
        %7935 = vmatprep.subr.bf16.mxu0 %v7831
        %7936 = vmatpush1.bf16.msra.mxu0 %v7830
        %7937 = vmatprep.subr.bf16.mxu0 0
        %7938 = vmatpush1.bf16.msra.mxu0 0
        %7939 = vmatprep.subr.bf16.mxu0 0
        %7940 = vmatpush1.bf16.msra.mxu0 0
        %7941 = vmatprep.subr.bf16.mxu0 0
        %7942 = vmatpush1.bf16.msra.mxu0 0
        %7943 = vmatprep.subr.bf16.mxu0 0
        %7944 = vmatpush1.bf16.msra.mxu0 0
        %7945 = vmatprep.subr.bf16.mxu0 0
        %7946 = vmatpush1.bf16.msra.mxu0 0
        %7947 = vmatprep.subr.bf16.mxu0 0
        %7948 = vmatpush1.bf16.msra.mxu0 0
        %7949 = vmatprep.subr.bf16.mxu0 0
        %7950 = vmatpush1.bf16.msra.mxu0 0
        %7951 = vmatprep.subr.bf16.mxu0 0
        %7952 = vmatpush1.bf16.msra.mxu0 0
        %7953 = vmatprep.mubr.bf16.mxu0 0
        %7954 = vmatmul.mubr.bf16.gmra.mrb[0].mxu0 %v7590
        %v7955 = vpop.f32.mrb[0].mxu0
        %v7956 = vadd.f32 %v7915, %v7955
        %v7957 = vpop.f32.mrb[0].mxu0
        %v7958 = vadd.f32 %v7917, %v7957
        %v7959 = vpop.f32.mrb[0].mxu0
        %v7960 = vpop.f32.mrb[0].mxu0
        %7961 = vdwg.mxu0
        %v7962 = vadd.f32 %v7586, %v7956
        %v7963 = vadd.f32 %v7587, %v7958
        %7964 = vst [vmem:[#allocation2] sm:$0xff] %v7962
        %7965 = vst [vmem:[#allocation2 + $0x8] sm:$0xff] %v7963
        %v7966 = vld [vmem:[#allocation2] sm:$0xff]
        %v7967 = vld [vmem:[#allocation2 + $0x8] sm:$0xff]
        %v7968 = vld [vmem:[%s4] sm:$0x3]
        %v7970 = vlaneseq
        %v7971 = vshrl.u32 %v7970, 7
        %v7972 = vsub.s32 0, %v7971
        %v7973 = vrot.slane %v7968, %v7972
        %v7974 = vlaneseq
        %v7975 = vshrl.u32 %v7974, 7
        %v7976 = vsub.s32 1, %v7975
        %v7977 = vrot.slane %v7968, %v7976
        %v7980 = vadd.f32 %v7966, %v7973
        %v7981 = vadd.f32 %v7967, %v7977
        %v7982 = vmax.f32 %v7980, 0.0
        %v7983 = vmax.f32 %v7981, 0.0
        %v7984 = vpack.c.bf16 %v7982, %v7982
        %v7985 = vpack.c.bf16 %v7983, %v7983
        %v7986 = vld [vmem:[%s5] sm:$0xf]
        %v7987 = vld [vmem:[%s5 + $0x4] sm:$0xf]
        %v7988 = vld [vmem:[%s5 + $0x8] sm:$0xf]
        %v7989 = vld [vmem:[%s5 + $0xc] sm:$0xf]
        %v7990 = vld [vmem:[%s5 + $0x10] sm:$0xf]
        %v7991 = vld [vmem:[%s5 + $0x14] sm:$0xf]
        %v7992 = vld [vmem:[%s5 + $0x18] sm:$0xf]
        %v7993 = vld [vmem:[%s5 + $0x1c] sm:$0xf]
        %v7994 = vld [vmem:[%s5 + $0x20] sm:$0xf]
        %v7995 = vld [vmem:[%s5 + $0x24] sm:$0xf]
        %v7996 = vld [vmem:[%s5 + $0x28] sm:$0xf]
        %v7997 = vld [vmem:[%s5 + $0x2c] sm:$0xf]
        %v7998 = vld [vmem:[%s5 + $0x30] sm:$0xf]
        %v7999 = vld [vmem:[%s5 + $0x34] sm:$0xf]
        %v8000 = vld [vmem:[%s5 + $0x38] sm:$0xf]
        %v8001 = vld [vmem:[%s5 + $0x3c] sm:$0xf]
        %v8002 = vld [vmem:[%s5 + $0x40] sm:$0xf]
        %v8003 = vld [vmem:[%s5 + $0x44] sm:$0xf]
        %v8004 = vld [vmem:[%s5 + $0x48] sm:$0xf]
        %v8005 = vld [vmem:[%s5 + $0x4c] sm:$0xf]
        %v8006 = vld [vmem:[%s5 + $0x50] sm:$0xf]
        %v8007 = vld [vmem:[%s5 + $0x54] sm:$0xf]
        %v8008 = vld [vmem:[%s5 + $0x58] sm:$0xf]
        %v8009 = vld [vmem:[%s5 + $0x5c] sm:$0xf]
        %v8010 = vld [vmem:[%s5 + $0x60] sm:$0xf]
        %v8011 = vld [vmem:[%s5 + $0x64] sm:$0xf]
        %v8012 = vld [vmem:[%s5 + $0x68] sm:$0xf]
        %v8013 = vld [vmem:[%s5 + $0x6c] sm:$0xf]
        %v8014 = vld [vmem:[%s5 + $0x70] sm:$0xf]
        %v8015 = vld [vmem:[%s5 + $0x74] sm:$0xf]
        %v8016 = vld [vmem:[%s5 + $0x78] sm:$0xf]
        %v8017 = vld [vmem:[%s5 + $0x7c] sm:$0xf]
        %v8018 = vld [vmem:[%s6] sm:$0x1]
        %v8020 = vlaneseq
        %v8021 = vshrl.u32 %v8020, 7
        %v8022 = vsub.s32 0, %v8021
        %v8023 = vrot.slane %v8018, %v8022
        %v8057 = vunpack.c.l.b16 %v7986
        %v8058 = vunpack.c.l.b16 %v7987
        %v8059 = vunpack.c.l.b16 %v7988
        %v8060 = vunpack.c.l.b16 %v7989
        %v8061 = vunpack.c.l.b16 %v7990
        %v8062 = vunpack.c.l.b16 %v7991
        %v8063 = vunpack.c.l.b16 %v7992
        %v8064 = vunpack.c.l.b16 %v7993
        %v8065 = vunpack.c.l.b16 %v7994
        %v8066 = vunpack.c.l.b16 %v7995
        %v8067 = vunpack.c.l.b16 %v7996
        %v8068 = vunpack.c.l.b16 %v7997
        %v8069 = vunpack.c.l.b16 %v7998
        %v8070 = vunpack.c.l.b16 %v7999
        %v8071 = vunpack.c.l.b16 %v8000
        %v8072 = vunpack.c.l.b16 %v8001
        %v8073 = vunpack.c.l.b16 %v8002
        %v8074 = vunpack.c.l.b16 %v8003
        %v8075 = vunpack.c.l.b16 %v8004
        %v8076 = vunpack.c.l.b16 %v8005
        %v8077 = vunpack.c.l.b16 %v8006
        %v8078 = vunpack.c.l.b16 %v8007
        %v8079 = vunpack.c.l.b16 %v8008
        %v8080 = vunpack.c.l.b16 %v8009
        %v8081 = vunpack.c.l.b16 %v8010
        %v8082 = vunpack.c.l.b16 %v8011
        %v8083 = vunpack.c.l.b16 %v8012
        %v8084 = vunpack.c.l.b16 %v8013
        %v8085 = vunpack.c.l.b16 %v8014
        %v8086 = vunpack.c.l.b16 %v8015
        %v8087 = vunpack.c.l.b16 %v8016
        %v8088 = vunpack.c.l.b16 %v8017
        %v8089 = vpack.c.b16 %v8058, %v8057
        %v8090 = vpack.c.b16 %v8060, %v8059
        %v8091 = vpack.c.b16 %v8062, %v8061
        %v8092 = vpack.c.b16 %v8064, %v8063
        %v8093 = vpack.c.b16 %v8066, %v8065
        %v8094 = vpack.c.b16 %v8068, %v8067
        %v8095 = vpack.c.b16 %v8070, %v8069
        %v8096 = vpack.c.b16 %v8072, %v8071
        %v8097 = vpack.c.b16 %v8074, %v8073
        %v8098 = vpack.c.b16 %v8076, %v8075
        %v8099 = vpack.c.b16 %v8078, %v8077
        %v8100 = vpack.c.b16 %v8080, %v8079
        %v8101 = vpack.c.b16 %v8082, %v8081
        %v8102 = vpack.c.b16 %v8084, %v8083
        %v8103 = vpack.c.b16 %v8086, %v8085
        %v8104 = vpack.c.b16 %v8088, %v8087
        %8121 = vmatprep.subr.bf16.mxu0 0
        %8122 = vmatpush1.bf16.msra.mxu0 %v8089
        %8123 = vmatprep.subr.bf16.mxu0 0
        %8124 = vmatpush1.bf16.msra.mxu0 %v8090
        %8125 = vmatprep.subr.bf16.mxu0 0
        %8126 = vmatpush1.bf16.msra.mxu0 %v8091
        %8127 = vmatprep.subr.bf16.mxu0 0
        %8128 = vmatpush1.bf16.msra.mxu0 %v8092
        %8129 = vmatprep.subr.bf16.mxu0 0
        %8130 = vmatpush1.bf16.msra.mxu0 %v8093
        %8131 = vmatprep.subr.bf16.mxu0 0
        %8132 = vmatpush1.bf16.msra.mxu0 %v8094
        %8133 = vmatprep.subr.bf16.mxu0 0
        %8134 = vmatpush1.bf16.msra.mxu0 %v8095
        %8135 = vmatprep.subr.bf16.mxu0 0
        %8136 = vmatpush1.bf16.msra.mxu0 %v8096
        %8137 = vmatprep.subr.bf16.mxu0 0
        %8138 = vmatpush1.bf16.msra.mxu0 %v8097
        %8139 = vmatprep.subr.bf16.mxu0 0
        %8140 = vmatpush1.bf16.msra.mxu0 %v8098
        %8141 = vmatprep.subr.bf16.mxu0 0
        %8142 = vmatpush1.bf16.msra.mxu0 %v8099
        %8143 = vmatprep.subr.bf16.mxu0 0
        %8144 = vmatpush1.bf16.msra.mxu0 %v8100
        %8145 = vmatprep.subr.bf16.mxu0 0
        %8146 = vmatpush1.bf16.msra.mxu0 %v8101
        %8147 = vmatprep.subr.bf16.mxu0 0
        %8148 = vmatpush1.bf16.msra.mxu0 %v8102
        %8149 = vmatprep.subr.bf16.mxu0 0
        %8150 = vmatpush1.bf16.msra.mxu0 %v8103
        %8151 = vmatprep.subr.bf16.mxu0 0
        %8152 = vmatpush1.bf16.msra.mxu0 %v8104
        %8153 = vmatprep.mubr.bf16.mxu0 %v7985
        %8154 = vmatmul.mubr.bf16.gmra.mrb[0].mxu0 %v7984
        %v8155 = vpop.f32.mrb[0].mxu0
        %v8156 = vadd.f32 %v8023, %v8155
        %v8157 = vpop.f32.mrb[0].mxu0
        %v8158 = vpop.f32.mrb[0].mxu0
        %v8159 = vpop.f32.mrb[0].mxu0
        %8160 = vdwg.mxu0
        %8161 = vst [vmem:[%s351] sm:$0xff] %v8156
        %p8162 = scmp.lt.s32.totalorder %s18, 1
        %s8163 = scalar_select %p8162, %s18, 1
        %s8164 = smul.addr %s8163, 8
        %s8165 = scalar_lea.vmem %s7, %s8164
        // Predicated region
        $region87: #{dqn_forward.1} parent=81 // pred_check
          %p8166 = pneg %p188
        $region88: #{dqn_forward.1} parent=81 // pred_check_branch
          %8168 = sbr.rel (%p8166) target = $region90
        $region89: #{dqn_forward.1} parent=81 // pred_region
          _
        $region90: #{dqn_forward.1} parent=81 // pred_fallthru
          _
      $region82: #{dqn_forward.1} parent=5 // pred_fallthru
        _
      %p8169 = scmp.le.s32.totalorder 2, %s13
      // Predicated region
      $region91: #{dqn_forward.1} parent=5 // pred_check
        %p8170 = pneg %p8169
      $region92: #{dqn_forward.1} parent=5 // pred_check_branch
        %8172 = sbr.rel (%p8170) target = $region94
      $region93: #{dqn_forward.1} parent=5 // pred_region
        %s8173 = ssub.s32 %s13, 2
        // Predicated region
        $region95: #{dqn_forward.1} parent=93 // pred_check
          %p8174 = pneg %p194
        $region96: #{dqn_forward.1} parent=93 // pred_check_branch
          %8176 = sbr.rel (%p8174) target = $region98
        $region97: #{dqn_forward.1} parent=93 // pred_region
          %p8177 = scmp.lt.s32.totalorder %s19, 1
          %s8178 = scalar_select %p8177, %s19, 1
          %s8179 = smul.addr %s8178, 8
          %s8180 = scalar_lea.vmem %s7, %s8179
        $region98: #{dqn_forward.1} parent=93 // pred_fallthru
          _
      $region94: #{dqn_forward.1} parent=5 // pred_fallthru
        _
    $region6: #{dqn_forward.1} parent=1 // loop_footer
      %s17 = sadd.s32 1, %s13
    $region7: #{dqn_forward.1} parent=1 // loop_footer_branch
      %12 = sbr.rel target = $region3
    $region8: #{dqn_forward.1} parent=1 // loop_exit
      _

</llo_original>
